<compile_context>
chip_gen: v7x
topology: tpu7x:2x2x1
jax: 0.10.0
libtpu: 0.0.40
codegen_flags: <defaults>
</compile_context>

<pallas_src>
import functools

import jax
import jax.numpy as jnp
from jax.experimental import pallas as pl
from jax.experimental.pallas import tpu as pltpu


# ---------------------------------------------------------------------------
# Kernel 1: fused conv stack (3 x [Conv2d(1x5) + ReLU + MaxPool(1x2)])
#   grid = (B,) with B = N*H independent rows (the 1x5 conv never mixes H).
# ---------------------------------------------------------------------------
def _conv_relu_pool(x, w_flat, bias, ktaps):
    """x: (W_in, Cin) f32 value, w_flat: (ktaps*Cin, Cout), bias: (1, Cout).

    Returns relu(maxpool_1x2(conv_1xk(x) + bias)) with shape (W_out//2, Cout),
    using only contiguous slices, lane concat and MXU dots (Mosaic + interpret safe).
    """
    w_in = x.shape[0]
    w_out = w_in - (ktaps - 1)
    wp = w_out // 2

    # im2col: fold the taps into the MXU contraction (K = ktaps*Cin).
    lhs = jnp.concatenate([x[t:t + w_out, :] for t in range(ktaps)], axis=1)
    y = jnp.dot(lhs, w_flat, preferred_element_type=jnp.float32)          # (W_out, Cout)

    # 1x2 max-pool via 0/1 row-selection matmuls (even / odd output columns).
    r = jax.lax.broadcasted_iota(jnp.int32, (wp, w_out), 0)
    c = jax.lax.broadcasted_iota(jnp.int32, (wp, w_out), 1)
    y_e = jnp.dot((c == 2 * r).astype(y.dtype), y, preferred_element_type=jnp.float32)
    y_o = jnp.dot((c == 2 * r + 1).astype(y.dtype), y, preferred_element_type=jnp.float32)

    # relu(maxpool(conv + b)) == relu(max(even, odd) + b)  (monotone, per-channel bias)
    return jnp.maximum(jnp.maximum(y_e, y_o) + bias, 0.0)


def _conv_stack_kernel(x_ref, w1_ref, b1_ref, w2_ref, b2_ref, w3_ref, b3_ref,
                       o_ref, *, ktaps):
    x = x_ref[...][0]                                            # (W_in, Cin)
    x = _conv_relu_pool(x, w1_ref[...], b1_ref[...], ktaps)      # (96, 128)
    x = _conv_relu_pool(x, w2_ref[...], b2_ref[...], ktaps)      # (46, 128)
    x = _conv_relu_pool(x, w3_ref[...], b3_ref[...], ktaps)      # (21, 256)
    o_ref[...] = x[None].astype(o_ref.dtype)


def conv_stack(x_bwc, w1f, b1, w2f, b2, w3f, b3, *, ktaps=5):
    """x_bwc: (B, W_in, Cin); w*f: flattened (ktaps*Cin, Cout) im2col conv weights."""
    B, W_in, Cin = x_bwc.shape
    K1, C1 = w1f.shape
    K2, C2 = w2f.shape
    K3, C3 = w3f.shape

    w = W_in
    for _ in range(3):
        w_out = w - (ktaps - 1)
        assert w_out % 2 == 0, "maxpool(1,2) expects an even conv output width"
        w = w_out // 2
    Wp3 = w

    kernel = functools.partial(_conv_stack_kernel, ktaps=ktaps)
    return pl.pallas_call(
        kernel,
        out_shape=jax.ShapeDtypeStruct((B, Wp3, C3), x_bwc.dtype),
        grid=(B,),
        in_specs=[
            pl.BlockSpec((1, W_in, Cin), lambda b: (b, 0, 0)),
            pl.BlockSpec((K1, C1), lambda b: (0, 0)),
            pl.BlockSpec((1, C1), lambda b: (0, 0)),
            pl.BlockSpec((K2, C2), lambda b: (0, 0)),
            pl.BlockSpec((1, C2), lambda b: (0, 0)),
            pl.BlockSpec((K3, C3), lambda b: (0, 0)),
            pl.BlockSpec((1, C3), lambda b: (0, 0)),
        ],
        out_specs=pl.BlockSpec((1, Wp3, C3), lambda b: (b, 0, 0)),
        compiler_params=pltpu.CompilerParams(dimension_semantics=("parallel",)),
    )(x_bwc, w1f, b1, w2f, b2, w3f, b3)


# ---------------------------------------------------------------------------
# Kernel 2: fused Linear(5376 -> 1024pad) + ReLU + Linear(1024pad -> classes) + LogSoftmax.
#   FC1 is tiled over the contraction dim K with a resident f32 VMEM accumulator;
#   the tiny FC2 + log-softmax run in the last-step epilogue.  wfc1 streams as bf16.
# ---------------------------------------------------------------------------
def _mlp_head_kernel(x_ref, w1_ref, b1_ref, w2_ref, b2_ref, o_ref, acc_ref):
    @pl.when(pl.program_id(0) == 0)
    def _():
        acc_ref[...] = jnp.zeros_like(acc_ref)

    # wfc1 streamed from HBM in bf16 (halves the dominant memory traffic);
    # the tiny activation tile is cast to match, accumulation stays f32.
    acc_ref[...] += jnp.dot(x_ref[...].astype(w1_ref.dtype), w1_ref[...],
                            preferred_element_type=jnp.float32)

    @pl.when(pl.program_id(0) == pl.num_programs(0) - 1)
    def _():
        h = jnp.maximum(acc_ref[...] + b1_ref[...], 0.0)                  # FC1 + ReLU
        logits = jnp.dot(h, w2_ref[...], preferred_element_type=jnp.float32) + b2_ref[...]
        m = jnp.max(logits, axis=-1, keepdims=True)
        s = logits - m
        lse = jnp.log(jnp.sum(jnp.exp(s), axis=-1, keepdims=True))
        o_ref[...] = (s - lse).astype(o_ref.dtype)


def mlp_head(x, w1, b1, w2, b2, *, tk):
    """log_softmax(relu(x @ w1 + b1) @ w2 + b2, axis=1), K-tiled over w1's rows."""
    N, K = x.shape
    _, Mp = w1.shape
    _, C = w2.shape
    assert K % tk == 0 and tk % 128 == 0
    return pl.pallas_call(
        _mlp_head_kernel,
        out_shape=jax.ShapeDtypeStruct((N, C), jnp.float32),
        grid=(K // tk,),
        in_specs=[
            pl.BlockSpec((N, tk), lambda k: (0, k)),
            pl.BlockSpec((tk, Mp), lambda k: (k, 0)),
            pl.BlockSpec((1, Mp), lambda k: (0, 0)),
            pl.BlockSpec((Mp, C), lambda k: (0, 0)),
            pl.BlockSpec((1, C), lambda k: (0, 0)),
        ],
        out_specs=pl.BlockSpec((N, C), lambda k: (0, 0)),
        scratch_shapes=[pltpu.VMEM((N, Mp), jnp.float32)],
        compiler_params=pltpu.CompilerParams(
            dimension_semantics=("arbitrary",),
            vmem_limit_bytes=32 * 1024 * 1024,
        ),
    )(x, w1, b1, w2, b2)
    # TODO(synk): on v7x the FC1 hidden dim could additionally be split across the
    # two TensorCores with a tiny cross-core combine before log-softmax.


# ---------------------------------------------------------------------------
# One-time parameter layout transforms (all mathematically exact except the
# optional bf16 cast of wfc1, whose accumulation stays f32).
# ---------------------------------------------------------------------------
def prepare_params(params, H, Wp_final, conv1_pad_to=128, fc_hidden_pad_to=1024):
    p = {}

    w1, b1 = params["w1"], params["b1"]
    w2, b2 = params["w2"], params["b2"]
    w3, b3 = params["w3"], params["b3"]

    # zero-pad conv1 Cout 64 -> 128 (lane-dense layer-1 output, full MXU depth in
    # layer 2) and zero-pad the matching conv2 input-channel rows.
    c1 = w1.shape[-1]
    if c1 < conv1_pad_to:
        pad = conv1_pad_to - c1
        w1 = jnp.pad(w1, ((0, 0), (0, 0), (0, pad)))
        b1 = jnp.pad(b1, ((0, 0), (0, pad)))
        w2 = jnp.pad(w2, ((0, 0), (0, pad), (0, 0)))

    # flatten conv weights to im2col layout (ktaps*Cin, Cout): row = t*Cin + c,
    # matching the kernel's concat-over-taps along the lane axis.
    def flat(w):
        k, cin, cout = w.shape
        return w.reshape(k * cin, cout)

    p["w1"], p["b1"] = flat(w1), b1
    p["w2"], p["b2"] = flat(w2), b2
    p["w3"], p["b3"] = flat(w3), b3

    # wfc1: re-order rows from torch's channel-major flatten (c, h, w) to the
    # natural (h, w, c) order produced by the conv kernel (no per-forward transpose).
    Cf = params["w3"].shape[-1]
    wfc1 = params["wfc1"]
    assert wfc1.shape[0] == Cf * H * Wp_final
    h_i = jnp.arange(H)[:, None, None]
    w_i = jnp.arange(Wp_final)[None, :, None]
    c_i = jnp.arange(Cf)[None, None, :]
    perm = (c_i * (H * Wp_final) + h_i * Wp_final + w_i).reshape(-1)
    wfc1 = wfc1[perm]

    # pad the FC hidden dim 1000 -> 1024 (zero cols / zero bias / zero wfc2 rows)
    # and store wfc1 in bf16: the head is HBM-bandwidth bound on this weight stream.
    M = wfc1.shape[1]
    pad = fc_hidden_pad_to - M
    p["wfc1"] = jnp.pad(wfc1, ((0, 0), (0, pad))).astype(jnp.bfloat16)
    p["bfc1"] = jnp.pad(params["bfc1"], ((0, 0), (0, pad)))
    p["wfc2"] = jnp.pad(params["wfc2"], ((0, pad), (0, 0)))
    p["bfc2"] = params["bfc2"]
    return p


# ---------------------------------------------------------------------------
# Full forward pass (glue = layout transposes/reshapes only; all math in kernels)
# ---------------------------------------------------------------------------
def cnn2d_forward(x_nchw, params):
    """`params` must already be run through prepare_params()."""
    N, C, H, W = x_nchw.shape
    # NCHW -> (B = N*H, W, C): the 1x5 conv / 1x2 pool never mix H -> rows independent.
    x = jnp.transpose(x_nchw, (0, 2, 3, 1)).reshape(N * H, W, C)

    feats = conv_stack(x, params["w1"], params["b1"], params["w2"], params["b2"],
                       params["w3"], params["b3"])                     # (N*H, 21, 256)

    # natural (h, w, c) flatten -- wfc1 rows were pre-permuted to this order.
    feats = feats.reshape(N, -1)                                       # (N, 5376)

    return mlp_head(feats, params["wfc1"], params["bfc1"],
                    params["wfc2"], params["bfc2"], tk=1792)


# ---------------------------------------------------------------------------
# Deterministic parameter init (shapes from CNN2D.__init__) + pure-JAX reference
# ---------------------------------------------------------------------------
def init_params(key, num_channels, classes):
    ks = jax.random.split(key, 5)

    def norm(k, shape, fan_in):
        return (jax.random.normal(k, shape, jnp.float32) / jnp.sqrt(fan_in)).astype(jnp.float32)

    return {
        # conv weights stored as (ktaps=5, Cin, Cout); biases as (1, Cout)
        "w1": norm(ks[0], (5, num_channels, 64), 5 * num_channels),
        "b1": jnp.full((1, 64), 0.01, jnp.float32),
        "w2": norm(ks[1], (5, 64, 128), 5 * 64),
        "b2": jnp.full((1, 128), 0.01, jnp.float32),
        "w3": norm(ks[2], (5, 128, 256), 5 * 128),
        "b3": jnp.full((1, 256), 0.01, jnp.float32),
        # Linear stored as (in_features, out_features); biases as (1, out)
        "wfc1": norm(ks[3], (5376, 1000), 5376),
        "bfc1": jnp.full((1, 1000), 0.01, jnp.float32),
        "wfc2": norm(ks[4], (1000, classes), 1000),
        "bfc2": jnp.zeros((1, classes), jnp.float32),
    }


def reference_forward(x_nchw, params):
    """Pure-JAX reference with the original (unpadded, torch-ordered) parameters."""
    x = jnp.transpose(x_nchw, (0, 2, 3, 1)).astype(jnp.float32)  # NHWC

    def conv_block(x, w, b):
        N, H, W, Cin = x.shape
        K, _, Cout = w.shape
        Wo = W - K + 1
        acc = jnp.zeros((N, H, Wo, Cout), jnp.float32)
        for t in range(K):
            acc = acc + jnp.einsum("nhwc,cd->nhwd", x[:, :, t:t + Wo, :], w[t])
        acc = jnp.maximum(acc + b.reshape(1, 1, 1, Cout), 0.0)
        Wp = Wo // 2
        return acc[:, :, :2 * Wp, :].reshape(N, H, Wp, 2, Cout).max(axis=3)

    x = conv_block(x, params["w1"], params["b1"])
    x = conv_block(x, params["w2"], params["b2"])
    x = conv_block(x, params["w3"], params["b3"])
    N, H, Wp, Cf = x.shape
    x = jnp.transpose(x, (0, 3, 1, 2)).reshape(N, Cf * H * Wp)   # torch channel-major flatten
    x = jnp.maximum(x @ params["wfc1"] + params["bfc1"], 0.0)
    logits = x @ params["wfc2"] + params["bfc2"]
    return jax.nn.log_softmax(logits, axis=1)


if __name__ == "__main__":
    # fc1 expects 5376 = 256 * H * W_final features, so with H=1 the input width must be
    # 196:  196 -conv-> 192 -pool-> 96 -conv-> 92 -pool-> 46 -conv-> 42 -pool-> 21.
    N, C, H, W = 2, 4, 1, 196
    classes = 4

    key = jax.random.PRNGKey(0)
    kx, kp = jax.random.split(key)
    x = jax.random.normal(kx, (N, C, H, W), jnp.float32)
    params = init_params(kp, C, classes)

    wp_final = W
    for _ in range(3):
        wp_final = (wp_final - 4) // 2                 # 196 -> 96 -> 46 -> 21
    prepared = prepare_params(params, H, wp_final)

    fwd = jax.jit(cnn2d_forward)
    out = jax.block_until_ready(fwd(x, prepared))
    ref = jax.block_until_ready(reference_forward(x, params))

    assert out.shape == (N, classes), out.shape
    assert jnp.allclose(out, ref, rtol=1e-2, atol=1e-2), (out, ref)
    print("KERNEL_OK")
</pallas_src>

<mosaic_0001>
module attributes {stable_mosaic.version = 11 : i64} {
  func.func @_conv_stack_kernel(%arg0: i32, %arg1: memref<1x196x4xf32, #tpu.memory_space<vmem>>, %arg2: memref<20x128xf32, #tpu.memory_space<vmem>>, %arg3: memref<1x128xf32, #tpu.memory_space<vmem>>, %arg4: memref<640x128xf32, #tpu.memory_space<vmem>>, %arg5: memref<1x128xf32, #tpu.memory_space<vmem>>, %arg6: memref<640x256xf32, #tpu.memory_space<vmem>>, %arg7: memref<1x256xf32, #tpu.memory_space<vmem>>, %arg8: memref<1x21x256xf32, #tpu.memory_space<vmem>>) attributes {dimension_semantics = [#tpu.dimension_semantics<parallel>], iteration_bounds = array<i64: 2>, scalar_prefetch = 0 : i64, scratch_operands = 0 : i64, tpu.core_type = #tpu.core_type<tc>, window_params = [{transform_indices = @transform_0, window_bounds = array<i64: 1, 196, 4>}, {pipeline_mode = #tpu.pipeline_mode<synchronous>, transform_indices = @transform_1, window_bounds = array<i64: 20, 128>}, {pipeline_mode = #tpu.pipeline_mode<synchronous>, transform_indices = @transform_2, window_bounds = array<i64: 1, 128>}, {pipeline_mode = #tpu.pipeline_mode<synchronous>, transform_indices = @transform_3, window_bounds = array<i64: 640, 128>}, {pipeline_mode = #tpu.pipeline_mode<synchronous>, transform_indices = @transform_4, window_bounds = array<i64: 1, 128>}, {pipeline_mode = #tpu.pipeline_mode<synchronous>, transform_indices = @transform_5, window_bounds = array<i64: 640, 256>}, {pipeline_mode = #tpu.pipeline_mode<synchronous>, transform_indices = @transform_6, window_bounds = array<i64: 1, 256>}, {transform_indices = @transform_7, window_bounds = array<i64: 1, 21, 256>}]} {
    %c0 = arith.constant 0 : index
    %c0_0 = arith.constant 0 : index
    %c0_1 = arith.constant 0 : index
    %0 = vector.load %arg1[%c0, %c0_0, %c0_1] : memref<1x196x4xf32, #tpu.memory_space<vmem>>, vector<1x196x4xf32>
    %1 = vector.shape_cast %0 : vector<1x196x4xf32> to vector<196x4xf32>
    %c0_2 = arith.constant 0 : index
    %c0_3 = arith.constant 0 : index
    %2 = vector.load %arg2[%c0_2, %c0_3] : memref<20x128xf32, #tpu.memory_space<vmem>>, vector<20x128xf32>
    %c0_4 = arith.constant 0 : index
    %c0_5 = arith.constant 0 : index
    %3 = vector.load %arg3[%c0_4, %c0_5] : memref<1x128xf32, #tpu.memory_space<vmem>>, vector<1x128xf32>
    %4 = vector.extract_strided_slice %1 {offsets = [0, 0], sizes = [192, 4], strides = [1, 1]} : vector<196x4xf32> to vector<192x4xf32>
    %5 = vector.extract_strided_slice %1 {offsets = [1, 0], sizes = [192, 4], strides = [1, 1]} : vector<196x4xf32> to vector<192x4xf32>
    %6 = vector.extract_strided_slice %1 {offsets = [2, 0], sizes = [192, 4], strides = [1, 1]} : vector<196x4xf32> to vector<192x4xf32>
    %7 = vector.extract_strided_slice %1 {offsets = [3, 0], sizes = [192, 4], strides = [1, 1]} : vector<196x4xf32> to vector<192x4xf32>
    %8 = vector.extract_strided_slice %1 {offsets = [4, 0], sizes = [192, 4], strides = [1, 1]} : vector<196x4xf32> to vector<192x4xf32>
    %9 = tpu.concatenate %4, %5, %6, %7, %8 in 1 : vector<192x4xf32>, vector<192x4xf32>, vector<192x4xf32>, vector<192x4xf32>, vector<192x4xf32> -> vector<192x20xf32>
    %cst = arith.constant dense<0.000000e+00> : vector<192x128xf32>
    %10 = tpu.matmul %9, %2, %cst {dimension_numbers = #tpu.dot_dimension_numbers<[1], [0], [0], [1], [0, 0, 1, 1], [], []>} : vector<192x20xf32>, vector<20x128xf32>, vector<192x128xf32> -> vector<192x128xf32>
    %11 = tpu.iota {dimensions = array<i32: 0>} : vector<96x192xi32>
    %12 = tpu.iota {dimensions = array<i32: 1>} : vector<96x192xi32>
    %c2_i32 = arith.constant 2 : i32
    %13 = vector.broadcast %c2_i32 : i32 to vector<96x192xi32>
    %14 = arith.muli %13, %11 : vector<96x192xi32>
    %15 = arith.cmpi eq, %12, %14 : vector<96x192xi32>
    %16 = arith.extui %15 : vector<96x192xi1> to vector<96x192xi32>
    %17 = arith.sitofp %16 : vector<96x192xi32> to vector<96x192xf32>
    %cst_6 = arith.constant dense<0.000000e+00> : vector<96x128xf32>
    %18 = tpu.matmul %17, %10, %cst_6 {dimension_numbers = #tpu.dot_dimension_numbers<[1], [0], [0], [1], [0, 0, 1, 1], [], []>} : vector<96x192xf32>, vector<192x128xf32>, vector<96x128xf32> -> vector<96x128xf32>
    %c2_i32_7 = arith.constant 2 : i32
    %19 = vector.broadcast %c2_i32_7 : i32 to vector<96x192xi32>
    %20 = arith.muli %19, %11 : vector<96x192xi32>
    %c1_i32 = arith.constant 1 : i32
    %21 = vector.broadcast %c1_i32 : i32 to vector<96x192xi32>
    %22 = arith.addi %20, %21 : vector<96x192xi32>
    %23 = arith.cmpi eq, %12, %22 : vector<96x192xi32>
    %24 = arith.extui %23 : vector<96x192xi1> to vector<96x192xi32>
    %25 = arith.sitofp %24 : vector<96x192xi32> to vector<96x192xf32>
    %cst_8 = arith.constant dense<0.000000e+00> : vector<96x128xf32>
    %26 = tpu.matmul %25, %10, %cst_8 {dimension_numbers = #tpu.dot_dimension_numbers<[1], [0], [0], [1], [0, 0, 1, 1], [], []>} : vector<96x192xf32>, vector<192x128xf32>, vector<96x128xf32> -> vector<96x128xf32>
    %27 = arith.maximumf %18, %26 : vector<96x128xf32>
    %28 = vector.broadcast %3 : vector<1x128xf32> to vector<96x128xf32>
    %29 = arith.addf %27, %28 : vector<96x128xf32>
    %cst_9 = arith.constant 0.000000e+00 : f32
    %30 = vector.broadcast %cst_9 : f32 to vector<96x128xf32>
    %31 = arith.maximumf %29, %30 : vector<96x128xf32>
    %c0_10 = arith.constant 0 : index
    %c0_11 = arith.constant 0 : index
    %32 = vector.load %arg4[%c0_10, %c0_11] : memref<640x128xf32, #tpu.memory_space<vmem>>, vector<640x128xf32>
    %c0_12 = arith.constant 0 : index
    %c0_13 = arith.constant 0 : index
    %33 = vector.load %arg5[%c0_12, %c0_13] : memref<1x128xf32, #tpu.memory_space<vmem>>, vector<1x128xf32>
    %34 = vector.extract_strided_slice %31 {offsets = [0, 0], sizes = [92, 128], strides = [1, 1]} : vector<96x128xf32> to vector<92x128xf32>
    %35 = vector.extract_strided_slice %31 {offsets = [1, 0], sizes = [92, 128], strides = [1, 1]} : vector<96x128xf32> to vector<92x128xf32>
    %36 = vector.extract_strided_slice %31 {offsets = [2, 0], sizes = [92, 128], strides = [1, 1]} : vector<96x128xf32> to vector<92x128xf32>
    %37 = vector.extract_strided_slice %31 {offsets = [3, 0], sizes = [92, 128], strides = [1, 1]} : vector<96x128xf32> to vector<92x128xf32>
    %38 = vector.extract_strided_slice %31 {offsets = [4, 0], sizes = [92, 128], strides = [1, 1]} : vector<96x128xf32> to vector<92x128xf32>
    %39 = tpu.concatenate %34, %35, %36, %37, %38 in 1 : vector<92x128xf32>, vector<92x128xf32>, vector<92x128xf32>, vector<92x128xf32>, vector<92x128xf32> -> vector<92x640xf32>
    %cst_14 = arith.constant dense<0.000000e+00> : vector<92x128xf32>
    %40 = tpu.matmul %39, %32, %cst_14 {dimension_numbers = #tpu.dot_dimension_numbers<[1], [0], [0], [1], [0, 0, 1, 1], [], []>} : vector<92x640xf32>, vector<640x128xf32>, vector<92x128xf32> -> vector<92x128xf32>
    %41 = tpu.iota {dimensions = array<i32: 0>} : vector<46x92xi32>
    %42 = tpu.iota {dimensions = array<i32: 1>} : vector<46x92xi32>
    %c2_i32_15 = arith.constant 2 : i32
    %43 = vector.broadcast %c2_i32_15 : i32 to vector<46x92xi32>
    %44 = arith.muli %43, %41 : vector<46x92xi32>
    %45 = arith.cmpi eq, %42, %44 : vector<46x92xi32>
    %46 = arith.extui %45 : vector<46x92xi1> to vector<46x92xi32>
    %47 = arith.sitofp %46 : vector<46x92xi32> to vector<46x92xf32>
    %cst_16 = arith.constant dense<0.000000e+00> : vector<46x128xf32>
    %48 = tpu.matmul %47, %40, %cst_16 {dimension_numbers = #tpu.dot_dimension_numbers<[1], [0], [0], [1], [0, 0, 1, 1], [], []>} : vector<46x92xf32>, vector<92x128xf32>, vector<46x128xf32> -> vector<46x128xf32>
    %c2_i32_17 = arith.constant 2 : i32
    %49 = vector.broadcast %c2_i32_17 : i32 to vector<46x92xi32>
    %50 = arith.muli %49, %41 : vector<46x92xi32>
    %c1_i32_18 = arith.constant 1 : i32
    %51 = vector.broadcast %c1_i32_18 : i32 to vector<46x92xi32>
    %52 = arith.addi %50, %51 : vector<46x92xi32>
    %53 = arith.cmpi eq, %42, %52 : vector<46x92xi32>
    %54 = arith.extui %53 : vector<46x92xi1> to vector<46x92xi32>
    %55 = arith.sitofp %54 : vector<46x92xi32> to vector<46x92xf32>
    %cst_19 = arith.constant dense<0.000000e+00> : vector<46x128xf32>
    %56 = tpu.matmul %55, %40, %cst_19 {dimension_numbers = #tpu.dot_dimension_numbers<[1], [0], [0], [1], [0, 0, 1, 1], [], []>} : vector<46x92xf32>, vector<92x128xf32>, vector<46x128xf32> -> vector<46x128xf32>
    %57 = arith.maximumf %48, %56 : vector<46x128xf32>
    %58 = vector.broadcast %33 : vector<1x128xf32> to vector<46x128xf32>
    %59 = arith.addf %57, %58 : vector<46x128xf32>
    %cst_20 = arith.constant 0.000000e+00 : f32
    %60 = vector.broadcast %cst_20 : f32 to vector<46x128xf32>
    %61 = arith.maximumf %59, %60 : vector<46x128xf32>
    %c0_21 = arith.constant 0 : index
    %c0_22 = arith.constant 0 : index
    %62 = vector.load %arg6[%c0_21, %c0_22] : memref<640x256xf32, #tpu.memory_space<vmem>>, vector<640x256xf32>
    %c0_23 = arith.constant 0 : index
    %c0_24 = arith.constant 0 : index
    %63 = vector.load %arg7[%c0_23, %c0_24] : memref<1x256xf32, #tpu.memory_space<vmem>>, vector<1x256xf32>
    %64 = vector.extract_strided_slice %61 {offsets = [0, 0], sizes = [42, 128], strides = [1, 1]} : vector<46x128xf32> to vector<42x128xf32>
    %65 = vector.extract_strided_slice %61 {offsets = [1, 0], sizes = [42, 128], strides = [1, 1]} : vector<46x128xf32> to vector<42x128xf32>
    %66 = vector.extract_strided_slice %61 {offsets = [2, 0], sizes = [42, 128], strides = [1, 1]} : vector<46x128xf32> to vector<42x128xf32>
    %67 = vector.extract_strided_slice %61 {offsets = [3, 0], sizes = [42, 128], strides = [1, 1]} : vector<46x128xf32> to vector<42x128xf32>
    %68 = vector.extract_strided_slice %61 {offsets = [4, 0], sizes = [42, 128], strides = [1, 1]} : vector<46x128xf32> to vector<42x128xf32>
    %69 = tpu.concatenate %64, %65, %66, %67, %68 in 1 : vector<42x128xf32>, vector<42x128xf32>, vector<42x128xf32>, vector<42x128xf32>, vector<42x128xf32> -> vector<42x640xf32>
    %cst_25 = arith.constant dense<0.000000e+00> : vector<42x256xf32>
    %70 = tpu.matmul %69, %62, %cst_25 {dimension_numbers = #tpu.dot_dimension_numbers<[1], [0], [0], [1], [0, 0, 1, 1], [], []>} : vector<42x640xf32>, vector<640x256xf32>, vector<42x256xf32> -> vector<42x256xf32>
    %71 = tpu.iota {dimensions = array<i32: 0>} : vector<21x42xi32>
    %72 = tpu.iota {dimensions = array<i32: 1>} : vector<21x42xi32>
    %c2_i32_26 = arith.constant 2 : i32
    %73 = vector.broadcast %c2_i32_26 : i32 to vector<21x42xi32>
    %74 = arith.muli %73, %71 : vector<21x42xi32>
    %75 = arith.cmpi eq, %72, %74 : vector<21x42xi32>
    %76 = arith.extui %75 : vector<21x42xi1> to vector<21x42xi32>
    %77 = arith.sitofp %76 : vector<21x42xi32> to vector<21x42xf32>
    %cst_27 = arith.constant dense<0.000000e+00> : vector<21x256xf32>
    %78 = tpu.matmul %77, %70, %cst_27 {dimension_numbers = #tpu.dot_dimension_numbers<[1], [0], [0], [1], [0, 0, 1, 1], [], []>} : vector<21x42xf32>, vector<42x256xf32>, vector<21x256xf32> -> vector<21x256xf32>
    %c2_i32_28 = arith.constant 2 : i32
    %79 = vector.broadcast %c2_i32_28 : i32 to vector<21x42xi32>
    %80 = arith.muli %79, %71 : vector<21x42xi32>
    %c1_i32_29 = arith.constant 1 : i32
    %81 = vector.broadcast %c1_i32_29 : i32 to vector<21x42xi32>
    %82 = arith.addi %80, %81 : vector<21x42xi32>
    %83 = arith.cmpi eq, %72, %82 : vector<21x42xi32>
    %84 = arith.extui %83 : vector<21x42xi1> to vector<21x42xi32>
    %85 = arith.sitofp %84 : vector<21x42xi32> to vector<21x42xf32>
    %cst_30 = arith.constant dense<0.000000e+00> : vector<21x256xf32>
    %86 = tpu.matmul %85, %70, %cst_30 {dimension_numbers = #tpu.dot_dimension_numbers<[1], [0], [0], [1], [0, 0, 1, 1], [], []>} : vector<21x42xf32>, vector<42x256xf32>, vector<21x256xf32> -> vector<21x256xf32>
    %87 = arith.maximumf %78, %86 : vector<21x256xf32>
    %88 = vector.broadcast %63 : vector<1x256xf32> to vector<21x256xf32>
    %89 = arith.addf %87, %88 : vector<21x256xf32>
    %cst_31 = arith.constant 0.000000e+00 : f32
    %90 = vector.broadcast %cst_31 : f32 to vector<21x256xf32>
    %91 = arith.maximumf %89, %90 : vector<21x256xf32>
    %92 = vector.shape_cast %91 : vector<21x256xf32> to vector<1x21x256xf32>
    %c0_32 = arith.constant 0 : index
    %c0_33 = arith.constant 0 : index
    %c0_34 = arith.constant 0 : index
    %93 = vector.load %arg8[%c0_32, %c0_33, %c0_34] : memref<1x21x256xf32, #tpu.memory_space<vmem>>, vector<1x21x256xf32>
    tpu.vector_store %arg8[%c0_32, %c0_33, %c0_34], %92 {strides = array<i32>} : memref<1x21x256xf32, #tpu.memory_space<vmem>>, vector<1x21x256xf32>,
    return
  }
  func.func @transform_0(%arg0: i32) -> (i32, i32, i32) {
    %c0_i32 = arith.constant 0 : i32
    %c0_i32_0 = arith.constant 0 : i32
    %c0_i32_1 = arith.constant 0 : i32
    return %arg0, %c0_i32, %c0_i32_0 : i32, i32, i32
  }
  func.func @transform_1(%arg0: i32) -> (i32, i32) {
    %c0_i32 = arith.constant 0 : i32
    %c0_i32_0 = arith.constant 0 : i32
    %c0_i32_1 = arith.constant 0 : i32
    return %c0_i32, %c0_i32_0 : i32, i32
  }
  func.func @transform_2(%arg0: i32) -> (i32, i32) {
    %c0_i32 = arith.constant 0 : i32
    %c0_i32_0 = arith.constant 0 : i32
    %c0_i32_1 = arith.constant 0 : i32
    return %c0_i32, %c0_i32_0 : i32, i32
  }
  func.func @transform_3(%arg0: i32) -> (i32, i32) {
    %c0_i32 = arith.constant 0 : i32
    %c0_i32_0 = arith.constant 0 : i32
    %c0_i32_1 = arith.constant 0 : i32
    return %c0_i32, %c0_i32_0 : i32, i32
  }
  func.func @transform_4(%arg0: i32) -> (i32, i32) {
    %c0_i32 = arith.constant 0 : i32
    %c0_i32_0 = arith.constant 0 : i32
    %c0_i32_1 = arith.constant 0 : i32
    return %c0_i32, %c0_i32_0 : i32, i32
  }
  func.func @transform_5(%arg0: i32) -> (i32, i32) {
    %c0_i32 = arith.constant 0 : i32
    %c0_i32_0 = arith.constant 0 : i32
    %c0_i32_1 = arith.constant 0 : i32
    return %c0_i32, %c0_i32_0 : i32, i32
  }
  func.func @transform_6(%arg0: i32) -> (i32, i32) {
    %c0_i32 = arith.constant 0 : i32
    %c0_i32_0 = arith.constant 0 : i32
    %c0_i32_1 = arith.constant 0 : i32
    return %c0_i32, %c0_i32_0 : i32, i32
  }
  func.func @transform_7(%arg0: i32) -> (i32, i32, i32) {
    %c0_i32 = arith.constant 0 : i32
    %c0_i32_0 = arith.constant 0 : i32
    %c0_i32_1 = arith.constant 0 : i32
    return %arg0, %c0_i32, %c0_i32_0 : i32, i32, i32
  }
}

module attributes {stable_mosaic.version = 11 : i64} {
  func.func @_mlp_head_kernel(%arg0: i32, %arg1: memref<2x1792xf32, #tpu.memory_space<vmem>>, %arg2: memref<1792x1024xbf16, #tpu.memory_space<vmem>>, %arg3: memref<1x1024xf32, #tpu.memory_space<vmem>>, %arg4: memref<1024x4xf32, #tpu.memory_space<vmem>>, %arg5: memref<1x4xf32, #tpu.memory_space<vmem>>, %arg6: memref<2x4xf32, #tpu.memory_space<vmem>>, %arg7: memref<2x1024xf32, #tpu.memory_space<vmem>>) attributes {dimension_semantics = [#tpu.dimension_semantics<arbitrary>], iteration_bounds = array<i64: 3>, scalar_prefetch = 0 : i64, scratch_operands = 1 : i64, tpu.core_type = #tpu.core_type<tc>, window_params = [{transform_indices = @transform_0, window_bounds = array<i64: 2, 1792>}, {transform_indices = @transform_1, window_bounds = array<i64: 1792, 1024>}, {pipeline_mode = #tpu.pipeline_mode<synchronous>, transform_indices = @transform_2, window_bounds = array<i64: 1, 1024>}, {pipeline_mode = #tpu.pipeline_mode<synchronous>, transform_indices = @transform_3, window_bounds = array<i64: 1024, 4>}, {pipeline_mode = #tpu.pipeline_mode<synchronous>, transform_indices = @transform_4, window_bounds = array<i64: 1, 4>}, {pipeline_mode = #tpu.pipeline_mode<synchronous>, transform_indices = @transform_5, window_bounds = array<i64: 2, 4>}]} {
    %c0_i32 = arith.constant 0 : i32
    %0 = arith.cmpi eq, %arg0, %c0_i32 : i32
    %1 = arith.extui %0 : i1 to i32
    %c0_i32_0 = arith.constant 0 : i32
    %2 = arith.cmpi ne, %1, %c0_i32_0 : i32
    scf.if %2 {
      %cst_9 = arith.constant 0.000000e+00 : f32
      %13 = vector.broadcast %cst_9 : f32 to vector<2x1024xf32>
      %c0_10 = arith.constant 0 : index
      %c0_11 = arith.constant 0 : index
      %14 = vector.load %arg7[%c0_10, %c0_11] : memref<2x1024xf32, #tpu.memory_space<vmem>>, vector<2x1024xf32>
      tpu.vector_store %arg7[%c0_10, %c0_11], %13 {strides = array<i32>} : memref<2x1024xf32, #tpu.memory_space<vmem>>, vector<2x1024xf32>,
    } else {
    }
    %c0 = arith.constant 0 : index
    %c0_1 = arith.constant 0 : index
    %3 = vector.load %arg7[%c0, %c0_1] : memref<2x1024xf32, #tpu.memory_space<vmem>>, vector<2x1024xf32>
    %c0_2 = arith.constant 0 : index
    %c0_3 = arith.constant 0 : index
    %4 = vector.load %arg1[%c0_2, %c0_3] : memref<2x1792xf32, #tpu.memory_space<vmem>>, vector<2x1792xf32>
    %5 = arith.truncf %4 : vector<2x1792xf32> to vector<2x1792xbf16>
    %c0_4 = arith.constant 0 : index
    %c0_5 = arith.constant 0 : index
    %6 = vector.load %arg2[%c0_4, %c0_5] : memref<1792x1024xbf16, #tpu.memory_space<vmem>>, vector<1792x1024xbf16>
    %cst = arith.constant dense<0.000000e+00> : vector<2x1024xf32>
    %7 = tpu.matmul %5, %6, %cst {dimension_numbers = #tpu.dot_dimension_numbers<[1], [0], [0], [1], [0, 0, 1, 1], [], []>} : vector<2x1792xbf16>, vector<1792x1024xbf16>, vector<2x1024xf32> -> vector<2x1024xf32>
    %8 = arith.addf %3, %7 : vector<2x1024xf32>
    %c0_6 = arith.constant 0 : index
    %c0_7 = arith.constant 0 : index
    %9 = vector.load %arg7[%c0_6, %c0_7] : memref<2x1024xf32, #tpu.memory_space<vmem>>, vector<2x1024xf32>
    tpu.vector_store %arg7[%c0_6, %c0_7], %8 {strides = array<i32>} : memref<2x1024xf32, #tpu.memory_space<vmem>>, vector<2x1024xf32>,
    %c2_i32 = arith.constant 2 : i32
    %10 = arith.cmpi eq, %arg0, %c2_i32 : i32
    %11 = arith.extui %10 : i1 to i32
    %c0_i32_8 = arith.constant 0 : i32
    %12 = arith.cmpi ne, %11, %c0_i32_8 : i32
    scf.if %12 {
      %c0_9 = arith.constant 0 : index
      %c0_10 = arith.constant 0 : index
      %13 = vector.load %arg7[%c0_9, %c0_10] : memref<2x1024xf32, #tpu.memory_space<vmem>>, vector<2x1024xf32>
      %c0_11 = arith.constant 0 : index
      %c0_12 = arith.constant 0 : index
      %14 = vector.load %arg3[%c0_11, %c0_12] : memref<1x1024xf32, #tpu.memory_space<vmem>>, vector<1x1024xf32>
      %15 = vector.broadcast %14 : vector<1x1024xf32> to vector<2x1024xf32>
      %16 = arith.addf %13, %15 : vector<2x1024xf32>
      %cst_13 = arith.constant 0.000000e+00 : f32
      %17 = vector.broadcast %cst_13 : f32 to vector<2x1024xf32>
      %18 = arith.maximumf %16, %17 : vector<2x1024xf32>
      %c0_14 = arith.constant 0 : index
      %c0_15 = arith.constant 0 : index
      %19 = vector.load %arg4[%c0_14, %c0_15] : memref<1024x4xf32, #tpu.memory_space<vmem>>, vector<1024x4xf32>
      %cst_16 = arith.constant dense<0.000000e+00> : vector<2x4xf32>
      %20 = tpu.matmul %18, %19, %cst_16 {dimension_numbers = #tpu.dot_dimension_numbers<[1], [0], [0], [1], [0, 0, 1, 1], [], []>} : vector<2x1024xf32>, vector<1024x4xf32>, vector<2x4xf32> -> vector<2x4xf32>
      %c0_17 = arith.constant 0 : index
      %c0_18 = arith.constant 0 : index
      %21 = vector.load %arg5[%c0_17, %c0_18] : memref<1x4xf32, #tpu.memory_space<vmem>>, vector<1x4xf32>
      %22 = vector.broadcast %21 : vector<1x4xf32> to vector<2x4xf32>
      %23 = arith.addf %20, %22 : vector<2x4xf32>
      %cst_19 = arith.constant dense<0xFF800000> : vector<2xf32>
      %24 = vector.multi_reduction <maximumf>, %23, %cst_19 [1] : vector<2x4xf32> to vector<2xf32>
      %25 = vector.shape_cast %24 : vector<2xf32> to vector<2x1xf32>
      %26 = vector.broadcast %25 : vector<2x1xf32> to vector<2x4xf32>
      %27 = arith.subf %23, %26 : vector<2x4xf32>
      %28 = math.exp %27 : vector<2x4xf32>
      %cst_20 = arith.constant dense<0.000000e+00> : vector<2xf32>
      %29 = vector.multi_reduction <add>, %28, %cst_20 [1] : vector<2x4xf32> to vector<2xf32>
      %30 = vector.shape_cast %29 : vector<2xf32> to vector<2x1xf32>
      %31 = math.log %30 : vector<2x1xf32>
      %32 = vector.broadcast %31 : vector<2x1xf32> to vector<2x4xf32>
      %33 = arith.subf %27, %32 : vector<2x4xf32>
      %c0_21 = arith.constant 0 : index
      %c0_22 = arith.constant 0 : index
      %34 = vector.load %arg6[%c0_21, %c0_22] : memref<2x4xf32, #tpu.memory_space<vmem>>, vector<2x4xf32>
      tpu.vector_store %arg6[%c0_21, %c0_22], %33 {strides = array<i32>} : memref<2x4xf32, #tpu.memory_space<vmem>>, vector<2x4xf32>,
    } else {
    }
    return
  }
  func.func @transform_0(%arg0: i32) -> (i32, i32) {
    %c0_i32 = arith.constant 0 : i32
    %c0_i32_0 = arith.constant 0 : i32
    return %c0_i32, %arg0 : i32, i32
  }
  func.func @transform_1(%arg0: i32) -> (i32, i32) {
    %c0_i32 = arith.constant 0 : i32
    %c0_i32_0 = arith.constant 0 : i32
    return %arg0, %c0_i32 : i32, i32
  }
  func.func @transform_2(%arg0: i32) -> (i32, i32) {
    %c0_i32 = arith.constant 0 : i32
    %c0_i32_0 = arith.constant 0 : i32
    %c0_i32_1 = arith.constant 0 : i32
    return %c0_i32, %c0_i32_0 : i32, i32
  }
  func.func @transform_3(%arg0: i32) -> (i32, i32) {
    %c0_i32 = arith.constant 0 : i32
    %c0_i32_0 = arith.constant 0 : i32
    %c0_i32_1 = arith.constant 0 : i32
    return %c0_i32, %c0_i32_0 : i32, i32
  }
  func.func @transform_4(%arg0: i32) -> (i32, i32) {
    %c0_i32 = arith.constant 0 : i32
    %c0_i32_0 = arith.constant 0 : i32
    %c0_i32_1 = arith.constant 0 : i32
    return %c0_i32, %c0_i32_0 : i32, i32
  }
  func.func @transform_5(%arg0: i32) -> (i32, i32) {
    %c0_i32 = arith.constant 0 : i32
    %c0_i32_0 = arith.constant 0 : i32
    %c0_i32_1 = arith.constant 0 : i32
    return %c0_i32, %c0_i32_0 : i32, i32
  }
}

</mosaic_0001>

<llo_original>
// kernel: cnn2d_forward.2
$region0: #{cnn2d_forward.2}
  #allocation0 [shape = 'u32[]', space=smem, size = 0x4, offset = 0x4, fixed_abs, tag = 'smem constant byte address 0x4 - core index']
  #allocation1 [shape = 'u32[144,128]{1,0:T(1,128)}', space=vmem, size = 0x12000, scoped, tag = 'internal scratch']
  %s0 = inlined_call_operand.vmem [shape: f32[2,196,4], index: 0, kind: input, shape index: {}]
  %s1 = inlined_call_operand.hbm [shape: f32[20,128], index: 1, kind: input, shape index: {}]
  %s2 = inlined_call_operand.hbm [shape: f32[1,128], index: 2, kind: input, shape index: {}]
  %s3 = inlined_call_operand.hbm [shape: f32[640,128], index: 3, kind: input, shape index: {}]
  %s4 = inlined_call_operand.hbm [shape: f32[1,128], index: 4, kind: input, shape index: {}]
  %s5 = inlined_call_operand.hbm [shape: f32[640,256], index: 5, kind: input, shape index: {}]
  %s6 = inlined_call_operand.hbm [shape: f32[1,256], index: 6, kind: input, shape index: {}]
  %s7 = inlined_call_operand.vmem [shape: f32[2,21,256], index: 7, kind: output, shape index: {}]
  %s8 = sld [smem:[#allocation0]]
  $region85: #{cnn2d_forward.2} parent=0
    _
  %s10 = ssub.s32 1, %s8
  %s11 = scalar_select 0, %s10, %s8
  $region1: #{cnn2d_forward.2} parent=0
    #allocation2 [shape = 'u8[12288]{0}', space=vmem, size = 0x3000, scoped, tag = 'input window, operand 1, single buffered']
    #allocation3 [shape = 's32[2]{0}', space=sflag, size = 0x8, scoped, tag = 'scoped memory for cnn2d_forward.2']
    #allocation4 [shape = 'u8[512]{0}', space=vmem, size = 0x400, scoped, tag = 'input window, operand 2, single buffered']
    #allocation5 [shape = 's32[1]{0}', space=sflag, size = 0x4, scoped, tag = 'scoped memory for cnn2d_forward.2']
    #allocation6 [shape = 'u8[327680]{0}', space=vmem, size = 0x50000, scoped, tag = 'input window, operand 3, single buffered']
    #allocation7 [shape = 'u8[512]{0}', space=vmem, size = 0x400, scoped, tag = 'input window, operand 4, single buffered']
    #allocation8 [shape = 's32[1]{0}', space=sflag, size = 0x4, scoped, tag = 'scoped memory for cnn2d_forward.2']
    #allocation9 [shape = 'u8[655360]{0}', space=vmem, size = 0xa0000, scoped, tag = 'input window, operand 5, single buffered']
    #allocation10 [shape = 'u8[1024]{0}', space=vmem, size = 0x400, scoped, tag = 'input window, operand 6, single buffered']
    #allocation11 [shape = 's32[1]{0}', space=sflag, size = 0x4, scoped, tag = 'scoped memory for cnn2d_forward.2']
    %12 = vsyncpa [#allocation3], 0
    %13 = vsyncpa [#allocation5], 0
    %14 = vsyncpa [#allocation8], 0
    %15 = vsyncpa [#allocation11], 0
    loop: start=0, step=1, limit=4
    $region2: #{cnn2d_forward.2} parent=1 // loop_pre_header
      _
    $region3: #{cnn2d_forward.2} parent=1 // loop_header
      %s17 = sphi 0, %s21
      %p18 = scmp.ge.s32.totalorder %s17, 4
      %s27 = sphi 0, %s29
      %s30 = sphi 0, %s27
      %s31 = sphi 0, %s30
      %s47 = sphi 0, %s31
      %s51 = sphi 0, %s51
      %s53 = sphi 0, %s51
      %s54 = sphi 0, %s53
      %s68 = sphi 0, %s54
      %s72 = sphi 0, %s72
      %s74 = sphi 0, %s72
      %s75 = sphi 0, %s74
      %s89 = sphi 0, %s75
      %s93 = sphi 0, %s93
      %s95 = sphi 0, %s93
      %s96 = sphi 0, %s95
      %s110 = sphi 0, %s96
      %s114 = sphi 0, %s114
      %s116 = sphi 0, %s114
      %s117 = sphi 0, %s116
      %s131 = sphi 0, %s117
      %s135 = sphi 0, %s135
      %s137 = sphi 0, %s135
      %s138 = sphi 0, %s137
      %s152 = sphi 0, %s138
      %s156 = sphi 0, %s156
      %s158 = sphi 0, %s156
      %s159 = sphi 0, %s158
      %s173 = sphi 0, %s159
      %s179 = sphi 0, %s181
      %s182 = sphi 0, %s179
      %s183 = sphi 0, %s182
      %s199 = sphi 0, %s183
    $region4: #{cnn2d_forward.2} parent=1 // loop_header_branch
      %20 = sbr.rel (%p18) target = $region8
    $region5: #{cnn2d_forward.2} parent=1 // loop_body
      %s22 = ssub.s32 %s17, 1
      %s23 = ssub.s32 %s17, 2
      %s24 = sadd.s32 %s17, 1
      %s25 = ssub.s32 %s17, %s24
      %p26 = scmp.eq.s32.totalorder %s25, 0
      %s28 = sadd.s32 %s27, 1
      %s29 = scalar_select %p26, %s27, %s28
      %p32 = pneg %p26
      %p33 = scmp.eq.s32.totalorder %s17, 1
      %p34 = por %p32, %p33
      %p35 = scmp.ne.s32.totalorder %s27, %s30
      %p36 = scmp.eq.s32.totalorder %s17, 0
      %p37 = por %p35, %p36
      %p38 = scmp.ne.s32.totalorder %s27, %s30
      %p39 = scmp.eq.s32.totalorder %s22, 1
      %p40 = por %p38, %p39
      %p41 = scmp.ne.s32.totalorder %s30, %s31
      %p42 = scmp.eq.s32.totalorder %s22, 0
      %p43 = por %p41, %p42
      %p44 = scmp.ne.s32.totalorder %s30, %s31
      %p45 = scmp.eq.s32.totalorder %s23, 1
      %p46 = por %p44, %p45
      %p48 = scmp.ne.s32.totalorder %s31, %s47
      %p49 = scmp.eq.s32.totalorder %s23, 0
      %p50 = por %p48, %p49
      %s52 = sadd.s32 %s51, 1
      %p55 = scmp.eq.s32.totalorder %s17, 1
      %p56 = scmp.ne.s32.totalorder %s51, %s53
      %p57 = scmp.eq.s32.totalorder %s17, 0
      %p58 = por %p56, %p57
      %p59 = scmp.ne.s32.totalorder %s51, %s53
      %p60 = scmp.eq.s32.totalorder %s22, 1
      %p61 = por %p59, %p60
      %p62 = scmp.ne.s32.totalorder %s53, %s54
      %p63 = scmp.eq.s32.totalorder %s22, 0
      %p64 = por %p62, %p63
      %p65 = scmp.ne.s32.totalorder %s53, %s54
      %p66 = scmp.eq.s32.totalorder %s23, 1
      %p67 = por %p65, %p66
      %p69 = scmp.ne.s32.totalorder %s54, %s68
      %p70 = scmp.eq.s32.totalorder %s23, 0
      %p71 = por %p69, %p70
      %s73 = sadd.s32 %s72, 1
      %p76 = scmp.eq.s32.totalorder %s17, 1
      %p77 = scmp.ne.s32.totalorder %s72, %s74
      %p78 = scmp.eq.s32.totalorder %s17, 0
      %p79 = por %p77, %p78
      %p80 = scmp.ne.s32.totalorder %s72, %s74
      %p81 = scmp.eq.s32.totalorder %s22, 1
      %p82 = por %p80, %p81
      %p83 = scmp.ne.s32.totalorder %s74, %s75
      %p84 = scmp.eq.s32.totalorder %s22, 0
      %p85 = por %p83, %p84
      %p86 = scmp.ne.s32.totalorder %s74, %s75
      %p87 = scmp.eq.s32.totalorder %s23, 1
      %p88 = por %p86, %p87
      %p90 = scmp.ne.s32.totalorder %s75, %s89
      %p91 = scmp.eq.s32.totalorder %s23, 0
      %p92 = por %p90, %p91
      %s94 = sadd.s32 %s93, 1
      %p97 = scmp.eq.s32.totalorder %s17, 1
      %p98 = scmp.ne.s32.totalorder %s93, %s95
      %p99 = scmp.eq.s32.totalorder %s17, 0
      %p100 = por %p98, %p99
      %p101 = scmp.ne.s32.totalorder %s93, %s95
      %p102 = scmp.eq.s32.totalorder %s22, 1
      %p103 = por %p101, %p102
      %p104 = scmp.ne.s32.totalorder %s95, %s96
      %p105 = scmp.eq.s32.totalorder %s22, 0
      %p106 = por %p104, %p105
      %p107 = scmp.ne.s32.totalorder %s95, %s96
      %p108 = scmp.eq.s32.totalorder %s23, 1
      %p109 = por %p107, %p108
      %p111 = scmp.ne.s32.totalorder %s96, %s110
      %p112 = scmp.eq.s32.totalorder %s23, 0
      %p113 = por %p111, %p112
      %s115 = sadd.s32 %s114, 1
      %p118 = scmp.eq.s32.totalorder %s17, 1
      %p119 = scmp.ne.s32.totalorder %s114, %s116
      %p120 = scmp.eq.s32.totalorder %s17, 0
      %p121 = por %p119, %p120
      %p122 = scmp.ne.s32.totalorder %s114, %s116
      %p123 = scmp.eq.s32.totalorder %s22, 1
      %p124 = por %p122, %p123
      %p125 = scmp.ne.s32.totalorder %s116, %s117
      %p126 = scmp.eq.s32.totalorder %s22, 0
      %p127 = por %p125, %p126
      %p128 = scmp.ne.s32.totalorder %s116, %s117
      %p129 = scmp.eq.s32.totalorder %s23, 1
      %p130 = por %p128, %p129
      %p132 = scmp.ne.s32.totalorder %s117, %s131
      %p133 = scmp.eq.s32.totalorder %s23, 0
      %p134 = por %p132, %p133
      %s136 = sadd.s32 %s135, 1
      %p139 = scmp.eq.s32.totalorder %s17, 1
      %p140 = scmp.ne.s32.totalorder %s135, %s137
      %p141 = scmp.eq.s32.totalorder %s17, 0
      %p142 = por %p140, %p141
      %p143 = scmp.ne.s32.totalorder %s135, %s137
      %p144 = scmp.eq.s32.totalorder %s22, 1
      %p145 = por %p143, %p144
      %p146 = scmp.ne.s32.totalorder %s137, %s138
      %p147 = scmp.eq.s32.totalorder %s22, 0
      %p148 = por %p146, %p147
      %p149 = scmp.ne.s32.totalorder %s137, %s138
      %p150 = scmp.eq.s32.totalorder %s23, 1
      %p151 = por %p149, %p150
      %p153 = scmp.ne.s32.totalorder %s138, %s152
      %p154 = scmp.eq.s32.totalorder %s23, 0
      %p155 = por %p153, %p154
      %s157 = sadd.s32 %s156, 1
      %p160 = scmp.eq.s32.totalorder %s17, 1
      %p161 = scmp.ne.s32.totalorder %s156, %s158
      %p162 = scmp.eq.s32.totalorder %s17, 0
      %p163 = por %p161, %p162
      %p164 = scmp.ne.s32.totalorder %s156, %s158
      %p165 = scmp.eq.s32.totalorder %s22, 1
      %p166 = por %p164, %p165
      %p167 = scmp.ne.s32.totalorder %s158, %s159
      %p168 = scmp.eq.s32.totalorder %s22, 0
      %p169 = por %p167, %p168
      %p170 = scmp.ne.s32.totalorder %s158, %s159
      %p171 = scmp.eq.s32.totalorder %s23, 1
      %p172 = por %p170, %p171
      %p174 = scmp.ne.s32.totalorder %s159, %s173
      %p175 = scmp.eq.s32.totalorder %s23, 0
      %p176 = por %p174, %p175
      %s177 = ssub.s32 %s17, %s24
      %p178 = scmp.eq.s32.totalorder %s177, 0
      %s180 = sadd.s32 %s179, 1
      %s181 = scalar_select %p178, %s179, %s180
      %p184 = pneg %p178
      %p185 = scmp.eq.s32.totalorder %s17, 1
      %p186 = por %p184, %p185
      %p187 = scmp.ne.s32.totalorder %s179, %s182
      %p188 = scmp.eq.s32.totalorder %s17, 0
      %p189 = por %p187, %p188
      %p190 = scmp.ne.s32.totalorder %s179, %s182
      %p191 = scmp.eq.s32.totalorder %s22, 1
      %p192 = por %p190, %p191
      %p193 = scmp.ne.s32.totalorder %s182, %s183
      %p194 = scmp.eq.s32.totalorder %s22, 0
      %p195 = por %p193, %p194
      %p196 = scmp.ne.s32.totalorder %s182, %s183
      %p197 = scmp.eq.s32.totalorder %s23, 1
      %p198 = por %p196, %p197
      %p200 = scmp.ne.s32.totalorder %s183, %s199
      %p201 = scmp.eq.s32.totalorder %s23, 0
      %p202 = por %p200, %p201
      %p203 = scmp.le.s32.totalorder 1, %s17
      %p204 = scmp.lt.s32.totalorder %s17, 3
      %p205 = pnand %p203, %p204
      %p206 = pneg %p205
      // Predicated region
      $region9: #{cnn2d_forward.2} parent=5 // pred_check
        _
      $region10: #{cnn2d_forward.2} parent=5 // pred_check_branch
        %208 = sbr.rel (%p205) target = $region12
      $region11: #{cnn2d_forward.2} parent=5 // pred_region
        %s209 = ssub.s32 %s17, 1
        // Predicated region
        $region13: #{cnn2d_forward.2} parent=11 // pred_check
          %p210 = pneg %p64
        $region14: #{cnn2d_forward.2} parent=11 // pred_check_branch
          %212 = sbr.rel (%p210) target = $region16
        $region15: #{cnn2d_forward.2} parent=11 // pred_region
          %s214 = ssub.s32 384, 384
          %215 = vsyncadd [#allocation3], %s214
          %s216 = sshll.u32 [#allocation2], 4
          %s217 = int_to_ptr.vmem [resolvable:$true] %s216
          %222 = dma.hbm_to_vmem [thread:$0]  %s1, 384, %s217, [#allocation3], 128, 128, 8
        $region16: #{cnn2d_forward.2} parent=11 // pred_fallthru
          _
        // Predicated region
        $region17: #{cnn2d_forward.2} parent=11 // pred_check
          %p223 = pneg %p85
        $region18: #{cnn2d_forward.2} parent=11 // pred_check_branch
          %225 = sbr.rel (%p223) target = $region20
        $region19: #{cnn2d_forward.2} parent=11 // pred_region
          %s227 = ssub.s32 16, 16
          %228 = vsyncadd [#allocation5], %s227
          %s230 = sshll.u32 [#allocation4], 4
          %s231 = int_to_ptr.vmem [resolvable:$true] %s230
          %233 = dma.hbm_to_vmem [thread:$0]  %s2, 16, %s231, [#allocation5]
        $region20: #{cnn2d_forward.2} parent=11 // pred_fallthru
          _
        // Predicated region
        $region21: #{cnn2d_forward.2} parent=11 // pred_check
          %p234 = pneg %p106
        $region22: #{cnn2d_forward.2} parent=11 // pred_check_branch
          %236 = sbr.rel (%p234) target = $region24
        $region23: #{cnn2d_forward.2} parent=11 // pred_region
          %s238 = ssub.s32 10240, 10240
          %239 = vsyncadd [#allocation5], %s238
          %s240 = sshll.u32 [#allocation6], 4
          %s241 = int_to_ptr.vmem [resolvable:$true] %s240
          %246 = dma.hbm_to_vmem [thread:$0]  %s3, 10240, %s241, [#allocation5], 128, 128, 8
        $region24: #{cnn2d_forward.2} parent=11 // pred_fallthru
          _
        // Predicated region
        $region25: #{cnn2d_forward.2} parent=11 // pred_check
          %p247 = pneg %p127
        $region26: #{cnn2d_forward.2} parent=11 // pred_check_branch
          %249 = sbr.rel (%p247) target = $region28
        $region27: #{cnn2d_forward.2} parent=11 // pred_region
          %s251 = ssub.s32 16, 16
          %252 = vsyncadd [#allocation8], %s251
          %s254 = sshll.u32 [#allocation7], 4
          %s255 = int_to_ptr.vmem [resolvable:$true] %s254
          %257 = dma.hbm_to_vmem [thread:$0]  %s4, 16, %s255, [#allocation8]
        $region28: #{cnn2d_forward.2} parent=11 // pred_fallthru
          _
        // Predicated region
        $region29: #{cnn2d_forward.2} parent=11 // pred_check
          %p258 = pneg %p148
        $region30: #{cnn2d_forward.2} parent=11 // pred_check_branch
          %260 = sbr.rel (%p258) target = $region32
        $region31: #{cnn2d_forward.2} parent=11 // pred_region
          %s262 = ssub.s32 20480, 20480
          %263 = vsyncadd [#allocation8], %s262
          %s264 = sshll.u32 [#allocation9], 4
          %s265 = int_to_ptr.vmem [resolvable:$true] %s264
          %270 = dma.hbm_to_vmem [thread:$0]  %s5, 20480, %s265, [#allocation8], 256, 256, 16
        $region32: #{cnn2d_forward.2} parent=11 // pred_fallthru
          _
        // Predicated region
        $region33: #{cnn2d_forward.2} parent=11 // pred_check
          %p271 = pneg %p169
        $region34: #{cnn2d_forward.2} parent=11 // pred_check_branch
          %273 = sbr.rel (%p271) target = $region36
        $region35: #{cnn2d_forward.2} parent=11 // pred_region
          %s275 = ssub.s32 32, 32
          %276 = vsyncadd [#allocation11], %s275
          %s278 = sshll.u32 [#allocation10], 4
          %s279 = int_to_ptr.vmem [resolvable:$true] %s278
          %281 = dma.hbm_to_vmem [thread:$0]  %s6, 32, %s279, [#allocation11]
        $region36: #{cnn2d_forward.2} parent=11 // pred_fallthru
          _
      $region12: #{cnn2d_forward.2} parent=5 // pred_fallthru
        _
      %p282 = scmp.lt.s32.totalorder %s17, 2
      // Predicated region
      $region37: #{cnn2d_forward.2} parent=5 // pred_check
        %p283 = pneg %p282
      $region38: #{cnn2d_forward.2} parent=5 // pred_check_branch
        %285 = sbr.rel (%p283) target = $region40
      $region39: #{cnn2d_forward.2} parent=5 // pred_region
        // Predicated region
        $region41: #{cnn2d_forward.2} parent=39 // pred_check
          %p286 = pneg %p37
        $region42: #{cnn2d_forward.2} parent=39 // pred_check_branch
          %288 = sbr.rel (%p286) target = $region44
        $region43: #{cnn2d_forward.2} parent=39 // pred_region
          %p289 = scmp.lt.s32.totalorder %s17, 1
          %s290 = scalar_select %p289, %s17, 1
          %s291 = smul.addr %s290, 25
          %s292 = smul.addr %s291, 8
          %s293 = scalar_lea.vmem %s0, %s292
        $region44: #{cnn2d_forward.2} parent=39 // pred_fallthru
          _
      $region40: #{cnn2d_forward.2} parent=5 // pred_fallthru
        _
      %p294 = scmp.le.s32.totalorder 1, %s17
      %p295 = scmp.lt.s32.totalorder %s17, 3
      %p296 = pnand %p294, %p295
      %p297 = pneg %p296
      // Predicated region
      $region45: #{cnn2d_forward.2} parent=5 // pred_check
        _
      $region46: #{cnn2d_forward.2} parent=5 // pred_check_branch
        %299 = sbr.rel (%p296) target = $region48
      $region47: #{cnn2d_forward.2} parent=5 // pred_region
        %s300 = ssub.s32 %s17, 1
        // Predicated region
        $region49: #{cnn2d_forward.2} parent=47 // pred_check
          %p301 = pneg %p64
        $region50: #{cnn2d_forward.2} parent=47 // pred_check_branch
          %303 = sbr.rel (%p301) target = $region52
        $region51: #{cnn2d_forward.2} parent=47 // pred_region
          %304 = dma.done [#allocation3], 384
        $region52: #{cnn2d_forward.2} parent=47 // pred_fallthru
          _
        // Predicated region
        $region53: #{cnn2d_forward.2} parent=47 // pred_check
          %p305 = pneg %p85
        $region54: #{cnn2d_forward.2} parent=47 // pred_check_branch
          %307 = sbr.rel (%p305) target = $region56
        $region55: #{cnn2d_forward.2} parent=47 // pred_region
          %308 = dma.done [#allocation5], 16
        $region56: #{cnn2d_forward.2} parent=47 // pred_fallthru
          _
        // Predicated region
        $region57: #{cnn2d_forward.2} parent=47 // pred_check
          %p309 = pneg %p106
        $region58: #{cnn2d_forward.2} parent=47 // pred_check_branch
          %311 = sbr.rel (%p309) target = $region60
        $region59: #{cnn2d_forward.2} parent=47 // pred_region
          %312 = dma.done [#allocation5], 10240
        $region60: #{cnn2d_forward.2} parent=47 // pred_fallthru
          _
        // Predicated region
        $region61: #{cnn2d_forward.2} parent=47 // pred_check
          %p313 = pneg %p127
        $region62: #{cnn2d_forward.2} parent=47 // pred_check_branch
          %315 = sbr.rel (%p313) target = $region64
        $region63: #{cnn2d_forward.2} parent=47 // pred_region
          %316 = dma.done [#allocation8], 16
        $region64: #{cnn2d_forward.2} parent=47 // pred_fallthru
          _
        // Predicated region
        $region65: #{cnn2d_forward.2} parent=47 // pred_check
          %p317 = pneg %p148
        $region66: #{cnn2d_forward.2} parent=47 // pred_check_branch
          %319 = sbr.rel (%p317) target = $region68
        $region67: #{cnn2d_forward.2} parent=47 // pred_region
          %320 = dma.done [#allocation8], 20480
        $region68: #{cnn2d_forward.2} parent=47 // pred_fallthru
          _
        // Predicated region
        $region69: #{cnn2d_forward.2} parent=47 // pred_check
          %p321 = pneg %p169
        $region70: #{cnn2d_forward.2} parent=47 // pred_check_branch
          %323 = sbr.rel (%p321) target = $region72
        $region71: #{cnn2d_forward.2} parent=47 // pred_region
          %324 = dma.done [#allocation11], 32
        $region72: #{cnn2d_forward.2} parent=47 // pred_fallthru
          _
        %p325 = scmp.lt.s32.totalorder %s22, 1
        %s326 = scalar_select %p325, %s22, 1
        %s327 = smul.addr %s326, 25
        %s328 = smul.addr %s327, 8
        %s329 = scalar_lea.vmem %s0, %s328
        %p330 = pneg %p43
        %p331 = pneg %p40
        %p332 = pneg %p64
        %p333 = pneg %p61
        %p334 = pneg %p85
        %p335 = pneg %p82
        %p336 = pneg %p106
        %p337 = pneg %p103
        %p338 = pneg %p127
        %p339 = pneg %p124
        %p340 = pneg %p148
        %p341 = pneg %p145
        %p342 = pneg %p169
        %p343 = pneg %p166
        %p344 = pneg %p195
        %p345 = pneg %p192
        %p346 = scmp.lt.s32.totalorder %s22, 1
        %s347 = scalar_select %p346, %s22, 1
        %s348 = smul.addr %s347, 6
        %s349 = smul.addr %s348, 8
        %s350 = scalar_lea.vmem %s7, %s349
        %p351 = scmp.lt.s32.totalorder %s22, 1
        %s352 = scalar_select %p351, %s22, 1
        %s353 = smul.addr %s352, 25
        %s354 = smul.addr %s353, 8
        %s355 = scalar_lea.vmem %s0, %s354
        %p356 = scmp.lt.s32.totalorder %s22, 1
        %s357 = scalar_select %p356, %s22, 1
        %s358 = smul.addr %s357, 6
        %s359 = smul.addr %s358, 8
        %s360 = scalar_lea.vmem %s7, %s359
        %v361 = vld [vmem:[%s355] sm:$0xff]
        %v362 = vld [vmem:[%s355 + $0x8] sm:$0xff]
        %v363 = vld [vmem:[%s355 + $0x10] sm:$0xff]
        %v364 = vld [vmem:[%s355 + $0x18] sm:$0xff]
        %v365 = vld [vmem:[%s355 + $0x20] sm:$0xff]
        %v366 = vld [vmem:[%s355 + $0x28] sm:$0xff]
        %v367 = vld [vmem:[%s355 + $0x30] sm:$0xff]
        %v368 = vld [vmem:[%s355 + $0x38] sm:$0xff]
        %v369 = vld [vmem:[%s355 + $0x40] sm:$0xff]
        %v370 = vld [vmem:[%s355 + $0x48] sm:$0xff]
        %v371 = vld [vmem:[%s355 + $0x50] sm:$0xff]
        %v372 = vld [vmem:[%s355 + $0x58] sm:$0xff]
        %v373 = vld [vmem:[%s355 + $0x60] sm:$0xff]
        %v374 = vld [vmem:[%s355 + $0x68] sm:$0xff]
        %v375 = vld [vmem:[%s355 + $0x70] sm:$0xff]
        %v376 = vld [vmem:[%s355 + $0x78] sm:$0xff]
        %v377 = vld [vmem:[%s355 + $0x80] sm:$0xff]
        %v378 = vld [vmem:[%s355 + $0x88] sm:$0xff]
        %v379 = vld [vmem:[%s355 + $0x90] sm:$0xff]
        %v380 = vld [vmem:[%s355 + $0x98] sm:$0xff]
        %v381 = vld [vmem:[%s355 + $0xa0] sm:$0xff]
        %v382 = vld [vmem:[%s355 + $0xa8] sm:$0xff]
        %v383 = vld [vmem:[%s355 + $0xb0] sm:$0xff]
        %v384 = vld [vmem:[%s355 + $0xb8] sm:$0xff]
        %v385 = vld [vmem:[%s355 + $0xc0] sm:$0xf]
        %v386 = vld [vmem:[#allocation2] sm:$0xff]
        %v387 = vld [vmem:[#allocation2 + $0x8] sm:$0xff]
        %v388 = vld [vmem:[#allocation2 + $0x10] sm:$0xf]
        %v389 = vld [vmem:[#allocation4] sm:$0x1]
        %vm415 = vcmask 1046528
        %v416 = vrot.slane %v361, 1
        %v417 = vrot.slane %v362, 1
        %v418 = vsel %vm415, %v416, %v417
        %v419 = vrot.slane %v363, 1
        %v420 = vsel %vm415, %v417, %v419
        %v421 = vrot.slane %v364, 1
        %v422 = vsel %vm415, %v419, %v421
        %v423 = vrot.slane %v365, 1
        %v424 = vsel %vm415, %v421, %v423
        %v425 = vrot.slane %v366, 1
        %v426 = vsel %vm415, %v423, %v425
        %v427 = vrot.slane %v367, 1
        %v428 = vsel %vm415, %v425, %v427
        %v429 = vrot.slane %v368, 1
        %v430 = vsel %vm415, %v427, %v429
        %v431 = vrot.slane %v369, 1
        %v432 = vsel %vm415, %v429, %v431
        %v433 = vrot.slane %v370, 1
        %v434 = vsel %vm415, %v431, %v433
        %v435 = vrot.slane %v371, 1
        %v436 = vsel %vm415, %v433, %v435
        %v437 = vrot.slane %v372, 1
        %v438 = vsel %vm415, %v435, %v437
        %v439 = vrot.slane %v373, 1
        %v440 = vsel %vm415, %v437, %v439
        %v441 = vrot.slane %v374, 1
        %v442 = vsel %vm415, %v439, %v441
        %v443 = vrot.slane %v375, 1
        %v444 = vsel %vm415, %v441, %v443
        %v445 = vrot.slane %v376, 1
        %v446 = vsel %vm415, %v443, %v445
        %v447 = vrot.slane %v377, 1
        %v448 = vsel %vm415, %v445, %v447
        %v449 = vrot.slane %v378, 1
        %v450 = vsel %vm415, %v447, %v449
        %v451 = vrot.slane %v379, 1
        %v452 = vsel %vm415, %v449, %v451
        %v453 = vrot.slane %v380, 1
        %v454 = vsel %vm415, %v451, %v453
        %v455 = vrot.slane %v381, 1
        %v456 = vsel %vm415, %v453, %v455
        %v457 = vrot.slane %v382, 1
        %v458 = vsel %vm415, %v455, %v457
        %v459 = vrot.slane %v383, 1
        %v460 = vsel %vm415, %v457, %v459
        %v461 = vrot.slane %v384, 1
        %v462 = vsel %vm415, %v459, %v461
        %v463 = vrot.slane %v385, 1
        %v464 = vsel %vm415, %v461, %v463
        %465 = vrot.lane.b32.xlu0 %v418, 4
        %v466 = vpop.permute.xlu0 %465
        %467 = vrot.lane.b32.xlu0 %v420, 4
        %v468 = vpop.permute.xlu0 %467
        %469 = vrot.lane.b32.xlu0 %v422, 4
        %v470 = vpop.permute.xlu0 %469
        %471 = vrot.lane.b32.xlu0 %v424, 4
        %v472 = vpop.permute.xlu0 %471
        %473 = vrot.lane.b32.xlu0 %v426, 4
        %v474 = vpop.permute.xlu0 %473
        %475 = vrot.lane.b32.xlu0 %v428, 4
        %v476 = vpop.permute.xlu0 %475
        %477 = vrot.lane.b32.xlu0 %v430, 4
        %v478 = vpop.permute.xlu0 %477
        %479 = vrot.lane.b32.xlu0 %v432, 4
        %v480 = vpop.permute.xlu0 %479
        %481 = vrot.lane.b32.xlu0 %v434, 4
        %v482 = vpop.permute.xlu0 %481
        %483 = vrot.lane.b32.xlu0 %v436, 4
        %v484 = vpop.permute.xlu0 %483
        %485 = vrot.lane.b32.xlu0 %v438, 4
        %v486 = vpop.permute.xlu0 %485
        %487 = vrot.lane.b32.xlu0 %v440, 4
        %v488 = vpop.permute.xlu0 %487
        %489 = vrot.lane.b32.xlu0 %v442, 4
        %v490 = vpop.permute.xlu0 %489
        %491 = vrot.lane.b32.xlu0 %v444, 4
        %v492 = vpop.permute.xlu0 %491
        %493 = vrot.lane.b32.xlu0 %v446, 4
        %v494 = vpop.permute.xlu0 %493
        %495 = vrot.lane.b32.xlu0 %v448, 4
        %v496 = vpop.permute.xlu0 %495
        %497 = vrot.lane.b32.xlu0 %v450, 4
        %v498 = vpop.permute.xlu0 %497
        %499 = vrot.lane.b32.xlu0 %v452, 4
        %v500 = vpop.permute.xlu0 %499
        %501 = vrot.lane.b32.xlu0 %v454, 4
        %v502 = vpop.permute.xlu0 %501
        %503 = vrot.lane.b32.xlu0 %v456, 4
        %v504 = vpop.permute.xlu0 %503
        %505 = vrot.lane.b32.xlu0 %v458, 4
        %v506 = vpop.permute.xlu0 %505
        %507 = vrot.lane.b32.xlu0 %v460, 4
        %v508 = vpop.permute.xlu0 %507
        %509 = vrot.lane.b32.xlu0 %v462, 4
        %v510 = vpop.permute.xlu0 %509
        %511 = vrot.lane.b32.xlu0 %v464, 4
        %v512 = vpop.permute.xlu0 %511
        %vm537 = vcmask 1045504
        %v538 = vrot.slane %v361, 2
        %v539 = vrot.slane %v362, 2
        %v540 = vsel %vm537, %v538, %v539
        %v541 = vrot.slane %v363, 2
        %v542 = vsel %vm537, %v539, %v541
        %v543 = vrot.slane %v364, 2
        %v544 = vsel %vm537, %v541, %v543
        %v545 = vrot.slane %v365, 2
        %v546 = vsel %vm537, %v543, %v545
        %v547 = vrot.slane %v366, 2
        %v548 = vsel %vm537, %v545, %v547
        %v549 = vrot.slane %v367, 2
        %v550 = vsel %vm537, %v547, %v549
        %v551 = vrot.slane %v368, 2
        %v552 = vsel %vm537, %v549, %v551
        %v553 = vrot.slane %v369, 2
        %v554 = vsel %vm537, %v551, %v553
        %v555 = vrot.slane %v370, 2
        %v556 = vsel %vm537, %v553, %v555
        %v557 = vrot.slane %v371, 2
        %v558 = vsel %vm537, %v555, %v557
        %v559 = vrot.slane %v372, 2
        %v560 = vsel %vm537, %v557, %v559
        %v561 = vrot.slane %v373, 2
        %v562 = vsel %vm537, %v559, %v561
        %v563 = vrot.slane %v374, 2
        %v564 = vsel %vm537, %v561, %v563
        %v565 = vrot.slane %v375, 2
        %v566 = vsel %vm537, %v563, %v565
        %v567 = vrot.slane %v376, 2
        %v568 = vsel %vm537, %v565, %v567
        %v569 = vrot.slane %v377, 2
        %v570 = vsel %vm537, %v567, %v569
        %v571 = vrot.slane %v378, 2
        %v572 = vsel %vm537, %v569, %v571
        %v573 = vrot.slane %v379, 2
        %v574 = vsel %vm537, %v571, %v573
        %v575 = vrot.slane %v380, 2
        %v576 = vsel %vm537, %v573, %v575
        %v577 = vrot.slane %v381, 2
        %v578 = vsel %vm537, %v575, %v577
        %v579 = vrot.slane %v382, 2
        %v580 = vsel %vm537, %v577, %v579
        %v581 = vrot.slane %v383, 2
        %v582 = vsel %vm537, %v579, %v581
        %v583 = vrot.slane %v384, 2
        %v584 = vsel %vm537, %v581, %v583
        %v585 = vrot.slane %v385, 2
        %v586 = vsel %vm537, %v583, %v585
        %587 = vrot.lane.b32.xlu0 %v540, 8
        %v588 = vpop.permute.xlu0 %587
        %589 = vrot.lane.b32.xlu0 %v542, 8
        %v590 = vpop.permute.xlu0 %589
        %591 = vrot.lane.b32.xlu0 %v544, 8
        %v592 = vpop.permute.xlu0 %591
        %593 = vrot.lane.b32.xlu0 %v546, 8
        %v594 = vpop.permute.xlu0 %593
        %595 = vrot.lane.b32.xlu0 %v548, 8
        %v596 = vpop.permute.xlu0 %595
        %597 = vrot.lane.b32.xlu0 %v550, 8
        %v598 = vpop.permute.xlu0 %597
        %599 = vrot.lane.b32.xlu0 %v552, 8
        %v600 = vpop.permute.xlu0 %599
        %601 = vrot.lane.b32.xlu0 %v554, 8
        %v602 = vpop.permute.xlu0 %601
        %603 = vrot.lane.b32.xlu0 %v556, 8
        %v604 = vpop.permute.xlu0 %603
        %605 = vrot.lane.b32.xlu0 %v558, 8
        %v606 = vpop.permute.xlu0 %605
        %607 = vrot.lane.b32.xlu0 %v560, 8
        %v608 = vpop.permute.xlu0 %607
        %609 = vrot.lane.b32.xlu0 %v562, 8
        %v610 = vpop.permute.xlu0 %609
        %611 = vrot.lane.b32.xlu0 %v564, 8
        %v612 = vpop.permute.xlu0 %611
        %613 = vrot.lane.b32.xlu0 %v566, 8
        %v614 = vpop.permute.xlu0 %613
        %615 = vrot.lane.b32.xlu0 %v568, 8
        %v616 = vpop.permute.xlu0 %615
        %617 = vrot.lane.b32.xlu0 %v570, 8
        %v618 = vpop.permute.xlu0 %617
        %619 = vrot.lane.b32.xlu0 %v572, 8
        %v620 = vpop.permute.xlu0 %619
        %621 = vrot.lane.b32.xlu0 %v574, 8
        %v622 = vpop.permute.xlu0 %621
        %623 = vrot.lane.b32.xlu0 %v576, 8
        %v624 = vpop.permute.xlu0 %623
        %625 = vrot.lane.b32.xlu0 %v578, 8
        %v626 = vpop.permute.xlu0 %625
        %627 = vrot.lane.b32.xlu0 %v580, 8
        %v628 = vpop.permute.xlu0 %627
        %629 = vrot.lane.b32.xlu0 %v582, 8
        %v630 = vpop.permute.xlu0 %629
        %631 = vrot.lane.b32.xlu0 %v584, 8
        %v632 = vpop.permute.xlu0 %631
        %633 = vrot.lane.b32.xlu0 %v586, 8
        %v634 = vpop.permute.xlu0 %633
        %vm659 = vcmask 1044480
        %v660 = vrot.slane %v361, 3
        %v661 = vrot.slane %v362, 3
        %v662 = vsel %vm659, %v660, %v661
        %v663 = vrot.slane %v363, 3
        %v664 = vsel %vm659, %v661, %v663
        %v665 = vrot.slane %v364, 3
        %v666 = vsel %vm659, %v663, %v665
        %v667 = vrot.slane %v365, 3
        %v668 = vsel %vm659, %v665, %v667
        %v669 = vrot.slane %v366, 3
        %v670 = vsel %vm659, %v667, %v669
        %v671 = vrot.slane %v367, 3
        %v672 = vsel %vm659, %v669, %v671
        %v673 = vrot.slane %v368, 3
        %v674 = vsel %vm659, %v671, %v673
        %v675 = vrot.slane %v369, 3
        %v676 = vsel %vm659, %v673, %v675
        %v677 = vrot.slane %v370, 3
        %v678 = vsel %vm659, %v675, %v677
        %v679 = vrot.slane %v371, 3
        %v680 = vsel %vm659, %v677, %v679
        %v681 = vrot.slane %v372, 3
        %v682 = vsel %vm659, %v679, %v681
        %v683 = vrot.slane %v373, 3
        %v684 = vsel %vm659, %v681, %v683
        %v685 = vrot.slane %v374, 3
        %v686 = vsel %vm659, %v683, %v685
        %v687 = vrot.slane %v375, 3
        %v688 = vsel %vm659, %v685, %v687
        %v689 = vrot.slane %v376, 3
        %v690 = vsel %vm659, %v687, %v689
        %v691 = vrot.slane %v377, 3
        %v692 = vsel %vm659, %v689, %v691
        %v693 = vrot.slane %v378, 3
        %v694 = vsel %vm659, %v691, %v693
        %v695 = vrot.slane %v379, 3
        %v696 = vsel %vm659, %v693, %v695
        %v697 = vrot.slane %v380, 3
        %v698 = vsel %vm659, %v695, %v697
        %v699 = vrot.slane %v381, 3
        %v700 = vsel %vm659, %v697, %v699
        %v701 = vrot.slane %v382, 3
        %v702 = vsel %vm659, %v699, %v701
        %v703 = vrot.slane %v383, 3
        %v704 = vsel %vm659, %v701, %v703
        %v705 = vrot.slane %v384, 3
        %v706 = vsel %vm659, %v703, %v705
        %v707 = vrot.slane %v385, 3
        %v708 = vsel %vm659, %v705, %v707
        %709 = vrot.lane.b32.xlu0 %v662, 12
        %v710 = vpop.permute.xlu0 %709
        %711 = vrot.lane.b32.xlu0 %v664, 12
        %v712 = vpop.permute.xlu0 %711
        %713 = vrot.lane.b32.xlu0 %v666, 12
        %v714 = vpop.permute.xlu0 %713
        %715 = vrot.lane.b32.xlu0 %v668, 12
        %v716 = vpop.permute.xlu0 %715
        %717 = vrot.lane.b32.xlu0 %v670, 12
        %v718 = vpop.permute.xlu0 %717
        %719 = vrot.lane.b32.xlu0 %v672, 12
        %v720 = vpop.permute.xlu0 %719
        %721 = vrot.lane.b32.xlu0 %v674, 12
        %v722 = vpop.permute.xlu0 %721
        %723 = vrot.lane.b32.xlu0 %v676, 12
        %v724 = vpop.permute.xlu0 %723
        %725 = vrot.lane.b32.xlu0 %v678, 12
        %v726 = vpop.permute.xlu0 %725
        %727 = vrot.lane.b32.xlu0 %v680, 12
        %v728 = vpop.permute.xlu0 %727
        %729 = vrot.lane.b32.xlu0 %v682, 12
        %v730 = vpop.permute.xlu0 %729
        %731 = vrot.lane.b32.xlu0 %v684, 12
        %v732 = vpop.permute.xlu0 %731
        %733 = vrot.lane.b32.xlu0 %v686, 12
        %v734 = vpop.permute.xlu0 %733
        %735 = vrot.lane.b32.xlu0 %v688, 12
        %v736 = vpop.permute.xlu0 %735
        %737 = vrot.lane.b32.xlu0 %v690, 12
        %v738 = vpop.permute.xlu0 %737
        %739 = vrot.lane.b32.xlu0 %v692, 12
        %v740 = vpop.permute.xlu0 %739
        %741 = vrot.lane.b32.xlu0 %v694, 12
        %v742 = vpop.permute.xlu0 %741
        %743 = vrot.lane.b32.xlu0 %v696, 12
        %v744 = vpop.permute.xlu0 %743
        %745 = vrot.lane.b32.xlu0 %v698, 12
        %v746 = vpop.permute.xlu0 %745
        %747 = vrot.lane.b32.xlu0 %v700, 12
        %v748 = vpop.permute.xlu0 %747
        %749 = vrot.lane.b32.xlu0 %v702, 12
        %v750 = vpop.permute.xlu0 %749
        %751 = vrot.lane.b32.xlu0 %v704, 12
        %v752 = vpop.permute.xlu0 %751
        %753 = vrot.lane.b32.xlu0 %v706, 12
        %v754 = vpop.permute.xlu0 %753
        %755 = vrot.lane.b32.xlu0 %v708, 12
        %v756 = vpop.permute.xlu0 %755
        %vm781 = vcmask 1043456
        %v782 = vrot.slane %v361, 4
        %v783 = vrot.slane %v362, 4
        %v784 = vsel %vm781, %v782, %v783
        %v785 = vrot.slane %v363, 4
        %v786 = vsel %vm781, %v783, %v785
        %v787 = vrot.slane %v364, 4
        %v788 = vsel %vm781, %v785, %v787
        %v789 = vrot.slane %v365, 4
        %v790 = vsel %vm781, %v787, %v789
        %v791 = vrot.slane %v366, 4
        %v792 = vsel %vm781, %v789, %v791
        %v793 = vrot.slane %v367, 4
        %v794 = vsel %vm781, %v791, %v793
        %v795 = vrot.slane %v368, 4
        %v796 = vsel %vm781, %v793, %v795
        %v797 = vrot.slane %v369, 4
        %v798 = vsel %vm781, %v795, %v797
        %v799 = vrot.slane %v370, 4
        %v800 = vsel %vm781, %v797, %v799
        %v801 = vrot.slane %v371, 4
        %v802 = vsel %vm781, %v799, %v801
        %v803 = vrot.slane %v372, 4
        %v804 = vsel %vm781, %v801, %v803
        %v805 = vrot.slane %v373, 4
        %v806 = vsel %vm781, %v803, %v805
        %v807 = vrot.slane %v374, 4
        %v808 = vsel %vm781, %v805, %v807
        %v809 = vrot.slane %v375, 4
        %v810 = vsel %vm781, %v807, %v809
        %v811 = vrot.slane %v376, 4
        %v812 = vsel %vm781, %v809, %v811
        %v813 = vrot.slane %v377, 4
        %v814 = vsel %vm781, %v811, %v813
        %v815 = vrot.slane %v378, 4
        %v816 = vsel %vm781, %v813, %v815
        %v817 = vrot.slane %v379, 4
        %v818 = vsel %vm781, %v815, %v817
        %v819 = vrot.slane %v380, 4
        %v820 = vsel %vm781, %v817, %v819
        %v821 = vrot.slane %v381, 4
        %v822 = vsel %vm781, %v819, %v821
        %v823 = vrot.slane %v382, 4
        %v824 = vsel %vm781, %v821, %v823
        %v825 = vrot.slane %v383, 4
        %v826 = vsel %vm781, %v823, %v825
        %v827 = vrot.slane %v384, 4
        %v828 = vsel %vm781, %v825, %v827
        %v829 = vrot.slane %v385, 4
        %v830 = vsel %vm781, %v827, %v829
        %831 = vrot.lane.b32.xlu0 %v784, 16
        %v832 = vpop.permute.xlu0 %831
        %833 = vrot.lane.b32.xlu0 %v786, 16
        %v834 = vpop.permute.xlu0 %833
        %835 = vrot.lane.b32.xlu0 %v788, 16
        %v836 = vpop.permute.xlu0 %835
        %837 = vrot.lane.b32.xlu0 %v790, 16
        %v838 = vpop.permute.xlu0 %837
        %839 = vrot.lane.b32.xlu0 %v792, 16
        %v840 = vpop.permute.xlu0 %839
        %841 = vrot.lane.b32.xlu0 %v794, 16
        %v842 = vpop.permute.xlu0 %841
        %843 = vrot.lane.b32.xlu0 %v796, 16
        %v844 = vpop.permute.xlu0 %843
        %845 = vrot.lane.b32.xlu0 %v798, 16
        %v846 = vpop.permute.xlu0 %845
        %847 = vrot.lane.b32.xlu0 %v800, 16
        %v848 = vpop.permute.xlu0 %847
        %849 = vrot.lane.b32.xlu0 %v802, 16
        %v850 = vpop.permute.xlu0 %849
        %851 = vrot.lane.b32.xlu0 %v804, 16
        %v852 = vpop.permute.xlu0 %851
        %853 = vrot.lane.b32.xlu0 %v806, 16
        %v854 = vpop.permute.xlu0 %853
        %855 = vrot.lane.b32.xlu0 %v808, 16
        %v856 = vpop.permute.xlu0 %855
        %857 = vrot.lane.b32.xlu0 %v810, 16
        %v858 = vpop.permute.xlu0 %857
        %859 = vrot.lane.b32.xlu0 %v812, 16
        %v860 = vpop.permute.xlu0 %859
        %861 = vrot.lane.b32.xlu0 %v814, 16
        %v862 = vpop.permute.xlu0 %861
        %863 = vrot.lane.b32.xlu0 %v816, 16
        %v864 = vpop.permute.xlu0 %863
        %865 = vrot.lane.b32.xlu0 %v818, 16
        %v866 = vpop.permute.xlu0 %865
        %867 = vrot.lane.b32.xlu0 %v820, 16
        %v868 = vpop.permute.xlu0 %867
        %869 = vrot.lane.b32.xlu0 %v822, 16
        %v870 = vpop.permute.xlu0 %869
        %871 = vrot.lane.b32.xlu0 %v824, 16
        %v872 = vpop.permute.xlu0 %871
        %873 = vrot.lane.b32.xlu0 %v826, 16
        %v874 = vpop.permute.xlu0 %873
        %875 = vrot.lane.b32.xlu0 %v828, 16
        %v876 = vpop.permute.xlu0 %875
        %877 = vrot.lane.b32.xlu0 %v830, 16
        %v878 = vpop.permute.xlu0 %877
        %vm903 = vcmask 31744
        %v904 = vsel %vm903, %v361, %v466
        %v905 = vsel %vm903, %v362, %v468
        %v906 = vsel %vm903, %v363, %v470
        %v907 = vsel %vm903, %v364, %v472
        %v908 = vsel %vm903, %v365, %v474
        %v909 = vsel %vm903, %v366, %v476
        %v910 = vsel %vm903, %v367, %v478
        %v911 = vsel %vm903, %v368, %v480
        %v912 = vsel %vm903, %v369, %v482
        %v913 = vsel %vm903, %v370, %v484
        %v914 = vsel %vm903, %v371, %v486
        %v915 = vsel %vm903, %v372, %v488
        %v916 = vsel %vm903, %v373, %v490
        %v917 = vsel %vm903, %v374, %v492
        %v918 = vsel %vm903, %v375, %v494
        %v919 = vsel %vm903, %v376, %v496
        %v920 = vsel %vm903, %v377, %v498
        %v921 = vsel %vm903, %v378, %v500
        %v922 = vsel %vm903, %v379, %v502
        %v923 = vsel %vm903, %v380, %v504
        %v924 = vsel %vm903, %v381, %v506
        %v925 = vsel %vm903, %v382, %v508
        %v926 = vsel %vm903, %v383, %v510
        %v927 = vsel %vm903, %v384, %v512
        %vm928 = vcmask 64512
        %v929 = vsel %vm928, %v904, %v588
        %v930 = vsel %vm928, %v905, %v590
        %v931 = vsel %vm928, %v906, %v592
        %v932 = vsel %vm928, %v907, %v594
        %v933 = vsel %vm928, %v908, %v596
        %v934 = vsel %vm928, %v909, %v598
        %v935 = vsel %vm928, %v910, %v600
        %v936 = vsel %vm928, %v911, %v602
        %v937 = vsel %vm928, %v912, %v604
        %v938 = vsel %vm928, %v913, %v606
        %v939 = vsel %vm928, %v914, %v608
        %v940 = vsel %vm928, %v915, %v610
        %v941 = vsel %vm928, %v916, %v612
        %v942 = vsel %vm928, %v917, %v614
        %v943 = vsel %vm928, %v918, %v616
        %v944 = vsel %vm928, %v919, %v618
        %v945 = vsel %vm928, %v920, %v620
        %v946 = vsel %vm928, %v921, %v622
        %v947 = vsel %vm928, %v922, %v624
        %v948 = vsel %vm928, %v923, %v626
        %v949 = vsel %vm928, %v924, %v628
        %v950 = vsel %vm928, %v925, %v630
        %v951 = vsel %vm928, %v926, %v632
        %v952 = vsel %vm928, %v927, %v634
        %vm953 = vcmask 97280
        %v954 = vsel %vm953, %v929, %v710
        %v955 = vsel %vm953, %v930, %v712
        %v956 = vsel %vm953, %v931, %v714
        %v957 = vsel %vm953, %v932, %v716
        %v958 = vsel %vm953, %v933, %v718
        %v959 = vsel %vm953, %v934, %v720
        %v960 = vsel %vm953, %v935, %v722
        %v961 = vsel %vm953, %v936, %v724
        %v962 = vsel %vm953, %v937, %v726
        %v963 = vsel %vm953, %v938, %v728
        %v964 = vsel %vm953, %v939, %v730
        %v965 = vsel %vm953, %v940, %v732
        %v966 = vsel %vm953, %v941, %v734
        %v967 = vsel %vm953, %v942, %v736
        %v968 = vsel %vm953, %v943, %v738
        %v969 = vsel %vm953, %v944, %v740
        %v970 = vsel %vm953, %v945, %v742
        %v971 = vsel %vm953, %v946, %v744
        %v972 = vsel %vm953, %v947, %v746
        %v973 = vsel %vm953, %v948, %v748
        %v974 = vsel %vm953, %v949, %v750
        %v975 = vsel %vm953, %v950, %v752
        %v976 = vsel %vm953, %v951, %v754
        %v977 = vsel %vm953, %v952, %v756
        %vm978 = vcmask 130048
        %v979 = vsel %vm978, %v954, %v832
        %v980 = vsel %vm978, %v955, %v834
        %v981 = vsel %vm978, %v956, %v836
        %v982 = vsel %vm978, %v957, %v838
        %v983 = vsel %vm978, %v958, %v840
        %v984 = vsel %vm978, %v959, %v842
        %v985 = vsel %vm978, %v960, %v844
        %v986 = vsel %vm978, %v961, %v846
        %v987 = vsel %vm978, %v962, %v848
        %v988 = vsel %vm978, %v963, %v850
        %v989 = vsel %vm978, %v964, %v852
        %v990 = vsel %vm978, %v965, %v854
        %v991 = vsel %vm978, %v966, %v856
        %v992 = vsel %vm978, %v967, %v858
        %v993 = vsel %vm978, %v968, %v860
        %v994 = vsel %vm978, %v969, %v862
        %v995 = vsel %vm978, %v970, %v864
        %v996 = vsel %vm978, %v971, %v866
        %v997 = vsel %vm978, %v972, %v868
        %v998 = vsel %vm978, %v973, %v870
        %v999 = vsel %vm978, %v974, %v872
        %v1000 = vsel %vm978, %v975, %v874
        %v1001 = vsel %vm978, %v976, %v876
        %v1002 = vsel %vm978, %v977, %v878
        %vm1003 = vcmask 162816
        %v1005 = vsel %vm1003, %v979, 0
        %v1008 = vsel %vm1003, %v980, 0
        %v1011 = vsel %vm1003, %v981, 0
        %v1014 = vsel %vm1003, %v982, 0
        %v1017 = vsel %vm1003, %v983, 0
        %v1020 = vsel %vm1003, %v984, 0
        %v1023 = vsel %vm1003, %v985, 0
        %v1026 = vsel %vm1003, %v986, 0
        %v1029 = vsel %vm1003, %v987, 0
        %v1032 = vsel %vm1003, %v988, 0
        %v1035 = vsel %vm1003, %v989, 0
        %v1038 = vsel %vm1003, %v990, 0
        %v1041 = vsel %vm1003, %v991, 0
        %v1044 = vsel %vm1003, %v992, 0
        %v1047 = vsel %vm1003, %v993, 0
        %v1050 = vsel %vm1003, %v994, 0
        %v1053 = vsel %vm1003, %v995, 0
        %v1056 = vsel %vm1003, %v996, 0
        %v1059 = vsel %vm1003, %v997, 0
        %v1062 = vsel %vm1003, %v998, 0
        %v1065 = vsel %vm1003, %v999, 0
        %v1068 = vsel %vm1003, %v1000, 0
        %v1071 = vsel %vm1003, %v1001, 0
        %v1074 = vsel %vm1003, %v1002, 0
        %v1077 = vsel %vm781, %v388, 0
        %1079 = vmatprep.subr.mxu0 0.0
        %1080 = vmatpush1.msra.mxu0 %v386
        %1081 = vmatprep.subr.mxu0 0.0
        %1082 = vmatpush1.msra.mxu0 %v387
        %1083 = vmatprep.subr.mxu0 0.0
        %1084 = vmatpush1.msra.mxu0 %v1077
        %1085 = vmatprep.subr.mxu0 0.0
        %1086 = vmatpush1.msra.mxu0 0.0
        %1087 = vmatprep.subr.mxu0 0.0
        %1088 = vmatpush1.msra.mxu0 0.0
        %1089 = vmatprep.subr.mxu0 0.0
        %1090 = vmatpush1.msra.mxu0 0.0
        %1091 = vmatprep.subr.mxu0 0.0
        %1092 = vmatpush1.msra.mxu0 0.0
        %1093 = vmatprep.subr.mxu0 0.0
        %1094 = vmatpush1.msra.mxu0 0.0
        %1095 = vmatprep.subr.mxu0 0.0
        %1096 = vmatpush1.msra.mxu0 0.0
        %1097 = vmatprep.subr.mxu0 0.0
        %1098 = vmatpush1.msra.mxu0 0.0
        %1099 = vmatprep.subr.mxu0 0.0
        %1100 = vmatpush1.msra.mxu0 0.0
        %1101 = vmatprep.subr.mxu0 0.0
        %1102 = vmatpush1.msra.mxu0 0.0
        %1103 = vmatprep.subr.mxu0 0.0
        %1104 = vmatpush1.msra.mxu0 0.0
        %1105 = vmatprep.subr.mxu0 0.0
        %1106 = vmatpush1.msra.mxu0 0.0
        %1107 = vmatprep.subr.mxu0 0.0
        %1108 = vmatpush1.msra.mxu0 0.0
        %1109 = vmatprep.subr.mxu0 0.0
        %1110 = vmatpush1.msra.mxu0 0.0
        %1111 = vmatprep.subr.mxu0 0.0
        %1112 = vmatpush1.msra.mxu0 0.0
        %1113 = vmatprep.subr.mxu0 0.0
        %1114 = vmatpush1.msra.mxu0 0.0
        %1115 = vmatprep.subr.mxu0 0.0
        %1116 = vmatpush1.msra.mxu0 0.0
        %1117 = vmatprep.subr.mxu0 0.0
        %1118 = vmatpush1.msra.mxu0 0.0
        %1119 = vmatprep.subr.mxu0 0.0
        %1120 = vmatpush1.msra.mxu0 0.0
        %1121 = vmatprep.subr.mxu0 0.0
        %1122 = vmatpush1.msra.mxu0 0.0
        %1123 = vmatprep.subr.mxu0 0.0
        %1124 = vmatpush1.msra.mxu0 0.0
        %1125 = vmatprep.subr.mxu0 0.0
        %1126 = vmatpush1.msra.mxu0 0.0
        %1127 = vmatprep.subr.mxu0 0.0
        %1128 = vmatpush1.msra.mxu0 0.0
        %1129 = vmatprep.subr.mxu0 0.0
        %1130 = vmatpush1.msra.mxu0 0.0
        %1131 = vmatprep.subr.mxu0 0.0
        %1132 = vmatpush1.msra.mxu0 0.0
        %1133 = vmatprep.subr.mxu0 0.0
        %1134 = vmatpush1.msra.mxu0 0.0
        %1135 = vmatprep.subr.mxu0 0.0
        %1136 = vmatpush1.msra.mxu0 0.0
        %1137 = vmatprep.subr.mxu0 0.0
        %1138 = vmatpush1.msra.mxu0 0.0
        %1139 = vmatprep.subr.mxu0 0.0
        %1140 = vmatpush1.msra.mxu0 0.0
        %1141 = vmatprep.subr.mxu0 0.0
        %1142 = vmatpush1.msra.mxu0 0.0
        %1143 = vmatprep.mubr.f32.mxu0 0.0
        %1144 = vmatmul.mubr.f32.gmra.mrb[0].mxu0 %v1005
        %v1145 = vpop.f32.mrb[0].mxu0
        %v1146 = vadd.f32 0.0, %v1145
        %v1147 = vpop.f32.mrb[0].mxu0
        %1148 = vmatprep.mubr.f32.mxu0 0.0
        %1149 = vmatmul.mubr.f32.gmra.mrb[0].mxu0 %v1008
        %v1150 = vpop.f32.mrb[0].mxu0
        %v1151 = vadd.f32 0.0, %v1150
        %v1152 = vpop.f32.mrb[0].mxu0
        %1153 = vmatprep.mubr.f32.mxu0 0.0
        %1154 = vmatmul.mubr.f32.gmra.mrb[0].mxu0 %v1011
        %v1155 = vpop.f32.mrb[0].mxu0
        %v1156 = vadd.f32 0.0, %v1155
        %v1157 = vpop.f32.mrb[0].mxu0
        %1158 = vmatprep.mubr.f32.mxu0 0.0
        %1159 = vmatmul.mubr.f32.gmra.mrb[0].mxu0 %v1014
        %v1160 = vpop.f32.mrb[0].mxu0
        %v1161 = vadd.f32 0.0, %v1160
        %v1162 = vpop.f32.mrb[0].mxu0
        %1163 = vmatprep.mubr.f32.mxu0 0.0
        %1164 = vmatmul.mubr.f32.gmra.mrb[0].mxu0 %v1017
        %v1165 = vpop.f32.mrb[0].mxu0
        %v1166 = vadd.f32 0.0, %v1165
        %v1167 = vpop.f32.mrb[0].mxu0
        %1168 = vmatprep.mubr.f32.mxu0 0.0
        %1169 = vmatmul.mubr.f32.gmra.mrb[0].mxu0 %v1020
        %v1170 = vpop.f32.mrb[0].mxu0
        %v1171 = vadd.f32 0.0, %v1170
        %v1172 = vpop.f32.mrb[0].mxu0
        %1173 = vmatprep.mubr.f32.mxu0 0.0
        %1174 = vmatmul.mubr.f32.gmra.mrb[0].mxu0 %v1023
        %v1175 = vpop.f32.mrb[0].mxu0
        %v1176 = vadd.f32 0.0, %v1175
        %v1177 = vpop.f32.mrb[0].mxu0
        %1178 = vmatprep.mubr.f32.mxu0 0.0
        %1179 = vmatmul.mubr.f32.gmra.mrb[0].mxu0 %v1026
        %v1180 = vpop.f32.mrb[0].mxu0
        %v1181 = vadd.f32 0.0, %v1180
        %v1182 = vpop.f32.mrb[0].mxu0
        %1183 = vmatprep.mubr.f32.mxu0 0.0
        %1184 = vmatmul.mubr.f32.gmra.mrb[0].mxu0 %v1029
        %v1185 = vpop.f32.mrb[0].mxu0
        %v1186 = vadd.f32 0.0, %v1185
        %v1187 = vpop.f32.mrb[0].mxu0
        %1188 = vmatprep.mubr.f32.mxu0 0.0
        %1189 = vmatmul.mubr.f32.gmra.mrb[0].mxu0 %v1032
        %v1190 = vpop.f32.mrb[0].mxu0
        %v1191 = vadd.f32 0.0, %v1190
        %v1192 = vpop.f32.mrb[0].mxu0
        %1193 = vmatprep.mubr.f32.mxu0 0.0
        %1194 = vmatmul.mubr.f32.gmra.mrb[0].mxu0 %v1035
        %v1195 = vpop.f32.mrb[0].mxu0
        %v1196 = vadd.f32 0.0, %v1195
        %v1197 = vpop.f32.mrb[0].mxu0
        %1198 = vmatprep.mubr.f32.mxu0 0.0
        %1199 = vmatmul.mubr.f32.gmra.mrb[0].mxu0 %v1038
        %v1200 = vpop.f32.mrb[0].mxu0
        %v1201 = vadd.f32 0.0, %v1200
        %v1202 = vpop.f32.mrb[0].mxu0
        %1203 = vmatprep.mubr.f32.mxu0 0.0
        %1204 = vmatmul.mubr.f32.gmra.mrb[0].mxu0 %v1041
        %v1205 = vpop.f32.mrb[0].mxu0
        %v1206 = vadd.f32 0.0, %v1205
        %v1207 = vpop.f32.mrb[0].mxu0
        %1208 = vmatprep.mubr.f32.mxu0 0.0
        %1209 = vmatmul.mubr.f32.gmra.mrb[0].mxu0 %v1044
        %v1210 = vpop.f32.mrb[0].mxu0
        %v1211 = vadd.f32 0.0, %v1210
        %v1212 = vpop.f32.mrb[0].mxu0
        %1213 = vmatprep.mubr.f32.mxu0 0.0
        %1214 = vmatmul.mubr.f32.gmra.mrb[0].mxu0 %v1047
        %v1215 = vpop.f32.mrb[0].mxu0
        %v1216 = vadd.f32 0.0, %v1215
        %v1217 = vpop.f32.mrb[0].mxu0
        %1218 = vmatprep.mubr.f32.mxu0 0.0
        %1219 = vmatmul.mubr.f32.gmra.mrb[0].mxu0 %v1050
        %v1220 = vpop.f32.mrb[0].mxu0
        %v1221 = vadd.f32 0.0, %v1220
        %v1222 = vpop.f32.mrb[0].mxu0
        %1223 = vmatprep.mubr.f32.mxu0 0.0
        %1224 = vmatmul.mubr.f32.gmra.mrb[0].mxu0 %v1053
        %v1225 = vpop.f32.mrb[0].mxu0
        %v1226 = vadd.f32 0.0, %v1225
        %v1227 = vpop.f32.mrb[0].mxu0
        %1228 = vmatprep.mubr.f32.mxu0 0.0
        %1229 = vmatmul.mubr.f32.gmra.mrb[0].mxu0 %v1056
        %v1230 = vpop.f32.mrb[0].mxu0
        %v1231 = vadd.f32 0.0, %v1230
        %v1232 = vpop.f32.mrb[0].mxu0
        %1233 = vmatprep.mubr.f32.mxu0 0.0
        %1234 = vmatmul.mubr.f32.gmra.mrb[0].mxu0 %v1059
        %v1235 = vpop.f32.mrb[0].mxu0
        %v1236 = vadd.f32 0.0, %v1235
        %v1237 = vpop.f32.mrb[0].mxu0
        %1238 = vmatprep.mubr.f32.mxu0 0.0
        %1239 = vmatmul.mubr.f32.gmra.mrb[0].mxu0 %v1062
        %v1240 = vpop.f32.mrb[0].mxu0
        %v1241 = vadd.f32 0.0, %v1240
        %v1242 = vpop.f32.mrb[0].mxu0
        %1243 = vmatprep.mubr.f32.mxu0 0.0
        %1244 = vmatmul.mubr.f32.gmra.mrb[0].mxu0 %v1065
        %v1245 = vpop.f32.mrb[0].mxu0
        %v1246 = vadd.f32 0.0, %v1245
        %v1247 = vpop.f32.mrb[0].mxu0
        %1248 = vmatprep.mubr.f32.mxu0 0.0
        %1249 = vmatmul.mubr.f32.gmra.mrb[0].mxu0 %v1068
        %v1250 = vpop.f32.mrb[0].mxu0
        %v1251 = vadd.f32 0.0, %v1250
        %v1252 = vpop.f32.mrb[0].mxu0
        %1253 = vmatprep.mubr.f32.mxu0 0.0
        %1254 = vmatmul.mubr.f32.gmra.mrb[0].mxu0 %v1071
        %v1255 = vpop.f32.mrb[0].mxu0
        %v1256 = vadd.f32 0.0, %v1255
        %v1257 = vpop.f32.mrb[0].mxu0
        %1258 = vmatprep.mubr.f32.mxu0 0.0
        %1259 = vmatmul.mubr.f32.gmra.mrb[0].mxu0 %v1074
        %v1260 = vpop.f32.mrb[0].mxu0
        %v1261 = vadd.f32 0.0, %v1260
        %v1262 = vpop.f32.mrb[0].mxu0
        %1263 = vdwg.mxu0
        %v1264 = vlaneseq
        %v1265 = vshrl.u32 %v1264, 7
        %v1266 = vadd.s32 %v1265, 8
        %v1267 = vadd.s32 %v1265, 16
        %v1268 = vadd.s32 %v1265, 24
        %v1269 = vadd.s32 %v1265, 32
        %v1270 = vadd.s32 %v1265, 40
        %v1271 = vadd.s32 %v1265, 48
        %v1272 = vadd.s32 %v1265, 56
        %v1273 = vadd.s32 %v1265, 64
        %v1274 = vadd.s32 %v1265, 72
        %v1275 = vadd.s32 %v1265, 80
        %v1276 = vadd.s32 %v1265, 88
        %v1277 = vlaneseq
        %v1278 = vand.u32 %v1277, 127
        %v1279 = vadd.s32 %v1278, 128
        %v1280 = vmul.u32 %v1265, 2
        %v1281 = vmul.u32 %v1266, 2
        %v1282 = vmul.u32 %v1267, 2
        %v1283 = vmul.u32 %v1268, 2
        %v1284 = vmul.u32 %v1269, 2
        %v1285 = vmul.u32 %v1270, 2
        %v1286 = vmul.u32 %v1271, 2
        %v1287 = vmul.u32 %v1272, 2
        %v1288 = vmul.u32 %v1273, 2
        %v1289 = vmul.u32 %v1274, 2
        %v1290 = vmul.u32 %v1275, 2
        %v1291 = vmul.u32 %v1276, 2
        %vm1292 = vcmp.eq.s32.totalorder %v1278, %v1280
        %vm1293 = vcmp.eq.s32.totalorder %v1279, %v1280
        %vm1294 = vcmp.eq.s32.totalorder %v1278, %v1281
        %vm1295 = vcmp.eq.s32.totalorder %v1279, %v1281
        %vm1296 = vcmp.eq.s32.totalorder %v1278, %v1282
        %vm1297 = vcmp.eq.s32.totalorder %v1279, %v1282
        %vm1298 = vcmp.eq.s32.totalorder %v1278, %v1283
        %vm1299 = vcmp.eq.s32.totalorder %v1279, %v1283
        %vm1300 = vcmp.eq.s32.totalorder %v1278, %v1284
        %vm1301 = vcmp.eq.s32.totalorder %v1279, %v1284
        %vm1302 = vcmp.eq.s32.totalorder %v1278, %v1285
        %vm1303 = vcmp.eq.s32.totalorder %v1279, %v1285
        %vm1304 = vcmp.eq.s32.totalorder %v1278, %v1286
        %vm1305 = vcmp.eq.s32.totalorder %v1279, %v1286
        %vm1306 = vcmp.eq.s32.totalorder %v1278, %v1287
        %vm1307 = vcmp.eq.s32.totalorder %v1279, %v1287
        %vm1308 = vcmp.eq.s32.totalorder %v1278, %v1288
        %vm1309 = vcmp.eq.s32.totalorder %v1279, %v1288
        %vm1310 = vcmp.eq.s32.totalorder %v1278, %v1289
        %vm1311 = vcmp.eq.s32.totalorder %v1279, %v1289
        %vm1312 = vcmp.eq.s32.totalorder %v1278, %v1290
        %vm1313 = vcmp.eq.s32.totalorder %v1279, %v1290
        %vm1314 = vcmp.eq.s32.totalorder %v1278, %v1291
        %vm1315 = vcmp.eq.s32.totalorder %v1279, %v1291
        %v1316 = vsel %vm1292, 1, 0
        %v1317 = vsel %vm1293, 1, 0
        %v1318 = vsel %vm1294, 1, 0
        %v1319 = vsel %vm1295, 1, 0
        %v1320 = vsel %vm1296, 1, 0
        %v1321 = vsel %vm1297, 1, 0
        %v1322 = vsel %vm1298, 1, 0
        %v1323 = vsel %vm1299, 1, 0
        %v1324 = vsel %vm1300, 1, 0
        %v1325 = vsel %vm1301, 1, 0
        %v1326 = vsel %vm1302, 1, 0
        %v1327 = vsel %vm1303, 1, 0
        %v1328 = vsel %vm1304, 1, 0
        %v1329 = vsel %vm1305, 1, 0
        %v1330 = vsel %vm1306, 1, 0
        %v1331 = vsel %vm1307, 1, 0
        %v1332 = vsel %vm1308, 1, 0
        %v1333 = vsel %vm1309, 1, 0
        %v1334 = vsel %vm1310, 1, 0
        %v1335 = vsel %vm1311, 1, 0
        %v1336 = vsel %vm1312, 1, 0
        %v1337 = vsel %vm1313, 1, 0
        %v1338 = vsel %vm1314, 1, 0
        %v1339 = vsel %vm1315, 1, 0
        %v1340 = vcvt.s32.f32 %v1316
        %v1341 = vcvt.s32.f32 %v1317
        %v1342 = vcvt.s32.f32 %v1318
        %v1343 = vcvt.s32.f32 %v1319
        %v1344 = vcvt.s32.f32 %v1320
        %v1345 = vcvt.s32.f32 %v1321
        %v1346 = vcvt.s32.f32 %v1322
        %v1347 = vcvt.s32.f32 %v1323
        %v1348 = vcvt.s32.f32 %v1324
        %v1349 = vcvt.s32.f32 %v1325
        %v1350 = vcvt.s32.f32 %v1326
        %v1351 = vcvt.s32.f32 %v1327
        %v1352 = vcvt.s32.f32 %v1328
        %v1353 = vcvt.s32.f32 %v1329
        %v1354 = vcvt.s32.f32 %v1330
        %v1355 = vcvt.s32.f32 %v1331
        %v1356 = vcvt.s32.f32 %v1332
        %v1357 = vcvt.s32.f32 %v1333
        %v1358 = vcvt.s32.f32 %v1334
        %v1359 = vcvt.s32.f32 %v1335
        %v1360 = vcvt.s32.f32 %v1336
        %v1361 = vcvt.s32.f32 %v1337
        %v1362 = vcvt.s32.f32 %v1338
        %v1363 = vcvt.s32.f32 %v1339
        %vm1364 = vcmask 523264
        %v1366 = vsel %vm1364, %v1341, 0
        %v1369 = vsel %vm1364, %v1343, 0
        %v1372 = vsel %vm1364, %v1345, 0
        %v1375 = vsel %vm1364, %v1347, 0
        %v1378 = vsel %vm1364, %v1349, 0
        %v1381 = vsel %vm1364, %v1351, 0
        %v1384 = vsel %vm1364, %v1353, 0
        %v1387 = vsel %vm1364, %v1355, 0
        %v1390 = vsel %vm1364, %v1357, 0
        %v1393 = vsel %vm1364, %v1359, 0
        %v1396 = vsel %vm1364, %v1361, 0
        %v1399 = vsel %vm1364, %v1363, 0
        %1401 = vmatprep.subr.mxu0 0.0
        %1402 = vmatpush1.msra.mxu0 %v1146
        %1403 = vmatprep.subr.mxu0 0.0
        %1404 = vmatpush1.msra.mxu0 %v1151
        %1405 = vmatprep.subr.mxu0 0.0
        %1406 = vmatpush1.msra.mxu0 %v1156
        %1407 = vmatprep.subr.mxu0 0.0
        %1408 = vmatpush1.msra.mxu0 %v1161
        %1409 = vmatprep.subr.mxu0 0.0
        %1410 = vmatpush1.msra.mxu0 %v1166
        %1411 = vmatprep.subr.mxu0 0.0
        %1412 = vmatpush1.msra.mxu0 %v1171
        %1413 = vmatprep.subr.mxu0 0.0
        %1414 = vmatpush1.msra.mxu0 %v1176
        %1415 = vmatprep.subr.mxu0 0.0
        %1416 = vmatpush1.msra.mxu0 %v1181
        %1417 = vmatprep.subr.mxu0 0.0
        %1418 = vmatpush1.msra.mxu0 %v1186
        %1419 = vmatprep.subr.mxu0 0.0
        %1420 = vmatpush1.msra.mxu0 %v1191
        %1421 = vmatprep.subr.mxu0 0.0
        %1422 = vmatpush1.msra.mxu0 %v1196
        %1423 = vmatprep.subr.mxu0 0.0
        %1424 = vmatpush1.msra.mxu0 %v1201
        %1425 = vmatprep.subr.mxu0 0.0
        %1426 = vmatpush1.msra.mxu0 %v1206
        %1427 = vmatprep.subr.mxu0 0.0
        %1428 = vmatpush1.msra.mxu0 %v1211
        %1429 = vmatprep.subr.mxu0 0.0
        %1430 = vmatpush1.msra.mxu0 %v1216
        %1431 = vmatprep.subr.mxu0 0.0
        %1432 = vmatpush1.msra.mxu0 %v1221
        %1433 = vmatprep.subr.mxu0 0.0
        %1434 = vmatpush1.msra.mxu0 %v1226
        %1435 = vmatprep.subr.mxu0 0.0
        %1436 = vmatpush1.msra.mxu0 %v1231
        %1437 = vmatprep.subr.mxu0 0.0
        %1438 = vmatpush1.msra.mxu0 %v1236
        %1439 = vmatprep.subr.mxu0 0.0
        %1440 = vmatpush1.msra.mxu0 %v1241
        %1441 = vmatprep.subr.mxu0 0.0
        %1442 = vmatpush1.msra.mxu0 %v1246
        %1443 = vmatprep.subr.mxu0 0.0
        %1444 = vmatpush1.msra.mxu0 %v1251
        %1445 = vmatprep.subr.mxu0 0.0
        %1446 = vmatpush1.msra.mxu0 %v1256
        %1447 = vmatprep.subr.mxu0 0.0
        %1448 = vmatpush1.msra.mxu0 %v1261
        %1449 = vmatprep.subr.mxu0 0.0
        %1450 = vmatpush1.msra.mxu0 0.0
        %1451 = vmatprep.subr.mxu0 0.0
        %1452 = vmatpush1.msra.mxu0 0.0
        %1453 = vmatprep.subr.mxu0 0.0
        %1454 = vmatpush1.msra.mxu0 0.0
        %1455 = vmatprep.subr.mxu0 0.0
        %1456 = vmatpush1.msra.mxu0 0.0
        %1457 = vmatprep.subr.mxu0 0.0
        %1458 = vmatpush1.msra.mxu0 0.0
        %1459 = vmatprep.subr.mxu0 0.0
        %1460 = vmatpush1.msra.mxu0 0.0
        %1461 = vmatprep.subr.mxu0 0.0
        %1462 = vmatpush1.msra.mxu0 0.0
        %1463 = vmatprep.subr.mxu0 0.0
        %1464 = vmatpush1.msra.mxu0 0.0
        %1465 = vmatprep.mubr.f32.mxu0 %v1366
        %1466 = vmatmul.mubr.f32.gmra.mrb[0].mxu0 %v1340
        %v1467 = vpop.f32.mrb[0].mxu0
        %v1468 = vadd.f32 0.0, %v1467
        %v1469 = vpop.f32.mrb[0].mxu0
        %1470 = vmatprep.mubr.f32.mxu0 %v1369
        %1471 = vmatmul.mubr.f32.gmra.mrb[0].mxu0 %v1342
        %v1472 = vpop.f32.mrb[0].mxu0
        %v1473 = vadd.f32 0.0, %v1472
        %v1474 = vpop.f32.mrb[0].mxu0
        %1475 = vmatprep.mubr.f32.mxu0 %v1372
        %1476 = vmatmul.mubr.f32.gmra.mrb[0].mxu0 %v1344
        %v1477 = vpop.f32.mrb[0].mxu0
        %v1478 = vadd.f32 0.0, %v1477
        %v1479 = vpop.f32.mrb[0].mxu0
        %1480 = vmatprep.mubr.f32.mxu0 %v1375
        %1481 = vmatmul.mubr.f32.gmra.mrb[0].mxu0 %v1346
        %v1482 = vpop.f32.mrb[0].mxu0
        %v1483 = vadd.f32 0.0, %v1482
        %v1484 = vpop.f32.mrb[0].mxu0
        %1485 = vmatprep.mubr.f32.mxu0 %v1378
        %1486 = vmatmul.mubr.f32.gmra.mrb[0].mxu0 %v1348
        %v1487 = vpop.f32.mrb[0].mxu0
        %v1488 = vadd.f32 0.0, %v1487
        %v1489 = vpop.f32.mrb[0].mxu0
        %1490 = vmatprep.mubr.f32.mxu0 %v1381
        %1491 = vmatmul.mubr.f32.gmra.mrb[0].mxu0 %v1350
        %v1492 = vpop.f32.mrb[0].mxu0
        %v1493 = vadd.f32 0.0, %v1492
        %v1494 = vpop.f32.mrb[0].mxu0
        %1495 = vmatprep.mubr.f32.mxu0 %v1384
        %1496 = vmatmul.mubr.f32.gmra.mrb[0].mxu0 %v1352
        %v1497 = vpop.f32.mrb[0].mxu0
        %v1498 = vadd.f32 0.0, %v1497
        %v1499 = vpop.f32.mrb[0].mxu0
        %1500 = vmatprep.mubr.f32.mxu0 %v1387
        %1501 = vmatmul.mubr.f32.gmra.mrb[0].mxu0 %v1354
        %v1502 = vpop.f32.mrb[0].mxu0
        %v1503 = vadd.f32 0.0, %v1502
        %v1504 = vpop.f32.mrb[0].mxu0
        %1505 = vmatprep.mubr.f32.mxu0 %v1390
        %1506 = vmatmul.mubr.f32.gmra.mrb[0].mxu0 %v1356
        %v1507 = vpop.f32.mrb[0].mxu0
        %v1508 = vadd.f32 0.0, %v1507
        %v1509 = vpop.f32.mrb[0].mxu0
        %1510 = vmatprep.mubr.f32.mxu0 %v1393
        %1511 = vmatmul.mubr.f32.gmra.mrb[0].mxu0 %v1358
        %v1512 = vpop.f32.mrb[0].mxu0
        %v1513 = vadd.f32 0.0, %v1512
        %v1514 = vpop.f32.mrb[0].mxu0
        %1515 = vmatprep.mubr.f32.mxu0 %v1396
        %1516 = vmatmul.mubr.f32.gmra.mrb[0].mxu0 %v1360
        %v1517 = vpop.f32.mrb[0].mxu0
        %v1518 = vadd.f32 0.0, %v1517
        %v1519 = vpop.f32.mrb[0].mxu0
        %1520 = vmatprep.mubr.f32.mxu0 %v1399
        %1521 = vmatmul.mubr.f32.gmra.mrb[0].mxu0 %v1362
        %v1522 = vpop.f32.mrb[0].mxu0
        %v1523 = vadd.f32 0.0, %v1522
        %v1524 = vpop.f32.mrb[0].mxu0
        %1525 = vdwg.mxu0
        %v1526 = vadd.s32 %v1280, 1
        %v1527 = vadd.s32 %v1281, 1
        %v1528 = vadd.s32 %v1282, 1
        %v1529 = vadd.s32 %v1283, 1
        %v1530 = vadd.s32 %v1284, 1
        %v1531 = vadd.s32 %v1285, 1
        %v1532 = vadd.s32 %v1286, 1
        %v1533 = vadd.s32 %v1287, 1
        %v1534 = vadd.s32 %v1288, 1
        %v1535 = vadd.s32 %v1289, 1
        %v1536 = vadd.s32 %v1290, 1
        %v1537 = vadd.s32 %v1291, 1
        %vm1538 = vcmp.eq.s32.totalorder %v1278, %v1526
        %vm1539 = vcmp.eq.s32.totalorder %v1279, %v1526
        %vm1540 = vcmp.eq.s32.totalorder %v1278, %v1527
        %vm1541 = vcmp.eq.s32.totalorder %v1279, %v1527
        %vm1542 = vcmp.eq.s32.totalorder %v1278, %v1528
        %vm1543 = vcmp.eq.s32.totalorder %v1279, %v1528
        %vm1544 = vcmp.eq.s32.totalorder %v1278, %v1529
        %vm1545 = vcmp.eq.s32.totalorder %v1279, %v1529
        %vm1546 = vcmp.eq.s32.totalorder %v1278, %v1530
        %vm1547 = vcmp.eq.s32.totalorder %v1279, %v1530
        %vm1548 = vcmp.eq.s32.totalorder %v1278, %v1531
        %vm1549 = vcmp.eq.s32.totalorder %v1279, %v1531
        %vm1550 = vcmp.eq.s32.totalorder %v1278, %v1532
        %vm1551 = vcmp.eq.s32.totalorder %v1279, %v1532
        %vm1552 = vcmp.eq.s32.totalorder %v1278, %v1533
        %vm1553 = vcmp.eq.s32.totalorder %v1279, %v1533
        %vm1554 = vcmp.eq.s32.totalorder %v1278, %v1534
        %vm1555 = vcmp.eq.s32.totalorder %v1279, %v1534
        %vm1556 = vcmp.eq.s32.totalorder %v1278, %v1535
        %vm1557 = vcmp.eq.s32.totalorder %v1279, %v1535
        %vm1558 = vcmp.eq.s32.totalorder %v1278, %v1536
        %vm1559 = vcmp.eq.s32.totalorder %v1279, %v1536
        %vm1560 = vcmp.eq.s32.totalorder %v1278, %v1537
        %vm1561 = vcmp.eq.s32.totalorder %v1279, %v1537
        %v1562 = vsel %vm1538, 1, 0
        %v1563 = vsel %vm1539, 1, 0
        %v1564 = vsel %vm1540, 1, 0
        %v1565 = vsel %vm1541, 1, 0
        %v1566 = vsel %vm1542, 1, 0
        %v1567 = vsel %vm1543, 1, 0
        %v1568 = vsel %vm1544, 1, 0
        %v1569 = vsel %vm1545, 1, 0
        %v1570 = vsel %vm1546, 1, 0
        %v1571 = vsel %vm1547, 1, 0
        %v1572 = vsel %vm1548, 1, 0
        %v1573 = vsel %vm1549, 1, 0
        %v1574 = vsel %vm1550, 1, 0
        %v1575 = vsel %vm1551, 1, 0
        %v1576 = vsel %vm1552, 1, 0
        %v1577 = vsel %vm1553, 1, 0
        %v1578 = vsel %vm1554, 1, 0
        %v1579 = vsel %vm1555, 1, 0
        %v1580 = vsel %vm1556, 1, 0
        %v1581 = vsel %vm1557, 1, 0
        %v1582 = vsel %vm1558, 1, 0
        %v1583 = vsel %vm1559, 1, 0
        %v1584 = vsel %vm1560, 1, 0
        %v1585 = vsel %vm1561, 1, 0
        %v1586 = vcvt.s32.f32 %v1562
        %v1587 = vcvt.s32.f32 %v1563
        %v1588 = vcvt.s32.f32 %v1564
        %v1589 = vcvt.s32.f32 %v1565
        %v1590 = vcvt.s32.f32 %v1566
        %v1591 = vcvt.s32.f32 %v1567
        %v1592 = vcvt.s32.f32 %v1568
        %v1593 = vcvt.s32.f32 %v1569
        %v1594 = vcvt.s32.f32 %v1570
        %v1595 = vcvt.s32.f32 %v1571
        %v1596 = vcvt.s32.f32 %v1572
        %v1597 = vcvt.s32.f32 %v1573
        %v1598 = vcvt.s32.f32 %v1574
        %v1599 = vcvt.s32.f32 %v1575
        %v1600 = vcvt.s32.f32 %v1576
        %v1601 = vcvt.s32.f32 %v1577
        %v1602 = vcvt.s32.f32 %v1578
        %v1603 = vcvt.s32.f32 %v1579
        %v1604 = vcvt.s32.f32 %v1580
        %v1605 = vcvt.s32.f32 %v1581
        %v1606 = vcvt.s32.f32 %v1582
        %v1607 = vcvt.s32.f32 %v1583
        %v1608 = vcvt.s32.f32 %v1584
        %v1609 = vcvt.s32.f32 %v1585
        %v1611 = vsel %vm1364, %v1587, 0
        %v1614 = vsel %vm1364, %v1589, 0
        %v1617 = vsel %vm1364, %v1591, 0
        %v1620 = vsel %vm1364, %v1593, 0
        %v1623 = vsel %vm1364, %v1595, 0
        %v1626 = vsel %vm1364, %v1597, 0
        %v1629 = vsel %vm1364, %v1599, 0
        %v1632 = vsel %vm1364, %v1601, 0
        %v1635 = vsel %vm1364, %v1603, 0
        %v1638 = vsel %vm1364, %v1605, 0
        %v1641 = vsel %vm1364, %v1607, 0
        %v1644 = vsel %vm1364, %v1609, 0
        %1646 = vmatprep.subr.mxu0 0.0
        %1647 = vmatpush1.msra.mxu0 %v1146
        %1648 = vmatprep.subr.mxu0 0.0
        %1649 = vmatpush1.msra.mxu0 %v1151
        %1650 = vmatprep.subr.mxu0 0.0
        %1651 = vmatpush1.msra.mxu0 %v1156
        %1652 = vmatprep.subr.mxu0 0.0
        %1653 = vmatpush1.msra.mxu0 %v1161
        %1654 = vmatprep.subr.mxu0 0.0
        %1655 = vmatpush1.msra.mxu0 %v1166
        %1656 = vmatprep.subr.mxu0 0.0
        %1657 = vmatpush1.msra.mxu0 %v1171
        %1658 = vmatprep.subr.mxu0 0.0
        %1659 = vmatpush1.msra.mxu0 %v1176
        %1660 = vmatprep.subr.mxu0 0.0
        %1661 = vmatpush1.msra.mxu0 %v1181
        %1662 = vmatprep.subr.mxu0 0.0
        %1663 = vmatpush1.msra.mxu0 %v1186
        %1664 = vmatprep.subr.mxu0 0.0
        %1665 = vmatpush1.msra.mxu0 %v1191
        %1666 = vmatprep.subr.mxu0 0.0
        %1667 = vmatpush1.msra.mxu0 %v1196
        %1668 = vmatprep.subr.mxu0 0.0
        %1669 = vmatpush1.msra.mxu0 %v1201
        %1670 = vmatprep.subr.mxu0 0.0
        %1671 = vmatpush1.msra.mxu0 %v1206
        %1672 = vmatprep.subr.mxu0 0.0
        %1673 = vmatpush1.msra.mxu0 %v1211
        %1674 = vmatprep.subr.mxu0 0.0
        %1675 = vmatpush1.msra.mxu0 %v1216
        %1676 = vmatprep.subr.mxu0 0.0
        %1677 = vmatpush1.msra.mxu0 %v1221
        %1678 = vmatprep.subr.mxu0 0.0
        %1679 = vmatpush1.msra.mxu0 %v1226
        %1680 = vmatprep.subr.mxu0 0.0
        %1681 = vmatpush1.msra.mxu0 %v1231
        %1682 = vmatprep.subr.mxu0 0.0
        %1683 = vmatpush1.msra.mxu0 %v1236
        %1684 = vmatprep.subr.mxu0 0.0
        %1685 = vmatpush1.msra.mxu0 %v1241
        %1686 = vmatprep.subr.mxu0 0.0
        %1687 = vmatpush1.msra.mxu0 %v1246
        %1688 = vmatprep.subr.mxu0 0.0
        %1689 = vmatpush1.msra.mxu0 %v1251
        %1690 = vmatprep.subr.mxu0 0.0
        %1691 = vmatpush1.msra.mxu0 %v1256
        %1692 = vmatprep.subr.mxu0 0.0
        %1693 = vmatpush1.msra.mxu0 %v1261
        %1694 = vmatprep.subr.mxu0 0.0
        %1695 = vmatpush1.msra.mxu0 0.0
        %1696 = vmatprep.subr.mxu0 0.0
        %1697 = vmatpush1.msra.mxu0 0.0
        %1698 = vmatprep.subr.mxu0 0.0
        %1699 = vmatpush1.msra.mxu0 0.0
        %1700 = vmatprep.subr.mxu0 0.0
        %1701 = vmatpush1.msra.mxu0 0.0
        %1702 = vmatprep.subr.mxu0 0.0
        %1703 = vmatpush1.msra.mxu0 0.0
        %1704 = vmatprep.subr.mxu0 0.0
        %1705 = vmatpush1.msra.mxu0 0.0
        %1706 = vmatprep.subr.mxu0 0.0
        %1707 = vmatpush1.msra.mxu0 0.0
        %1708 = vmatprep.subr.mxu0 0.0
        %1709 = vmatpush1.msra.mxu0 0.0
        %1710 = vmatprep.mubr.f32.mxu0 %v1611
        %1711 = vmatmul.mubr.f32.gmra.mrb[0].mxu0 %v1586
        %v1712 = vpop.f32.mrb[0].mxu0
        %v1713 = vadd.f32 0.0, %v1712
        %v1714 = vpop.f32.mrb[0].mxu0
        %1715 = vmatprep.mubr.f32.mxu0 %v1614
        %1716 = vmatmul.mubr.f32.gmra.mrb[0].mxu0 %v1588
        %v1717 = vpop.f32.mrb[0].mxu0
        %v1718 = vadd.f32 0.0, %v1717
        %v1719 = vpop.f32.mrb[0].mxu0
        %1720 = vmatprep.mubr.f32.mxu0 %v1617
        %1721 = vmatmul.mubr.f32.gmra.mrb[0].mxu0 %v1590
        %v1722 = vpop.f32.mrb[0].mxu0
        %v1723 = vadd.f32 0.0, %v1722
        %v1724 = vpop.f32.mrb[0].mxu0
        %1725 = vmatprep.mubr.f32.mxu0 %v1620
        %1726 = vmatmul.mubr.f32.gmra.mrb[0].mxu0 %v1592
        %v1727 = vpop.f32.mrb[0].mxu0
        %v1728 = vadd.f32 0.0, %v1727
        %v1729 = vpop.f32.mrb[0].mxu0
        %1730 = vmatprep.mubr.f32.mxu0 %v1623
        %1731 = vmatmul.mubr.f32.gmra.mrb[0].mxu0 %v1594
        %v1732 = vpop.f32.mrb[0].mxu0
        %v1733 = vadd.f32 0.0, %v1732
        %v1734 = vpop.f32.mrb[0].mxu0
        %1735 = vmatprep.mubr.f32.mxu0 %v1626
        %1736 = vmatmul.mubr.f32.gmra.mrb[0].mxu0 %v1596
        %v1737 = vpop.f32.mrb[0].mxu0
        %v1738 = vadd.f32 0.0, %v1737
        %v1739 = vpop.f32.mrb[0].mxu0
        %1740 = vmatprep.mubr.f32.mxu0 %v1629
        %1741 = vmatmul.mubr.f32.gmra.mrb[0].mxu0 %v1598
        %v1742 = vpop.f32.mrb[0].mxu0
        %v1743 = vadd.f32 0.0, %v1742
        %v1744 = vpop.f32.mrb[0].mxu0
        %1745 = vmatprep.mubr.f32.mxu0 %v1632
        %1746 = vmatmul.mubr.f32.gmra.mrb[0].mxu0 %v1600
        %v1747 = vpop.f32.mrb[0].mxu0
        %v1748 = vadd.f32 0.0, %v1747
        %v1749 = vpop.f32.mrb[0].mxu0
        %1750 = vmatprep.mubr.f32.mxu0 %v1635
        %1751 = vmatmul.mubr.f32.gmra.mrb[0].mxu0 %v1602
        %v1752 = vpop.f32.mrb[0].mxu0
        %v1753 = vadd.f32 0.0, %v1752
        %v1754 = vpop.f32.mrb[0].mxu0
        %1755 = vmatprep.mubr.f32.mxu0 %v1638
        %1756 = vmatmul.mubr.f32.gmra.mrb[0].mxu0 %v1604
        %v1757 = vpop.f32.mrb[0].mxu0
        %v1758 = vadd.f32 0.0, %v1757
        %v1759 = vpop.f32.mrb[0].mxu0
        %1760 = vmatprep.mubr.f32.mxu0 %v1641
        %1761 = vmatmul.mubr.f32.gmra.mrb[0].mxu0 %v1606
        %v1762 = vpop.f32.mrb[0].mxu0
        %v1763 = vadd.f32 0.0, %v1762
        %v1764 = vpop.f32.mrb[0].mxu0
        %1765 = vmatprep.mubr.f32.mxu0 %v1644
        %1766 = vmatmul.mubr.f32.gmra.mrb[0].mxu0 %v1608
        %v1767 = vpop.f32.mrb[0].mxu0
        %v1768 = vadd.f32 0.0, %v1767
        %v1769 = vpop.f32.mrb[0].mxu0
        %1770 = vdwg.mxu0
        %v1771 = vmax.f32 %v1468, %v1713
        %v1772 = vmax.f32 %v1473, %v1718
        %v1773 = vmax.f32 %v1478, %v1723
        %v1774 = vmax.f32 %v1483, %v1728
        %v1775 = vmax.f32 %v1488, %v1733
        %v1776 = vmax.f32 %v1493, %v1738
        %v1777 = vmax.f32 %v1498, %v1743
        %v1778 = vmax.f32 %v1503, %v1748
        %v1779 = vmax.f32 %v1508, %v1753
        %v1780 = vmax.f32 %v1513, %v1758
        %v1781 = vmax.f32 %v1518, %v1763
        %v1782 = vmax.f32 %v1523, %v1768
        %v1784 = vlaneseq
        %v1785 = vshrl.u32 %v1784, 7
        %v1786 = vsub.s32 0, %v1785
        %v1787 = vrot.slane %v389, %v1786
        %v1789 = vadd.f32 %v1771, %v1787
        %v1790 = vadd.f32 %v1772, %v1787
        %v1791 = vadd.f32 %v1773, %v1787
        %v1792 = vadd.f32 %v1774, %v1787
        %v1793 = vadd.f32 %v1775, %v1787
        %v1794 = vadd.f32 %v1776, %v1787
        %v1795 = vadd.f32 %v1777, %v1787
        %v1796 = vadd.f32 %v1778, %v1787
        %v1797 = vadd.f32 %v1779, %v1787
        %v1798 = vadd.f32 %v1780, %v1787
        %v1799 = vadd.f32 %v1781, %v1787
        %v1800 = vadd.f32 %v1782, %v1787
        %v1801 = vmax.f32 %v1789, 0.0
        %v1802 = vmax.f32 %v1790, 0.0
        %v1803 = vmax.f32 %v1791, 0.0
        %v1804 = vmax.f32 %v1792, 0.0
        %v1805 = vmax.f32 %v1793, 0.0
        %v1806 = vmax.f32 %v1794, 0.0
        %v1807 = vmax.f32 %v1795, 0.0
        %v1808 = vmax.f32 %v1796, 0.0
        %v1809 = vmax.f32 %v1797, 0.0
        %v1810 = vmax.f32 %v1798, 0.0
        %v1811 = vmax.f32 %v1799, 0.0
        %v1812 = vmax.f32 %v1800, 0.0
        %v1813 = vld [vmem:[#allocation6] sm:$0xff]
        %v1814 = vld [vmem:[#allocation6 + $0x8] sm:$0xff]
        %v1815 = vld [vmem:[#allocation6 + $0x10] sm:$0xff]
        %v1816 = vld [vmem:[#allocation6 + $0x18] sm:$0xff]
        %v1817 = vld [vmem:[#allocation6 + $0x20] sm:$0xff]
        %v1818 = vld [vmem:[#allocation6 + $0x28] sm:$0xff]
        %v1819 = vld [vmem:[#allocation6 + $0x30] sm:$0xff]
        %v1820 = vld [vmem:[#allocation6 + $0x38] sm:$0xff]
        %v1821 = vld [vmem:[#allocation6 + $0x40] sm:$0xff]
        %v1822 = vld [vmem:[#allocation6 + $0x48] sm:$0xff]
        %v1823 = vld [vmem:[#allocation6 + $0x50] sm:$0xff]
        %v1824 = vld [vmem:[#allocation6 + $0x58] sm:$0xff]
        %v1825 = vld [vmem:[#allocation6 + $0x60] sm:$0xff]
        %v1826 = vld [vmem:[#allocation6 + $0x68] sm:$0xff]
        %v1827 = vld [vmem:[#allocation6 + $0x70] sm:$0xff]
        %v1828 = vld [vmem:[#allocation6 + $0x78] sm:$0xff]
        %v1829 = vld [vmem:[#allocation6 + $0x80] sm:$0xff]
        %v1830 = vld [vmem:[#allocation6 + $0x88] sm:$0xff]
        %v1831 = vld [vmem:[#allocation6 + $0x90] sm:$0xff]
        %v1832 = vld [vmem:[#allocation6 + $0x98] sm:$0xff]
        %v1833 = vld [vmem:[#allocation6 + $0xa0] sm:$0xff]
        %v1834 = vld [vmem:[#allocation6 + $0xa8] sm:$0xff]
        %v1835 = vld [vmem:[#allocation6 + $0xb0] sm:$0xff]
        %v1836 = vld [vmem:[#allocation6 + $0xb8] sm:$0xff]
        %v1837 = vld [vmem:[#allocation6 + $0xc0] sm:$0xff]
        %v1838 = vld [vmem:[#allocation6 + $0xc8] sm:$0xff]
        %v1839 = vld [vmem:[#allocation6 + $0xd0] sm:$0xff]
        %v1840 = vld [vmem:[#allocation6 + $0xd8] sm:$0xff]
        %v1841 = vld [vmem:[#allocation6 + $0xe0] sm:$0xff]
        %v1842 = vld [vmem:[#allocation6 + $0xe8] sm:$0xff]
        %v1843 = vld [vmem:[#allocation6 + $0xf0] sm:$0xff]
        %v1844 = vld [vmem:[#allocation6 + $0xf8] sm:$0xff]
        %v1845 = vld [vmem:[#allocation6 + $0x100] sm:$0xff]
        %v1846 = vld [vmem:[#allocation6 + $0x108] sm:$0xff]
        %v1847 = vld [vmem:[#allocation6 + $0x110] sm:$0xff]
        %v1848 = vld [vmem:[#allocation6 + $0x118] sm:$0xff]
        %v1849 = vld [vmem:[#allocation6 + $0x120] sm:$0xff]
        %v1850 = vld [vmem:[#allocation6 + $0x128] sm:$0xff]
        %v1851 = vld [vmem:[#allocation6 + $0x130] sm:$0xff]
        %v1852 = vld [vmem:[#allocation6 + $0x138] sm:$0xff]
        %v1853 = vld [vmem:[#allocation6 + $0x140] sm:$0xff]
        %v1854 = vld [vmem:[#allocation6 + $0x148] sm:$0xff]
        %v1855 = vld [vmem:[#allocation6 + $0x150] sm:$0xff]
        %v1856 = vld [vmem:[#allocation6 + $0x158] sm:$0xff]
        %v1857 = vld [vmem:[#allocation6 + $0x160] sm:$0xff]
        %v1858 = vld [vmem:[#allocation6 + $0x168] sm:$0xff]
        %v1859 = vld [vmem:[#allocation6 + $0x170] sm:$0xff]
        %v1860 = vld [vmem:[#allocation6 + $0x178] sm:$0xff]
        %v1861 = vld [vmem:[#allocation6 + $0x180] sm:$0xff]
        %v1862 = vld [vmem:[#allocation6 + $0x188] sm:$0xff]
        %v1863 = vld [vmem:[#allocation6 + $0x190] sm:$0xff]
        %v1864 = vld [vmem:[#allocation6 + $0x198] sm:$0xff]
        %v1865 = vld [vmem:[#allocation6 + $0x1a0] sm:$0xff]
        %v1866 = vld [vmem:[#allocation6 + $0x1a8] sm:$0xff]
        %v1867 = vld [vmem:[#allocation6 + $0x1b0] sm:$0xff]
        %v1868 = vld [vmem:[#allocation6 + $0x1b8] sm:$0xff]
        %v1869 = vld [vmem:[#allocation6 + $0x1c0] sm:$0xff]
        %v1870 = vld [vmem:[#allocation6 + $0x1c8] sm:$0xff]
        %v1871 = vld [vmem:[#allocation6 + $0x1d0] sm:$0xff]
        %v1872 = vld [vmem:[#allocation6 + $0x1d8] sm:$0xff]
        %v1873 = vld [vmem:[#allocation6 + $0x1e0] sm:$0xff]
        %v1874 = vld [vmem:[#allocation6 + $0x1e8] sm:$0xff]
        %v1875 = vld [vmem:[#allocation6 + $0x1f0] sm:$0xff]
        %v1876 = vld [vmem:[#allocation6 + $0x1f8] sm:$0xff]
        %v1877 = vld [vmem:[#allocation6 + $0x200] sm:$0xff]
        %v1878 = vld [vmem:[#allocation6 + $0x208] sm:$0xff]
        %v1879 = vld [vmem:[#allocation6 + $0x210] sm:$0xff]
        %v1880 = vld [vmem:[#allocation6 + $0x218] sm:$0xff]
        %v1881 = vld [vmem:[#allocation6 + $0x220] sm:$0xff]
        %v1882 = vld [vmem:[#allocation6 + $0x228] sm:$0xff]
        %v1883 = vld [vmem:[#allocation6 + $0x230] sm:$0xff]
        %v1884 = vld [vmem:[#allocation6 + $0x238] sm:$0xff]
        %v1885 = vld [vmem:[#allocation6 + $0x240] sm:$0xff]
        %v1886 = vld [vmem:[#allocation6 + $0x248] sm:$0xff]
        %v1887 = vld [vmem:[#allocation6 + $0x250] sm:$0xff]
        %v1888 = vld [vmem:[#allocation6 + $0x258] sm:$0xff]
        %v1889 = vld [vmem:[#allocation6 + $0x260] sm:$0xff]
        %v1890 = vld [vmem:[#allocation6 + $0x268] sm:$0xff]
        %v1891 = vld [vmem:[#allocation6 + $0x270] sm:$0xff]
        %v1892 = vld [vmem:[#allocation6 + $0x278] sm:$0xff]
        %v1893 = vld [vmem:[#allocation7] sm:$0x1]
        %v1906 = vrot.slane %v1801, 1
        %v1907 = vrot.slane %v1802, 1
        %v1908 = vsel %vm415, %v1906, %v1907
        %v1909 = vrot.slane %v1803, 1
        %v1910 = vsel %vm415, %v1907, %v1909
        %v1911 = vrot.slane %v1804, 1
        %v1912 = vsel %vm415, %v1909, %v1911
        %v1913 = vrot.slane %v1805, 1
        %v1914 = vsel %vm415, %v1911, %v1913
        %v1915 = vrot.slane %v1806, 1
        %v1916 = vsel %vm415, %v1913, %v1915
        %v1917 = vrot.slane %v1807, 1
        %v1918 = vsel %vm415, %v1915, %v1917
        %v1919 = vrot.slane %v1808, 1
        %v1920 = vsel %vm415, %v1917, %v1919
        %v1921 = vrot.slane %v1809, 1
        %v1922 = vsel %vm415, %v1919, %v1921
        %v1923 = vrot.slane %v1810, 1
        %v1924 = vsel %vm415, %v1921, %v1923
        %v1925 = vrot.slane %v1811, 1
        %v1926 = vsel %vm415, %v1923, %v1925
        %v1927 = vrot.slane %v1812, 1
        %v1928 = vsel %vm415, %v1925, %v1927
        %v1941 = vrot.slane %v1801, 2
        %v1942 = vrot.slane %v1802, 2
        %v1943 = vsel %vm537, %v1941, %v1942
        %v1944 = vrot.slane %v1803, 2
        %v1945 = vsel %vm537, %v1942, %v1944
        %v1946 = vrot.slane %v1804, 2
        %v1947 = vsel %vm537, %v1944, %v1946
        %v1948 = vrot.slane %v1805, 2
        %v1949 = vsel %vm537, %v1946, %v1948
        %v1950 = vrot.slane %v1806, 2
        %v1951 = vsel %vm537, %v1948, %v1950
        %v1952 = vrot.slane %v1807, 2
        %v1953 = vsel %vm537, %v1950, %v1952
        %v1954 = vrot.slane %v1808, 2
        %v1955 = vsel %vm537, %v1952, %v1954
        %v1956 = vrot.slane %v1809, 2
        %v1957 = vsel %vm537, %v1954, %v1956
        %v1958 = vrot.slane %v1810, 2
        %v1959 = vsel %vm537, %v1956, %v1958
        %v1960 = vrot.slane %v1811, 2
        %v1961 = vsel %vm537, %v1958, %v1960
        %v1962 = vrot.slane %v1812, 2
        %v1963 = vsel %vm537, %v1960, %v1962
        %v1976 = vrot.slane %v1801, 3
        %v1977 = vrot.slane %v1802, 3
        %v1978 = vsel %vm659, %v1976, %v1977
        %v1979 = vrot.slane %v1803, 3
        %v1980 = vsel %vm659, %v1977, %v1979
        %v1981 = vrot.slane %v1804, 3
        %v1982 = vsel %vm659, %v1979, %v1981
        %v1983 = vrot.slane %v1805, 3
        %v1984 = vsel %vm659, %v1981, %v1983
        %v1985 = vrot.slane %v1806, 3
        %v1986 = vsel %vm659, %v1983, %v1985
        %v1987 = vrot.slane %v1807, 3
        %v1988 = vsel %vm659, %v1985, %v1987
        %v1989 = vrot.slane %v1808, 3
        %v1990 = vsel %vm659, %v1987, %v1989
        %v1991 = vrot.slane %v1809, 3
        %v1992 = vsel %vm659, %v1989, %v1991
        %v1993 = vrot.slane %v1810, 3
        %v1994 = vsel %vm659, %v1991, %v1993
        %v1995 = vrot.slane %v1811, 3
        %v1996 = vsel %vm659, %v1993, %v1995
        %v1997 = vrot.slane %v1812, 3
        %v1998 = vsel %vm659, %v1995, %v1997
        %v2011 = vrot.slane %v1801, 4
        %v2012 = vrot.slane %v1802, 4
        %v2013 = vsel %vm781, %v2011, %v2012
        %v2014 = vrot.slane %v1803, 4
        %v2015 = vsel %vm781, %v2012, %v2014
        %v2016 = vrot.slane %v1804, 4
        %v2017 = vsel %vm781, %v2014, %v2016
        %v2018 = vrot.slane %v1805, 4
        %v2019 = vsel %vm781, %v2016, %v2018
        %v2020 = vrot.slane %v1806, 4
        %v2021 = vsel %vm781, %v2018, %v2020
        %v2022 = vrot.slane %v1807, 4
        %v2023 = vsel %vm781, %v2020, %v2022
        %v2024 = vrot.slane %v1808, 4
        %v2025 = vsel %vm781, %v2022, %v2024
        %v2026 = vrot.slane %v1809, 4
        %v2027 = vsel %vm781, %v2024, %v2026
        %v2028 = vrot.slane %v1810, 4
        %v2029 = vsel %vm781, %v2026, %v2028
        %v2030 = vrot.slane %v1811, 4
        %v2031 = vsel %vm781, %v2028, %v2030
        %v2032 = vrot.slane %v1812, 4
        %v2033 = vsel %vm781, %v2030, %v2032
        %2046 = vmatprep.subr.mxu0 0.0
        %2047 = vmatpush1.msra.mxu0 %v1813
        %2048 = vmatprep.subr.mxu0 0.0
        %2049 = vmatpush1.msra.mxu0 %v1814
        %2050 = vmatprep.subr.mxu0 0.0
        %2051 = vmatpush1.msra.mxu0 %v1815
        %2052 = vmatprep.subr.mxu0 0.0
        %2053 = vmatpush1.msra.mxu0 %v1816
        %2054 = vmatprep.subr.mxu0 0.0
        %2055 = vmatpush1.msra.mxu0 %v1817
        %2056 = vmatprep.subr.mxu0 0.0
        %2057 = vmatpush1.msra.mxu0 %v1818
        %2058 = vmatprep.subr.mxu0 0.0
        %2059 = vmatpush1.msra.mxu0 %v1819
        %2060 = vmatprep.subr.mxu0 0.0
        %2061 = vmatpush1.msra.mxu0 %v1820
        %2062 = vmatprep.subr.mxu0 0.0
        %2063 = vmatpush1.msra.mxu0 %v1821
        %2064 = vmatprep.subr.mxu0 0.0
        %2065 = vmatpush1.msra.mxu0 %v1822
        %2066 = vmatprep.subr.mxu0 0.0
        %2067 = vmatpush1.msra.mxu0 %v1823
        %2068 = vmatprep.subr.mxu0 0.0
        %2069 = vmatpush1.msra.mxu0 %v1824
        %2070 = vmatprep.subr.mxu0 0.0
        %2071 = vmatpush1.msra.mxu0 %v1825
        %2072 = vmatprep.subr.mxu0 0.0
        %2073 = vmatpush1.msra.mxu0 %v1826
        %2074 = vmatprep.subr.mxu0 0.0
        %2075 = vmatpush1.msra.mxu0 %v1827
        %2076 = vmatprep.subr.mxu0 0.0
        %2077 = vmatpush1.msra.mxu0 %v1828
        %2078 = vmatprep.subr.mxu0 0.0
        %2079 = vmatpush1.msra.mxu0 %v1829
        %2080 = vmatprep.subr.mxu0 0.0
        %2081 = vmatpush1.msra.mxu0 %v1830
        %2082 = vmatprep.subr.mxu0 0.0
        %2083 = vmatpush1.msra.mxu0 %v1831
        %2084 = vmatprep.subr.mxu0 0.0
        %2085 = vmatpush1.msra.mxu0 %v1832
        %2086 = vmatprep.subr.mxu0 0.0
        %2087 = vmatpush1.msra.mxu0 %v1833
        %2088 = vmatprep.subr.mxu0 0.0
        %2089 = vmatpush1.msra.mxu0 %v1834
        %2090 = vmatprep.subr.mxu0 0.0
        %2091 = vmatpush1.msra.mxu0 %v1835
        %2092 = vmatprep.subr.mxu0 0.0
        %2093 = vmatpush1.msra.mxu0 %v1836
        %2094 = vmatprep.subr.mxu0 0.0
        %2095 = vmatpush1.msra.mxu0 %v1837
        %2096 = vmatprep.subr.mxu0 0.0
        %2097 = vmatpush1.msra.mxu0 %v1838
        %2098 = vmatprep.subr.mxu0 0.0
        %2099 = vmatpush1.msra.mxu0 %v1839
        %2100 = vmatprep.subr.mxu0 0.0
        %2101 = vmatpush1.msra.mxu0 %v1840
        %2102 = vmatprep.subr.mxu0 0.0
        %2103 = vmatpush1.msra.mxu0 %v1841
        %2104 = vmatprep.subr.mxu0 0.0
        %2105 = vmatpush1.msra.mxu0 %v1842
        %2106 = vmatprep.subr.mxu0 0.0
        %2107 = vmatpush1.msra.mxu0 %v1843
        %2108 = vmatprep.subr.mxu0 0.0
        %2109 = vmatpush1.msra.mxu0 %v1844
        %2110 = vmatprep.mubr.f32.mxu0 %v1908
        %2111 = vmatmul.mubr.f32.gmra.mrb[0].mxu0 %v1801
        %v2112 = vpop.f32.mrb[0].mxu0
        %v2113 = vadd.f32 0.0, %v2112
        %v2114 = vpop.f32.mrb[0].mxu0
        %2115 = vmatprep.mubr.f32.mxu0 %v1910
        %2116 = vmatmul.mubr.f32.gmra.mrb[0].mxu0 %v1802
        %v2117 = vpop.f32.mrb[0].mxu0
        %v2118 = vadd.f32 0.0, %v2117
        %v2119 = vpop.f32.mrb[0].mxu0
        %2120 = vmatprep.mubr.f32.mxu0 %v1912
        %2121 = vmatmul.mubr.f32.gmra.mrb[0].mxu0 %v1803
        %v2122 = vpop.f32.mrb[0].mxu0
        %v2123 = vadd.f32 0.0, %v2122
        %v2124 = vpop.f32.mrb[0].mxu0
        %2125 = vmatprep.mubr.f32.mxu0 %v1914
        %2126 = vmatmul.mubr.f32.gmra.mrb[0].mxu0 %v1804
        %v2127 = vpop.f32.mrb[0].mxu0
        %v2128 = vadd.f32 0.0, %v2127
        %v2129 = vpop.f32.mrb[0].mxu0
        %2130 = vmatprep.mubr.f32.mxu0 %v1916
        %2131 = vmatmul.mubr.f32.gmra.mrb[0].mxu0 %v1805
        %v2132 = vpop.f32.mrb[0].mxu0
        %v2133 = vadd.f32 0.0, %v2132
        %v2134 = vpop.f32.mrb[0].mxu0
        %2135 = vmatprep.mubr.f32.mxu0 %v1918
        %2136 = vmatmul.mubr.f32.gmra.mrb[0].mxu0 %v1806
        %v2137 = vpop.f32.mrb[0].mxu0
        %v2138 = vadd.f32 0.0, %v2137
        %v2139 = vpop.f32.mrb[0].mxu0
        %2140 = vmatprep.mubr.f32.mxu0 %v1920
        %2141 = vmatmul.mubr.f32.gmra.mrb[0].mxu0 %v1807
        %v2142 = vpop.f32.mrb[0].mxu0
        %v2143 = vadd.f32 0.0, %v2142
        %v2144 = vpop.f32.mrb[0].mxu0
        %2145 = vmatprep.mubr.f32.mxu0 %v1922
        %2146 = vmatmul.mubr.f32.gmra.mrb[0].mxu0 %v1808
        %v2147 = vpop.f32.mrb[0].mxu0
        %v2148 = vadd.f32 0.0, %v2147
        %v2149 = vpop.f32.mrb[0].mxu0
        %2150 = vmatprep.mubr.f32.mxu0 %v1924
        %2151 = vmatmul.mubr.f32.gmra.mrb[0].mxu0 %v1809
        %v2152 = vpop.f32.mrb[0].mxu0
        %v2153 = vadd.f32 0.0, %v2152
        %v2154 = vpop.f32.mrb[0].mxu0
        %2155 = vmatprep.mubr.f32.mxu0 %v1926
        %2156 = vmatmul.mubr.f32.gmra.mrb[0].mxu0 %v1810
        %v2157 = vpop.f32.mrb[0].mxu0
        %v2158 = vadd.f32 0.0, %v2157
        %v2159 = vpop.f32.mrb[0].mxu0
        %2160 = vmatprep.mubr.f32.mxu0 %v1928
        %2161 = vmatmul.mubr.f32.gmra.mrb[0].mxu0 %v1811
        %v2162 = vpop.f32.mrb[0].mxu0
        %v2163 = vadd.f32 0.0, %v2162
        %v2164 = vpop.f32.mrb[0].mxu0
        %2165 = vmatprep.mubr.f32.mxu0 %v1927
        %2166 = vmatmul.mubr.f32.gmra.mrb[0].mxu0 %v1812
        %v2167 = vpop.f32.mrb[0].mxu0
        %v2168 = vadd.f32 0.0, %v2167
        %v2169 = vpop.f32.mrb[0].mxu0
        %2170 = vdwg.mxu0
        %2171 = vmatprep.subr.mxu0 0.0
        %2172 = vmatpush1.msra.mxu0 %v1845
        %2173 = vmatprep.subr.mxu0 0.0
        %2174 = vmatpush1.msra.mxu0 %v1846
        %2175 = vmatprep.subr.mxu0 0.0
        %2176 = vmatpush1.msra.mxu0 %v1847
        %2177 = vmatprep.subr.mxu0 0.0
        %2178 = vmatpush1.msra.mxu0 %v1848
        %2179 = vmatprep.subr.mxu0 0.0
        %2180 = vmatpush1.msra.mxu0 %v1849
        %2181 = vmatprep.subr.mxu0 0.0
        %2182 = vmatpush1.msra.mxu0 %v1850
        %2183 = vmatprep.subr.mxu0 0.0
        %2184 = vmatpush1.msra.mxu0 %v1851
        %2185 = vmatprep.subr.mxu0 0.0
        %2186 = vmatpush1.msra.mxu0 %v1852
        %2187 = vmatprep.subr.mxu0 0.0
        %2188 = vmatpush1.msra.mxu0 %v1853
        %2189 = vmatprep.subr.mxu0 0.0
        %2190 = vmatpush1.msra.mxu0 %v1854
        %2191 = vmatprep.subr.mxu0 0.0
        %2192 = vmatpush1.msra.mxu0 %v1855
        %2193 = vmatprep.subr.mxu0 0.0
        %2194 = vmatpush1.msra.mxu0 %v1856
        %2195 = vmatprep.subr.mxu0 0.0
        %2196 = vmatpush1.msra.mxu0 %v1857
        %2197 = vmatprep.subr.mxu0 0.0
        %2198 = vmatpush1.msra.mxu0 %v1858
        %2199 = vmatprep.subr.mxu0 0.0
        %2200 = vmatpush1.msra.mxu0 %v1859
        %2201 = vmatprep.subr.mxu0 0.0
        %2202 = vmatpush1.msra.mxu0 %v1860
        %2203 = vmatprep.subr.mxu0 0.0
        %2204 = vmatpush1.msra.mxu0 %v1861
        %2205 = vmatprep.subr.mxu0 0.0
        %2206 = vmatpush1.msra.mxu0 %v1862
        %2207 = vmatprep.subr.mxu0 0.0
        %2208 = vmatpush1.msra.mxu0 %v1863
        %2209 = vmatprep.subr.mxu0 0.0
        %2210 = vmatpush1.msra.mxu0 %v1864
        %2211 = vmatprep.subr.mxu0 0.0
        %2212 = vmatpush1.msra.mxu0 %v1865
        %2213 = vmatprep.subr.mxu0 0.0
        %2214 = vmatpush1.msra.mxu0 %v1866
        %2215 = vmatprep.subr.mxu0 0.0
        %2216 = vmatpush1.msra.mxu0 %v1867
        %2217 = vmatprep.subr.mxu0 0.0
        %2218 = vmatpush1.msra.mxu0 %v1868
        %2219 = vmatprep.subr.mxu0 0.0
        %2220 = vmatpush1.msra.mxu0 %v1869
        %2221 = vmatprep.subr.mxu0 0.0
        %2222 = vmatpush1.msra.mxu0 %v1870
        %2223 = vmatprep.subr.mxu0 0.0
        %2224 = vmatpush1.msra.mxu0 %v1871
        %2225 = vmatprep.subr.mxu0 0.0
        %2226 = vmatpush1.msra.mxu0 %v1872
        %2227 = vmatprep.subr.mxu0 0.0
        %2228 = vmatpush1.msra.mxu0 %v1873
        %2229 = vmatprep.subr.mxu0 0.0
        %2230 = vmatpush1.msra.mxu0 %v1874
        %2231 = vmatprep.subr.mxu0 0.0
        %2232 = vmatpush1.msra.mxu0 %v1875
        %2233 = vmatprep.subr.mxu0 0.0
        %2234 = vmatpush1.msra.mxu0 %v1876
        %2235 = vmatprep.mubr.f32.mxu0 %v1978
        %2236 = vmatmul.mubr.f32.gmra.mrb[0].mxu0 %v1943
        %v2237 = vpop.f32.mrb[0].mxu0
        %v2238 = vadd.f32 %v2113, %v2237
        %v2239 = vpop.f32.mrb[0].mxu0
        %2240 = vmatprep.mubr.f32.mxu0 %v1980
        %2241 = vmatmul.mubr.f32.gmra.mrb[0].mxu0 %v1945
        %v2242 = vpop.f32.mrb[0].mxu0
        %v2243 = vadd.f32 %v2118, %v2242
        %v2244 = vpop.f32.mrb[0].mxu0
        %2245 = vmatprep.mubr.f32.mxu0 %v1982
        %2246 = vmatmul.mubr.f32.gmra.mrb[0].mxu0 %v1947
        %v2247 = vpop.f32.mrb[0].mxu0
        %v2248 = vadd.f32 %v2123, %v2247
        %v2249 = vpop.f32.mrb[0].mxu0
        %2250 = vmatprep.mubr.f32.mxu0 %v1984
        %2251 = vmatmul.mubr.f32.gmra.mrb[0].mxu0 %v1949
        %v2252 = vpop.f32.mrb[0].mxu0
        %v2253 = vadd.f32 %v2128, %v2252
        %v2254 = vpop.f32.mrb[0].mxu0
        %2255 = vmatprep.mubr.f32.mxu0 %v1986
        %2256 = vmatmul.mubr.f32.gmra.mrb[0].mxu0 %v1951
        %v2257 = vpop.f32.mrb[0].mxu0
        %v2258 = vadd.f32 %v2133, %v2257
        %v2259 = vpop.f32.mrb[0].mxu0
        %2260 = vmatprep.mubr.f32.mxu0 %v1988
        %2261 = vmatmul.mubr.f32.gmra.mrb[0].mxu0 %v1953
        %v2262 = vpop.f32.mrb[0].mxu0
        %v2263 = vadd.f32 %v2138, %v2262
        %v2264 = vpop.f32.mrb[0].mxu0
        %2265 = vmatprep.mubr.f32.mxu0 %v1990
        %2266 = vmatmul.mubr.f32.gmra.mrb[0].mxu0 %v1955
        %v2267 = vpop.f32.mrb[0].mxu0
        %v2268 = vadd.f32 %v2143, %v2267
        %v2269 = vpop.f32.mrb[0].mxu0
        %2270 = vmatprep.mubr.f32.mxu0 %v1992
        %2271 = vmatmul.mubr.f32.gmra.mrb[0].mxu0 %v1957
        %v2272 = vpop.f32.mrb[0].mxu0
        %v2273 = vadd.f32 %v2148, %v2272
        %v2274 = vpop.f32.mrb[0].mxu0
        %2275 = vmatprep.mubr.f32.mxu0 %v1994
        %2276 = vmatmul.mubr.f32.gmra.mrb[0].mxu0 %v1959
        %v2277 = vpop.f32.mrb[0].mxu0
        %v2278 = vadd.f32 %v2153, %v2277
        %v2279 = vpop.f32.mrb[0].mxu0
        %2280 = vmatprep.mubr.f32.mxu0 %v1996
        %2281 = vmatmul.mubr.f32.gmra.mrb[0].mxu0 %v1961
        %v2282 = vpop.f32.mrb[0].mxu0
        %v2283 = vadd.f32 %v2158, %v2282
        %v2284 = vpop.f32.mrb[0].mxu0
        %2285 = vmatprep.mubr.f32.mxu0 %v1998
        %2286 = vmatmul.mubr.f32.gmra.mrb[0].mxu0 %v1963
        %v2287 = vpop.f32.mrb[0].mxu0
        %v2288 = vadd.f32 %v2163, %v2287
        %v2289 = vpop.f32.mrb[0].mxu0
        %2290 = vmatprep.mubr.f32.mxu0 %v1997
        %2291 = vmatmul.mubr.f32.gmra.mrb[0].mxu0 %v1962
        %v2292 = vpop.f32.mrb[0].mxu0
        %v2293 = vadd.f32 %v2168, %v2292
        %v2294 = vpop.f32.mrb[0].mxu0
        %2295 = vdwg.mxu0
        %2296 = vmatprep.subr.mxu0 0.0
        %2297 = vmatpush1.msra.mxu0 %v1877
        %2298 = vmatprep.subr.mxu0 0.0
        %2299 = vmatpush1.msra.mxu0 %v1878
        %2300 = vmatprep.subr.mxu0 0.0
        %2301 = vmatpush1.msra.mxu0 %v1879
        %2302 = vmatprep.subr.mxu0 0.0
        %2303 = vmatpush1.msra.mxu0 %v1880
        %2304 = vmatprep.subr.mxu0 0.0
        %2305 = vmatpush1.msra.mxu0 %v1881
        %2306 = vmatprep.subr.mxu0 0.0
        %2307 = vmatpush1.msra.mxu0 %v1882
        %2308 = vmatprep.subr.mxu0 0.0
        %2309 = vmatpush1.msra.mxu0 %v1883
        %2310 = vmatprep.subr.mxu0 0.0
        %2311 = vmatpush1.msra.mxu0 %v1884
        %2312 = vmatprep.subr.mxu0 0.0
        %2313 = vmatpush1.msra.mxu0 %v1885
        %2314 = vmatprep.subr.mxu0 0.0
        %2315 = vmatpush1.msra.mxu0 %v1886
        %2316 = vmatprep.subr.mxu0 0.0
        %2317 = vmatpush1.msra.mxu0 %v1887
        %2318 = vmatprep.subr.mxu0 0.0
        %2319 = vmatpush1.msra.mxu0 %v1888
        %2320 = vmatprep.subr.mxu0 0.0
        %2321 = vmatpush1.msra.mxu0 %v1889
        %2322 = vmatprep.subr.mxu0 0.0
        %2323 = vmatpush1.msra.mxu0 %v1890
        %2324 = vmatprep.subr.mxu0 0.0
        %2325 = vmatpush1.msra.mxu0 %v1891
        %2326 = vmatprep.subr.mxu0 0.0
        %2327 = vmatpush1.msra.mxu0 %v1892
        %2328 = vmatprep.subr.mxu0 0.0
        %2329 = vmatpush1.msra.mxu0 0.0
        %2330 = vmatprep.subr.mxu0 0.0
        %2331 = vmatpush1.msra.mxu0 0.0
        %2332 = vmatprep.subr.mxu0 0.0
        %2333 = vmatpush1.msra.mxu0 0.0
        %2334 = vmatprep.subr.mxu0 0.0
        %2335 = vmatpush1.msra.mxu0 0.0
        %2336 = vmatprep.subr.mxu0 0.0
        %2337 = vmatpush1.msra.mxu0 0.0
        %2338 = vmatprep.subr.mxu0 0.0
        %2339 = vmatpush1.msra.mxu0 0.0
        %2340 = vmatprep.subr.mxu0 0.0
        %2341 = vmatpush1.msra.mxu0 0.0
        %2342 = vmatprep.subr.mxu0 0.0
        %2343 = vmatpush1.msra.mxu0 0.0
        %2344 = vmatprep.subr.mxu0 0.0
        %2345 = vmatpush1.msra.mxu0 0.0
        %2346 = vmatprep.subr.mxu0 0.0
        %2347 = vmatpush1.msra.mxu0 0.0
        %2348 = vmatprep.subr.mxu0 0.0
        %2349 = vmatpush1.msra.mxu0 0.0
        %2350 = vmatprep.subr.mxu0 0.0
        %2351 = vmatpush1.msra.mxu0 0.0
        %2352 = vmatprep.subr.mxu0 0.0
        %2353 = vmatpush1.msra.mxu0 0.0
        %2354 = vmatprep.subr.mxu0 0.0
        %2355 = vmatpush1.msra.mxu0 0.0
        %2356 = vmatprep.subr.mxu0 0.0
        %2357 = vmatpush1.msra.mxu0 0.0
        %2358 = vmatprep.subr.mxu0 0.0
        %2359 = vmatpush1.msra.mxu0 0.0
        %2360 = vmatprep.mubr.f32.mxu0 0.0
        %2361 = vmatmul.mubr.f32.gmra.mrb[0].mxu0 %v2013
        %v2362 = vpop.f32.mrb[0].mxu0
        %v2363 = vadd.f32 %v2238, %v2362
        %v2364 = vpop.f32.mrb[0].mxu0
        %2365 = vmatprep.mubr.f32.mxu0 0.0
        %2366 = vmatmul.mubr.f32.gmra.mrb[0].mxu0 %v2015
        %v2367 = vpop.f32.mrb[0].mxu0
        %v2368 = vadd.f32 %v2243, %v2367
        %v2369 = vpop.f32.mrb[0].mxu0
        %2370 = vmatprep.mubr.f32.mxu0 0.0
        %2371 = vmatmul.mubr.f32.gmra.mrb[0].mxu0 %v2017
        %v2372 = vpop.f32.mrb[0].mxu0
        %v2373 = vadd.f32 %v2248, %v2372
        %v2374 = vpop.f32.mrb[0].mxu0
        %2375 = vmatprep.mubr.f32.mxu0 0.0
        %2376 = vmatmul.mubr.f32.gmra.mrb[0].mxu0 %v2019
        %v2377 = vpop.f32.mrb[0].mxu0
        %v2378 = vadd.f32 %v2253, %v2377
        %v2379 = vpop.f32.mrb[0].mxu0
        %2380 = vmatprep.mubr.f32.mxu0 0.0
        %2381 = vmatmul.mubr.f32.gmra.mrb[0].mxu0 %v2021
        %v2382 = vpop.f32.mrb[0].mxu0
        %v2383 = vadd.f32 %v2258, %v2382
        %v2384 = vpop.f32.mrb[0].mxu0
        %2385 = vmatprep.mubr.f32.mxu0 0.0
        %2386 = vmatmul.mubr.f32.gmra.mrb[0].mxu0 %v2023
        %v2387 = vpop.f32.mrb[0].mxu0
        %v2388 = vadd.f32 %v2263, %v2387
        %v2389 = vpop.f32.mrb[0].mxu0
        %2390 = vmatprep.mubr.f32.mxu0 0.0
        %2391 = vmatmul.mubr.f32.gmra.mrb[0].mxu0 %v2025
        %v2392 = vpop.f32.mrb[0].mxu0
        %v2393 = vadd.f32 %v2268, %v2392
        %v2394 = vpop.f32.mrb[0].mxu0
        %2395 = vmatprep.mubr.f32.mxu0 0.0
        %2396 = vmatmul.mubr.f32.gmra.mrb[0].mxu0 %v2027
        %v2397 = vpop.f32.mrb[0].mxu0
        %v2398 = vadd.f32 %v2273, %v2397
        %v2399 = vpop.f32.mrb[0].mxu0
        %2400 = vmatprep.mubr.f32.mxu0 0.0
        %2401 = vmatmul.mubr.f32.gmra.mrb[0].mxu0 %v2029
        %v2402 = vpop.f32.mrb[0].mxu0
        %v2403 = vadd.f32 %v2278, %v2402
        %v2404 = vpop.f32.mrb[0].mxu0
        %2405 = vmatprep.mubr.f32.mxu0 0.0
        %2406 = vmatmul.mubr.f32.gmra.mrb[0].mxu0 %v2031
        %v2407 = vpop.f32.mrb[0].mxu0
        %v2408 = vadd.f32 %v2283, %v2407
        %v2409 = vpop.f32.mrb[0].mxu0
        %2410 = vmatprep.mubr.f32.mxu0 0.0
        %2411 = vmatmul.mubr.f32.gmra.mrb[0].mxu0 %v2033
        %v2412 = vpop.f32.mrb[0].mxu0
        %v2413 = vadd.f32 %v2288, %v2412
        %v2414 = vpop.f32.mrb[0].mxu0
        %2415 = vmatprep.mubr.f32.mxu0 0.0
        %2416 = vmatmul.mubr.f32.gmra.mrb[0].mxu0 %v2032
        %v2417 = vpop.f32.mrb[0].mxu0
        %v2418 = vadd.f32 %v2293, %v2417
        %v2419 = vpop.f32.mrb[0].mxu0
        %2420 = vdwg.mxu0
        %vm2421 = vcmask 752640
        %v2423 = vsel %vm2421, %v1340, 0
        %v2426 = vsel %vm2421, %v1342, 0
        %v2429 = vsel %vm2421, %v1344, 0
        %v2432 = vsel %vm2421, %v1346, 0
        %v2435 = vsel %vm2421, %v1348, 0
        %v2438 = vsel %vm2421, %v1350, 0
        %v2441 = vsel %vm781, %v2418, 0
        %2443 = vmatprep.subr.mxu0 0.0
        %2444 = vmatpush1.msra.mxu0 %v2363
        %2445 = vmatprep.subr.mxu0 0.0
        %2446 = vmatpush1.msra.mxu0 %v2368
        %2447 = vmatprep.subr.mxu0 0.0
        %2448 = vmatpush1.msra.mxu0 %v2373
        %2449 = vmatprep.subr.mxu0 0.0
        %2450 = vmatpush1.msra.mxu0 %v2378
        %2451 = vmatprep.subr.mxu0 0.0
        %2452 = vmatpush1.msra.mxu0 %v2383
        %2453 = vmatprep.subr.mxu0 0.0
        %2454 = vmatpush1.msra.mxu0 %v2388
        %2455 = vmatprep.subr.mxu0 0.0
        %2456 = vmatpush1.msra.mxu0 %v2393
        %2457 = vmatprep.subr.mxu0 0.0
        %2458 = vmatpush1.msra.mxu0 %v2398
        %2459 = vmatprep.subr.mxu0 0.0
        %2460 = vmatpush1.msra.mxu0 %v2403
        %2461 = vmatprep.subr.mxu0 0.0
        %2462 = vmatpush1.msra.mxu0 %v2408
        %2463 = vmatprep.subr.mxu0 0.0
        %2464 = vmatpush1.msra.mxu0 %v2413
        %2465 = vmatprep.subr.mxu0 0.0
        %2466 = vmatpush1.msra.mxu0 %v2441
        %2467 = vmatprep.subr.mxu0 0.0
        %2468 = vmatpush1.msra.mxu0 0.0
        %2469 = vmatprep.subr.mxu0 0.0
        %2470 = vmatpush1.msra.mxu0 0.0
        %2471 = vmatprep.subr.mxu0 0.0
        %2472 = vmatpush1.msra.mxu0 0.0
        %2473 = vmatprep.subr.mxu0 0.0
        %2474 = vmatpush1.msra.mxu0 0.0
        %2475 = vmatprep.subr.mxu0 0.0
        %2476 = vmatpush1.msra.mxu0 0.0
        %2477 = vmatprep.subr.mxu0 0.0
        %2478 = vmatpush1.msra.mxu0 0.0
        %2479 = vmatprep.subr.mxu0 0.0
        %2480 = vmatpush1.msra.mxu0 0.0
        %2481 = vmatprep.subr.mxu0 0.0
        %2482 = vmatpush1.msra.mxu0 0.0
        %2483 = vmatprep.subr.mxu0 0.0
        %2484 = vmatpush1.msra.mxu0 0.0
        %2485 = vmatprep.subr.mxu0 0.0
        %2486 = vmatpush1.msra.mxu0 0.0
        %2487 = vmatprep.subr.mxu0 0.0
        %2488 = vmatpush1.msra.mxu0 0.0
        %2489 = vmatprep.subr.mxu0 0.0
        %2490 = vmatpush1.msra.mxu0 0.0
        %2491 = vmatprep.subr.mxu0 0.0
        %2492 = vmatpush1.msra.mxu0 0.0
        %2493 = vmatprep.subr.mxu0 0.0
        %2494 = vmatpush1.msra.mxu0 0.0
        %2495 = vmatprep.subr.mxu0 0.0
        %2496 = vmatpush1.msra.mxu0 0.0
        %2497 = vmatprep.subr.mxu0 0.0
        %2498 = vmatpush1.msra.mxu0 0.0
        %2499 = vmatprep.subr.mxu0 0.0
        %2500 = vmatpush1.msra.mxu0 0.0
        %2501 = vmatprep.subr.mxu0 0.0
        %2502 = vmatpush1.msra.mxu0 0.0
        %2503 = vmatprep.subr.mxu0 0.0
        %2504 = vmatpush1.msra.mxu0 0.0
        %2505 = vmatprep.subr.mxu0 0.0
        %2506 = vmatpush1.msra.mxu0 0.0
        %2507 = vmatprep.mubr.f32.mxu0 0.0
        %2508 = vmatmul.mubr.f32.gmra.mrb[0].mxu0 %v2423
        %v2509 = vpop.f32.mrb[0].mxu0
        %v2510 = vadd.f32 0.0, %v2509
        %v2511 = vpop.f32.mrb[0].mxu0
        %2512 = vmatprep.mubr.f32.mxu0 0.0
        %2513 = vmatmul.mubr.f32.gmra.mrb[0].mxu0 %v2426
        %v2514 = vpop.f32.mrb[0].mxu0
        %v2515 = vadd.f32 0.0, %v2514
        %v2516 = vpop.f32.mrb[0].mxu0
        %2517 = vmatprep.mubr.f32.mxu0 0.0
        %2518 = vmatmul.mubr.f32.gmra.mrb[0].mxu0 %v2429
        %v2519 = vpop.f32.mrb[0].mxu0
        %v2520 = vadd.f32 0.0, %v2519
        %v2521 = vpop.f32.mrb[0].mxu0
        %2522 = vmatprep.mubr.f32.mxu0 0.0
        %2523 = vmatmul.mubr.f32.gmra.mrb[0].mxu0 %v2432
        %v2524 = vpop.f32.mrb[0].mxu0
        %v2525 = vadd.f32 0.0, %v2524
        %v2526 = vpop.f32.mrb[0].mxu0
        %2527 = vmatprep.mubr.f32.mxu0 0.0
        %2528 = vmatmul.mubr.f32.gmra.mrb[0].mxu0 %v2435
        %v2529 = vpop.f32.mrb[0].mxu0
        %v2530 = vadd.f32 0.0, %v2529
        %v2531 = vpop.f32.mrb[0].mxu0
        %2532 = vmatprep.mubr.f32.mxu0 0.0
        %2533 = vmatmul.mubr.f32.gmra.mrb[0].mxu0 %v2438
        %v2534 = vpop.f32.mrb[0].mxu0
        %v2535 = vadd.f32 0.0, %v2534
        %v2536 = vpop.f32.mrb[0].mxu0
        %2537 = vdwg.mxu0
        %v2539 = vsel %vm2421, %v1586, 0
        %v2542 = vsel %vm2421, %v1588, 0
        %v2545 = vsel %vm2421, %v1590, 0
        %v2548 = vsel %vm2421, %v1592, 0
        %v2551 = vsel %vm2421, %v1594, 0
        %v2554 = vsel %vm2421, %v1596, 0
        %2556 = vmatprep.subr.mxu0 0.0
        %2557 = vmatpush1.msra.mxu0 %v2363
        %2558 = vmatprep.subr.mxu0 0.0
        %2559 = vmatpush1.msra.mxu0 %v2368
        %2560 = vmatprep.subr.mxu0 0.0
        %2561 = vmatpush1.msra.mxu0 %v2373
        %2562 = vmatprep.subr.mxu0 0.0
        %2563 = vmatpush1.msra.mxu0 %v2378
        %2564 = vmatprep.subr.mxu0 0.0
        %2565 = vmatpush1.msra.mxu0 %v2383
        %2566 = vmatprep.subr.mxu0 0.0
        %2567 = vmatpush1.msra.mxu0 %v2388
        %2568 = vmatprep.subr.mxu0 0.0
        %2569 = vmatpush1.msra.mxu0 %v2393
        %2570 = vmatprep.subr.mxu0 0.0
        %2571 = vmatpush1.msra.mxu0 %v2398
        %2572 = vmatprep.subr.mxu0 0.0
        %2573 = vmatpush1.msra.mxu0 %v2403
        %2574 = vmatprep.subr.mxu0 0.0
        %2575 = vmatpush1.msra.mxu0 %v2408
        %2576 = vmatprep.subr.mxu0 0.0
        %2577 = vmatpush1.msra.mxu0 %v2413
        %2578 = vmatprep.subr.mxu0 0.0
        %2579 = vmatpush1.msra.mxu0 %v2441
        %2580 = vmatprep.subr.mxu0 0.0
        %2581 = vmatpush1.msra.mxu0 0.0
        %2582 = vmatprep.subr.mxu0 0.0
        %2583 = vmatpush1.msra.mxu0 0.0
        %2584 = vmatprep.subr.mxu0 0.0
        %2585 = vmatpush1.msra.mxu0 0.0
        %2586 = vmatprep.subr.mxu0 0.0
        %2587 = vmatpush1.msra.mxu0 0.0
        %2588 = vmatprep.subr.mxu0 0.0
        %2589 = vmatpush1.msra.mxu0 0.0
        %2590 = vmatprep.subr.mxu0 0.0
        %2591 = vmatpush1.msra.mxu0 0.0
        %2592 = vmatprep.subr.mxu0 0.0
        %2593 = vmatpush1.msra.mxu0 0.0
        %2594 = vmatprep.subr.mxu0 0.0
        %2595 = vmatpush1.msra.mxu0 0.0
        %2596 = vmatprep.subr.mxu0 0.0
        %2597 = vmatpush1.msra.mxu0 0.0
        %2598 = vmatprep.subr.mxu0 0.0
        %2599 = vmatpush1.msra.mxu0 0.0
        %2600 = vmatprep.subr.mxu0 0.0
        %2601 = vmatpush1.msra.mxu0 0.0
        %2602 = vmatprep.subr.mxu0 0.0
        %2603 = vmatpush1.msra.mxu0 0.0
        %2604 = vmatprep.subr.mxu0 0.0
        %2605 = vmatpush1.msra.mxu0 0.0
        %2606 = vmatprep.subr.mxu0 0.0
        %2607 = vmatpush1.msra.mxu0 0.0
        %2608 = vmatprep.subr.mxu0 0.0
        %2609 = vmatpush1.msra.mxu0 0.0
        %2610 = vmatprep.subr.mxu0 0.0
        %2611 = vmatpush1.msra.mxu0 0.0
        %2612 = vmatprep.subr.mxu0 0.0
        %2613 = vmatpush1.msra.mxu0 0.0
        %2614 = vmatprep.subr.mxu0 0.0
        %2615 = vmatpush1.msra.mxu0 0.0
        %2616 = vmatprep.subr.mxu0 0.0
        %2617 = vmatpush1.msra.mxu0 0.0
        %2618 = vmatprep.subr.mxu0 0.0
        %2619 = vmatpush1.msra.mxu0 0.0
        %2620 = vmatprep.mubr.f32.mxu0 0.0
        %2621 = vmatmul.mubr.f32.gmra.mrb[0].mxu0 %v2539
        %v2622 = vpop.f32.mrb[0].mxu0
        %v2623 = vadd.f32 0.0, %v2622
        %v2624 = vpop.f32.mrb[0].mxu0
        %2625 = vmatprep.mubr.f32.mxu0 0.0
        %2626 = vmatmul.mubr.f32.gmra.mrb[0].mxu0 %v2542
        %v2627 = vpop.f32.mrb[0].mxu0
        %v2628 = vadd.f32 0.0, %v2627
        %v2629 = vpop.f32.mrb[0].mxu0
        %2630 = vmatprep.mubr.f32.mxu0 0.0
        %2631 = vmatmul.mubr.f32.gmra.mrb[0].mxu0 %v2545
        %v2632 = vpop.f32.mrb[0].mxu0
        %v2633 = vadd.f32 0.0, %v2632
        %v2634 = vpop.f32.mrb[0].mxu0
        %2635 = vmatprep.mubr.f32.mxu0 0.0
        %2636 = vmatmul.mubr.f32.gmra.mrb[0].mxu0 %v2548
        %v2637 = vpop.f32.mrb[0].mxu0
        %v2638 = vadd.f32 0.0, %v2637
        %v2639 = vpop.f32.mrb[0].mxu0
        %2640 = vmatprep.mubr.f32.mxu0 0.0
        %2641 = vmatmul.mubr.f32.gmra.mrb[0].mxu0 %v2551
        %v2642 = vpop.f32.mrb[0].mxu0
        %v2643 = vadd.f32 0.0, %v2642
        %v2644 = vpop.f32.mrb[0].mxu0
        %2645 = vmatprep.mubr.f32.mxu0 0.0
        %2646 = vmatmul.mubr.f32.gmra.mrb[0].mxu0 %v2554
        %v2647 = vpop.f32.mrb[0].mxu0
        %v2648 = vadd.f32 0.0, %v2647
        %v2649 = vpop.f32.mrb[0].mxu0
        %2650 = vdwg.mxu0
        %v2651 = vmax.f32 %v2510, %v2623
        %v2652 = vmax.f32 %v2515, %v2628
        %v2653 = vmax.f32 %v2520, %v2633
        %v2654 = vmax.f32 %v2525, %v2638
        %v2655 = vmax.f32 %v2530, %v2643
        %v2656 = vmax.f32 %v2535, %v2648
        %v2658 = vlaneseq
        %v2659 = vshrl.u32 %v2658, 7
        %v2660 = vsub.s32 0, %v2659
        %v2661 = vrot.slane %v1893, %v2660
        %v2663 = vadd.f32 %v2651, %v2661
        %v2664 = vadd.f32 %v2652, %v2661
        %v2665 = vadd.f32 %v2653, %v2661
        %v2666 = vadd.f32 %v2654, %v2661
        %v2667 = vadd.f32 %v2655, %v2661
        %v2668 = vadd.f32 %v2656, %v2661
        %v2669 = vmax.f32 %v2663, 0.0
        %v2670 = vmax.f32 %v2664, 0.0
        %v2671 = vmax.f32 %v2665, 0.0
        %v2672 = vmax.f32 %v2666, 0.0
        %v2673 = vmax.f32 %v2667, 0.0
        %v2674 = vmax.f32 %v2668, 0.0
        %v2675 = vld [vmem:[#allocation9] sm:$0xff]
        %v2676 = vld [vmem:[#allocation9 + $0x8] sm:$0xff]
        %v2677 = vld [vmem:[#allocation9 + $0x10] sm:$0xff]
        %v2678 = vld [vmem:[#allocation9 + $0x18] sm:$0xff]
        %v2679 = vld [vmem:[#allocation9 + $0x20] sm:$0xff]
        %v2680 = vld [vmem:[#allocation9 + $0x28] sm:$0xff]
        %v2681 = vld [vmem:[#allocation9 + $0x30] sm:$0xff]
        %v2682 = vld [vmem:[#allocation9 + $0x38] sm:$0xff]
        %v2683 = vld [vmem:[#allocation9 + $0x40] sm:$0xff]
        %v2684 = vld [vmem:[#allocation9 + $0x48] sm:$0xff]
        %v2685 = vld [vmem:[#allocation9 + $0x50] sm:$0xff]
        %v2686 = vld [vmem:[#allocation9 + $0x58] sm:$0xff]
        %v2687 = vld [vmem:[#allocation9 + $0x60] sm:$0xff]
        %v2688 = vld [vmem:[#allocation9 + $0x68] sm:$0xff]
        %v2689 = vld [vmem:[#allocation9 + $0x70] sm:$0xff]
        %v2690 = vld [vmem:[#allocation9 + $0x78] sm:$0xff]
        %v2691 = vld [vmem:[#allocation9 + $0x80] sm:$0xff]
        %v2692 = vld [vmem:[#allocation9 + $0x88] sm:$0xff]
        %v2693 = vld [vmem:[#allocation9 + $0x90] sm:$0xff]
        %v2694 = vld [vmem:[#allocation9 + $0x98] sm:$0xff]
        %v2695 = vld [vmem:[#allocation9 + $0xa0] sm:$0xff]
        %v2696 = vld [vmem:[#allocation9 + $0xa8] sm:$0xff]
        %v2697 = vld [vmem:[#allocation9 + $0xb0] sm:$0xff]
        %v2698 = vld [vmem:[#allocation9 + $0xb8] sm:$0xff]
        %v2699 = vld [vmem:[#allocation9 + $0xc0] sm:$0xff]
        %v2700 = vld [vmem:[#allocation9 + $0xc8] sm:$0xff]
        %v2701 = vld [vmem:[#allocation9 + $0xd0] sm:$0xff]
        %v2702 = vld [vmem:[#allocation9 + $0xd8] sm:$0xff]
        %v2703 = vld [vmem:[#allocation9 + $0xe0] sm:$0xff]
        %v2704 = vld [vmem:[#allocation9 + $0xe8] sm:$0xff]
        %v2705 = vld [vmem:[#allocation9 + $0xf0] sm:$0xff]
        %v2706 = vld [vmem:[#allocation9 + $0xf8] sm:$0xff]
        %v2707 = vld [vmem:[#allocation9 + $0x100] sm:$0xff]
        %v2708 = vld [vmem:[#allocation9 + $0x108] sm:$0xff]
        %v2709 = vld [vmem:[#allocation9 + $0x110] sm:$0xff]
        %v2710 = vld [vmem:[#allocation9 + $0x118] sm:$0xff]
        %v2711 = vld [vmem:[#allocation9 + $0x120] sm:$0xff]
        %v2712 = vld [vmem:[#allocation9 + $0x128] sm:$0xff]
        %v2713 = vld [vmem:[#allocation9 + $0x130] sm:$0xff]
        %v2714 = vld [vmem:[#allocation9 + $0x138] sm:$0xff]
        %v2715 = vld [vmem:[#allocation9 + $0x140] sm:$0xff]
        %v2716 = vld [vmem:[#allocation9 + $0x148] sm:$0xff]
        %v2717 = vld [vmem:[#allocation9 + $0x150] sm:$0xff]
        %v2718 = vld [vmem:[#allocation9 + $0x158] sm:$0xff]
        %v2719 = vld [vmem:[#allocation9 + $0x160] sm:$0xff]
        %v2720 = vld [vmem:[#allocation9 + $0x168] sm:$0xff]
        %v2721 = vld [vmem:[#allocation9 + $0x170] sm:$0xff]
        %v2722 = vld [vmem:[#allocation9 + $0x178] sm:$0xff]
        %v2723 = vld [vmem:[#allocation9 + $0x180] sm:$0xff]
        %v2724 = vld [vmem:[#allocation9 + $0x188] sm:$0xff]
        %v2725 = vld [vmem:[#allocation9 + $0x190] sm:$0xff]
        %v2726 = vld [vmem:[#allocation9 + $0x198] sm:$0xff]
        %v2727 = vld [vmem:[#allocation9 + $0x1a0] sm:$0xff]
        %v2728 = vld [vmem:[#allocation9 + $0x1a8] sm:$0xff]
        %v2729 = vld [vmem:[#allocation9 + $0x1b0] sm:$0xff]
        %v2730 = vld [vmem:[#allocation9 + $0x1b8] sm:$0xff]
        %v2731 = vld [vmem:[#allocation9 + $0x1c0] sm:$0xff]
        %v2732 = vld [vmem:[#allocation9 + $0x1c8] sm:$0xff]
        %v2733 = vld [vmem:[#allocation9 + $0x1d0] sm:$0xff]
        %v2734 = vld [vmem:[#allocation9 + $0x1d8] sm:$0xff]
        %v2735 = vld [vmem:[#allocation9 + $0x1e0] sm:$0xff]
        %v2736 = vld [vmem:[#allocation9 + $0x1e8] sm:$0xff]
        %v2737 = vld [vmem:[#allocation9 + $0x1f0] sm:$0xff]
        %v2738 = vld [vmem:[#allocation9 + $0x1f8] sm:$0xff]
        %v2739 = vld [vmem:[#allocation9 + $0x200] sm:$0xff]
        %v2740 = vld [vmem:[#allocation9 + $0x208] sm:$0xff]
        %v2741 = vld [vmem:[#allocation9 + $0x210] sm:$0xff]
        %v2742 = vld [vmem:[#allocation9 + $0x218] sm:$0xff]
        %v2743 = vld [vmem:[#allocation9 + $0x220] sm:$0xff]
        %v2744 = vld [vmem:[#allocation9 + $0x228] sm:$0xff]
        %v2745 = vld [vmem:[#allocation9 + $0x230] sm:$0xff]
        %v2746 = vld [vmem:[#allocation9 + $0x238] sm:$0xff]
        %v2747 = vld [vmem:[#allocation9 + $0x240] sm:$0xff]
        %v2748 = vld [vmem:[#allocation9 + $0x248] sm:$0xff]
        %v2749 = vld [vmem:[#allocation9 + $0x250] sm:$0xff]
        %v2750 = vld [vmem:[#allocation9 + $0x258] sm:$0xff]
        %v2751 = vld [vmem:[#allocation9 + $0x260] sm:$0xff]
        %v2752 = vld [vmem:[#allocation9 + $0x268] sm:$0xff]
        %v2753 = vld [vmem:[#allocation9 + $0x270] sm:$0xff]
        %v2754 = vld [vmem:[#allocation9 + $0x278] sm:$0xff]
        %v2755 = vld [vmem:[#allocation9 + $0x280] sm:$0xff]
        %v2756 = vld [vmem:[#allocation9 + $0x288] sm:$0xff]
        %v2757 = vld [vmem:[#allocation9 + $0x290] sm:$0xff]
        %v2758 = vld [vmem:[#allocation9 + $0x298] sm:$0xff]
        %v2759 = vld [vmem:[#allocation9 + $0x2a0] sm:$0xff]
        %v2760 = vld [vmem:[#allocation9 + $0x2a8] sm:$0xff]
        %v2761 = vld [vmem:[#allocation9 + $0x2b0] sm:$0xff]
        %v2762 = vld [vmem:[#allocation9 + $0x2b8] sm:$0xff]
        %v2763 = vld [vmem:[#allocation9 + $0x2c0] sm:$0xff]
        %v2764 = vld [vmem:[#allocation9 + $0x2c8] sm:$0xff]
        %v2765 = vld [vmem:[#allocation9 + $0x2d0] sm:$0xff]
        %v2766 = vld [vmem:[#allocation9 + $0x2d8] sm:$0xff]
        %v2767 = vld [vmem:[#allocation9 + $0x2e0] sm:$0xff]
        %v2768 = vld [vmem:[#allocation9 + $0x2e8] sm:$0xff]
        %v2769 = vld [vmem:[#allocation9 + $0x2f0] sm:$0xff]
        %v2770 = vld [vmem:[#allocation9 + $0x2f8] sm:$0xff]
        %v2771 = vld [vmem:[#allocation9 + $0x300] sm:$0xff]
        %v2772 = vld [vmem:[#allocation9 + $0x308] sm:$0xff]
        %v2773 = vld [vmem:[#allocation9 + $0x310] sm:$0xff]
        %v2774 = vld [vmem:[#allocation9 + $0x318] sm:$0xff]
        %v2775 = vld [vmem:[#allocation9 + $0x320] sm:$0xff]
        %v2776 = vld [vmem:[#allocation9 + $0x328] sm:$0xff]
        %v2777 = vld [vmem:[#allocation9 + $0x330] sm:$0xff]
        %v2778 = vld [vmem:[#allocation9 + $0x338] sm:$0xff]
        %v2779 = vld [vmem:[#allocation9 + $0x340] sm:$0xff]
        %v2780 = vld [vmem:[#allocation9 + $0x348] sm:$0xff]
        %v2781 = vld [vmem:[#allocation9 + $0x350] sm:$0xff]
        %v2782 = vld [vmem:[#allocation9 + $0x358] sm:$0xff]
        %v2783 = vld [vmem:[#allocation9 + $0x360] sm:$0xff]
        %v2784 = vld [vmem:[#allocation9 + $0x368] sm:$0xff]
        %v2785 = vld [vmem:[#allocation9 + $0x370] sm:$0xff]
        %v2786 = vld [vmem:[#allocation9 + $0x378] sm:$0xff]
        %v2787 = vld [vmem:[#allocation9 + $0x380] sm:$0xff]
        %v2788 = vld [vmem:[#allocation9 + $0x388] sm:$0xff]
        %v2789 = vld [vmem:[#allocation9 + $0x390] sm:$0xff]
        %v2790 = vld [vmem:[#allocation9 + $0x398] sm:$0xff]
        %v2791 = vld [vmem:[#allocation9 + $0x3a0] sm:$0xff]
        %v2792 = vld [vmem:[#allocation9 + $0x3a8] sm:$0xff]
        %v2793 = vld [vmem:[#allocation9 + $0x3b0] sm:$0xff]
        %v2794 = vld [vmem:[#allocation9 + $0x3b8] sm:$0xff]
        %v2795 = vld [vmem:[#allocation9 + $0x3c0] sm:$0xff]
        %v2796 = vld [vmem:[#allocation9 + $0x3c8] sm:$0xff]
        %v2797 = vld [vmem:[#allocation9 + $0x3d0] sm:$0xff]
        %v2798 = vld [vmem:[#allocation9 + $0x3d8] sm:$0xff]
        %v2799 = vld [vmem:[#allocation9 + $0x3e0] sm:$0xff]
        %v2800 = vld [vmem:[#allocation9 + $0x3e8] sm:$0xff]
        %v2801 = vld [vmem:[#allocation9 + $0x3f0] sm:$0xff]
        %v2802 = vld [vmem:[#allocation9 + $0x3f8] sm:$0xff]
        %v2803 = vld [vmem:[#allocation9 + $0x400] sm:$0xff]
        %v2804 = vld [vmem:[#allocation9 + $0x408] sm:$0xff]
        %v2805 = vld [vmem:[#allocation9 + $0x410] sm:$0xff]
        %v2806 = vld [vmem:[#allocation9 + $0x418] sm:$0xff]
        %v2807 = vld [vmem:[#allocation9 + $0x420] sm:$0xff]
        %v2808 = vld [vmem:[#allocation9 + $0x428] sm:$0xff]
        %v2809 = vld [vmem:[#allocation9 + $0x430] sm:$0xff]
        %v2810 = vld [vmem:[#allocation9 + $0x438] sm:$0xff]
        %v2811 = vld [vmem:[#allocation9 + $0x440] sm:$0xff]
        %v2812 = vld [vmem:[#allocation9 + $0x448] sm:$0xff]
        %v2813 = vld [vmem:[#allocation9 + $0x450] sm:$0xff]
        %v2814 = vld [vmem:[#allocation9 + $0x458] sm:$0xff]
        %v2815 = vld [vmem:[#allocation9 + $0x460] sm:$0xff]
        %v2816 = vld [vmem:[#allocation9 + $0x468] sm:$0xff]
        %v2817 = vld [vmem:[#allocation9 + $0x470] sm:$0xff]
        %v2818 = vld [vmem:[#allocation9 + $0x478] sm:$0xff]
        %v2819 = vld [vmem:[#allocation9 + $0x480] sm:$0xff]
        %v2820 = vld [vmem:[#allocation9 + $0x488] sm:$0xff]
        %v2821 = vld [vmem:[#allocation9 + $0x490] sm:$0xff]
        %v2822 = vld [vmem:[#allocation9 + $0x498] sm:$0xff]
        %v2823 = vld [vmem:[#allocation9 + $0x4a0] sm:$0xff]
        %v2824 = vld [vmem:[#allocation9 + $0x4a8] sm:$0xff]
        %v2825 = vld [vmem:[#allocation9 + $0x4b0] sm:$0xff]
        %v2826 = vld [vmem:[#allocation9 + $0x4b8] sm:$0xff]
        %v2827 = vld [vmem:[#allocation9 + $0x4c0] sm:$0xff]
        %v2828 = vld [vmem:[#allocation9 + $0x4c8] sm:$0xff]
        %v2829 = vld [vmem:[#allocation9 + $0x4d0] sm:$0xff]
        %v2830 = vld [vmem:[#allocation9 + $0x4d8] sm:$0xff]
        %v2831 = vld [vmem:[#allocation9 + $0x4e0] sm:$0xff]
        %v2832 = vld [vmem:[#allocation9 + $0x4e8] sm:$0xff]
        %v2833 = vld [vmem:[#allocation9 + $0x4f0] sm:$0xff]
        %v2834 = vld [vmem:[#allocation9 + $0x4f8] sm:$0xff]
        %v2835 = vld [vmem:[#allocation10] sm:$0x3]
        %v2842 = vrot.slane %v2669, 1
        %v2843 = vrot.slane %v2670, 1
        %v2844 = vsel %vm415, %v2842, %v2843
        %v2845 = vrot.slane %v2671, 1
        %v2846 = vsel %vm415, %v2843, %v2845
        %v2847 = vrot.slane %v2672, 1
        %v2848 = vsel %vm415, %v2845, %v2847
        %v2849 = vrot.slane %v2673, 1
        %v2850 = vsel %vm415, %v2847, %v2849
        %v2851 = vrot.slane %v2674, 1
        %v2852 = vsel %vm415, %v2849, %v2851
        %v2859 = vrot.slane %v2669, 2
        %v2860 = vrot.slane %v2670, 2
        %v2861 = vsel %vm537, %v2859, %v2860
        %v2862 = vrot.slane %v2671, 2
        %v2863 = vsel %vm537, %v2860, %v2862
        %v2864 = vrot.slane %v2672, 2
        %v2865 = vsel %vm537, %v2862, %v2864
        %v2866 = vrot.slane %v2673, 2
        %v2867 = vsel %vm537, %v2864, %v2866
        %v2868 = vrot.slane %v2674, 2
        %v2869 = vsel %vm537, %v2866, %v2868
        %v2876 = vrot.slane %v2669, 3
        %v2877 = vrot.slane %v2670, 3
        %v2878 = vsel %vm659, %v2876, %v2877
        %v2879 = vrot.slane %v2671, 3
        %v2880 = vsel %vm659, %v2877, %v2879
        %v2881 = vrot.slane %v2672, 3
        %v2882 = vsel %vm659, %v2879, %v2881
        %v2883 = vrot.slane %v2673, 3
        %v2884 = vsel %vm659, %v2881, %v2883
        %v2885 = vrot.slane %v2674, 3
        %v2886 = vsel %vm659, %v2883, %v2885
        %v2893 = vrot.slane %v2669, 4
        %v2894 = vrot.slane %v2670, 4
        %v2895 = vsel %vm781, %v2893, %v2894
        %v2896 = vrot.slane %v2671, 4
        %v2897 = vsel %vm781, %v2894, %v2896
        %v2898 = vrot.slane %v2672, 4
        %v2899 = vsel %vm781, %v2896, %v2898
        %v2900 = vrot.slane %v2673, 4
        %v2901 = vsel %vm781, %v2898, %v2900
        %v2902 = vrot.slane %v2674, 4
        %v2903 = vsel %vm781, %v2900, %v2902
        %2910 = vmatprep.subr.mxu0 %v2676
        %2911 = vmatpush1.msra.mxu0 %v2675
        %2912 = vmatprep.subr.mxu0 %v2678
        %2913 = vmatpush1.msra.mxu0 %v2677
        %2914 = vmatprep.subr.mxu0 %v2680
        %2915 = vmatpush1.msra.mxu0 %v2679
        %2916 = vmatprep.subr.mxu0 %v2682
        %2917 = vmatpush1.msra.mxu0 %v2681
        %2918 = vmatprep.subr.mxu0 %v2684
        %2919 = vmatpush1.msra.mxu0 %v2683
        %2920 = vmatprep.subr.mxu0 %v2686
        %2921 = vmatpush1.msra.mxu0 %v2685
        %2922 = vmatprep.subr.mxu0 %v2688
        %2923 = vmatpush1.msra.mxu0 %v2687
        %2924 = vmatprep.subr.mxu0 %v2690
        %2925 = vmatpush1.msra.mxu0 %v2689
        %2926 = vmatprep.subr.mxu0 %v2692
        %2927 = vmatpush1.msra.mxu0 %v2691
        %2928 = vmatprep.subr.mxu0 %v2694
        %2929 = vmatpush1.msra.mxu0 %v2693
        %2930 = vmatprep.subr.mxu0 %v2696
        %2931 = vmatpush1.msra.mxu0 %v2695
        %2932 = vmatprep.subr.mxu0 %v2698
        %2933 = vmatpush1.msra.mxu0 %v2697
        %2934 = vmatprep.subr.mxu0 %v2700
        %2935 = vmatpush1.msra.mxu0 %v2699
        %2936 = vmatprep.subr.mxu0 %v2702
        %2937 = vmatpush1.msra.mxu0 %v2701
        %2938 = vmatprep.subr.mxu0 %v2704
        %2939 = vmatpush1.msra.mxu0 %v2703
        %2940 = vmatprep.subr.mxu0 %v2706
        %2941 = vmatpush1.msra.mxu0 %v2705
        %2942 = vmatprep.subr.mxu0 %v2708
        %2943 = vmatpush1.msra.mxu0 %v2707
        %2944 = vmatprep.subr.mxu0 %v2710
        %2945 = vmatpush1.msra.mxu0 %v2709
        %2946 = vmatprep.subr.mxu0 %v2712
        %2947 = vmatpush1.msra.mxu0 %v2711
        %2948 = vmatprep.subr.mxu0 %v2714
        %2949 = vmatpush1.msra.mxu0 %v2713
        %2950 = vmatprep.subr.mxu0 %v2716
        %2951 = vmatpush1.msra.mxu0 %v2715
        %2952 = vmatprep.subr.mxu0 %v2718
        %2953 = vmatpush1.msra.mxu0 %v2717
        %2954 = vmatprep.subr.mxu0 %v2720
        %2955 = vmatpush1.msra.mxu0 %v2719
        %2956 = vmatprep.subr.mxu0 %v2722
        %2957 = vmatpush1.msra.mxu0 %v2721
        %2958 = vmatprep.subr.mxu0 %v2724
        %2959 = vmatpush1.msra.mxu0 %v2723
        %2960 = vmatprep.subr.mxu0 %v2726
        %2961 = vmatpush1.msra.mxu0 %v2725
        %2962 = vmatprep.subr.mxu0 %v2728
        %2963 = vmatpush1.msra.mxu0 %v2727
        %2964 = vmatprep.subr.mxu0 %v2730
        %2965 = vmatpush1.msra.mxu0 %v2729
        %2966 = vmatprep.subr.mxu0 %v2732
        %2967 = vmatpush1.msra.mxu0 %v2731
        %2968 = vmatprep.subr.mxu0 %v2734
        %2969 = vmatpush1.msra.mxu0 %v2733
        %2970 = vmatprep.subr.mxu0 %v2736
        %2971 = vmatpush1.msra.mxu0 %v2735
        %2972 = vmatprep.subr.mxu0 %v2738
        %2973 = vmatpush1.msra.mxu0 %v2737
        %2974 = vmatprep.mubr.f32.mxu0 %v2844
        %2975 = vmatmul.mubr.f32.gmra.mrb[0].mxu0 %v2669
        %v2976 = vpop.f32.mrb[0].mxu0
        %v2977 = vadd.f32 0.0, %v2976
        %v2978 = vpop.f32.mrb[0].mxu0
        %v2979 = vadd.f32 0.0, %v2978
        %2980 = vmatprep.mubr.f32.mxu0 %v2846
        %2981 = vmatmul.mubr.f32.gmra.mrb[0].mxu0 %v2670
        %v2982 = vpop.f32.mrb[0].mxu0
        %v2983 = vadd.f32 0.0, %v2982
        %v2984 = vpop.f32.mrb[0].mxu0
        %v2985 = vadd.f32 0.0, %v2984
        %2986 = vmatprep.mubr.f32.mxu0 %v2848
        %2987 = vmatmul.mubr.f32.gmra.mrb[0].mxu0 %v2671
        %v2988 = vpop.f32.mrb[0].mxu0
        %v2989 = vadd.f32 0.0, %v2988
        %v2990 = vpop.f32.mrb[0].mxu0
        %v2991 = vadd.f32 0.0, %v2990
        %2992 = vmatprep.mubr.f32.mxu0 %v2850
        %2993 = vmatmul.mubr.f32.gmra.mrb[0].mxu0 %v2672
        %v2994 = vpop.f32.mrb[0].mxu0
        %v2995 = vadd.f32 0.0, %v2994
        %v2996 = vpop.f32.mrb[0].mxu0
        %v2997 = vadd.f32 0.0, %v2996
        %2998 = vmatprep.mubr.f32.mxu0 %v2852
        %2999 = vmatmul.mubr.f32.gmra.mrb[0].mxu0 %v2673
        %v3000 = vpop.f32.mrb[0].mxu0
        %v3001 = vadd.f32 0.0, %v3000
        %v3002 = vpop.f32.mrb[0].mxu0
        %v3003 = vadd.f32 0.0, %v3002
        %3004 = vmatprep.mubr.f32.mxu0 %v2851
        %3005 = vmatmul.mubr.f32.gmra.mrb[0].mxu0 %v2674
        %v3006 = vpop.f32.mrb[0].mxu0
        %v3007 = vadd.f32 0.0, %v3006
        %v3008 = vpop.f32.mrb[0].mxu0
        %v3009 = vadd.f32 0.0, %v3008
        %3010 = vdwg.mxu0
        %3011 = vmatprep.subr.mxu0 %v2740
        %3012 = vmatpush1.msra.mxu0 %v2739
        %3013 = vmatprep.subr.mxu0 %v2742
        %3014 = vmatpush1.msra.mxu0 %v2741
        %3015 = vmatprep.subr.mxu0 %v2744
        %3016 = vmatpush1.msra.mxu0 %v2743
        %3017 = vmatprep.subr.mxu0 %v2746
        %3018 = vmatpush1.msra.mxu0 %v2745
        %3019 = vmatprep.subr.mxu0 %v2748
        %3020 = vmatpush1.msra.mxu0 %v2747
        %3021 = vmatprep.subr.mxu0 %v2750
        %3022 = vmatpush1.msra.mxu0 %v2749
        %3023 = vmatprep.subr.mxu0 %v2752
        %3024 = vmatpush1.msra.mxu0 %v2751
        %3025 = vmatprep.subr.mxu0 %v2754
        %3026 = vmatpush1.msra.mxu0 %v2753
        %3027 = vmatprep.subr.mxu0 %v2756
        %3028 = vmatpush1.msra.mxu0 %v2755
        %3029 = vmatprep.subr.mxu0 %v2758
        %3030 = vmatpush1.msra.mxu0 %v2757
        %3031 = vmatprep.subr.mxu0 %v2760
        %3032 = vmatpush1.msra.mxu0 %v2759
        %3033 = vmatprep.subr.mxu0 %v2762
        %3034 = vmatpush1.msra.mxu0 %v2761
        %3035 = vmatprep.subr.mxu0 %v2764
        %3036 = vmatpush1.msra.mxu0 %v2763
        %3037 = vmatprep.subr.mxu0 %v2766
        %3038 = vmatpush1.msra.mxu0 %v2765
        %3039 = vmatprep.subr.mxu0 %v2768
        %3040 = vmatpush1.msra.mxu0 %v2767
        %3041 = vmatprep.subr.mxu0 %v2770
        %3042 = vmatpush1.msra.mxu0 %v2769
        %3043 = vmatprep.subr.mxu0 %v2772
        %3044 = vmatpush1.msra.mxu0 %v2771
        %3045 = vmatprep.subr.mxu0 %v2774
        %3046 = vmatpush1.msra.mxu0 %v2773
        %3047 = vmatprep.subr.mxu0 %v2776
        %3048 = vmatpush1.msra.mxu0 %v2775
        %3049 = vmatprep.subr.mxu0 %v2778
        %3050 = vmatpush1.msra.mxu0 %v2777
        %3051 = vmatprep.subr.mxu0 %v2780
        %3052 = vmatpush1.msra.mxu0 %v2779
        %3053 = vmatprep.subr.mxu0 %v2782
        %3054 = vmatpush1.msra.mxu0 %v2781
        %3055 = vmatprep.subr.mxu0 %v2784
        %3056 = vmatpush1.msra.mxu0 %v2783
        %3057 = vmatprep.subr.mxu0 %v2786
        %3058 = vmatpush1.msra.mxu0 %v2785
        %3059 = vmatprep.subr.mxu0 %v2788
        %3060 = vmatpush1.msra.mxu0 %v2787
        %3061 = vmatprep.subr.mxu0 %v2790
        %3062 = vmatpush1.msra.mxu0 %v2789
        %3063 = vmatprep.subr.mxu0 %v2792
        %3064 = vmatpush1.msra.mxu0 %v2791
        %3065 = vmatprep.subr.mxu0 %v2794
        %3066 = vmatpush1.msra.mxu0 %v2793
        %3067 = vmatprep.subr.mxu0 %v2796
        %3068 = vmatpush1.msra.mxu0 %v2795
        %3069 = vmatprep.subr.mxu0 %v2798
        %3070 = vmatpush1.msra.mxu0 %v2797
        %3071 = vmatprep.subr.mxu0 %v2800
        %3072 = vmatpush1.msra.mxu0 %v2799
        %3073 = vmatprep.subr.mxu0 %v2802
        %3074 = vmatpush1.msra.mxu0 %v2801
        %3075 = vmatprep.mubr.f32.mxu0 %v2878
        %3076 = vmatmul.mubr.f32.gmra.mrb[0].mxu0 %v2861
        %v3077 = vpop.f32.mrb[0].mxu0
        %v3078 = vadd.f32 %v2977, %v3077
        %v3079 = vpop.f32.mrb[0].mxu0
        %v3080 = vadd.f32 %v2979, %v3079
        %3081 = vmatprep.mubr.f32.mxu0 %v2880
        %3082 = vmatmul.mubr.f32.gmra.mrb[0].mxu0 %v2863
        %v3083 = vpop.f32.mrb[0].mxu0
        %v3084 = vadd.f32 %v2983, %v3083
        %v3085 = vpop.f32.mrb[0].mxu0
        %v3086 = vadd.f32 %v2985, %v3085
        %3087 = vmatprep.mubr.f32.mxu0 %v2882
        %3088 = vmatmul.mubr.f32.gmra.mrb[0].mxu0 %v2865
        %v3089 = vpop.f32.mrb[0].mxu0
        %v3090 = vadd.f32 %v2989, %v3089
        %v3091 = vpop.f32.mrb[0].mxu0
        %v3092 = vadd.f32 %v2991, %v3091
        %3093 = vmatprep.mubr.f32.mxu0 %v2884
        %3094 = vmatmul.mubr.f32.gmra.mrb[0].mxu0 %v2867
        %v3095 = vpop.f32.mrb[0].mxu0
        %v3096 = vadd.f32 %v2995, %v3095
        %v3097 = vpop.f32.mrb[0].mxu0
        %v3098 = vadd.f32 %v2997, %v3097
        %3099 = vmatprep.mubr.f32.mxu0 %v2886
        %3100 = vmatmul.mubr.f32.gmra.mrb[0].mxu0 %v2869
        %v3101 = vpop.f32.mrb[0].mxu0
        %v3102 = vadd.f32 %v3001, %v3101
        %v3103 = vpop.f32.mrb[0].mxu0
        %v3104 = vadd.f32 %v3003, %v3103
        %3105 = vmatprep.mubr.f32.mxu0 %v2885
        %3106 = vmatmul.mubr.f32.gmra.mrb[0].mxu0 %v2868
        %v3107 = vpop.f32.mrb[0].mxu0
        %v3108 = vadd.f32 %v3007, %v3107
        %v3109 = vpop.f32.mrb[0].mxu0
        %v3110 = vadd.f32 %v3009, %v3109
        %3111 = vdwg.mxu0
        %3112 = vmatprep.subr.mxu0 %v2804
        %3113 = vmatpush1.msra.mxu0 %v2803
        %3114 = vmatprep.subr.mxu0 %v2806
        %3115 = vmatpush1.msra.mxu0 %v2805
        %3116 = vmatprep.subr.mxu0 %v2808
        %3117 = vmatpush1.msra.mxu0 %v2807
        %3118 = vmatprep.subr.mxu0 %v2810
        %3119 = vmatpush1.msra.mxu0 %v2809
        %3120 = vmatprep.subr.mxu0 %v2812
        %3121 = vmatpush1.msra.mxu0 %v2811
        %3122 = vmatprep.subr.mxu0 %v2814
        %3123 = vmatpush1.msra.mxu0 %v2813
        %3124 = vmatprep.subr.mxu0 %v2816
        %3125 = vmatpush1.msra.mxu0 %v2815
        %3126 = vmatprep.subr.mxu0 %v2818
        %3127 = vmatpush1.msra.mxu0 %v2817
        %3128 = vmatprep.subr.mxu0 %v2820
        %3129 = vmatpush1.msra.mxu0 %v2819
        %3130 = vmatprep.subr.mxu0 %v2822
        %3131 = vmatpush1.msra.mxu0 %v2821
        %3132 = vmatprep.subr.mxu0 %v2824
        %3133 = vmatpush1.msra.mxu0 %v2823
        %3134 = vmatprep.subr.mxu0 %v2826
        %3135 = vmatpush1.msra.mxu0 %v2825
        %3136 = vmatprep.subr.mxu0 %v2828
        %3137 = vmatpush1.msra.mxu0 %v2827
        %3138 = vmatprep.subr.mxu0 %v2830
        %3139 = vmatpush1.msra.mxu0 %v2829
        %3140 = vmatprep.subr.mxu0 %v2832
        %3141 = vmatpush1.msra.mxu0 %v2831
        %3142 = vmatprep.subr.mxu0 %v2834
        %3143 = vmatpush1.msra.mxu0 %v2833
        %3144 = vmatprep.subr.mxu0 0.0
        %3145 = vmatpush1.msra.mxu0 0.0
        %3146 = vmatprep.subr.mxu0 0.0
        %3147 = vmatpush1.msra.mxu0 0.0
        %3148 = vmatprep.subr.mxu0 0.0
        %3149 = vmatpush1.msra.mxu0 0.0
        %3150 = vmatprep.subr.mxu0 0.0
        %3151 = vmatpush1.msra.mxu0 0.0
        %3152 = vmatprep.subr.mxu0 0.0
        %3153 = vmatpush1.msra.mxu0 0.0
        %3154 = vmatprep.subr.mxu0 0.0
        %3155 = vmatpush1.msra.mxu0 0.0
        %3156 = vmatprep.subr.mxu0 0.0
        %3157 = vmatpush1.msra.mxu0 0.0
        %3158 = vmatprep.subr.mxu0 0.0
        %3159 = vmatpush1.msra.mxu0 0.0
        %3160 = vmatprep.subr.mxu0 0.0
        %3161 = vmatpush1.msra.mxu0 0.0
        %3162 = vmatprep.subr.mxu0 0.0
        %3163 = vmatpush1.msra.mxu0 0.0
        %3164 = vmatprep.subr.mxu0 0.0
        %3165 = vmatpush1.msra.mxu0 0.0
        %3166 = vmatprep.subr.mxu0 0.0
        %3167 = vmatpush1.msra.mxu0 0.0
        %3168 = vmatprep.subr.mxu0 0.0
        %3169 = vmatpush1.msra.mxu0 0.0
        %3170 = vmatprep.subr.mxu0 0.0
        %3171 = vmatpush1.msra.mxu0 0.0
        %3172 = vmatprep.subr.mxu0 0.0
        %3173 = vmatpush1.msra.mxu0 0.0
        %3174 = vmatprep.subr.mxu0 0.0
        %3175 = vmatpush1.msra.mxu0 0.0
        %3176 = vmatprep.mubr.f32.mxu0 0.0
        %3177 = vmatmul.mubr.f32.gmra.mrb[0].mxu0 %v2895
        %v3178 = vpop.f32.mrb[0].mxu0
        %v3179 = vadd.f32 %v3078, %v3178
        %v3180 = vpop.f32.mrb[0].mxu0
        %v3181 = vadd.f32 %v3080, %v3180
        %3182 = vmatprep.mubr.f32.mxu0 0.0
        %3183 = vmatmul.mubr.f32.gmra.mrb[0].mxu0 %v2897
        %v3184 = vpop.f32.mrb[0].mxu0
        %v3185 = vadd.f32 %v3084, %v3184
        %v3186 = vpop.f32.mrb[0].mxu0
        %v3187 = vadd.f32 %v3086, %v3186
        %3188 = vmatprep.mubr.f32.mxu0 0.0
        %3189 = vmatmul.mubr.f32.gmra.mrb[0].mxu0 %v2899
        %v3190 = vpop.f32.mrb[0].mxu0
        %v3191 = vadd.f32 %v3090, %v3190
        %v3192 = vpop.f32.mrb[0].mxu0
        %v3193 = vadd.f32 %v3092, %v3192
        %3194 = vmatprep.mubr.f32.mxu0 0.0
        %3195 = vmatmul.mubr.f32.gmra.mrb[0].mxu0 %v2901
        %v3196 = vpop.f32.mrb[0].mxu0
        %v3197 = vadd.f32 %v3096, %v3196
        %v3198 = vpop.f32.mrb[0].mxu0
        %v3199 = vadd.f32 %v3098, %v3198
        %3200 = vmatprep.mubr.f32.mxu0 0.0
        %3201 = vmatmul.mubr.f32.gmra.mrb[0].mxu0 %v2903
        %v3202 = vpop.f32.mrb[0].mxu0
        %v3203 = vadd.f32 %v3102, %v3202
        %v3204 = vpop.f32.mrb[0].mxu0
        %v3205 = vadd.f32 %v3104, %v3204
        %3206 = vmatprep.mubr.f32.mxu0 0.0
        %3207 = vmatmul.mubr.f32.gmra.mrb[0].mxu0 %v2902
        %v3208 = vpop.f32.mrb[0].mxu0
        %v3209 = vadd.f32 %v3108, %v3208
        %v3210 = vpop.f32.mrb[0].mxu0
        %v3211 = vadd.f32 %v3110, %v3210
        %3212 = vdwg.mxu0
        %vm3213 = vcmask 343040
        %v3214 = vsel %vm3213, %v1340, 0
        %v3216 = vsel %vm3213, %v1342, 0
        %v3218 = vsel %vm3213, %v1344, 0
        %vm3220 = vcmask 1041408
        %v3222 = vsel %vm3220, %v3209, 0
        %v3225 = vsel %vm3220, %v3211, 0
        %3227 = vmatprep.subr.mxu0 %v3181
        %3228 = vmatpush1.msra.mxu0 %v3179
        %3229 = vmatprep.subr.mxu0 %v3187
        %3230 = vmatpush1.msra.mxu0 %v3185
        %3231 = vmatprep.subr.mxu0 %v3193
        %3232 = vmatpush1.msra.mxu0 %v3191
        %3233 = vmatprep.subr.mxu0 %v3199
        %3234 = vmatpush1.msra.mxu0 %v3197
        %3235 = vmatprep.subr.mxu0 %v3205
        %3236 = vmatpush1.msra.mxu0 %v3203
        %3237 = vmatprep.subr.mxu0 %v3225
        %3238 = vmatpush1.msra.mxu0 %v3222
        %3239 = vmatprep.subr.mxu0 0.0
        %3240 = vmatpush1.msra.mxu0 0.0
        %3241 = vmatprep.subr.mxu0 0.0
        %3242 = vmatpush1.msra.mxu0 0.0
        %3243 = vmatprep.subr.mxu0 0.0
        %3244 = vmatpush1.msra.mxu0 0.0
        %3245 = vmatprep.subr.mxu0 0.0
        %3246 = vmatpush1.msra.mxu0 0.0
        %3247 = vmatprep.subr.mxu0 0.0
        %3248 = vmatpush1.msra.mxu0 0.0
        %3249 = vmatprep.subr.mxu0 0.0
        %3250 = vmatpush1.msra.mxu0 0.0
        %3251 = vmatprep.subr.mxu0 0.0
        %3252 = vmatpush1.msra.mxu0 0.0
        %3253 = vmatprep.subr.mxu0 0.0
        %3254 = vmatpush1.msra.mxu0 0.0
        %3255 = vmatprep.subr.mxu0 0.0
        %3256 = vmatpush1.msra.mxu0 0.0
        %3257 = vmatprep.subr.mxu0 0.0
        %3258 = vmatpush1.msra.mxu0 0.0
        %3259 = vmatprep.subr.mxu0 0.0
        %3260 = vmatpush1.msra.mxu0 0.0
        %3261 = vmatprep.subr.mxu0 0.0
        %3262 = vmatpush1.msra.mxu0 0.0
        %3263 = vmatprep.subr.mxu0 0.0
        %3264 = vmatpush1.msra.mxu0 0.0
        %3265 = vmatprep.subr.mxu0 0.0
        %3266 = vmatpush1.msra.mxu0 0.0
        %3267 = vmatprep.subr.mxu0 0.0
        %3268 = vmatpush1.msra.mxu0 0.0
        %3269 = vmatprep.subr.mxu0 0.0
        %3270 = vmatpush1.msra.mxu0 0.0
        %3271 = vmatprep.subr.mxu0 0.0
        %3272 = vmatpush1.msra.mxu0 0.0
        %3273 = vmatprep.subr.mxu0 0.0
        %3274 = vmatpush1.msra.mxu0 0.0
        %3275 = vmatprep.subr.mxu0 0.0
        %3276 = vmatpush1.msra.mxu0 0.0
        %3277 = vmatprep.subr.mxu0 0.0
        %3278 = vmatpush1.msra.mxu0 0.0
        %3279 = vmatprep.subr.mxu0 0.0
        %3280 = vmatpush1.msra.mxu0 0.0
        %3281 = vmatprep.subr.mxu0 0.0
        %3282 = vmatpush1.msra.mxu0 0.0
        %3283 = vmatprep.subr.mxu0 0.0
        %3284 = vmatpush1.msra.mxu0 0.0
        %3285 = vmatprep.subr.mxu0 0.0
        %3286 = vmatpush1.msra.mxu0 0.0
        %3287 = vmatprep.subr.mxu0 0.0
        %3288 = vmatpush1.msra.mxu0 0.0
        %3289 = vmatprep.subr.mxu0 0.0
        %3290 = vmatpush1.msra.mxu0 0.0
        %3291 = vmatprep.mubr.f32.mxu0 0.0
        %3292 = vmatmul.mubr.f32.gmra.mrb[0].mxu0 %v3214
        %v3293 = vpop.f32.mrb[0].mxu0
        %v3294 = vadd.f32 0.0, %v3293
        %v3295 = vpop.f32.mrb[0].mxu0
        %v3296 = vadd.f32 0.0, %v3295
        %3297 = vmatprep.mubr.f32.mxu0 0.0
        %3298 = vmatmul.mubr.f32.gmra.mrb[0].mxu0 %v3216
        %v3299 = vpop.f32.mrb[0].mxu0
        %v3300 = vadd.f32 0.0, %v3299
        %v3301 = vpop.f32.mrb[0].mxu0
        %v3302 = vadd.f32 0.0, %v3301
        %3303 = vmatprep.mubr.f32.mxu0 0.0
        %3304 = vmatmul.mubr.f32.gmra.mrb[0].mxu0 %v3218
        %v3305 = vpop.f32.mrb[0].mxu0
        %v3306 = vadd.f32 0.0, %v3305
        %v3307 = vpop.f32.mrb[0].mxu0
        %v3308 = vadd.f32 0.0, %v3307
        %3309 = vdwg.mxu0
        %v3310 = vsel %vm3213, %v1586, 0
        %v3312 = vsel %vm3213, %v1588, 0
        %v3314 = vsel %vm3213, %v1590, 0
        %3316 = vmatprep.subr.mxu0 %v3181
        %3317 = vmatpush1.msra.mxu0 %v3179
        %3318 = vmatprep.subr.mxu0 %v3187
        %3319 = vmatpush1.msra.mxu0 %v3185
        %3320 = vmatprep.subr.mxu0 %v3193
        %3321 = vmatpush1.msra.mxu0 %v3191
        %3322 = vmatprep.subr.mxu0 %v3199
        %3323 = vmatpush1.msra.mxu0 %v3197
        %3324 = vmatprep.subr.mxu0 %v3205
        %3325 = vmatpush1.msra.mxu0 %v3203
        %3326 = vmatprep.subr.mxu0 %v3225
        %3327 = vmatpush1.msra.mxu0 %v3222
        %3328 = vmatprep.subr.mxu0 0.0
        %3329 = vmatpush1.msra.mxu0 0.0
        %3330 = vmatprep.subr.mxu0 0.0
        %3331 = vmatpush1.msra.mxu0 0.0
        %3332 = vmatprep.subr.mxu0 0.0
        %3333 = vmatpush1.msra.mxu0 0.0
        %3334 = vmatprep.subr.mxu0 0.0
        %3335 = vmatpush1.msra.mxu0 0.0
        %3336 = vmatprep.subr.mxu0 0.0
        %3337 = vmatpush1.msra.mxu0 0.0
        %3338 = vmatprep.subr.mxu0 0.0
        %3339 = vmatpush1.msra.mxu0 0.0
        %3340 = vmatprep.subr.mxu0 0.0
        %3341 = vmatpush1.msra.mxu0 0.0
        %3342 = vmatprep.subr.mxu0 0.0
        %3343 = vmatpush1.msra.mxu0 0.0
        %3344 = vmatprep.subr.mxu0 0.0
        %3345 = vmatpush1.msra.mxu0 0.0
        %3346 = vmatprep.subr.mxu0 0.0
        %3347 = vmatpush1.msra.mxu0 0.0
        %3348 = vmatprep.subr.mxu0 0.0
        %3349 = vmatpush1.msra.mxu0 0.0
        %3350 = vmatprep.subr.mxu0 0.0
        %3351 = vmatpush1.msra.mxu0 0.0
        %3352 = vmatprep.subr.mxu0 0.0
        %3353 = vmatpush1.msra.mxu0 0.0
        %3354 = vmatprep.subr.mxu0 0.0
        %3355 = vmatpush1.msra.mxu0 0.0
        %3356 = vmatprep.subr.mxu0 0.0
        %3357 = vmatpush1.msra.mxu0 0.0
        %3358 = vmatprep.subr.mxu0 0.0
        %3359 = vmatpush1.msra.mxu0 0.0
        %3360 = vmatprep.subr.mxu0 0.0
        %3361 = vmatpush1.msra.mxu0 0.0
        %3362 = vmatprep.subr.mxu0 0.0
        %3363 = vmatpush1.msra.mxu0 0.0
        %3364 = vmatprep.subr.mxu0 0.0
        %3365 = vmatpush1.msra.mxu0 0.0
        %3366 = vmatprep.subr.mxu0 0.0
        %3367 = vmatpush1.msra.mxu0 0.0
        %3368 = vmatprep.subr.mxu0 0.0
        %3369 = vmatpush1.msra.mxu0 0.0
        %3370 = vmatprep.subr.mxu0 0.0
        %3371 = vmatpush1.msra.mxu0 0.0
        %3372 = vmatprep.subr.mxu0 0.0
        %3373 = vmatpush1.msra.mxu0 0.0
        %3374 = vmatprep.subr.mxu0 0.0
        %3375 = vmatpush1.msra.mxu0 0.0
        %3376 = vmatprep.subr.mxu0 0.0
        %3377 = vmatpush1.msra.mxu0 0.0
        %3378 = vmatprep.subr.mxu0 0.0
        %3379 = vmatpush1.msra.mxu0 0.0
        %3380 = vmatprep.mubr.f32.mxu0 0.0
        %3381 = vmatmul.mubr.f32.gmra.mrb[0].mxu0 %v3310
        %v3382 = vpop.f32.mrb[0].mxu0
        %v3383 = vadd.f32 0.0, %v3382
        %v3384 = vpop.f32.mrb[0].mxu0
        %v3385 = vadd.f32 0.0, %v3384
        %3386 = vmatprep.mubr.f32.mxu0 0.0
        %3387 = vmatmul.mubr.f32.gmra.mrb[0].mxu0 %v3312
        %v3388 = vpop.f32.mrb[0].mxu0
        %v3389 = vadd.f32 0.0, %v3388
        %v3390 = vpop.f32.mrb[0].mxu0
        %v3391 = vadd.f32 0.0, %v3390
        %3392 = vmatprep.mubr.f32.mxu0 0.0
        %3393 = vmatmul.mubr.f32.gmra.mrb[0].mxu0 %v3314
        %v3394 = vpop.f32.mrb[0].mxu0
        %v3395 = vadd.f32 0.0, %v3394
        %v3396 = vpop.f32.mrb[0].mxu0
        %v3397 = vadd.f32 0.0, %v3396
        %3398 = vdwg.mxu0
        %v3399 = vmax.f32 %v3294, %v3383
        %v3400 = vmax.f32 %v3296, %v3385
        %v3401 = vmax.f32 %v3300, %v3389
        %v3402 = vmax.f32 %v3302, %v3391
        %v3403 = vmax.f32 %v3306, %v3395
        %v3404 = vmax.f32 %v3308, %v3397
        %v3406 = vlaneseq
        %v3407 = vshrl.u32 %v3406, 7
        %v3408 = vsub.s32 0, %v3407
        %v3409 = vrot.slane %v2835, %v3408
        %v3410 = vlaneseq
        %v3411 = vshrl.u32 %v3410, 7
        %v3412 = vsub.s32 1, %v3411
        %v3413 = vrot.slane %v2835, %v3412
        %v3416 = vadd.f32 %v3399, %v3409
        %v3417 = vadd.f32 %v3400, %v3413
        %v3418 = vadd.f32 %v3401, %v3409
        %v3419 = vadd.f32 %v3402, %v3413
        %v3420 = vadd.f32 %v3403, %v3409
        %v3421 = vadd.f32 %v3404, %v3413
        %v3422 = vmax.f32 %v3416, 0.0
        %v3423 = vmax.f32 %v3417, 0.0
        %v3424 = vmax.f32 %v3418, 0.0
        %v3425 = vmax.f32 %v3419, 0.0
        %v3426 = vmax.f32 %v3420, 0.0
        %v3427 = vmax.f32 %v3421, 0.0
        %3428 = vst [vmem:[%s360] sm:$0xff] %v3422
        %3429 = vst [vmem:[%s360 + $0x8] sm:$0xff] %v3423
        %3430 = vst [vmem:[%s360 + $0x10] sm:$0xff] %v3424
        %3431 = vst [vmem:[%s360 + $0x18] sm:$0xff] %v3425
        %3432 = vst [vmem:[%s360 + $0x20] sm:$0x1f] %v3426
        %3433 = vst [vmem:[%s360 + $0x28] sm:$0x1f] %v3427
        %p3434 = scmp.lt.s32.totalorder %s22, 1
        %s3435 = scalar_select %p3434, %s22, 1
        %s3436 = smul.addr %s3435, 6
        %s3437 = smul.addr %s3436, 8
        %s3438 = scalar_lea.vmem %s7, %s3437
        // Predicated region
        $region73: #{cnn2d_forward.2} parent=47 // pred_check
          %p3439 = pneg %p192
        $region74: #{cnn2d_forward.2} parent=47 // pred_check_branch
          %3441 = sbr.rel (%p3439) target = $region76
        $region75: #{cnn2d_forward.2} parent=47 // pred_region
          _
        $region76: #{cnn2d_forward.2} parent=47 // pred_fallthru
          _
      $region48: #{cnn2d_forward.2} parent=5 // pred_fallthru
        _
      %p3442 = scmp.le.s32.totalorder 2, %s17
      // Predicated region
      $region77: #{cnn2d_forward.2} parent=5 // pred_check
        %p3443 = pneg %p3442
      $region78: #{cnn2d_forward.2} parent=5 // pred_check_branch
        %3445 = sbr.rel (%p3443) target = $region80
      $region79: #{cnn2d_forward.2} parent=5 // pred_region
        %s3446 = ssub.s32 %s17, 2
        // Predicated region
        $region81: #{cnn2d_forward.2} parent=79 // pred_check
          %p3447 = pneg %p198
        $region82: #{cnn2d_forward.2} parent=79 // pred_check_branch
          %3449 = sbr.rel (%p3447) target = $region84
        $region83: #{cnn2d_forward.2} parent=79 // pred_region
          %p3450 = scmp.lt.s32.totalorder %s23, 1
          %s3451 = scalar_select %p3450, %s23, 1
          %s3452 = smul.addr %s3451, 6
          %s3453 = smul.addr %s3452, 8
          %s3454 = scalar_lea.vmem %s7, %s3453
        $region84: #{cnn2d_forward.2} parent=79 // pred_fallthru
          _
      $region80: #{cnn2d_forward.2} parent=5 // pred_fallthru
        _
    $region6: #{cnn2d_forward.2} parent=1 // loop_footer
      %s21 = sadd.s32 1, %s17
    $region7: #{cnn2d_forward.2} parent=1 // loop_footer_branch
      %16 = sbr.rel target = $region3
    $region8: #{cnn2d_forward.2} parent=1 // loop_exit
      _
    %3455 = vsyncpa [#allocation3], 1
    %s3456 = scalar_lea.sflag [#allocation3], 1
    %3457 = vsyncpa %s3456, 1
    %3458 = vsyncpa [#allocation5], 1
    %3459 = vsyncpa [#allocation8], 1
    %3460 = vsyncpa [#allocation11], 1

// kernel: cnn2d_forward.3
$region0: #{cnn2d_forward.3}
  #allocation0 [shape = 'u32[]', space=smem, size = 0x4, offset = 0x4, fixed_abs, tag = 'smem constant byte address 0x4 - core index']
  #allocation1 [shape = 'u32[144,128]{1,0:T(1,128)}', space=vmem, size = 0x12000, scoped, tag = 'internal scratch']
  #allocation2 [shape = 'f32[2,1024]{1,0:T(2,128)}', space=vmem, size = 0x2000, scoped, tag = 'scratch operand']
  %s0 = inlined_call_operand.vmem [shape: f32[2,5376], index: 0, kind: input, shape index: {}]
  %s1 = inlined_call_operand.hbm [shape: bf16[5376,1024], index: 1, kind: input, shape index: {}]
  %s2 = inlined_call_operand.hbm [shape: f32[1,1024], index: 2, kind: input, shape index: {}]
  %s3 = inlined_call_operand.vmem [shape: f32[1024,4], index: 3, kind: input, shape index: {}]
  %s4 = inlined_call_operand.hbm [shape: f32[1,4], index: 4, kind: input, shape index: {}]
  %s5 = inlined_call_operand.hbm [shape: f32[2,4], index: 5, kind: output, shape index: {}]
  %s6 = sld [smem:[#allocation0]]
  $region73: #{cnn2d_forward.3} parent=0
    _
  %s8 = ssub.s32 1, %s6
  %s9 = scalar_select 0, %s8, %s6
  $region1: #{cnn2d_forward.3} parent=0
    #allocation3 [shape = 'u8[7340032]{0}', space=vmem, size = 0x700000, scoped, tag = 'input window, operand 1']
    #allocation4 [shape = 's32[2]{0}', space=sflag, size = 0x8, scoped, tag = 'scoped memory for cnn2d_forward.3']
    #allocation5 [shape = 's32[2]{0}', space=sflag, size = 0x8, scoped, tag = 'scoped memory for cnn2d_forward.3']
    #allocation6 [shape = 'u8[4096]{0}', space=vmem, size = 0x1000, scoped, tag = 'input window, operand 2, single buffered']
    #allocation7 [shape = 's32[1]{0}', space=sflag, size = 0x4, scoped, tag = 'scoped memory for cnn2d_forward.3']
    #allocation8 [shape = 'u8[512]{0}', space=vmem, size = 0x400, scoped, tag = 'input window, operand 4, single buffered']
    #allocation9 [shape = 'u8[1024]{0}', space=vmem, size = 0x400, scoped, tag = 'output window, operand 0, single buffered']
    %10 = vsyncpa [#allocation4], 0
    %s11 = scalar_lea.sflag [#allocation4], 1
    %12 = vsyncpa %s11, 0
    %13 = vsyncpa [#allocation7], 0
    %14 = vsyncpa [#allocation5], 0
    loop: start=0, step=1, limit=5
    $region2: #{cnn2d_forward.3} parent=1 // loop_pre_header
      _
    $region3: #{cnn2d_forward.3} parent=1 // loop_header
      %s16 = sphi 0, %s20
      %p17 = scmp.ge.s32.totalorder %s16, 5
      %s26 = sphi 0, %s28
      %s29 = sphi 0, %s26
      %s30 = sphi 0, %s29
      %s46 = sphi 0, %s30
      %s52 = sphi 0, %s54
      %s55 = sphi 0, %s52
      %s56 = sphi 0, %s55
      %s72 = sphi 0, %s56
      %s76 = sphi 0, %s76
      %s78 = sphi 0, %s76
      %s79 = sphi 0, %s78
      %s93 = sphi 0, %s79
      %s97 = sphi 0, %s97
      %s99 = sphi 0, %s97
      %s100 = sphi 0, %s99
      %s114 = sphi 0, %s100
      %s118 = sphi 0, %s118
      %s120 = sphi 0, %s118
      %s121 = sphi 0, %s120
      %s135 = sphi 0, %s121
      %s139 = sphi 0, %s139
      %s141 = sphi 0, %s139
      %s142 = sphi 0, %s141
      %s156 = sphi 0, %s142
    $region4: #{cnn2d_forward.3} parent=1 // loop_header_branch
      %19 = sbr.rel (%p17) target = $region8
    $region5: #{cnn2d_forward.3} parent=1 // loop_body
      %s21 = ssub.s32 %s16, 1
      %s22 = ssub.s32 %s16, 2
      %s23 = sadd.s32 %s16, 1
      %s24 = ssub.s32 %s16, %s23
      %p25 = scmp.eq.s32.totalorder %s24, 0
      %s27 = sadd.s32 %s26, 1
      %s28 = scalar_select %p25, %s26, %s27
      %p31 = pneg %p25
      %p32 = scmp.eq.s32.totalorder %s16, 2
      %p33 = por %p31, %p32
      %p34 = scmp.ne.s32.totalorder %s26, %s29
      %p35 = scmp.eq.s32.totalorder %s16, 0
      %p36 = por %p34, %p35
      %p37 = scmp.ne.s32.totalorder %s26, %s29
      %p38 = scmp.eq.s32.totalorder %s21, 2
      %p39 = por %p37, %p38
      %p40 = scmp.ne.s32.totalorder %s29, %s30
      %p41 = scmp.eq.s32.totalorder %s21, 0
      %p42 = por %p40, %p41
      %p43 = scmp.ne.s32.totalorder %s29, %s30
      %p44 = scmp.eq.s32.totalorder %s22, 2
      %p45 = por %p43, %p44
      %p47 = scmp.ne.s32.totalorder %s30, %s46
      %p48 = scmp.eq.s32.totalorder %s22, 0
      %p49 = por %p47, %p48
      %s50 = ssub.s32 %s16, %s23
      %p51 = scmp.eq.s32.totalorder %s50, 0
      %s53 = sadd.s32 %s52, 1
      %s54 = scalar_select %p51, %s52, %s53
      %p57 = pneg %p51
      %p58 = scmp.eq.s32.totalorder %s16, 2
      %p59 = por %p57, %p58
      %p60 = scmp.ne.s32.totalorder %s52, %s55
      %p61 = scmp.eq.s32.totalorder %s16, 0
      %p62 = por %p60, %p61
      %p63 = scmp.ne.s32.totalorder %s52, %s55
      %p64 = scmp.eq.s32.totalorder %s21, 2
      %p65 = por %p63, %p64
      %p66 = scmp.ne.s32.totalorder %s55, %s56
      %p67 = scmp.eq.s32.totalorder %s21, 0
      %p68 = por %p66, %p67
      %p69 = scmp.ne.s32.totalorder %s55, %s56
      %p70 = scmp.eq.s32.totalorder %s22, 2
      %p71 = por %p69, %p70
      %p73 = scmp.ne.s32.totalorder %s56, %s72
      %p74 = scmp.eq.s32.totalorder %s22, 0
      %p75 = por %p73, %p74
      %s77 = sadd.s32 %s76, 1
      %p80 = scmp.eq.s32.totalorder %s16, 2
      %p81 = scmp.ne.s32.totalorder %s76, %s78
      %p82 = scmp.eq.s32.totalorder %s16, 0
      %p83 = por %p81, %p82
      %p84 = scmp.ne.s32.totalorder %s76, %s78
      %p85 = scmp.eq.s32.totalorder %s21, 2
      %p86 = por %p84, %p85
      %p87 = scmp.ne.s32.totalorder %s78, %s79
      %p88 = scmp.eq.s32.totalorder %s21, 0
      %p89 = por %p87, %p88
      %p90 = scmp.ne.s32.totalorder %s78, %s79
      %p91 = scmp.eq.s32.totalorder %s22, 2
      %p92 = por %p90, %p91
      %p94 = scmp.ne.s32.totalorder %s79, %s93
      %p95 = scmp.eq.s32.totalorder %s22, 0
      %p96 = por %p94, %p95
      %s98 = sadd.s32 %s97, 1
      %p101 = scmp.eq.s32.totalorder %s16, 2
      %p102 = scmp.ne.s32.totalorder %s97, %s99
      %p103 = scmp.eq.s32.totalorder %s16, 0
      %p104 = por %p102, %p103
      %p105 = scmp.ne.s32.totalorder %s97, %s99
      %p106 = scmp.eq.s32.totalorder %s21, 2
      %p107 = por %p105, %p106
      %p108 = scmp.ne.s32.totalorder %s99, %s100
      %p109 = scmp.eq.s32.totalorder %s21, 0
      %p110 = por %p108, %p109
      %p111 = scmp.ne.s32.totalorder %s99, %s100
      %p112 = scmp.eq.s32.totalorder %s22, 2
      %p113 = por %p111, %p112
      %p115 = scmp.ne.s32.totalorder %s100, %s114
      %p116 = scmp.eq.s32.totalorder %s22, 0
      %p117 = por %p115, %p116
      %s119 = sadd.s32 %s118, 1
      %p122 = scmp.eq.s32.totalorder %s16, 2
      %p123 = scmp.ne.s32.totalorder %s118, %s120
      %p124 = scmp.eq.s32.totalorder %s16, 0
      %p125 = por %p123, %p124
      %p126 = scmp.ne.s32.totalorder %s118, %s120
      %p127 = scmp.eq.s32.totalorder %s21, 2
      %p128 = por %p126, %p127
      %p129 = scmp.ne.s32.totalorder %s120, %s121
      %p130 = scmp.eq.s32.totalorder %s21, 0
      %p131 = por %p129, %p130
      %p132 = scmp.ne.s32.totalorder %s120, %s121
      %p133 = scmp.eq.s32.totalorder %s22, 2
      %p134 = por %p132, %p133
      %p136 = scmp.ne.s32.totalorder %s121, %s135
      %p137 = scmp.eq.s32.totalorder %s22, 0
      %p138 = por %p136, %p137
      %s140 = sadd.s32 %s139, 1
      %p143 = scmp.eq.s32.totalorder %s16, 2
      %p144 = scmp.ne.s32.totalorder %s139, %s141
      %p145 = scmp.eq.s32.totalorder %s16, 0
      %p146 = por %p144, %p145
      %p147 = scmp.ne.s32.totalorder %s139, %s141
      %p148 = scmp.eq.s32.totalorder %s21, 2
      %p149 = por %p147, %p148
      %p150 = scmp.ne.s32.totalorder %s141, %s142
      %p151 = scmp.eq.s32.totalorder %s21, 0
      %p152 = por %p150, %p151
      %p153 = scmp.ne.s32.totalorder %s141, %s142
      %p154 = scmp.eq.s32.totalorder %s22, 2
      %p155 = por %p153, %p154
      %p157 = scmp.ne.s32.totalorder %s142, %s156
      %p158 = scmp.eq.s32.totalorder %s22, 0
      %p159 = por %p157, %p158
      %p160 = scmp.le.s32.totalorder 1, %s16
      %p161 = scmp.lt.s32.totalorder %s16, 4
      %p162 = pnand %p160, %p161
      %p163 = pneg %p162
      // Predicated region
      $region9: #{cnn2d_forward.3} parent=5 // pred_check
        _
      $region10: #{cnn2d_forward.3} parent=5 // pred_check_branch
        %165 = sbr.rel (%p162) target = $region12
      $region11: #{cnn2d_forward.3} parent=5 // pred_region
        %s166 = ssub.s32 %s16, 1
        // Predicated region
        $region13: #{cnn2d_forward.3} parent=11 // pred_check
          %p167 = pneg %p89
        $region14: #{cnn2d_forward.3} parent=11 // pred_check_branch
          %169 = sbr.rel (%p167) target = $region16
        $region15: #{cnn2d_forward.3} parent=11 // pred_region
          %s171 = ssub.s32 128, 128
          %172 = vsyncadd [#allocation7], %s171
          %s174 = sshll.u32 [#allocation6], 4
          %s175 = int_to_ptr.vmem [resolvable:$true] %s174
          %177 = dma.hbm_to_vmem [thread:$0]  %s2, 128, %s175, [#allocation7]
        $region16: #{cnn2d_forward.3} parent=11 // pred_fallthru
          _
        // Predicated region
        $region17: #{cnn2d_forward.3} parent=11 // pred_check
          %p178 = pneg %p110
        $region18: #{cnn2d_forward.3} parent=11 // pred_check_branch
          %180 = sbr.rel (%p178) target = $region20
        $region19: #{cnn2d_forward.3} parent=11 // pred_region
          _
        $region20: #{cnn2d_forward.3} parent=11 // pred_fallthru
          _
        // Predicated region
        $region21: #{cnn2d_forward.3} parent=11 // pred_check
          %p181 = pneg %p131
        $region22: #{cnn2d_forward.3} parent=11 // pred_check_branch
          %183 = sbr.rel (%p181) target = $region24
        $region23: #{cnn2d_forward.3} parent=11 // pred_region
          %s185 = ssub.s32 16, 16
          %186 = vsyncadd [#allocation7], %s185
          %s188 = sshll.u32 [#allocation8], 4
          %s189 = int_to_ptr.vmem [resolvable:$true] %s188
          %191 = dma.hbm_to_vmem [thread:$0]  %s4, 16, %s189, [#allocation7]
        $region24: #{cnn2d_forward.3} parent=11 // pred_fallthru
          _
      $region12: #{cnn2d_forward.3} parent=5 // pred_fallthru
        _
      %p192 = scmp.lt.s32.totalorder %s16, 3
      // Predicated region
      $region25: #{cnn2d_forward.3} parent=5 // pred_check
        %p193 = pneg %p192
      $region26: #{cnn2d_forward.3} parent=5 // pred_check_branch
        %195 = sbr.rel (%p193) target = $region28
      $region27: #{cnn2d_forward.3} parent=5 // pred_region
        // Predicated region
        $region29: #{cnn2d_forward.3} parent=27 // pred_check
          %p196 = pneg %p36
        $region30: #{cnn2d_forward.3} parent=27 // pred_check_branch
          %198 = sbr.rel (%p196) target = $region32
        $region31: #{cnn2d_forward.3} parent=27 // pred_region
          %s199 = smul.u32 14, %s16
          %p200 = scmp.lt.s32.totalorder %s199, 41
          %s201 = scalar_select %p200, %s199, 41
          %s202 = smul.addr %s201, 2
          %s203 = scalar_lea.vmem %s0, %s202
          %s204 = smul.u32 14, %s16
        $region32: #{cnn2d_forward.3} parent=27 // pred_fallthru
          _
        // Predicated region
        $region33: #{cnn2d_forward.3} parent=27 // pred_check
          %p205 = pneg %p62
        $region34: #{cnn2d_forward.3} parent=27 // pred_check_branch
          %207 = sbr.rel (%p205) target = $region36
        $region35: #{cnn2d_forward.3} parent=27 // pred_region
          %s208 = sand.u32 %s52, 1
          %s209 = scalar_lea.sflag [#allocation4], %s208
          %s210 = sand.u32 %s52, 1
          %s211 = smul.addr %s210, 7168
          %s212 = scalar_lea.vmem [#allocation3], %s211
          %s213 = smul.u32 224, %s16
          %s215 = ssub.s32 114688, 114688
          %216 = vsyncadd %s209, %s215
          %s217 = smul.addr %s213, 8
          %s218 = smul.addr %s217, 64
          %s219 = scalar_lea.hbm %s1, %s218
          %s220 = sshll.u32 %s212, 4
          %s221 = int_to_ptr.vmem [resolvable:$true] %s220
          %226 = dma.hbm_to_vmem [thread:$0]  %s219, 114688, %s221, %s209, 512, 512, 32
        $region36: #{cnn2d_forward.3} parent=27 // pred_fallthru
          _
      $region28: #{cnn2d_forward.3} parent=5 // pred_fallthru
        _
      %p227 = scmp.le.s32.totalorder 1, %s16
      %p228 = scmp.lt.s32.totalorder %s16, 4
      %p229 = pnand %p227, %p228
      %p230 = pneg %p229
      // Predicated region
      $region37: #{cnn2d_forward.3} parent=5 // pred_check
        _
      $region38: #{cnn2d_forward.3} parent=5 // pred_check_branch
        %232 = sbr.rel (%p229) target = $region40
      $region39: #{cnn2d_forward.3} parent=5 // pred_region
        %s233 = ssub.s32 %s16, 1
        %s234 = sand.u32 %s55, 1
        %s235 = scalar_lea.sflag [#allocation4], %s234
        %s236 = sand.u32 %s55, 1
        %s237 = smul.addr %s236, 7168
        %s238 = scalar_lea.vmem [#allocation3], %s237
        // Predicated region
        $region41: #{cnn2d_forward.3} parent=39 // pred_check
          %p239 = pneg %p68
        $region42: #{cnn2d_forward.3} parent=39 // pred_check_branch
          %241 = sbr.rel (%p239) target = $region44
        $region43: #{cnn2d_forward.3} parent=39 // pred_region
          %242 = dma.done %s235, 114688
        $region44: #{cnn2d_forward.3} parent=39 // pred_fallthru
          _
        // Predicated region
        $region45: #{cnn2d_forward.3} parent=39 // pred_check
          %p243 = pneg %p89
        $region46: #{cnn2d_forward.3} parent=39 // pred_check_branch
          %245 = sbr.rel (%p243) target = $region48
        $region47: #{cnn2d_forward.3} parent=39 // pred_region
          %246 = dma.done [#allocation7], 128
        $region48: #{cnn2d_forward.3} parent=39 // pred_fallthru
          _
        // Predicated region
        $region49: #{cnn2d_forward.3} parent=39 // pred_check
          %p247 = pneg %p131
        $region50: #{cnn2d_forward.3} parent=39 // pred_check_branch
          %249 = sbr.rel (%p247) target = $region52
        $region51: #{cnn2d_forward.3} parent=39 // pred_region
          %250 = dma.done [#allocation7], 16
        $region52: #{cnn2d_forward.3} parent=39 // pred_fallthru
          _
        %s251 = smul.u32 14, %s21
        %p252 = scmp.lt.s32.totalorder %s251, 41
        %s253 = scalar_select %p252, %s251, 41
        %s254 = smul.addr %s253, 2
        %s255 = scalar_lea.vmem %s0, %s254
        %p256 = pneg %p42
        %p257 = pneg %p39
        %s258 = sand.u32 %s55, 1
        %s259 = scalar_lea.sflag [#allocation4], %s258
        %s260 = sand.u32 %s55, 1
        %s261 = smul.addr %s260, 7168
        %s262 = scalar_lea.vmem [#allocation3], %s261
        %p263 = pneg %p68
        %p264 = pneg %p65
        %p265 = pneg %p89
        %p266 = pneg %p86
        %p267 = pneg %p110
        %p268 = pneg %p107
        %p269 = pneg %p131
        %p270 = pneg %p128
        %p271 = pneg %p152
        %p272 = pneg %p149
        %s273 = smul.u32 14, %s21
        %p274 = scmp.lt.s32.totalorder %s273, 41
        %s275 = scalar_select %p274, %s273, 41
        %s276 = smul.addr %s275, 2
        %s277 = scalar_lea.vmem %s0, %s276
        %s278 = smul.u32 14, %s21
        %s279 = smul.u32 224, %s21
        %p280 = scmp.eq.s32.totalorder %s21, 0
        // Predicated region
        $region53: #{cnn2d_forward.3} parent=39 // pred_check
          %p281 = pneg %p280
        $region54: #{cnn2d_forward.3} parent=39 // pred_check_branch
          %283 = sbr.rel (%p281) target = $region56
        $region55: #{cnn2d_forward.3} parent=39 // pred_region
          %284 = vst [vmem:[#allocation2] sm:$0xff] 0.0
          %285 = vst [vmem:[#allocation2 + $0x8] sm:$0xff] 0.0
        $region56: #{cnn2d_forward.3} parent=39 // pred_fallthru
          _
        %v286 = vld [vmem:[#allocation2] sm:$0xff]
        %v287 = vld [vmem:[#allocation2 + $0x8] sm:$0xff]
        %v288 = vld [vmem:[%s277] sm:$0xff]
        %v289 = vld [vmem:[%s277 + $0x8] sm:$0xff]
        %v290 = vld [vmem:[%s277 + $0x10] sm:$0xff]
        %v291 = vld [vmem:[%s277 + $0x18] sm:$0xf]
        %v296 = vcombine.high %v288, %v288
        %v298 = vunpack.c.l.s4 1983009808
        %v299 = vunpack.c.0.s8 %v298
        %v300 = vlaneseq
        %v301 = vshrl.u32 %v300, 7
        %v302 = vsub.s32 %v299, %v301
        %v303 = vrot.slane %v288, %v302
        %v305 = vunpack.c.l.s4 1983009808
        %v306 = vunpack.c.0.s8 %v305
        %v307 = vlaneseq
        %v308 = vshrl.u32 %v307, 7
        %v309 = vsub.s32 %v306, %v308
        %v310 = vrot.slane %v296, %v309
        %v311 = vcombine.high %v303, %v303
        %v312 = vcombine.high %v310, %v310
        %v313 = vcombine.high %v289, %v289
        %v315 = vunpack.c.l.s4 1983009808
        %v316 = vunpack.c.0.s8 %v315
        %v317 = vlaneseq
        %v318 = vshrl.u32 %v317, 7
        %v319 = vsub.s32 %v316, %v318
        %v320 = vrot.slane %v289, %v319
        %v322 = vunpack.c.l.s4 1983009808
        %v323 = vunpack.c.0.s8 %v322
        %v324 = vlaneseq
        %v325 = vshrl.u32 %v324, 7
        %v326 = vsub.s32 %v323, %v325
        %v327 = vrot.slane %v313, %v326
        %v328 = vcombine.high %v320, %v320
        %v329 = vcombine.high %v327, %v327
        %v330 = vcombine.high %v290, %v290
        %v332 = vunpack.c.l.s4 1983009808
        %v333 = vunpack.c.0.s8 %v332
        %v334 = vlaneseq
        %v335 = vshrl.u32 %v334, 7
        %v336 = vsub.s32 %v333, %v335
        %v337 = vrot.slane %v290, %v336
        %v339 = vunpack.c.l.s4 1983009808
        %v340 = vunpack.c.0.s8 %v339
        %v341 = vlaneseq
        %v342 = vshrl.u32 %v341, 7
        %v343 = vsub.s32 %v340, %v342
        %v344 = vrot.slane %v330, %v343
        %v345 = vcombine.high %v337, %v337
        %v346 = vcombine.high %v344, %v344
        %v348 = vunpack.c.l.s4 1983009808
        %v349 = vunpack.c.0.s8 %v348
        %v350 = vlaneseq
        %v351 = vshrl.u32 %v350, 7
        %v352 = vsub.s32 %v349, %v351
        %v353 = vrot.slane %v291, %v352
        %v354 = vcombine.high %v353, %v353
        %v369 = vpack.c.bf16 %v303, %v303
        %v370 = vpack.c.bf16 %v311, %v311
        %v371 = vpack.c.bf16 %v310, %v310
        %v372 = vpack.c.bf16 %v312, %v312
        %v373 = vpack.c.bf16 %v320, %v320
        %v374 = vpack.c.bf16 %v328, %v328
        %v375 = vpack.c.bf16 %v327, %v327
        %v376 = vpack.c.bf16 %v329, %v329
        %v377 = vpack.c.bf16 %v337, %v337
        %v378 = vpack.c.bf16 %v345, %v345
        %v379 = vpack.c.bf16 %v344, %v344
        %v380 = vpack.c.bf16 %v346, %v346
        %v381 = vpack.c.bf16 %v353, %v353
        %v382 = vpack.c.bf16 %v354, %v354
        %v383 = vld [vmem:[%s238] sm:$0xff]
        %v384 = vld [vmem:[%s238 + $0x8] sm:$0xff]
        %v385 = vld [vmem:[%s238 + $0x10] sm:$0xff]
        %v386 = vld [vmem:[%s238 + $0x18] sm:$0xff]
        %v387 = vld [vmem:[%s238 + $0x20] sm:$0xff]
        %v388 = vld [vmem:[%s238 + $0x28] sm:$0xff]
        %v389 = vld [vmem:[%s238 + $0x30] sm:$0xff]
        %v390 = vld [vmem:[%s238 + $0x38] sm:$0xff]
        %v391 = vld [vmem:[%s238 + $0x40] sm:$0xff]
        %v392 = vld [vmem:[%s238 + $0x48] sm:$0xff]
        %v393 = vld [vmem:[%s238 + $0x50] sm:$0xff]
        %v394 = vld [vmem:[%s238 + $0x58] sm:$0xff]
        %v395 = vld [vmem:[%s238 + $0x60] sm:$0xff]
        %v396 = vld [vmem:[%s238 + $0x68] sm:$0xff]
        %v397 = vld [vmem:[%s238 + $0x70] sm:$0xff]
        %v398 = vld [vmem:[%s238 + $0x78] sm:$0xff]
        %v399 = vld [vmem:[%s238 + $0x80] sm:$0xff]
        %v400 = vld [vmem:[%s238 + $0x88] sm:$0xff]
        %v401 = vld [vmem:[%s238 + $0x90] sm:$0xff]
        %v402 = vld [vmem:[%s238 + $0x98] sm:$0xff]
        %v403 = vld [vmem:[%s238 + $0xa0] sm:$0xff]
        %v404 = vld [vmem:[%s238 + $0xa8] sm:$0xff]
        %v405 = vld [vmem:[%s238 + $0xb0] sm:$0xff]
        %v406 = vld [vmem:[%s238 + $0xb8] sm:$0xff]
        %v407 = vld [vmem:[%s238 + $0xc0] sm:$0xff]
        %v408 = vld [vmem:[%s238 + $0xc8] sm:$0xff]
        %v409 = vld [vmem:[%s238 + $0xd0] sm:$0xff]
        %v410 = vld [vmem:[%s238 + $0xd8] sm:$0xff]
        %v411 = vld [vmem:[%s238 + $0xe0] sm:$0xff]
        %v412 = vld [vmem:[%s238 + $0xe8] sm:$0xff]
        %v413 = vld [vmem:[%s238 + $0xf0] sm:$0xff]
        %v414 = vld [vmem:[%s238 + $0xf8] sm:$0xff]
        %v415 = vld [vmem:[%s238 + $0x100] sm:$0xff]
        %v416 = vld [vmem:[%s238 + $0x108] sm:$0xff]
        %v417 = vld [vmem:[%s238 + $0x110] sm:$0xff]
        %v418 = vld [vmem:[%s238 + $0x118] sm:$0xff]
        %v419 = vld [vmem:[%s238 + $0x120] sm:$0xff]
        %v420 = vld [vmem:[%s238 + $0x128] sm:$0xff]
        %v421 = vld [vmem:[%s238 + $0x130] sm:$0xff]
        %v422 = vld [vmem:[%s238 + $0x138] sm:$0xff]
        %v423 = vld [vmem:[%s238 + $0x140] sm:$0xff]
        %v424 = vld [vmem:[%s238 + $0x148] sm:$0xff]
        %v425 = vld [vmem:[%s238 + $0x150] sm:$0xff]
        %v426 = vld [vmem:[%s238 + $0x158] sm:$0xff]
        %v427 = vld [vmem:[%s238 + $0x160] sm:$0xff]
        %v428 = vld [vmem:[%s238 + $0x168] sm:$0xff]
        %v429 = vld [vmem:[%s238 + $0x170] sm:$0xff]
        %v430 = vld [vmem:[%s238 + $0x178] sm:$0xff]
        %v431 = vld [vmem:[%s238 + $0x180] sm:$0xff]
        %v432 = vld [vmem:[%s238 + $0x188] sm:$0xff]
        %v433 = vld [vmem:[%s238 + $0x190] sm:$0xff]
        %v434 = vld [vmem:[%s238 + $0x198] sm:$0xff]
        %v435 = vld [vmem:[%s238 + $0x1a0] sm:$0xff]
        %v436 = vld [vmem:[%s238 + $0x1a8] sm:$0xff]
        %v437 = vld [vmem:[%s238 + $0x1b0] sm:$0xff]
        %v438 = vld [vmem:[%s238 + $0x1b8] sm:$0xff]
        %v439 = vld [vmem:[%s238 + $0x1c0] sm:$0xff]
        %v440 = vld [vmem:[%s238 + $0x1c8] sm:$0xff]
        %v441 = vld [vmem:[%s238 + $0x1d0] sm:$0xff]
        %v442 = vld [vmem:[%s238 + $0x1d8] sm:$0xff]
        %v443 = vld [vmem:[%s238 + $0x1e0] sm:$0xff]
        %v444 = vld [vmem:[%s238 + $0x1e8] sm:$0xff]
        %v445 = vld [vmem:[%s238 + $0x1f0] sm:$0xff]
        %v446 = vld [vmem:[%s238 + $0x1f8] sm:$0xff]
        %v447 = vld [vmem:[%s238 + $0x200] sm:$0xff]
        %v448 = vld [vmem:[%s238 + $0x208] sm:$0xff]
        %v449 = vld [vmem:[%s238 + $0x210] sm:$0xff]
        %v450 = vld [vmem:[%s238 + $0x218] sm:$0xff]
        %v451 = vld [vmem:[%s238 + $0x220] sm:$0xff]
        %v452 = vld [vmem:[%s238 + $0x228] sm:$0xff]
        %v453 = vld [vmem:[%s238 + $0x230] sm:$0xff]
        %v454 = vld [vmem:[%s238 + $0x238] sm:$0xff]
        %v455 = vld [vmem:[%s238 + $0x240] sm:$0xff]
        %v456 = vld [vmem:[%s238 + $0x248] sm:$0xff]
        %v457 = vld [vmem:[%s238 + $0x250] sm:$0xff]
        %v458 = vld [vmem:[%s238 + $0x258] sm:$0xff]
        %v459 = vld [vmem:[%s238 + $0x260] sm:$0xff]
        %v460 = vld [vmem:[%s238 + $0x268] sm:$0xff]
        %v461 = vld [vmem:[%s238 + $0x270] sm:$0xff]
        %v462 = vld [vmem:[%s238 + $0x278] sm:$0xff]
        %v463 = vld [vmem:[%s238 + $0x280] sm:$0xff]
        %v464 = vld [vmem:[%s238 + $0x288] sm:$0xff]
        %v465 = vld [vmem:[%s238 + $0x290] sm:$0xff]
        %v466 = vld [vmem:[%s238 + $0x298] sm:$0xff]
        %v467 = vld [vmem:[%s238 + $0x2a0] sm:$0xff]
        %v468 = vld [vmem:[%s238 + $0x2a8] sm:$0xff]
        %v469 = vld [vmem:[%s238 + $0x2b0] sm:$0xff]
        %v470 = vld [vmem:[%s238 + $0x2b8] sm:$0xff]
        %v471 = vld [vmem:[%s238 + $0x2c0] sm:$0xff]
        %v472 = vld [vmem:[%s238 + $0x2c8] sm:$0xff]
        %v473 = vld [vmem:[%s238 + $0x2d0] sm:$0xff]
        %v474 = vld [vmem:[%s238 + $0x2d8] sm:$0xff]
        %v475 = vld [vmem:[%s238 + $0x2e0] sm:$0xff]
        %v476 = vld [vmem:[%s238 + $0x2e8] sm:$0xff]
        %v477 = vld [vmem:[%s238 + $0x2f0] sm:$0xff]
        %v478 = vld [vmem:[%s238 + $0x2f8] sm:$0xff]
        %v479 = vld [vmem:[%s238 + $0x300] sm:$0xff]
        %v480 = vld [vmem:[%s238 + $0x308] sm:$0xff]
        %v481 = vld [vmem:[%s238 + $0x310] sm:$0xff]
        %v482 = vld [vmem:[%s238 + $0x318] sm:$0xff]
        %v483 = vld [vmem:[%s238 + $0x320] sm:$0xff]
        %v484 = vld [vmem:[%s238 + $0x328] sm:$0xff]
        %v485 = vld [vmem:[%s238 + $0x330] sm:$0xff]
        %v486 = vld [vmem:[%s238 + $0x338] sm:$0xff]
        %v487 = vld [vmem:[%s238 + $0x340] sm:$0xff]
        %v488 = vld [vmem:[%s238 + $0x348] sm:$0xff]
        %v489 = vld [vmem:[%s238 + $0x350] sm:$0xff]
        %v490 = vld [vmem:[%s238 + $0x358] sm:$0xff]
        %v491 = vld [vmem:[%s238 + $0x360] sm:$0xff]
        %v492 = vld [vmem:[%s238 + $0x368] sm:$0xff]
        %v493 = vld [vmem:[%s238 + $0x370] sm:$0xff]
        %v494 = vld [vmem:[%s238 + $0x378] sm:$0xff]
        %v495 = vld [vmem:[%s238 + $0x380] sm:$0xff]
        %v496 = vld [vmem:[%s238 + $0x388] sm:$0xff]
        %v497 = vld [vmem:[%s238 + $0x390] sm:$0xff]
        %v498 = vld [vmem:[%s238 + $0x398] sm:$0xff]
        %v499 = vld [vmem:[%s238 + $0x3a0] sm:$0xff]
        %v500 = vld [vmem:[%s238 + $0x3a8] sm:$0xff]
        %v501 = vld [vmem:[%s238 + $0x3b0] sm:$0xff]
        %v502 = vld [vmem:[%s238 + $0x3b8] sm:$0xff]
        %v503 = vld [vmem:[%s238 + $0x3c0] sm:$0xff]
        %v504 = vld [vmem:[%s238 + $0x3c8] sm:$0xff]
        %v505 = vld [vmem:[%s238 + $0x3d0] sm:$0xff]
        %v506 = vld [vmem:[%s238 + $0x3d8] sm:$0xff]
        %v507 = vld [vmem:[%s238 + $0x3e0] sm:$0xff]
        %v508 = vld [vmem:[%s238 + $0x3e8] sm:$0xff]
        %v509 = vld [vmem:[%s238 + $0x3f0] sm:$0xff]
        %v510 = vld [vmem:[%s238 + $0x3f8] sm:$0xff]
        %v511 = vld [vmem:[%s238 + $0x400] sm:$0xff]
        %v512 = vld [vmem:[%s238 + $0x408] sm:$0xff]
        %v513 = vld [vmem:[%s238 + $0x410] sm:$0xff]
        %v514 = vld [vmem:[%s238 + $0x418] sm:$0xff]
        %v515 = vld [vmem:[%s238 + $0x420] sm:$0xff]
        %v516 = vld [vmem:[%s238 + $0x428] sm:$0xff]
        %v517 = vld [vmem:[%s238 + $0x430] sm:$0xff]
        %v518 = vld [vmem:[%s238 + $0x438] sm:$0xff]
        %v519 = vld [vmem:[%s238 + $0x440] sm:$0xff]
        %v520 = vld [vmem:[%s238 + $0x448] sm:$0xff]
        %v521 = vld [vmem:[%s238 + $0x450] sm:$0xff]
        %v522 = vld [vmem:[%s238 + $0x458] sm:$0xff]
        %v523 = vld [vmem:[%s238 + $0x460] sm:$0xff]
        %v524 = vld [vmem:[%s238 + $0x468] sm:$0xff]
        %v525 = vld [vmem:[%s238 + $0x470] sm:$0xff]
        %v526 = vld [vmem:[%s238 + $0x478] sm:$0xff]
        %v527 = vld [vmem:[%s238 + $0x480] sm:$0xff]
        %v528 = vld [vmem:[%s238 + $0x488] sm:$0xff]
        %v529 = vld [vmem:[%s238 + $0x490] sm:$0xff]
        %v530 = vld [vmem:[%s238 + $0x498] sm:$0xff]
        %v531 = vld [vmem:[%s238 + $0x4a0] sm:$0xff]
        %v532 = vld [vmem:[%s238 + $0x4a8] sm:$0xff]
        %v533 = vld [vmem:[%s238 + $0x4b0] sm:$0xff]
        %v534 = vld [vmem:[%s238 + $0x4b8] sm:$0xff]
        %v535 = vld [vmem:[%s238 + $0x4c0] sm:$0xff]
        %v536 = vld [vmem:[%s238 + $0x4c8] sm:$0xff]
        %v537 = vld [vmem:[%s238 + $0x4d0] sm:$0xff]
        %v538 = vld [vmem:[%s238 + $0x4d8] sm:$0xff]
        %v539 = vld [vmem:[%s238 + $0x4e0] sm:$0xff]
        %v540 = vld [vmem:[%s238 + $0x4e8] sm:$0xff]
        %v541 = vld [vmem:[%s238 + $0x4f0] sm:$0xff]
        %v542 = vld [vmem:[%s238 + $0x4f8] sm:$0xff]
        %v543 = vld [vmem:[%s238 + $0x500] sm:$0xff]
        %v544 = vld [vmem:[%s238 + $0x508] sm:$0xff]
        %v545 = vld [vmem:[%s238 + $0x510] sm:$0xff]
        %v546 = vld [vmem:[%s238 + $0x518] sm:$0xff]
        %v547 = vld [vmem:[%s238 + $0x520] sm:$0xff]
        %v548 = vld [vmem:[%s238 + $0x528] sm:$0xff]
        %v549 = vld [vmem:[%s238 + $0x530] sm:$0xff]
        %v550 = vld [vmem:[%s238 + $0x538] sm:$0xff]
        %v551 = vld [vmem:[%s238 + $0x540] sm:$0xff]
        %v552 = vld [vmem:[%s238 + $0x548] sm:$0xff]
        %v553 = vld [vmem:[%s238 + $0x550] sm:$0xff]
        %v554 = vld [vmem:[%s238 + $0x558] sm:$0xff]
        %v555 = vld [vmem:[%s238 + $0x560] sm:$0xff]
        %v556 = vld [vmem:[%s238 + $0x568] sm:$0xff]
        %v557 = vld [vmem:[%s238 + $0x570] sm:$0xff]
        %v558 = vld [vmem:[%s238 + $0x578] sm:$0xff]
        %v559 = vld [vmem:[%s238 + $0x580] sm:$0xff]
        %v560 = vld [vmem:[%s238 + $0x588] sm:$0xff]
        %v561 = vld [vmem:[%s238 + $0x590] sm:$0xff]
        %v562 = vld [vmem:[%s238 + $0x598] sm:$0xff]
        %v563 = vld [vmem:[%s238 + $0x5a0] sm:$0xff]
        %v564 = vld [vmem:[%s238 + $0x5a8] sm:$0xff]
        %v565 = vld [vmem:[%s238 + $0x5b0] sm:$0xff]
        %v566 = vld [vmem:[%s238 + $0x5b8] sm:$0xff]
        %v567 = vld [vmem:[%s238 + $0x5c0] sm:$0xff]
        %v568 = vld [vmem:[%s238 + $0x5c8] sm:$0xff]
        %v569 = vld [vmem:[%s238 + $0x5d0] sm:$0xff]
        %v570 = vld [vmem:[%s238 + $0x5d8] sm:$0xff]
        %v571 = vld [vmem:[%s238 + $0x5e0] sm:$0xff]
        %v572 = vld [vmem:[%s238 + $0x5e8] sm:$0xff]
        %v573 = vld [vmem:[%s238 + $0x5f0] sm:$0xff]
        %v574 = vld [vmem:[%s238 + $0x5f8] sm:$0xff]
        %v575 = vld [vmem:[%s238 + $0x600] sm:$0xff]
        %v576 = vld [vmem:[%s238 + $0x608] sm:$0xff]
        %v577 = vld [vmem:[%s238 + $0x610] sm:$0xff]
        %v578 = vld [vmem:[%s238 + $0x618] sm:$0xff]
        %v579 = vld [vmem:[%s238 + $0x620] sm:$0xff]
        %v580 = vld [vmem:[%s238 + $0x628] sm:$0xff]
        %v581 = vld [vmem:[%s238 + $0x630] sm:$0xff]
        %v582 = vld [vmem:[%s238 + $0x638] sm:$0xff]
        %v583 = vld [vmem:[%s238 + $0x640] sm:$0xff]
        %v584 = vld [vmem:[%s238 + $0x648] sm:$0xff]
        %v585 = vld [vmem:[%s238 + $0x650] sm:$0xff]
        %v586 = vld [vmem:[%s238 + $0x658] sm:$0xff]
        %v587 = vld [vmem:[%s238 + $0x660] sm:$0xff]
        %v588 = vld [vmem:[%s238 + $0x668] sm:$0xff]
        %v589 = vld [vmem:[%s238 + $0x670] sm:$0xff]
        %v590 = vld [vmem:[%s238 + $0x678] sm:$0xff]
        %v591 = vld [vmem:[%s238 + $0x680] sm:$0xff]
        %v592 = vld [vmem:[%s238 + $0x688] sm:$0xff]
        %v593 = vld [vmem:[%s238 + $0x690] sm:$0xff]
        %v594 = vld [vmem:[%s238 + $0x698] sm:$0xff]
        %v595 = vld [vmem:[%s238 + $0x6a0] sm:$0xff]
        %v596 = vld [vmem:[%s238 + $0x6a8] sm:$0xff]
        %v597 = vld [vmem:[%s238 + $0x6b0] sm:$0xff]
        %v598 = vld [vmem:[%s238 + $0x6b8] sm:$0xff]
        %v599 = vld [vmem:[%s238 + $0x6c0] sm:$0xff]
        %v600 = vld [vmem:[%s238 + $0x6c8] sm:$0xff]
        %v601 = vld [vmem:[%s238 + $0x6d0] sm:$0xff]
        %v602 = vld [vmem:[%s238 + $0x6d8] sm:$0xff]
        %v603 = vld [vmem:[%s238 + $0x6e0] sm:$0xff]
        %v604 = vld [vmem:[%s238 + $0x6e8] sm:$0xff]
        %v605 = vld [vmem:[%s238 + $0x6f0] sm:$0xff]
        %v606 = vld [vmem:[%s238 + $0x6f8] sm:$0xff]
        %v607 = vld [vmem:[%s238 + $0x700] sm:$0xff]
        %v608 = vld [vmem:[%s238 + $0x708] sm:$0xff]
        %v609 = vld [vmem:[%s238 + $0x710] sm:$0xff]
        %v610 = vld [vmem:[%s238 + $0x718] sm:$0xff]
        %v611 = vld [vmem:[%s238 + $0x720] sm:$0xff]
        %v612 = vld [vmem:[%s238 + $0x728] sm:$0xff]
        %v613 = vld [vmem:[%s238 + $0x730] sm:$0xff]
        %v614 = vld [vmem:[%s238 + $0x738] sm:$0xff]
        %v615 = vld [vmem:[%s238 + $0x740] sm:$0xff]
        %v616 = vld [vmem:[%s238 + $0x748] sm:$0xff]
        %v617 = vld [vmem:[%s238 + $0x750] sm:$0xff]
        %v618 = vld [vmem:[%s238 + $0x758] sm:$0xff]
        %v619 = vld [vmem:[%s238 + $0x760] sm:$0xff]
        %v620 = vld [vmem:[%s238 + $0x768] sm:$0xff]
        %v621 = vld [vmem:[%s238 + $0x770] sm:$0xff]
        %v622 = vld [vmem:[%s238 + $0x778] sm:$0xff]
        %v623 = vld [vmem:[%s238 + $0x780] sm:$0xff]
        %v624 = vld [vmem:[%s238 + $0x788] sm:$0xff]
        %v625 = vld [vmem:[%s238 + $0x790] sm:$0xff]
        %v626 = vld [vmem:[%s238 + $0x798] sm:$0xff]
        %v627 = vld [vmem:[%s238 + $0x7a0] sm:$0xff]
        %v628 = vld [vmem:[%s238 + $0x7a8] sm:$0xff]
        %v629 = vld [vmem:[%s238 + $0x7b0] sm:$0xff]
        %v630 = vld [vmem:[%s238 + $0x7b8] sm:$0xff]
        %v631 = vld [vmem:[%s238 + $0x7c0] sm:$0xff]
        %v632 = vld [vmem:[%s238 + $0x7c8] sm:$0xff]
        %v633 = vld [vmem:[%s238 + $0x7d0] sm:$0xff]
        %v634 = vld [vmem:[%s238 + $0x7d8] sm:$0xff]
        %v635 = vld [vmem:[%s238 + $0x7e0] sm:$0xff]
        %v636 = vld [vmem:[%s238 + $0x7e8] sm:$0xff]
        %v637 = vld [vmem:[%s238 + $0x7f0] sm:$0xff]
        %v638 = vld [vmem:[%s238 + $0x7f8] sm:$0xff]
        %v639 = vld [vmem:[%s238 + $0x800] sm:$0xff]
        %v640 = vld [vmem:[%s238 + $0x808] sm:$0xff]
        %v641 = vld [vmem:[%s238 + $0x810] sm:$0xff]
        %v642 = vld [vmem:[%s238 + $0x818] sm:$0xff]
        %v643 = vld [vmem:[%s238 + $0x820] sm:$0xff]
        %v644 = vld [vmem:[%s238 + $0x828] sm:$0xff]
        %v645 = vld [vmem:[%s238 + $0x830] sm:$0xff]
        %v646 = vld [vmem:[%s238 + $0x838] sm:$0xff]
        %v647 = vld [vmem:[%s238 + $0x840] sm:$0xff]
        %v648 = vld [vmem:[%s238 + $0x848] sm:$0xff]
        %v649 = vld [vmem:[%s238 + $0x850] sm:$0xff]
        %v650 = vld [vmem:[%s238 + $0x858] sm:$0xff]
        %v651 = vld [vmem:[%s238 + $0x860] sm:$0xff]
        %v652 = vld [vmem:[%s238 + $0x868] sm:$0xff]
        %v653 = vld [vmem:[%s238 + $0x870] sm:$0xff]
        %v654 = vld [vmem:[%s238 + $0x878] sm:$0xff]
        %v655 = vld [vmem:[%s238 + $0x880] sm:$0xff]
        %v656 = vld [vmem:[%s238 + $0x888] sm:$0xff]
        %v657 = vld [vmem:[%s238 + $0x890] sm:$0xff]
        %v658 = vld [vmem:[%s238 + $0x898] sm:$0xff]
        %v659 = vld [vmem:[%s238 + $0x8a0] sm:$0xff]
        %v660 = vld [vmem:[%s238 + $0x8a8] sm:$0xff]
        %v661 = vld [vmem:[%s238 + $0x8b0] sm:$0xff]
        %v662 = vld [vmem:[%s238 + $0x8b8] sm:$0xff]
        %v663 = vld [vmem:[%s238 + $0x8c0] sm:$0xff]
        %v664 = vld [vmem:[%s238 + $0x8c8] sm:$0xff]
        %v665 = vld [vmem:[%s238 + $0x8d0] sm:$0xff]
        %v666 = vld [vmem:[%s238 + $0x8d8] sm:$0xff]
        %v667 = vld [vmem:[%s238 + $0x8e0] sm:$0xff]
        %v668 = vld [vmem:[%s238 + $0x8e8] sm:$0xff]
        %v669 = vld [vmem:[%s238 + $0x8f0] sm:$0xff]
        %v670 = vld [vmem:[%s238 + $0x8f8] sm:$0xff]
        %v671 = vld [vmem:[%s238 + $0x900] sm:$0xff]
        %v672 = vld [vmem:[%s238 + $0x908] sm:$0xff]
        %v673 = vld [vmem:[%s238 + $0x910] sm:$0xff]
        %v674 = vld [vmem:[%s238 + $0x918] sm:$0xff]
        %v675 = vld [vmem:[%s238 + $0x920] sm:$0xff]
        %v676 = vld [vmem:[%s238 + $0x928] sm:$0xff]
        %v677 = vld [vmem:[%s238 + $0x930] sm:$0xff]
        %v678 = vld [vmem:[%s238 + $0x938] sm:$0xff]
        %v679 = vld [vmem:[%s238 + $0x940] sm:$0xff]
        %v680 = vld [vmem:[%s238 + $0x948] sm:$0xff]
        %v681 = vld [vmem:[%s238 + $0x950] sm:$0xff]
        %v682 = vld [vmem:[%s238 + $0x958] sm:$0xff]
        %v683 = vld [vmem:[%s238 + $0x960] sm:$0xff]
        %v684 = vld [vmem:[%s238 + $0x968] sm:$0xff]
        %v685 = vld [vmem:[%s238 + $0x970] sm:$0xff]
        %v686 = vld [vmem:[%s238 + $0x978] sm:$0xff]
        %v687 = vld [vmem:[%s238 + $0x980] sm:$0xff]
        %v688 = vld [vmem:[%s238 + $0x988] sm:$0xff]
        %v689 = vld [vmem:[%s238 + $0x990] sm:$0xff]
        %v690 = vld [vmem:[%s238 + $0x998] sm:$0xff]
        %v691 = vld [vmem:[%s238 + $0x9a0] sm:$0xff]
        %v692 = vld [vmem:[%s238 + $0x9a8] sm:$0xff]
        %v693 = vld [vmem:[%s238 + $0x9b0] sm:$0xff]
        %v694 = vld [vmem:[%s238 + $0x9b8] sm:$0xff]
        %v695 = vld [vmem:[%s238 + $0x9c0] sm:$0xff]
        %v696 = vld [vmem:[%s238 + $0x9c8] sm:$0xff]
        %v697 = vld [vmem:[%s238 + $0x9d0] sm:$0xff]
        %v698 = vld [vmem:[%s238 + $0x9d8] sm:$0xff]
        %v699 = vld [vmem:[%s238 + $0x9e0] sm:$0xff]
        %v700 = vld [vmem:[%s238 + $0x9e8] sm:$0xff]
        %v701 = vld [vmem:[%s238 + $0x9f0] sm:$0xff]
        %v702 = vld [vmem:[%s238 + $0x9f8] sm:$0xff]
        %v703 = vld [vmem:[%s238 + $0xa00] sm:$0xff]
        %v704 = vld [vmem:[%s238 + $0xa08] sm:$0xff]
        %v705 = vld [vmem:[%s238 + $0xa10] sm:$0xff]
        %v706 = vld [vmem:[%s238 + $0xa18] sm:$0xff]
        %v707 = vld [vmem:[%s238 + $0xa20] sm:$0xff]
        %v708 = vld [vmem:[%s238 + $0xa28] sm:$0xff]
        %v709 = vld [vmem:[%s238 + $0xa30] sm:$0xff]
        %v710 = vld [vmem:[%s238 + $0xa38] sm:$0xff]
        %v711 = vld [vmem:[%s238 + $0xa40] sm:$0xff]
        %v712 = vld [vmem:[%s238 + $0xa48] sm:$0xff]
        %v713 = vld [vmem:[%s238 + $0xa50] sm:$0xff]
        %v714 = vld [vmem:[%s238 + $0xa58] sm:$0xff]
        %v715 = vld [vmem:[%s238 + $0xa60] sm:$0xff]
        %v716 = vld [vmem:[%s238 + $0xa68] sm:$0xff]
        %v717 = vld [vmem:[%s238 + $0xa70] sm:$0xff]
        %v718 = vld [vmem:[%s238 + $0xa78] sm:$0xff]
        %v719 = vld [vmem:[%s238 + $0xa80] sm:$0xff]
        %v720 = vld [vmem:[%s238 + $0xa88] sm:$0xff]
        %v721 = vld [vmem:[%s238 + $0xa90] sm:$0xff]
        %v722 = vld [vmem:[%s238 + $0xa98] sm:$0xff]
        %v723 = vld [vmem:[%s238 + $0xaa0] sm:$0xff]
        %v724 = vld [vmem:[%s238 + $0xaa8] sm:$0xff]
        %v725 = vld [vmem:[%s238 + $0xab0] sm:$0xff]
        %v726 = vld [vmem:[%s238 + $0xab8] sm:$0xff]
        %v727 = vld [vmem:[%s238 + $0xac0] sm:$0xff]
        %v728 = vld [vmem:[%s238 + $0xac8] sm:$0xff]
        %v729 = vld [vmem:[%s238 + $0xad0] sm:$0xff]
        %v730 = vld [vmem:[%s238 + $0xad8] sm:$0xff]
        %v731 = vld [vmem:[%s238 + $0xae0] sm:$0xff]
        %v732 = vld [vmem:[%s238 + $0xae8] sm:$0xff]
        %v733 = vld [vmem:[%s238 + $0xaf0] sm:$0xff]
        %v734 = vld [vmem:[%s238 + $0xaf8] sm:$0xff]
        %v735 = vld [vmem:[%s238 + $0xb00] sm:$0xff]
        %v736 = vld [vmem:[%s238 + $0xb08] sm:$0xff]
        %v737 = vld [vmem:[%s238 + $0xb10] sm:$0xff]
        %v738 = vld [vmem:[%s238 + $0xb18] sm:$0xff]
        %v739 = vld [vmem:[%s238 + $0xb20] sm:$0xff]
        %v740 = vld [vmem:[%s238 + $0xb28] sm:$0xff]
        %v741 = vld [vmem:[%s238 + $0xb30] sm:$0xff]
        %v742 = vld [vmem:[%s238 + $0xb38] sm:$0xff]
        %v743 = vld [vmem:[%s238 + $0xb40] sm:$0xff]
        %v744 = vld [vmem:[%s238 + $0xb48] sm:$0xff]
        %v745 = vld [vmem:[%s238 + $0xb50] sm:$0xff]
        %v746 = vld [vmem:[%s238 + $0xb58] sm:$0xff]
        %v747 = vld [vmem:[%s238 + $0xb60] sm:$0xff]
        %v748 = vld [vmem:[%s238 + $0xb68] sm:$0xff]
        %v749 = vld [vmem:[%s238 + $0xb70] sm:$0xff]
        %v750 = vld [vmem:[%s238 + $0xb78] sm:$0xff]
        %v751 = vld [vmem:[%s238 + $0xb80] sm:$0xff]
        %v752 = vld [vmem:[%s238 + $0xb88] sm:$0xff]
        %v753 = vld [vmem:[%s238 + $0xb90] sm:$0xff]
        %v754 = vld [vmem:[%s238 + $0xb98] sm:$0xff]
        %v755 = vld [vmem:[%s238 + $0xba0] sm:$0xff]
        %v756 = vld [vmem:[%s238 + $0xba8] sm:$0xff]
        %v757 = vld [vmem:[%s238 + $0xbb0] sm:$0xff]
        %v758 = vld [vmem:[%s238 + $0xbb8] sm:$0xff]
        %v759 = vld [vmem:[%s238 + $0xbc0] sm:$0xff]
        %v760 = vld [vmem:[%s238 + $0xbc8] sm:$0xff]
        %v761 = vld [vmem:[%s238 + $0xbd0] sm:$0xff]
        %v762 = vld [vmem:[%s238 + $0xbd8] sm:$0xff]
        %v763 = vld [vmem:[%s238 + $0xbe0] sm:$0xff]
        %v764 = vld [vmem:[%s238 + $0xbe8] sm:$0xff]
        %v765 = vld [vmem:[%s238 + $0xbf0] sm:$0xff]
        %v766 = vld [vmem:[%s238 + $0xbf8] sm:$0xff]
        %v767 = vld [vmem:[%s238 + $0xc00] sm:$0xff]
        %v768 = vld [vmem:[%s238 + $0xc08] sm:$0xff]
        %v769 = vld [vmem:[%s238 + $0xc10] sm:$0xff]
        %v770 = vld [vmem:[%s238 + $0xc18] sm:$0xff]
        %v771 = vld [vmem:[%s238 + $0xc20] sm:$0xff]
        %v772 = vld [vmem:[%s238 + $0xc28] sm:$0xff]
        %v773 = vld [vmem:[%s238 + $0xc30] sm:$0xff]
        %v774 = vld [vmem:[%s238 + $0xc38] sm:$0xff]
        %v775 = vld [vmem:[%s238 + $0xc40] sm:$0xff]
        %v776 = vld [vmem:[%s238 + $0xc48] sm:$0xff]
        %v777 = vld [vmem:[%s238 + $0xc50] sm:$0xff]
        %v778 = vld [vmem:[%s238 + $0xc58] sm:$0xff]
        %v779 = vld [vmem:[%s238 + $0xc60] sm:$0xff]
        %v780 = vld [vmem:[%s238 + $0xc68] sm:$0xff]
        %v781 = vld [vmem:[%s238 + $0xc70] sm:$0xff]
        %v782 = vld [vmem:[%s238 + $0xc78] sm:$0xff]
        %v783 = vld [vmem:[%s238 + $0xc80] sm:$0xff]
        %v784 = vld [vmem:[%s238 + $0xc88] sm:$0xff]
        %v785 = vld [vmem:[%s238 + $0xc90] sm:$0xff]
        %v786 = vld [vmem:[%s238 + $0xc98] sm:$0xff]
        %v787 = vld [vmem:[%s238 + $0xca0] sm:$0xff]
        %v788 = vld [vmem:[%s238 + $0xca8] sm:$0xff]
        %v789 = vld [vmem:[%s238 + $0xcb0] sm:$0xff]
        %v790 = vld [vmem:[%s238 + $0xcb8] sm:$0xff]
        %v791 = vld [vmem:[%s238 + $0xcc0] sm:$0xff]
        %v792 = vld [vmem:[%s238 + $0xcc8] sm:$0xff]
        %v793 = vld [vmem:[%s238 + $0xcd0] sm:$0xff]
        %v794 = vld [vmem:[%s238 + $0xcd8] sm:$0xff]
        %v795 = vld [vmem:[%s238 + $0xce0] sm:$0xff]
        %v796 = vld [vmem:[%s238 + $0xce8] sm:$0xff]
        %v797 = vld [vmem:[%s238 + $0xcf0] sm:$0xff]
        %v798 = vld [vmem:[%s238 + $0xcf8] sm:$0xff]
        %v799 = vld [vmem:[%s238 + $0xd00] sm:$0xff]
        %v800 = vld [vmem:[%s238 + $0xd08] sm:$0xff]
        %v801 = vld [vmem:[%s238 + $0xd10] sm:$0xff]
        %v802 = vld [vmem:[%s238 + $0xd18] sm:$0xff]
        %v803 = vld [vmem:[%s238 + $0xd20] sm:$0xff]
        %v804 = vld [vmem:[%s238 + $0xd28] sm:$0xff]
        %v805 = vld [vmem:[%s238 + $0xd30] sm:$0xff]
        %v806 = vld [vmem:[%s238 + $0xd38] sm:$0xff]
        %v807 = vld [vmem:[%s238 + $0xd40] sm:$0xff]
        %v808 = vld [vmem:[%s238 + $0xd48] sm:$0xff]
        %v809 = vld [vmem:[%s238 + $0xd50] sm:$0xff]
        %v810 = vld [vmem:[%s238 + $0xd58] sm:$0xff]
        %v811 = vld [vmem:[%s238 + $0xd60] sm:$0xff]
        %v812 = vld [vmem:[%s238 + $0xd68] sm:$0xff]
        %v813 = vld [vmem:[%s238 + $0xd70] sm:$0xff]
        %v814 = vld [vmem:[%s238 + $0xd78] sm:$0xff]
        %v815 = vld [vmem:[%s238 + $0xd80] sm:$0xff]
        %v816 = vld [vmem:[%s238 + $0xd88] sm:$0xff]
        %v817 = vld [vmem:[%s238 + $0xd90] sm:$0xff]
        %v818 = vld [vmem:[%s238 + $0xd98] sm:$0xff]
        %v819 = vld [vmem:[%s238 + $0xda0] sm:$0xff]
        %v820 = vld [vmem:[%s238 + $0xda8] sm:$0xff]
        %v821 = vld [vmem:[%s238 + $0xdb0] sm:$0xff]
        %v822 = vld [vmem:[%s238 + $0xdb8] sm:$0xff]
        %v823 = vld [vmem:[%s238 + $0xdc0] sm:$0xff]
        %v824 = vld [vmem:[%s238 + $0xdc8] sm:$0xff]
        %v825 = vld [vmem:[%s238 + $0xdd0] sm:$0xff]
        %v826 = vld [vmem:[%s238 + $0xdd8] sm:$0xff]
        %v827 = vld [vmem:[%s238 + $0xde0] sm:$0xff]
        %v828 = vld [vmem:[%s238 + $0xde8] sm:$0xff]
        %v829 = vld [vmem:[%s238 + $0xdf0] sm:$0xff]
        %v830 = vld [vmem:[%s238 + $0xdf8] sm:$0xff]
        %v831 = vld [vmem:[%s238 + $0xe00] sm:$0xff]
        %v832 = vld [vmem:[%s238 + $0xe08] sm:$0xff]
        %v833 = vld [vmem:[%s238 + $0xe10] sm:$0xff]
        %v834 = vld [vmem:[%s238 + $0xe18] sm:$0xff]
        %v835 = vld [vmem:[%s238 + $0xe20] sm:$0xff]
        %v836 = vld [vmem:[%s238 + $0xe28] sm:$0xff]
        %v837 = vld [vmem:[%s238 + $0xe30] sm:$0xff]
        %v838 = vld [vmem:[%s238 + $0xe38] sm:$0xff]
        %v839 = vld [vmem:[%s238 + $0xe40] sm:$0xff]
        %v840 = vld [vmem:[%s238 + $0xe48] sm:$0xff]
        %v841 = vld [vmem:[%s238 + $0xe50] sm:$0xff]
        %v842 = vld [vmem:[%s238 + $0xe58] sm:$0xff]
        %v843 = vld [vmem:[%s238 + $0xe60] sm:$0xff]
        %v844 = vld [vmem:[%s238 + $0xe68] sm:$0xff]
        %v845 = vld [vmem:[%s238 + $0xe70] sm:$0xff]
        %v846 = vld [vmem:[%s238 + $0xe78] sm:$0xff]
        %v847 = vld [vmem:[%s238 + $0xe80] sm:$0xff]
        %v848 = vld [vmem:[%s238 + $0xe88] sm:$0xff]
        %v849 = vld [vmem:[%s238 + $0xe90] sm:$0xff]
        %v850 = vld [vmem:[%s238 + $0xe98] sm:$0xff]
        %v851 = vld [vmem:[%s238 + $0xea0] sm:$0xff]
        %v852 = vld [vmem:[%s238 + $0xea8] sm:$0xff]
        %v853 = vld [vmem:[%s238 + $0xeb0] sm:$0xff]
        %v854 = vld [vmem:[%s238 + $0xeb8] sm:$0xff]
        %v855 = vld [vmem:[%s238 + $0xec0] sm:$0xff]
        %v856 = vld [vmem:[%s238 + $0xec8] sm:$0xff]
        %v857 = vld [vmem:[%s238 + $0xed0] sm:$0xff]
        %v858 = vld [vmem:[%s238 + $0xed8] sm:$0xff]
        %v859 = vld [vmem:[%s238 + $0xee0] sm:$0xff]
        %v860 = vld [vmem:[%s238 + $0xee8] sm:$0xff]
        %v861 = vld [vmem:[%s238 + $0xef0] sm:$0xff]
        %v862 = vld [vmem:[%s238 + $0xef8] sm:$0xff]
        %v863 = vld [vmem:[%s238 + $0xf00] sm:$0xff]
        %v864 = vld [vmem:[%s238 + $0xf08] sm:$0xff]
        %v865 = vld [vmem:[%s238 + $0xf10] sm:$0xff]
        %v866 = vld [vmem:[%s238 + $0xf18] sm:$0xff]
        %v867 = vld [vmem:[%s238 + $0xf20] sm:$0xff]
        %v868 = vld [vmem:[%s238 + $0xf28] sm:$0xff]
        %v869 = vld [vmem:[%s238 + $0xf30] sm:$0xff]
        %v870 = vld [vmem:[%s238 + $0xf38] sm:$0xff]
        %v871 = vld [vmem:[%s238 + $0xf40] sm:$0xff]
        %v872 = vld [vmem:[%s238 + $0xf48] sm:$0xff]
        %v873 = vld [vmem:[%s238 + $0xf50] sm:$0xff]
        %v874 = vld [vmem:[%s238 + $0xf58] sm:$0xff]
        %v875 = vld [vmem:[%s238 + $0xf60] sm:$0xff]
        %v876 = vld [vmem:[%s238 + $0xf68] sm:$0xff]
        %v877 = vld [vmem:[%s238 + $0xf70] sm:$0xff]
        %v878 = vld [vmem:[%s238 + $0xf78] sm:$0xff]
        %v879 = vld [vmem:[%s238 + $0xf80] sm:$0xff]
        %v880 = vld [vmem:[%s238 + $0xf88] sm:$0xff]
        %v881 = vld [vmem:[%s238 + $0xf90] sm:$0xff]
        %v882 = vld [vmem:[%s238 + $0xf98] sm:$0xff]
        %v883 = vld [vmem:[%s238 + $0xfa0] sm:$0xff]
        %v884 = vld [vmem:[%s238 + $0xfa8] sm:$0xff]
        %v885 = vld [vmem:[%s238 + $0xfb0] sm:$0xff]
        %v886 = vld [vmem:[%s238 + $0xfb8] sm:$0xff]
        %v887 = vld [vmem:[%s238 + $0xfc0] sm:$0xff]
        %v888 = vld [vmem:[%s238 + $0xfc8] sm:$0xff]
        %v889 = vld [vmem:[%s238 + $0xfd0] sm:$0xff]
        %v890 = vld [vmem:[%s238 + $0xfd8] sm:$0xff]
        %v891 = vld [vmem:[%s238 + $0xfe0] sm:$0xff]
        %v892 = vld [vmem:[%s238 + $0xfe8] sm:$0xff]
        %v893 = vld [vmem:[%s238 + $0xff0] sm:$0xff]
        %v894 = vld [vmem:[%s238 + $0xff8] sm:$0xff]
        %v895 = vld [vmem:[%s238 + $0x1000] sm:$0xff]
        %v896 = vld [vmem:[%s238 + $0x1008] sm:$0xff]
        %v897 = vld [vmem:[%s238 + $0x1010] sm:$0xff]
        %v898 = vld [vmem:[%s238 + $0x1018] sm:$0xff]
        %v899 = vld [vmem:[%s238 + $0x1020] sm:$0xff]
        %v900 = vld [vmem:[%s238 + $0x1028] sm:$0xff]
        %v901 = vld [vmem:[%s238 + $0x1030] sm:$0xff]
        %v902 = vld [vmem:[%s238 + $0x1038] sm:$0xff]
        %v903 = vld [vmem:[%s238 + $0x1040] sm:$0xff]
        %v904 = vld [vmem:[%s238 + $0x1048] sm:$0xff]
        %v905 = vld [vmem:[%s238 + $0x1050] sm:$0xff]
        %v906 = vld [vmem:[%s238 + $0x1058] sm:$0xff]
        %v907 = vld [vmem:[%s238 + $0x1060] sm:$0xff]
        %v908 = vld [vmem:[%s238 + $0x1068] sm:$0xff]
        %v909 = vld [vmem:[%s238 + $0x1070] sm:$0xff]
        %v910 = vld [vmem:[%s238 + $0x1078] sm:$0xff]
        %v911 = vld [vmem:[%s238 + $0x1080] sm:$0xff]
        %v912 = vld [vmem:[%s238 + $0x1088] sm:$0xff]
        %v913 = vld [vmem:[%s238 + $0x1090] sm:$0xff]
        %v914 = vld [vmem:[%s238 + $0x1098] sm:$0xff]
        %v915 = vld [vmem:[%s238 + $0x10a0] sm:$0xff]
        %v916 = vld [vmem:[%s238 + $0x10a8] sm:$0xff]
        %v917 = vld [vmem:[%s238 + $0x10b0] sm:$0xff]
        %v918 = vld [vmem:[%s238 + $0x10b8] sm:$0xff]
        %v919 = vld [vmem:[%s238 + $0x10c0] sm:$0xff]
        %v920 = vld [vmem:[%s238 + $0x10c8] sm:$0xff]
        %v921 = vld [vmem:[%s238 + $0x10d0] sm:$0xff]
        %v922 = vld [vmem:[%s238 + $0x10d8] sm:$0xff]
        %v923 = vld [vmem:[%s238 + $0x10e0] sm:$0xff]
        %v924 = vld [vmem:[%s238 + $0x10e8] sm:$0xff]
        %v925 = vld [vmem:[%s238 + $0x10f0] sm:$0xff]
        %v926 = vld [vmem:[%s238 + $0x10f8] sm:$0xff]
        %v927 = vld [vmem:[%s238 + $0x1100] sm:$0xff]
        %v928 = vld [vmem:[%s238 + $0x1108] sm:$0xff]
        %v929 = vld [vmem:[%s238 + $0x1110] sm:$0xff]
        %v930 = vld [vmem:[%s238 + $0x1118] sm:$0xff]
        %v931 = vld [vmem:[%s238 + $0x1120] sm:$0xff]
        %v932 = vld [vmem:[%s238 + $0x1128] sm:$0xff]
        %v933 = vld [vmem:[%s238 + $0x1130] sm:$0xff]
        %v934 = vld [vmem:[%s238 + $0x1138] sm:$0xff]
        %v935 = vld [vmem:[%s238 + $0x1140] sm:$0xff]
        %v936 = vld [vmem:[%s238 + $0x1148] sm:$0xff]
        %v937 = vld [vmem:[%s238 + $0x1150] sm:$0xff]
        %v938 = vld [vmem:[%s238 + $0x1158] sm:$0xff]
        %v939 = vld [vmem:[%s238 + $0x1160] sm:$0xff]
        %v940 = vld [vmem:[%s238 + $0x1168] sm:$0xff]
        %v941 = vld [vmem:[%s238 + $0x1170] sm:$0xff]
        %v942 = vld [vmem:[%s238 + $0x1178] sm:$0xff]
        %v943 = vld [vmem:[%s238 + $0x1180] sm:$0xff]
        %v944 = vld [vmem:[%s238 + $0x1188] sm:$0xff]
        %v945 = vld [vmem:[%s238 + $0x1190] sm:$0xff]
        %v946 = vld [vmem:[%s238 + $0x1198] sm:$0xff]
        %v947 = vld [vmem:[%s238 + $0x11a0] sm:$0xff]
        %v948 = vld [vmem:[%s238 + $0x11a8] sm:$0xff]
        %v949 = vld [vmem:[%s238 + $0x11b0] sm:$0xff]
        %v950 = vld [vmem:[%s238 + $0x11b8] sm:$0xff]
        %v951 = vld [vmem:[%s238 + $0x11c0] sm:$0xff]
        %v952 = vld [vmem:[%s238 + $0x11c8] sm:$0xff]
        %v953 = vld [vmem:[%s238 + $0x11d0] sm:$0xff]
        %v954 = vld [vmem:[%s238 + $0x11d8] sm:$0xff]
        %v955 = vld [vmem:[%s238 + $0x11e0] sm:$0xff]
        %v956 = vld [vmem:[%s238 + $0x11e8] sm:$0xff]
        %v957 = vld [vmem:[%s238 + $0x11f0] sm:$0xff]
        %v958 = vld [vmem:[%s238 + $0x11f8] sm:$0xff]
        %v959 = vld [vmem:[%s238 + $0x1200] sm:$0xff]
        %v960 = vld [vmem:[%s238 + $0x1208] sm:$0xff]
        %v961 = vld [vmem:[%s238 + $0x1210] sm:$0xff]
        %v962 = vld [vmem:[%s238 + $0x1218] sm:$0xff]
        %v963 = vld [vmem:[%s238 + $0x1220] sm:$0xff]
        %v964 = vld [vmem:[%s238 + $0x1228] sm:$0xff]
        %v965 = vld [vmem:[%s238 + $0x1230] sm:$0xff]
        %v966 = vld [vmem:[%s238 + $0x1238] sm:$0xff]
        %v967 = vld [vmem:[%s238 + $0x1240] sm:$0xff]
        %v968 = vld [vmem:[%s238 + $0x1248] sm:$0xff]
        %v969 = vld [vmem:[%s238 + $0x1250] sm:$0xff]
        %v970 = vld [vmem:[%s238 + $0x1258] sm:$0xff]
        %v971 = vld [vmem:[%s238 + $0x1260] sm:$0xff]
        %v972 = vld [vmem:[%s238 + $0x1268] sm:$0xff]
        %v973 = vld [vmem:[%s238 + $0x1270] sm:$0xff]
        %v974 = vld [vmem:[%s238 + $0x1278] sm:$0xff]
        %v975 = vld [vmem:[%s238 + $0x1280] sm:$0xff]
        %v976 = vld [vmem:[%s238 + $0x1288] sm:$0xff]
        %v977 = vld [vmem:[%s238 + $0x1290] sm:$0xff]
        %v978 = vld [vmem:[%s238 + $0x1298] sm:$0xff]
        %v979 = vld [vmem:[%s238 + $0x12a0] sm:$0xff]
        %v980 = vld [vmem:[%s238 + $0x12a8] sm:$0xff]
        %v981 = vld [vmem:[%s238 + $0x12b0] sm:$0xff]
        %v982 = vld [vmem:[%s238 + $0x12b8] sm:$0xff]
        %v983 = vld [vmem:[%s238 + $0x12c0] sm:$0xff]
        %v984 = vld [vmem:[%s238 + $0x12c8] sm:$0xff]
        %v985 = vld [vmem:[%s238 + $0x12d0] sm:$0xff]
        %v986 = vld [vmem:[%s238 + $0x12d8] sm:$0xff]
        %v987 = vld [vmem:[%s238 + $0x12e0] sm:$0xff]
        %v988 = vld [vmem:[%s238 + $0x12e8] sm:$0xff]
        %v989 = vld [vmem:[%s238 + $0x12f0] sm:$0xff]
        %v990 = vld [vmem:[%s238 + $0x12f8] sm:$0xff]
        %v991 = vld [vmem:[%s238 + $0x1300] sm:$0xff]
        %v992 = vld [vmem:[%s238 + $0x1308] sm:$0xff]
        %v993 = vld [vmem:[%s238 + $0x1310] sm:$0xff]
        %v994 = vld [vmem:[%s238 + $0x1318] sm:$0xff]
        %v995 = vld [vmem:[%s238 + $0x1320] sm:$0xff]
        %v996 = vld [vmem:[%s238 + $0x1328] sm:$0xff]
        %v997 = vld [vmem:[%s238 + $0x1330] sm:$0xff]
        %v998 = vld [vmem:[%s238 + $0x1338] sm:$0xff]
        %v999 = vld [vmem:[%s238 + $0x1340] sm:$0xff]
        %v1000 = vld [vmem:[%s238 + $0x1348] sm:$0xff]
        %v1001 = vld [vmem:[%s238 + $0x1350] sm:$0xff]
        %v1002 = vld [vmem:[%s238 + $0x1358] sm:$0xff]
        %v1003 = vld [vmem:[%s238 + $0x1360] sm:$0xff]
        %v1004 = vld [vmem:[%s238 + $0x1368] sm:$0xff]
        %v1005 = vld [vmem:[%s238 + $0x1370] sm:$0xff]
        %v1006 = vld [vmem:[%s238 + $0x1378] sm:$0xff]
        %v1007 = vld [vmem:[%s238 + $0x1380] sm:$0xff]
        %v1008 = vld [vmem:[%s238 + $0x1388] sm:$0xff]
        %v1009 = vld [vmem:[%s238 + $0x1390] sm:$0xff]
        %v1010 = vld [vmem:[%s238 + $0x1398] sm:$0xff]
        %v1011 = vld [vmem:[%s238 + $0x13a0] sm:$0xff]
        %v1012 = vld [vmem:[%s238 + $0x13a8] sm:$0xff]
        %v1013 = vld [vmem:[%s238 + $0x13b0] sm:$0xff]
        %v1014 = vld [vmem:[%s238 + $0x13b8] sm:$0xff]
        %v1015 = vld [vmem:[%s238 + $0x13c0] sm:$0xff]
        %v1016 = vld [vmem:[%s238 + $0x13c8] sm:$0xff]
        %v1017 = vld [vmem:[%s238 + $0x13d0] sm:$0xff]
        %v1018 = vld [vmem:[%s238 + $0x13d8] sm:$0xff]
        %v1019 = vld [vmem:[%s238 + $0x13e0] sm:$0xff]
        %v1020 = vld [vmem:[%s238 + $0x13e8] sm:$0xff]
        %v1021 = vld [vmem:[%s238 + $0x13f0] sm:$0xff]
        %v1022 = vld [vmem:[%s238 + $0x13f8] sm:$0xff]
        %v1023 = vld [vmem:[%s238 + $0x1400] sm:$0xff]
        %v1024 = vld [vmem:[%s238 + $0x1408] sm:$0xff]
        %v1025 = vld [vmem:[%s238 + $0x1410] sm:$0xff]
        %v1026 = vld [vmem:[%s238 + $0x1418] sm:$0xff]
        %v1027 = vld [vmem:[%s238 + $0x1420] sm:$0xff]
        %v1028 = vld [vmem:[%s238 + $0x1428] sm:$0xff]
        %v1029 = vld [vmem:[%s238 + $0x1430] sm:$0xff]
        %v1030 = vld [vmem:[%s238 + $0x1438] sm:$0xff]
        %v1031 = vld [vmem:[%s238 + $0x1440] sm:$0xff]
        %v1032 = vld [vmem:[%s238 + $0x1448] sm:$0xff]
        %v1033 = vld [vmem:[%s238 + $0x1450] sm:$0xff]
        %v1034 = vld [vmem:[%s238 + $0x1458] sm:$0xff]
        %v1035 = vld [vmem:[%s238 + $0x1460] sm:$0xff]
        %v1036 = vld [vmem:[%s238 + $0x1468] sm:$0xff]
        %v1037 = vld [vmem:[%s238 + $0x1470] sm:$0xff]
        %v1038 = vld [vmem:[%s238 + $0x1478] sm:$0xff]
        %v1039 = vld [vmem:[%s238 + $0x1480] sm:$0xff]
        %v1040 = vld [vmem:[%s238 + $0x1488] sm:$0xff]
        %v1041 = vld [vmem:[%s238 + $0x1490] sm:$0xff]
        %v1042 = vld [vmem:[%s238 + $0x1498] sm:$0xff]
        %v1043 = vld [vmem:[%s238 + $0x14a0] sm:$0xff]
        %v1044 = vld [vmem:[%s238 + $0x14a8] sm:$0xff]
        %v1045 = vld [vmem:[%s238 + $0x14b0] sm:$0xff]
        %v1046 = vld [vmem:[%s238 + $0x14b8] sm:$0xff]
        %v1047 = vld [vmem:[%s238 + $0x14c0] sm:$0xff]
        %v1048 = vld [vmem:[%s238 + $0x14c8] sm:$0xff]
        %v1049 = vld [vmem:[%s238 + $0x14d0] sm:$0xff]
        %v1050 = vld [vmem:[%s238 + $0x14d8] sm:$0xff]
        %v1051 = vld [vmem:[%s238 + $0x14e0] sm:$0xff]
        %v1052 = vld [vmem:[%s238 + $0x14e8] sm:$0xff]
        %v1053 = vld [vmem:[%s238 + $0x14f0] sm:$0xff]
        %v1054 = vld [vmem:[%s238 + $0x14f8] sm:$0xff]
        %v1055 = vld [vmem:[%s238 + $0x1500] sm:$0xff]
        %v1056 = vld [vmem:[%s238 + $0x1508] sm:$0xff]
        %v1057 = vld [vmem:[%s238 + $0x1510] sm:$0xff]
        %v1058 = vld [vmem:[%s238 + $0x1518] sm:$0xff]
        %v1059 = vld [vmem:[%s238 + $0x1520] sm:$0xff]
        %v1060 = vld [vmem:[%s238 + $0x1528] sm:$0xff]
        %v1061 = vld [vmem:[%s238 + $0x1530] sm:$0xff]
        %v1062 = vld [vmem:[%s238 + $0x1538] sm:$0xff]
        %v1063 = vld [vmem:[%s238 + $0x1540] sm:$0xff]
        %v1064 = vld [vmem:[%s238 + $0x1548] sm:$0xff]
        %v1065 = vld [vmem:[%s238 + $0x1550] sm:$0xff]
        %v1066 = vld [vmem:[%s238 + $0x1558] sm:$0xff]
        %v1067 = vld [vmem:[%s238 + $0x1560] sm:$0xff]
        %v1068 = vld [vmem:[%s238 + $0x1568] sm:$0xff]
        %v1069 = vld [vmem:[%s238 + $0x1570] sm:$0xff]
        %v1070 = vld [vmem:[%s238 + $0x1578] sm:$0xff]
        %v1071 = vld [vmem:[%s238 + $0x1580] sm:$0xff]
        %v1072 = vld [vmem:[%s238 + $0x1588] sm:$0xff]
        %v1073 = vld [vmem:[%s238 + $0x1590] sm:$0xff]
        %v1074 = vld [vmem:[%s238 + $0x1598] sm:$0xff]
        %v1075 = vld [vmem:[%s238 + $0x15a0] sm:$0xff]
        %v1076 = vld [vmem:[%s238 + $0x15a8] sm:$0xff]
        %v1077 = vld [vmem:[%s238 + $0x15b0] sm:$0xff]
        %v1078 = vld [vmem:[%s238 + $0x15b8] sm:$0xff]
        %v1079 = vld [vmem:[%s238 + $0x15c0] sm:$0xff]
        %v1080 = vld [vmem:[%s238 + $0x15c8] sm:$0xff]
        %v1081 = vld [vmem:[%s238 + $0x15d0] sm:$0xff]
        %v1082 = vld [vmem:[%s238 + $0x15d8] sm:$0xff]
        %v1083 = vld [vmem:[%s238 + $0x15e0] sm:$0xff]
        %v1084 = vld [vmem:[%s238 + $0x15e8] sm:$0xff]
        %v1085 = vld [vmem:[%s238 + $0x15f0] sm:$0xff]
        %v1086 = vld [vmem:[%s238 + $0x15f8] sm:$0xff]
        %v1087 = vld [vmem:[%s238 + $0x1600] sm:$0xff]
        %v1088 = vld [vmem:[%s238 + $0x1608] sm:$0xff]
        %v1089 = vld [vmem:[%s238 + $0x1610] sm:$0xff]
        %v1090 = vld [vmem:[%s238 + $0x1618] sm:$0xff]
        %v1091 = vld [vmem:[%s238 + $0x1620] sm:$0xff]
        %v1092 = vld [vmem:[%s238 + $0x1628] sm:$0xff]
        %v1093 = vld [vmem:[%s238 + $0x1630] sm:$0xff]
        %v1094 = vld [vmem:[%s238 + $0x1638] sm:$0xff]
        %v1095 = vld [vmem:[%s238 + $0x1640] sm:$0xff]
        %v1096 = vld [vmem:[%s238 + $0x1648] sm:$0xff]
        %v1097 = vld [vmem:[%s238 + $0x1650] sm:$0xff]
        %v1098 = vld [vmem:[%s238 + $0x1658] sm:$0xff]
        %v1099 = vld [vmem:[%s238 + $0x1660] sm:$0xff]
        %v1100 = vld [vmem:[%s238 + $0x1668] sm:$0xff]
        %v1101 = vld [vmem:[%s238 + $0x1670] sm:$0xff]
        %v1102 = vld [vmem:[%s238 + $0x1678] sm:$0xff]
        %v1103 = vld [vmem:[%s238 + $0x1680] sm:$0xff]
        %v1104 = vld [vmem:[%s238 + $0x1688] sm:$0xff]
        %v1105 = vld [vmem:[%s238 + $0x1690] sm:$0xff]
        %v1106 = vld [vmem:[%s238 + $0x1698] sm:$0xff]
        %v1107 = vld [vmem:[%s238 + $0x16a0] sm:$0xff]
        %v1108 = vld [vmem:[%s238 + $0x16a8] sm:$0xff]
        %v1109 = vld [vmem:[%s238 + $0x16b0] sm:$0xff]
        %v1110 = vld [vmem:[%s238 + $0x16b8] sm:$0xff]
        %v1111 = vld [vmem:[%s238 + $0x16c0] sm:$0xff]
        %v1112 = vld [vmem:[%s238 + $0x16c8] sm:$0xff]
        %v1113 = vld [vmem:[%s238 + $0x16d0] sm:$0xff]
        %v1114 = vld [vmem:[%s238 + $0x16d8] sm:$0xff]
        %v1115 = vld [vmem:[%s238 + $0x16e0] sm:$0xff]
        %v1116 = vld [vmem:[%s238 + $0x16e8] sm:$0xff]
        %v1117 = vld [vmem:[%s238 + $0x16f0] sm:$0xff]
        %v1118 = vld [vmem:[%s238 + $0x16f8] sm:$0xff]
        %v1119 = vld [vmem:[%s238 + $0x1700] sm:$0xff]
        %v1120 = vld [vmem:[%s238 + $0x1708] sm:$0xff]
        %v1121 = vld [vmem:[%s238 + $0x1710] sm:$0xff]
        %v1122 = vld [vmem:[%s238 + $0x1718] sm:$0xff]
        %v1123 = vld [vmem:[%s238 + $0x1720] sm:$0xff]
        %v1124 = vld [vmem:[%s238 + $0x1728] sm:$0xff]
        %v1125 = vld [vmem:[%s238 + $0x1730] sm:$0xff]
        %v1126 = vld [vmem:[%s238 + $0x1738] sm:$0xff]
        %v1127 = vld [vmem:[%s238 + $0x1740] sm:$0xff]
        %v1128 = vld [vmem:[%s238 + $0x1748] sm:$0xff]
        %v1129 = vld [vmem:[%s238 + $0x1750] sm:$0xff]
        %v1130 = vld [vmem:[%s238 + $0x1758] sm:$0xff]
        %v1131 = vld [vmem:[%s238 + $0x1760] sm:$0xff]
        %v1132 = vld [vmem:[%s238 + $0x1768] sm:$0xff]
        %v1133 = vld [vmem:[%s238 + $0x1770] sm:$0xff]
        %v1134 = vld [vmem:[%s238 + $0x1778] sm:$0xff]
        %v1135 = vld [vmem:[%s238 + $0x1780] sm:$0xff]
        %v1136 = vld [vmem:[%s238 + $0x1788] sm:$0xff]
        %v1137 = vld [vmem:[%s238 + $0x1790] sm:$0xff]
        %v1138 = vld [vmem:[%s238 + $0x1798] sm:$0xff]
        %v1139 = vld [vmem:[%s238 + $0x17a0] sm:$0xff]
        %v1140 = vld [vmem:[%s238 + $0x17a8] sm:$0xff]
        %v1141 = vld [vmem:[%s238 + $0x17b0] sm:$0xff]
        %v1142 = vld [vmem:[%s238 + $0x17b8] sm:$0xff]
        %v1143 = vld [vmem:[%s238 + $0x17c0] sm:$0xff]
        %v1144 = vld [vmem:[%s238 + $0x17c8] sm:$0xff]
        %v1145 = vld [vmem:[%s238 + $0x17d0] sm:$0xff]
        %v1146 = vld [vmem:[%s238 + $0x17d8] sm:$0xff]
        %v1147 = vld [vmem:[%s238 + $0x17e0] sm:$0xff]
        %v1148 = vld [vmem:[%s238 + $0x17e8] sm:$0xff]
        %v1149 = vld [vmem:[%s238 + $0x17f0] sm:$0xff]
        %v1150 = vld [vmem:[%s238 + $0x17f8] sm:$0xff]
        %v1151 = vld [vmem:[%s238 + $0x1800] sm:$0xff]
        %v1152 = vld [vmem:[%s238 + $0x1808] sm:$0xff]
        %v1153 = vld [vmem:[%s238 + $0x1810] sm:$0xff]
        %v1154 = vld [vmem:[%s238 + $0x1818] sm:$0xff]
        %v1155 = vld [vmem:[%s238 + $0x1820] sm:$0xff]
        %v1156 = vld [vmem:[%s238 + $0x1828] sm:$0xff]
        %v1157 = vld [vmem:[%s238 + $0x1830] sm:$0xff]
        %v1158 = vld [vmem:[%s238 + $0x1838] sm:$0xff]
        %v1159 = vld [vmem:[%s238 + $0x1840] sm:$0xff]
        %v1160 = vld [vmem:[%s238 + $0x1848] sm:$0xff]
        %v1161 = vld [vmem:[%s238 + $0x1850] sm:$0xff]
        %v1162 = vld [vmem:[%s238 + $0x1858] sm:$0xff]
        %v1163 = vld [vmem:[%s238 + $0x1860] sm:$0xff]
        %v1164 = vld [vmem:[%s238 + $0x1868] sm:$0xff]
        %v1165 = vld [vmem:[%s238 + $0x1870] sm:$0xff]
        %v1166 = vld [vmem:[%s238 + $0x1878] sm:$0xff]
        %v1167 = vld [vmem:[%s238 + $0x1880] sm:$0xff]
        %v1168 = vld [vmem:[%s238 + $0x1888] sm:$0xff]
        %v1169 = vld [vmem:[%s238 + $0x1890] sm:$0xff]
        %v1170 = vld [vmem:[%s238 + $0x1898] sm:$0xff]
        %v1171 = vld [vmem:[%s238 + $0x18a0] sm:$0xff]
        %v1172 = vld [vmem:[%s238 + $0x18a8] sm:$0xff]
        %v1173 = vld [vmem:[%s238 + $0x18b0] sm:$0xff]
        %v1174 = vld [vmem:[%s238 + $0x18b8] sm:$0xff]
        %v1175 = vld [vmem:[%s238 + $0x18c0] sm:$0xff]
        %v1176 = vld [vmem:[%s238 + $0x18c8] sm:$0xff]
        %v1177 = vld [vmem:[%s238 + $0x18d0] sm:$0xff]
        %v1178 = vld [vmem:[%s238 + $0x18d8] sm:$0xff]
        %v1179 = vld [vmem:[%s238 + $0x18e0] sm:$0xff]
        %v1180 = vld [vmem:[%s238 + $0x18e8] sm:$0xff]
        %v1181 = vld [vmem:[%s238 + $0x18f0] sm:$0xff]
        %v1182 = vld [vmem:[%s238 + $0x18f8] sm:$0xff]
        %v1183 = vld [vmem:[%s238 + $0x1900] sm:$0xff]
        %v1184 = vld [vmem:[%s238 + $0x1908] sm:$0xff]
        %v1185 = vld [vmem:[%s238 + $0x1910] sm:$0xff]
        %v1186 = vld [vmem:[%s238 + $0x1918] sm:$0xff]
        %v1187 = vld [vmem:[%s238 + $0x1920] sm:$0xff]
        %v1188 = vld [vmem:[%s238 + $0x1928] sm:$0xff]
        %v1189 = vld [vmem:[%s238 + $0x1930] sm:$0xff]
        %v1190 = vld [vmem:[%s238 + $0x1938] sm:$0xff]
        %v1191 = vld [vmem:[%s238 + $0x1940] sm:$0xff]
        %v1192 = vld [vmem:[%s238 + $0x1948] sm:$0xff]
        %v1193 = vld [vmem:[%s238 + $0x1950] sm:$0xff]
        %v1194 = vld [vmem:[%s238 + $0x1958] sm:$0xff]
        %v1195 = vld [vmem:[%s238 + $0x1960] sm:$0xff]
        %v1196 = vld [vmem:[%s238 + $0x1968] sm:$0xff]
        %v1197 = vld [vmem:[%s238 + $0x1970] sm:$0xff]
        %v1198 = vld [vmem:[%s238 + $0x1978] sm:$0xff]
        %v1199 = vld [vmem:[%s238 + $0x1980] sm:$0xff]
        %v1200 = vld [vmem:[%s238 + $0x1988] sm:$0xff]
        %v1201 = vld [vmem:[%s238 + $0x1990] sm:$0xff]
        %v1202 = vld [vmem:[%s238 + $0x1998] sm:$0xff]
        %v1203 = vld [vmem:[%s238 + $0x19a0] sm:$0xff]
        %v1204 = vld [vmem:[%s238 + $0x19a8] sm:$0xff]
        %v1205 = vld [vmem:[%s238 + $0x19b0] sm:$0xff]
        %v1206 = vld [vmem:[%s238 + $0x19b8] sm:$0xff]
        %v1207 = vld [vmem:[%s238 + $0x19c0] sm:$0xff]
        %v1208 = vld [vmem:[%s238 + $0x19c8] sm:$0xff]
        %v1209 = vld [vmem:[%s238 + $0x19d0] sm:$0xff]
        %v1210 = vld [vmem:[%s238 + $0x19d8] sm:$0xff]
        %v1211 = vld [vmem:[%s238 + $0x19e0] sm:$0xff]
        %v1212 = vld [vmem:[%s238 + $0x19e8] sm:$0xff]
        %v1213 = vld [vmem:[%s238 + $0x19f0] sm:$0xff]
        %v1214 = vld [vmem:[%s238 + $0x19f8] sm:$0xff]
        %v1215 = vld [vmem:[%s238 + $0x1a00] sm:$0xff]
        %v1216 = vld [vmem:[%s238 + $0x1a08] sm:$0xff]
        %v1217 = vld [vmem:[%s238 + $0x1a10] sm:$0xff]
        %v1218 = vld [vmem:[%s238 + $0x1a18] sm:$0xff]
        %v1219 = vld [vmem:[%s238 + $0x1a20] sm:$0xff]
        %v1220 = vld [vmem:[%s238 + $0x1a28] sm:$0xff]
        %v1221 = vld [vmem:[%s238 + $0x1a30] sm:$0xff]
        %v1222 = vld [vmem:[%s238 + $0x1a38] sm:$0xff]
        %v1223 = vld [vmem:[%s238 + $0x1a40] sm:$0xff]
        %v1224 = vld [vmem:[%s238 + $0x1a48] sm:$0xff]
        %v1225 = vld [vmem:[%s238 + $0x1a50] sm:$0xff]
        %v1226 = vld [vmem:[%s238 + $0x1a58] sm:$0xff]
        %v1227 = vld [vmem:[%s238 + $0x1a60] sm:$0xff]
        %v1228 = vld [vmem:[%s238 + $0x1a68] sm:$0xff]
        %v1229 = vld [vmem:[%s238 + $0x1a70] sm:$0xff]
        %v1230 = vld [vmem:[%s238 + $0x1a78] sm:$0xff]
        %v1231 = vld [vmem:[%s238 + $0x1a80] sm:$0xff]
        %v1232 = vld [vmem:[%s238 + $0x1a88] sm:$0xff]
        %v1233 = vld [vmem:[%s238 + $0x1a90] sm:$0xff]
        %v1234 = vld [vmem:[%s238 + $0x1a98] sm:$0xff]
        %v1235 = vld [vmem:[%s238 + $0x1aa0] sm:$0xff]
        %v1236 = vld [vmem:[%s238 + $0x1aa8] sm:$0xff]
        %v1237 = vld [vmem:[%s238 + $0x1ab0] sm:$0xff]
        %v1238 = vld [vmem:[%s238 + $0x1ab8] sm:$0xff]
        %v1239 = vld [vmem:[%s238 + $0x1ac0] sm:$0xff]
        %v1240 = vld [vmem:[%s238 + $0x1ac8] sm:$0xff]
        %v1241 = vld [vmem:[%s238 + $0x1ad0] sm:$0xff]
        %v1242 = vld [vmem:[%s238 + $0x1ad8] sm:$0xff]
        %v1243 = vld [vmem:[%s238 + $0x1ae0] sm:$0xff]
        %v1244 = vld [vmem:[%s238 + $0x1ae8] sm:$0xff]
        %v1245 = vld [vmem:[%s238 + $0x1af0] sm:$0xff]
        %v1246 = vld [vmem:[%s238 + $0x1af8] sm:$0xff]
        %v1247 = vld [vmem:[%s238 + $0x1b00] sm:$0xff]
        %v1248 = vld [vmem:[%s238 + $0x1b08] sm:$0xff]
        %v1249 = vld [vmem:[%s238 + $0x1b10] sm:$0xff]
        %v1250 = vld [vmem:[%s238 + $0x1b18] sm:$0xff]
        %v1251 = vld [vmem:[%s238 + $0x1b20] sm:$0xff]
        %v1252 = vld [vmem:[%s238 + $0x1b28] sm:$0xff]
        %v1253 = vld [vmem:[%s238 + $0x1b30] sm:$0xff]
        %v1254 = vld [vmem:[%s238 + $0x1b38] sm:$0xff]
        %v1255 = vld [vmem:[%s238 + $0x1b40] sm:$0xff]
        %v1256 = vld [vmem:[%s238 + $0x1b48] sm:$0xff]
        %v1257 = vld [vmem:[%s238 + $0x1b50] sm:$0xff]
        %v1258 = vld [vmem:[%s238 + $0x1b58] sm:$0xff]
        %v1259 = vld [vmem:[%s238 + $0x1b60] sm:$0xff]
        %v1260 = vld [vmem:[%s238 + $0x1b68] sm:$0xff]
        %v1261 = vld [vmem:[%s238 + $0x1b70] sm:$0xff]
        %v1262 = vld [vmem:[%s238 + $0x1b78] sm:$0xff]
        %v1263 = vld [vmem:[%s238 + $0x1b80] sm:$0xff]
        %v1264 = vld [vmem:[%s238 + $0x1b88] sm:$0xff]
        %v1265 = vld [vmem:[%s238 + $0x1b90] sm:$0xff]
        %v1266 = vld [vmem:[%s238 + $0x1b98] sm:$0xff]
        %v1267 = vld [vmem:[%s238 + $0x1ba0] sm:$0xff]
        %v1268 = vld [vmem:[%s238 + $0x1ba8] sm:$0xff]
        %v1269 = vld [vmem:[%s238 + $0x1bb0] sm:$0xff]
        %v1270 = vld [vmem:[%s238 + $0x1bb8] sm:$0xff]
        %v1271 = vld [vmem:[%s238 + $0x1bc0] sm:$0xff]
        %v1272 = vld [vmem:[%s238 + $0x1bc8] sm:$0xff]
        %v1273 = vld [vmem:[%s238 + $0x1bd0] sm:$0xff]
        %v1274 = vld [vmem:[%s238 + $0x1bd8] sm:$0xff]
        %v1275 = vld [vmem:[%s238 + $0x1be0] sm:$0xff]
        %v1276 = vld [vmem:[%s238 + $0x1be8] sm:$0xff]
        %v1277 = vld [vmem:[%s238 + $0x1bf0] sm:$0xff]
        %v1278 = vld [vmem:[%s238 + $0x1bf8] sm:$0xff]
        %v2175 = vunpack.c.l.b16 %v383
        %v2176 = vunpack.c.h.b16 %v383
        %v2177 = vunpack.c.l.b16 %v384
        %v2178 = vunpack.c.h.b16 %v384
        %v2179 = vunpack.c.l.b16 %v385
        %v2180 = vunpack.c.h.b16 %v385
        %v2181 = vunpack.c.l.b16 %v386
        %v2182 = vunpack.c.h.b16 %v386
        %v2183 = vunpack.c.l.b16 %v387
        %v2184 = vunpack.c.h.b16 %v387
        %v2185 = vunpack.c.l.b16 %v388
        %v2186 = vunpack.c.h.b16 %v388
        %v2187 = vunpack.c.l.b16 %v389
        %v2188 = vunpack.c.h.b16 %v389
        %v2189 = vunpack.c.l.b16 %v390
        %v2190 = vunpack.c.h.b16 %v390
        %v2191 = vunpack.c.l.b16 %v391
        %v2192 = vunpack.c.h.b16 %v391
        %v2193 = vunpack.c.l.b16 %v392
        %v2194 = vunpack.c.h.b16 %v392
        %v2195 = vunpack.c.l.b16 %v393
        %v2196 = vunpack.c.h.b16 %v393
        %v2197 = vunpack.c.l.b16 %v394
        %v2198 = vunpack.c.h.b16 %v394
        %v2199 = vunpack.c.l.b16 %v395
        %v2200 = vunpack.c.h.b16 %v395
        %v2201 = vunpack.c.l.b16 %v396
        %v2202 = vunpack.c.h.b16 %v396
        %v2203 = vunpack.c.l.b16 %v397
        %v2204 = vunpack.c.h.b16 %v397
        %v2205 = vunpack.c.l.b16 %v398
        %v2206 = vunpack.c.h.b16 %v398
        %v2207 = vunpack.c.l.b16 %v399
        %v2208 = vunpack.c.h.b16 %v399
        %v2209 = vunpack.c.l.b16 %v400
        %v2210 = vunpack.c.h.b16 %v400
        %v2211 = vunpack.c.l.b16 %v401
        %v2212 = vunpack.c.h.b16 %v401
        %v2213 = vunpack.c.l.b16 %v402
        %v2214 = vunpack.c.h.b16 %v402
        %v2215 = vunpack.c.l.b16 %v403
        %v2216 = vunpack.c.h.b16 %v403
        %v2217 = vunpack.c.l.b16 %v404
        %v2218 = vunpack.c.h.b16 %v404
        %v2219 = vunpack.c.l.b16 %v405
        %v2220 = vunpack.c.h.b16 %v405
        %v2221 = vunpack.c.l.b16 %v406
        %v2222 = vunpack.c.h.b16 %v406
        %v2223 = vunpack.c.l.b16 %v407
        %v2224 = vunpack.c.h.b16 %v407
        %v2225 = vunpack.c.l.b16 %v408
        %v2226 = vunpack.c.h.b16 %v408
        %v2227 = vunpack.c.l.b16 %v409
        %v2228 = vunpack.c.h.b16 %v409
        %v2229 = vunpack.c.l.b16 %v410
        %v2230 = vunpack.c.h.b16 %v410
        %v2231 = vunpack.c.l.b16 %v411
        %v2232 = vunpack.c.h.b16 %v411
        %v2233 = vunpack.c.l.b16 %v412
        %v2234 = vunpack.c.h.b16 %v412
        %v2235 = vunpack.c.l.b16 %v413
        %v2236 = vunpack.c.h.b16 %v413
        %v2237 = vunpack.c.l.b16 %v414
        %v2238 = vunpack.c.h.b16 %v414
        %v2239 = vunpack.c.l.b16 %v415
        %v2240 = vunpack.c.h.b16 %v415
        %v2241 = vunpack.c.l.b16 %v416
        %v2242 = vunpack.c.h.b16 %v416
        %v2243 = vunpack.c.l.b16 %v417
        %v2244 = vunpack.c.h.b16 %v417
        %v2245 = vunpack.c.l.b16 %v418
        %v2246 = vunpack.c.h.b16 %v418
        %v2247 = vunpack.c.l.b16 %v419
        %v2248 = vunpack.c.h.b16 %v419
        %v2249 = vunpack.c.l.b16 %v420
        %v2250 = vunpack.c.h.b16 %v420
        %v2251 = vunpack.c.l.b16 %v421
        %v2252 = vunpack.c.h.b16 %v421
        %v2253 = vunpack.c.l.b16 %v422
        %v2254 = vunpack.c.h.b16 %v422
        %v2255 = vunpack.c.l.b16 %v423
        %v2256 = vunpack.c.h.b16 %v423
        %v2257 = vunpack.c.l.b16 %v424
        %v2258 = vunpack.c.h.b16 %v424
        %v2259 = vunpack.c.l.b16 %v425
        %v2260 = vunpack.c.h.b16 %v425
        %v2261 = vunpack.c.l.b16 %v426
        %v2262 = vunpack.c.h.b16 %v426
        %v2263 = vunpack.c.l.b16 %v427
        %v2264 = vunpack.c.h.b16 %v427
        %v2265 = vunpack.c.l.b16 %v428
        %v2266 = vunpack.c.h.b16 %v428
        %v2267 = vunpack.c.l.b16 %v429
        %v2268 = vunpack.c.h.b16 %v429
        %v2269 = vunpack.c.l.b16 %v430
        %v2270 = vunpack.c.h.b16 %v430
        %v2271 = vunpack.c.l.b16 %v431
        %v2272 = vunpack.c.h.b16 %v431
        %v2273 = vunpack.c.l.b16 %v432
        %v2274 = vunpack.c.h.b16 %v432
        %v2275 = vunpack.c.l.b16 %v433
        %v2276 = vunpack.c.h.b16 %v433
        %v2277 = vunpack.c.l.b16 %v434
        %v2278 = vunpack.c.h.b16 %v434
        %v2279 = vunpack.c.l.b16 %v435
        %v2280 = vunpack.c.h.b16 %v435
        %v2281 = vunpack.c.l.b16 %v436
        %v2282 = vunpack.c.h.b16 %v436
        %v2283 = vunpack.c.l.b16 %v437
        %v2284 = vunpack.c.h.b16 %v437
        %v2285 = vunpack.c.l.b16 %v438
        %v2286 = vunpack.c.h.b16 %v438
        %v2287 = vunpack.c.l.b16 %v439
        %v2288 = vunpack.c.h.b16 %v439
        %v2289 = vunpack.c.l.b16 %v440
        %v2290 = vunpack.c.h.b16 %v440
        %v2291 = vunpack.c.l.b16 %v441
        %v2292 = vunpack.c.h.b16 %v441
        %v2293 = vunpack.c.l.b16 %v442
        %v2294 = vunpack.c.h.b16 %v442
        %v2295 = vunpack.c.l.b16 %v443
        %v2296 = vunpack.c.h.b16 %v443
        %v2297 = vunpack.c.l.b16 %v444
        %v2298 = vunpack.c.h.b16 %v444
        %v2299 = vunpack.c.l.b16 %v445
        %v2300 = vunpack.c.h.b16 %v445
        %v2301 = vunpack.c.l.b16 %v446
        %v2302 = vunpack.c.h.b16 %v446
        %v2303 = vunpack.c.l.b16 %v447
        %v2304 = vunpack.c.h.b16 %v447
        %v2305 = vunpack.c.l.b16 %v448
        %v2306 = vunpack.c.h.b16 %v448
        %v2307 = vunpack.c.l.b16 %v449
        %v2308 = vunpack.c.h.b16 %v449
        %v2309 = vunpack.c.l.b16 %v450
        %v2310 = vunpack.c.h.b16 %v450
        %v2311 = vunpack.c.l.b16 %v451
        %v2312 = vunpack.c.h.b16 %v451
        %v2313 = vunpack.c.l.b16 %v452
        %v2314 = vunpack.c.h.b16 %v452
        %v2315 = vunpack.c.l.b16 %v453
        %v2316 = vunpack.c.h.b16 %v453
        %v2317 = vunpack.c.l.b16 %v454
        %v2318 = vunpack.c.h.b16 %v454
        %v2319 = vunpack.c.l.b16 %v455
        %v2320 = vunpack.c.h.b16 %v455
        %v2321 = vunpack.c.l.b16 %v456
        %v2322 = vunpack.c.h.b16 %v456
        %v2323 = vunpack.c.l.b16 %v457
        %v2324 = vunpack.c.h.b16 %v457
        %v2325 = vunpack.c.l.b16 %v458
        %v2326 = vunpack.c.h.b16 %v458
        %v2327 = vunpack.c.l.b16 %v459
        %v2328 = vunpack.c.h.b16 %v459
        %v2329 = vunpack.c.l.b16 %v460
        %v2330 = vunpack.c.h.b16 %v460
        %v2331 = vunpack.c.l.b16 %v461
        %v2332 = vunpack.c.h.b16 %v461
        %v2333 = vunpack.c.l.b16 %v462
        %v2334 = vunpack.c.h.b16 %v462
        %v2335 = vunpack.c.l.b16 %v463
        %v2336 = vunpack.c.h.b16 %v463
        %v2337 = vunpack.c.l.b16 %v464
        %v2338 = vunpack.c.h.b16 %v464
        %v2339 = vunpack.c.l.b16 %v465
        %v2340 = vunpack.c.h.b16 %v465
        %v2341 = vunpack.c.l.b16 %v466
        %v2342 = vunpack.c.h.b16 %v466
        %v2343 = vunpack.c.l.b16 %v467
        %v2344 = vunpack.c.h.b16 %v467
        %v2345 = vunpack.c.l.b16 %v468
        %v2346 = vunpack.c.h.b16 %v468
        %v2347 = vunpack.c.l.b16 %v469
        %v2348 = vunpack.c.h.b16 %v469
        %v2349 = vunpack.c.l.b16 %v470
        %v2350 = vunpack.c.h.b16 %v470
        %v2351 = vunpack.c.l.b16 %v471
        %v2352 = vunpack.c.h.b16 %v471
        %v2353 = vunpack.c.l.b16 %v472
        %v2354 = vunpack.c.h.b16 %v472
        %v2355 = vunpack.c.l.b16 %v473
        %v2356 = vunpack.c.h.b16 %v473
        %v2357 = vunpack.c.l.b16 %v474
        %v2358 = vunpack.c.h.b16 %v474
        %v2359 = vunpack.c.l.b16 %v475
        %v2360 = vunpack.c.h.b16 %v475
        %v2361 = vunpack.c.l.b16 %v476
        %v2362 = vunpack.c.h.b16 %v476
        %v2363 = vunpack.c.l.b16 %v477
        %v2364 = vunpack.c.h.b16 %v477
        %v2365 = vunpack.c.l.b16 %v478
        %v2366 = vunpack.c.h.b16 %v478
        %v2367 = vunpack.c.l.b16 %v479
        %v2368 = vunpack.c.h.b16 %v479
        %v2369 = vunpack.c.l.b16 %v480
        %v2370 = vunpack.c.h.b16 %v480
        %v2371 = vunpack.c.l.b16 %v481
        %v2372 = vunpack.c.h.b16 %v481
        %v2373 = vunpack.c.l.b16 %v482
        %v2374 = vunpack.c.h.b16 %v482
        %v2375 = vunpack.c.l.b16 %v483
        %v2376 = vunpack.c.h.b16 %v483
        %v2377 = vunpack.c.l.b16 %v484
        %v2378 = vunpack.c.h.b16 %v484
        %v2379 = vunpack.c.l.b16 %v485
        %v2380 = vunpack.c.h.b16 %v485
        %v2381 = vunpack.c.l.b16 %v486
        %v2382 = vunpack.c.h.b16 %v486
        %v2383 = vunpack.c.l.b16 %v487
        %v2384 = vunpack.c.h.b16 %v487
        %v2385 = vunpack.c.l.b16 %v488
        %v2386 = vunpack.c.h.b16 %v488
        %v2387 = vunpack.c.l.b16 %v489
        %v2388 = vunpack.c.h.b16 %v489
        %v2389 = vunpack.c.l.b16 %v490
        %v2390 = vunpack.c.h.b16 %v490
        %v2391 = vunpack.c.l.b16 %v491
        %v2392 = vunpack.c.h.b16 %v491
        %v2393 = vunpack.c.l.b16 %v492
        %v2394 = vunpack.c.h.b16 %v492
        %v2395 = vunpack.c.l.b16 %v493
        %v2396 = vunpack.c.h.b16 %v493
        %v2397 = vunpack.c.l.b16 %v494
        %v2398 = vunpack.c.h.b16 %v494
        %v2399 = vunpack.c.l.b16 %v495
        %v2400 = vunpack.c.h.b16 %v495
        %v2401 = vunpack.c.l.b16 %v496
        %v2402 = vunpack.c.h.b16 %v496
        %v2403 = vunpack.c.l.b16 %v497
        %v2404 = vunpack.c.h.b16 %v497
        %v2405 = vunpack.c.l.b16 %v498
        %v2406 = vunpack.c.h.b16 %v498
        %v2407 = vunpack.c.l.b16 %v499
        %v2408 = vunpack.c.h.b16 %v499
        %v2409 = vunpack.c.l.b16 %v500
        %v2410 = vunpack.c.h.b16 %v500
        %v2411 = vunpack.c.l.b16 %v501
        %v2412 = vunpack.c.h.b16 %v501
        %v2413 = vunpack.c.l.b16 %v502
        %v2414 = vunpack.c.h.b16 %v502
        %v2415 = vunpack.c.l.b16 %v503
        %v2416 = vunpack.c.h.b16 %v503
        %v2417 = vunpack.c.l.b16 %v504
        %v2418 = vunpack.c.h.b16 %v504
        %v2419 = vunpack.c.l.b16 %v505
        %v2420 = vunpack.c.h.b16 %v505
        %v2421 = vunpack.c.l.b16 %v506
        %v2422 = vunpack.c.h.b16 %v506
        %v2423 = vunpack.c.l.b16 %v507
        %v2424 = vunpack.c.h.b16 %v507
        %v2425 = vunpack.c.l.b16 %v508
        %v2426 = vunpack.c.h.b16 %v508
        %v2427 = vunpack.c.l.b16 %v509
        %v2428 = vunpack.c.h.b16 %v509
        %v2429 = vunpack.c.l.b16 %v510
        %v2430 = vunpack.c.h.b16 %v510
        %v2431 = vunpack.c.l.b16 %v511
        %v2432 = vunpack.c.h.b16 %v511
        %v2433 = vunpack.c.l.b16 %v512
        %v2434 = vunpack.c.h.b16 %v512
        %v2435 = vunpack.c.l.b16 %v513
        %v2436 = vunpack.c.h.b16 %v513
        %v2437 = vunpack.c.l.b16 %v514
        %v2438 = vunpack.c.h.b16 %v514
        %v2439 = vunpack.c.l.b16 %v515
        %v2440 = vunpack.c.h.b16 %v515
        %v2441 = vunpack.c.l.b16 %v516
        %v2442 = vunpack.c.h.b16 %v516
        %v2443 = vunpack.c.l.b16 %v517
        %v2444 = vunpack.c.h.b16 %v517
        %v2445 = vunpack.c.l.b16 %v518
        %v2446 = vunpack.c.h.b16 %v518
        %v2447 = vunpack.c.l.b16 %v519
        %v2448 = vunpack.c.h.b16 %v519
        %v2449 = vunpack.c.l.b16 %v520
        %v2450 = vunpack.c.h.b16 %v520
        %v2451 = vunpack.c.l.b16 %v521
        %v2452 = vunpack.c.h.b16 %v521
        %v2453 = vunpack.c.l.b16 %v522
        %v2454 = vunpack.c.h.b16 %v522
        %v2455 = vunpack.c.l.b16 %v523
        %v2456 = vunpack.c.h.b16 %v523
        %v2457 = vunpack.c.l.b16 %v524
        %v2458 = vunpack.c.h.b16 %v524
        %v2459 = vunpack.c.l.b16 %v525
        %v2460 = vunpack.c.h.b16 %v525
        %v2461 = vunpack.c.l.b16 %v526
        %v2462 = vunpack.c.h.b16 %v526
        %v2463 = vunpack.c.l.b16 %v527
        %v2464 = vunpack.c.h.b16 %v527
        %v2465 = vunpack.c.l.b16 %v528
        %v2466 = vunpack.c.h.b16 %v528
        %v2467 = vunpack.c.l.b16 %v529
        %v2468 = vunpack.c.h.b16 %v529
        %v2469 = vunpack.c.l.b16 %v530
        %v2470 = vunpack.c.h.b16 %v530
        %v2471 = vunpack.c.l.b16 %v531
        %v2472 = vunpack.c.h.b16 %v531
        %v2473 = vunpack.c.l.b16 %v532
        %v2474 = vunpack.c.h.b16 %v532
        %v2475 = vunpack.c.l.b16 %v533
        %v2476 = vunpack.c.h.b16 %v533
        %v2477 = vunpack.c.l.b16 %v534
        %v2478 = vunpack.c.h.b16 %v534
        %v2479 = vunpack.c.l.b16 %v535
        %v2480 = vunpack.c.h.b16 %v535
        %v2481 = vunpack.c.l.b16 %v536
        %v2482 = vunpack.c.h.b16 %v536
        %v2483 = vunpack.c.l.b16 %v537
        %v2484 = vunpack.c.h.b16 %v537
        %v2485 = vunpack.c.l.b16 %v538
        %v2486 = vunpack.c.h.b16 %v538
        %v2487 = vunpack.c.l.b16 %v539
        %v2488 = vunpack.c.h.b16 %v539
        %v2489 = vunpack.c.l.b16 %v540
        %v2490 = vunpack.c.h.b16 %v540
        %v2491 = vunpack.c.l.b16 %v541
        %v2492 = vunpack.c.h.b16 %v541
        %v2493 = vunpack.c.l.b16 %v542
        %v2494 = vunpack.c.h.b16 %v542
        %v2495 = vunpack.c.l.b16 %v543
        %v2496 = vunpack.c.h.b16 %v543
        %v2497 = vunpack.c.l.b16 %v544
        %v2498 = vunpack.c.h.b16 %v544
        %v2499 = vunpack.c.l.b16 %v545
        %v2500 = vunpack.c.h.b16 %v545
        %v2501 = vunpack.c.l.b16 %v546
        %v2502 = vunpack.c.h.b16 %v546
        %v2503 = vunpack.c.l.b16 %v547
        %v2504 = vunpack.c.h.b16 %v547
        %v2505 = vunpack.c.l.b16 %v548
        %v2506 = vunpack.c.h.b16 %v548
        %v2507 = vunpack.c.l.b16 %v549
        %v2508 = vunpack.c.h.b16 %v549
        %v2509 = vunpack.c.l.b16 %v550
        %v2510 = vunpack.c.h.b16 %v550
        %v2511 = vunpack.c.l.b16 %v551
        %v2512 = vunpack.c.h.b16 %v551
        %v2513 = vunpack.c.l.b16 %v552
        %v2514 = vunpack.c.h.b16 %v552
        %v2515 = vunpack.c.l.b16 %v553
        %v2516 = vunpack.c.h.b16 %v553
        %v2517 = vunpack.c.l.b16 %v554
        %v2518 = vunpack.c.h.b16 %v554
        %v2519 = vunpack.c.l.b16 %v555
        %v2520 = vunpack.c.h.b16 %v555
        %v2521 = vunpack.c.l.b16 %v556
        %v2522 = vunpack.c.h.b16 %v556
        %v2523 = vunpack.c.l.b16 %v557
        %v2524 = vunpack.c.h.b16 %v557
        %v2525 = vunpack.c.l.b16 %v558
        %v2526 = vunpack.c.h.b16 %v558
        %v2527 = vunpack.c.l.b16 %v559
        %v2528 = vunpack.c.h.b16 %v559
        %v2529 = vunpack.c.l.b16 %v560
        %v2530 = vunpack.c.h.b16 %v560
        %v2531 = vunpack.c.l.b16 %v561
        %v2532 = vunpack.c.h.b16 %v561
        %v2533 = vunpack.c.l.b16 %v562
        %v2534 = vunpack.c.h.b16 %v562
        %v2535 = vunpack.c.l.b16 %v563
        %v2536 = vunpack.c.h.b16 %v563
        %v2537 = vunpack.c.l.b16 %v564
        %v2538 = vunpack.c.h.b16 %v564
        %v2539 = vunpack.c.l.b16 %v565
        %v2540 = vunpack.c.h.b16 %v565
        %v2541 = vunpack.c.l.b16 %v566
        %v2542 = vunpack.c.h.b16 %v566
        %v2543 = vunpack.c.l.b16 %v567
        %v2544 = vunpack.c.h.b16 %v567
        %v2545 = vunpack.c.l.b16 %v568
        %v2546 = vunpack.c.h.b16 %v568
        %v2547 = vunpack.c.l.b16 %v569
        %v2548 = vunpack.c.h.b16 %v569
        %v2549 = vunpack.c.l.b16 %v570
        %v2550 = vunpack.c.h.b16 %v570
        %v2551 = vunpack.c.l.b16 %v571
        %v2552 = vunpack.c.h.b16 %v571
        %v2553 = vunpack.c.l.b16 %v572
        %v2554 = vunpack.c.h.b16 %v572
        %v2555 = vunpack.c.l.b16 %v573
        %v2556 = vunpack.c.h.b16 %v573
        %v2557 = vunpack.c.l.b16 %v574
        %v2558 = vunpack.c.h.b16 %v574
        %v2559 = vunpack.c.l.b16 %v575
        %v2560 = vunpack.c.h.b16 %v575
        %v2561 = vunpack.c.l.b16 %v576
        %v2562 = vunpack.c.h.b16 %v576
        %v2563 = vunpack.c.l.b16 %v577
        %v2564 = vunpack.c.h.b16 %v577
        %v2565 = vunpack.c.l.b16 %v578
        %v2566 = vunpack.c.h.b16 %v578
        %v2567 = vunpack.c.l.b16 %v579
        %v2568 = vunpack.c.h.b16 %v579
        %v2569 = vunpack.c.l.b16 %v580
        %v2570 = vunpack.c.h.b16 %v580
        %v2571 = vunpack.c.l.b16 %v581
        %v2572 = vunpack.c.h.b16 %v581
        %v2573 = vunpack.c.l.b16 %v582
        %v2574 = vunpack.c.h.b16 %v582
        %v2575 = vunpack.c.l.b16 %v583
        %v2576 = vunpack.c.h.b16 %v583
        %v2577 = vunpack.c.l.b16 %v584
        %v2578 = vunpack.c.h.b16 %v584
        %v2579 = vunpack.c.l.b16 %v585
        %v2580 = vunpack.c.h.b16 %v585
        %v2581 = vunpack.c.l.b16 %v586
        %v2582 = vunpack.c.h.b16 %v586
        %v2583 = vunpack.c.l.b16 %v587
        %v2584 = vunpack.c.h.b16 %v587
        %v2585 = vunpack.c.l.b16 %v588
        %v2586 = vunpack.c.h.b16 %v588
        %v2587 = vunpack.c.l.b16 %v589
        %v2588 = vunpack.c.h.b16 %v589
        %v2589 = vunpack.c.l.b16 %v590
        %v2590 = vunpack.c.h.b16 %v590
        %v2591 = vunpack.c.l.b16 %v591
        %v2592 = vunpack.c.h.b16 %v591
        %v2593 = vunpack.c.l.b16 %v592
        %v2594 = vunpack.c.h.b16 %v592
        %v2595 = vunpack.c.l.b16 %v593
        %v2596 = vunpack.c.h.b16 %v593
        %v2597 = vunpack.c.l.b16 %v594
        %v2598 = vunpack.c.h.b16 %v594
        %v2599 = vunpack.c.l.b16 %v595
        %v2600 = vunpack.c.h.b16 %v595
        %v2601 = vunpack.c.l.b16 %v596
        %v2602 = vunpack.c.h.b16 %v596
        %v2603 = vunpack.c.l.b16 %v597
        %v2604 = vunpack.c.h.b16 %v597
        %v2605 = vunpack.c.l.b16 %v598
        %v2606 = vunpack.c.h.b16 %v598
        %v2607 = vunpack.c.l.b16 %v599
        %v2608 = vunpack.c.h.b16 %v599
        %v2609 = vunpack.c.l.b16 %v600
        %v2610 = vunpack.c.h.b16 %v600
        %v2611 = vunpack.c.l.b16 %v601
        %v2612 = vunpack.c.h.b16 %v601
        %v2613 = vunpack.c.l.b16 %v602
        %v2614 = vunpack.c.h.b16 %v602
        %v2615 = vunpack.c.l.b16 %v603
        %v2616 = vunpack.c.h.b16 %v603
        %v2617 = vunpack.c.l.b16 %v604
        %v2618 = vunpack.c.h.b16 %v604
        %v2619 = vunpack.c.l.b16 %v605
        %v2620 = vunpack.c.h.b16 %v605
        %v2621 = vunpack.c.l.b16 %v606
        %v2622 = vunpack.c.h.b16 %v606
        %v2623 = vunpack.c.l.b16 %v607
        %v2624 = vunpack.c.h.b16 %v607
        %v2625 = vunpack.c.l.b16 %v608
        %v2626 = vunpack.c.h.b16 %v608
        %v2627 = vunpack.c.l.b16 %v609
        %v2628 = vunpack.c.h.b16 %v609
        %v2629 = vunpack.c.l.b16 %v610
        %v2630 = vunpack.c.h.b16 %v610
        %v2631 = vunpack.c.l.b16 %v611
        %v2632 = vunpack.c.h.b16 %v611
        %v2633 = vunpack.c.l.b16 %v612
        %v2634 = vunpack.c.h.b16 %v612
        %v2635 = vunpack.c.l.b16 %v613
        %v2636 = vunpack.c.h.b16 %v613
        %v2637 = vunpack.c.l.b16 %v614
        %v2638 = vunpack.c.h.b16 %v614
        %v2639 = vunpack.c.l.b16 %v615
        %v2640 = vunpack.c.h.b16 %v615
        %v2641 = vunpack.c.l.b16 %v616
        %v2642 = vunpack.c.h.b16 %v616
        %v2643 = vunpack.c.l.b16 %v617
        %v2644 = vunpack.c.h.b16 %v617
        %v2645 = vunpack.c.l.b16 %v618
        %v2646 = vunpack.c.h.b16 %v618
        %v2647 = vunpack.c.l.b16 %v619
        %v2648 = vunpack.c.h.b16 %v619
        %v2649 = vunpack.c.l.b16 %v620
        %v2650 = vunpack.c.h.b16 %v620
        %v2651 = vunpack.c.l.b16 %v621
        %v2652 = vunpack.c.h.b16 %v621
        %v2653 = vunpack.c.l.b16 %v622
        %v2654 = vunpack.c.h.b16 %v622
        %v2655 = vunpack.c.l.b16 %v623
        %v2656 = vunpack.c.h.b16 %v623
        %v2657 = vunpack.c.l.b16 %v624
        %v2658 = vunpack.c.h.b16 %v624
        %v2659 = vunpack.c.l.b16 %v625
        %v2660 = vunpack.c.h.b16 %v625
        %v2661 = vunpack.c.l.b16 %v626
        %v2662 = vunpack.c.h.b16 %v626
        %v2663 = vunpack.c.l.b16 %v627
        %v2664 = vunpack.c.h.b16 %v627
        %v2665 = vunpack.c.l.b16 %v628
        %v2666 = vunpack.c.h.b16 %v628
        %v2667 = vunpack.c.l.b16 %v629
        %v2668 = vunpack.c.h.b16 %v629
        %v2669 = vunpack.c.l.b16 %v630
        %v2670 = vunpack.c.h.b16 %v630
        %v2671 = vunpack.c.l.b16 %v631
        %v2672 = vunpack.c.h.b16 %v631
        %v2673 = vunpack.c.l.b16 %v632
        %v2674 = vunpack.c.h.b16 %v632
        %v2675 = vunpack.c.l.b16 %v633
        %v2676 = vunpack.c.h.b16 %v633
        %v2677 = vunpack.c.l.b16 %v634
        %v2678 = vunpack.c.h.b16 %v634
        %v2679 = vunpack.c.l.b16 %v635
        %v2680 = vunpack.c.h.b16 %v635
        %v2681 = vunpack.c.l.b16 %v636
        %v2682 = vunpack.c.h.b16 %v636
        %v2683 = vunpack.c.l.b16 %v637
        %v2684 = vunpack.c.h.b16 %v637
        %v2685 = vunpack.c.l.b16 %v638
        %v2686 = vunpack.c.h.b16 %v638
        %v2687 = vunpack.c.l.b16 %v639
        %v2688 = vunpack.c.h.b16 %v639
        %v2689 = vunpack.c.l.b16 %v640
        %v2690 = vunpack.c.h.b16 %v640
        %v2691 = vunpack.c.l.b16 %v641
        %v2692 = vunpack.c.h.b16 %v641
        %v2693 = vunpack.c.l.b16 %v642
        %v2694 = vunpack.c.h.b16 %v642
        %v2695 = vunpack.c.l.b16 %v643
        %v2696 = vunpack.c.h.b16 %v643
        %v2697 = vunpack.c.l.b16 %v644
        %v2698 = vunpack.c.h.b16 %v644
        %v2699 = vunpack.c.l.b16 %v645
        %v2700 = vunpack.c.h.b16 %v645
        %v2701 = vunpack.c.l.b16 %v646
        %v2702 = vunpack.c.h.b16 %v646
        %v2703 = vunpack.c.l.b16 %v647
        %v2704 = vunpack.c.h.b16 %v647
        %v2705 = vunpack.c.l.b16 %v648
        %v2706 = vunpack.c.h.b16 %v648
        %v2707 = vunpack.c.l.b16 %v649
        %v2708 = vunpack.c.h.b16 %v649
        %v2709 = vunpack.c.l.b16 %v650
        %v2710 = vunpack.c.h.b16 %v650
        %v2711 = vunpack.c.l.b16 %v651
        %v2712 = vunpack.c.h.b16 %v651
        %v2713 = vunpack.c.l.b16 %v652
        %v2714 = vunpack.c.h.b16 %v652
        %v2715 = vunpack.c.l.b16 %v653
        %v2716 = vunpack.c.h.b16 %v653
        %v2717 = vunpack.c.l.b16 %v654
        %v2718 = vunpack.c.h.b16 %v654
        %v2719 = vunpack.c.l.b16 %v655
        %v2720 = vunpack.c.h.b16 %v655
        %v2721 = vunpack.c.l.b16 %v656
        %v2722 = vunpack.c.h.b16 %v656
        %v2723 = vunpack.c.l.b16 %v657
        %v2724 = vunpack.c.h.b16 %v657
        %v2725 = vunpack.c.l.b16 %v658
        %v2726 = vunpack.c.h.b16 %v658
        %v2727 = vunpack.c.l.b16 %v659
        %v2728 = vunpack.c.h.b16 %v659
        %v2729 = vunpack.c.l.b16 %v660
        %v2730 = vunpack.c.h.b16 %v660
        %v2731 = vunpack.c.l.b16 %v661
        %v2732 = vunpack.c.h.b16 %v661
        %v2733 = vunpack.c.l.b16 %v662
        %v2734 = vunpack.c.h.b16 %v662
        %v2735 = vunpack.c.l.b16 %v663
        %v2736 = vunpack.c.h.b16 %v663
        %v2737 = vunpack.c.l.b16 %v664
        %v2738 = vunpack.c.h.b16 %v664
        %v2739 = vunpack.c.l.b16 %v665
        %v2740 = vunpack.c.h.b16 %v665
        %v2741 = vunpack.c.l.b16 %v666
        %v2742 = vunpack.c.h.b16 %v666
        %v2743 = vunpack.c.l.b16 %v667
        %v2744 = vunpack.c.h.b16 %v667
        %v2745 = vunpack.c.l.b16 %v668
        %v2746 = vunpack.c.h.b16 %v668
        %v2747 = vunpack.c.l.b16 %v669
        %v2748 = vunpack.c.h.b16 %v669
        %v2749 = vunpack.c.l.b16 %v670
        %v2750 = vunpack.c.h.b16 %v670
        %v2751 = vunpack.c.l.b16 %v671
        %v2752 = vunpack.c.h.b16 %v671
        %v2753 = vunpack.c.l.b16 %v672
        %v2754 = vunpack.c.h.b16 %v672
        %v2755 = vunpack.c.l.b16 %v673
        %v2756 = vunpack.c.h.b16 %v673
        %v2757 = vunpack.c.l.b16 %v674
        %v2758 = vunpack.c.h.b16 %v674
        %v2759 = vunpack.c.l.b16 %v675
        %v2760 = vunpack.c.h.b16 %v675
        %v2761 = vunpack.c.l.b16 %v676
        %v2762 = vunpack.c.h.b16 %v676
        %v2763 = vunpack.c.l.b16 %v677
        %v2764 = vunpack.c.h.b16 %v677
        %v2765 = vunpack.c.l.b16 %v678
        %v2766 = vunpack.c.h.b16 %v678
        %v2767 = vunpack.c.l.b16 %v679
        %v2768 = vunpack.c.h.b16 %v679
        %v2769 = vunpack.c.l.b16 %v680
        %v2770 = vunpack.c.h.b16 %v680
        %v2771 = vunpack.c.l.b16 %v681
        %v2772 = vunpack.c.h.b16 %v681
        %v2773 = vunpack.c.l.b16 %v682
        %v2774 = vunpack.c.h.b16 %v682
        %v2775 = vunpack.c.l.b16 %v683
        %v2776 = vunpack.c.h.b16 %v683
        %v2777 = vunpack.c.l.b16 %v684
        %v2778 = vunpack.c.h.b16 %v684
        %v2779 = vunpack.c.l.b16 %v685
        %v2780 = vunpack.c.h.b16 %v685
        %v2781 = vunpack.c.l.b16 %v686
        %v2782 = vunpack.c.h.b16 %v686
        %v2783 = vunpack.c.l.b16 %v687
        %v2784 = vunpack.c.h.b16 %v687
        %v2785 = vunpack.c.l.b16 %v688
        %v2786 = vunpack.c.h.b16 %v688
        %v2787 = vunpack.c.l.b16 %v689
        %v2788 = vunpack.c.h.b16 %v689
        %v2789 = vunpack.c.l.b16 %v690
        %v2790 = vunpack.c.h.b16 %v690
        %v2791 = vunpack.c.l.b16 %v691
        %v2792 = vunpack.c.h.b16 %v691
        %v2793 = vunpack.c.l.b16 %v692
        %v2794 = vunpack.c.h.b16 %v692
        %v2795 = vunpack.c.l.b16 %v693
        %v2796 = vunpack.c.h.b16 %v693
        %v2797 = vunpack.c.l.b16 %v694
        %v2798 = vunpack.c.h.b16 %v694
        %v2799 = vunpack.c.l.b16 %v695
        %v2800 = vunpack.c.h.b16 %v695
        %v2801 = vunpack.c.l.b16 %v696
        %v2802 = vunpack.c.h.b16 %v696
        %v2803 = vunpack.c.l.b16 %v697
        %v2804 = vunpack.c.h.b16 %v697
        %v2805 = vunpack.c.l.b16 %v698
        %v2806 = vunpack.c.h.b16 %v698
        %v2807 = vunpack.c.l.b16 %v699
        %v2808 = vunpack.c.h.b16 %v699
        %v2809 = vunpack.c.l.b16 %v700
        %v2810 = vunpack.c.h.b16 %v700
        %v2811 = vunpack.c.l.b16 %v701
        %v2812 = vunpack.c.h.b16 %v701
        %v2813 = vunpack.c.l.b16 %v702
        %v2814 = vunpack.c.h.b16 %v702
        %v2815 = vunpack.c.l.b16 %v703
        %v2816 = vunpack.c.h.b16 %v703
        %v2817 = vunpack.c.l.b16 %v704
        %v2818 = vunpack.c.h.b16 %v704
        %v2819 = vunpack.c.l.b16 %v705
        %v2820 = vunpack.c.h.b16 %v705
        %v2821 = vunpack.c.l.b16 %v706
        %v2822 = vunpack.c.h.b16 %v706
        %v2823 = vunpack.c.l.b16 %v707
        %v2824 = vunpack.c.h.b16 %v707
        %v2825 = vunpack.c.l.b16 %v708
        %v2826 = vunpack.c.h.b16 %v708
        %v2827 = vunpack.c.l.b16 %v709
        %v2828 = vunpack.c.h.b16 %v709
        %v2829 = vunpack.c.l.b16 %v710
        %v2830 = vunpack.c.h.b16 %v710
        %v2831 = vunpack.c.l.b16 %v711
        %v2832 = vunpack.c.h.b16 %v711
        %v2833 = vunpack.c.l.b16 %v712
        %v2834 = vunpack.c.h.b16 %v712
        %v2835 = vunpack.c.l.b16 %v713
        %v2836 = vunpack.c.h.b16 %v713
        %v2837 = vunpack.c.l.b16 %v714
        %v2838 = vunpack.c.h.b16 %v714
        %v2839 = vunpack.c.l.b16 %v715
        %v2840 = vunpack.c.h.b16 %v715
        %v2841 = vunpack.c.l.b16 %v716
        %v2842 = vunpack.c.h.b16 %v716
        %v2843 = vunpack.c.l.b16 %v717
        %v2844 = vunpack.c.h.b16 %v717
        %v2845 = vunpack.c.l.b16 %v718
        %v2846 = vunpack.c.h.b16 %v718
        %v2847 = vunpack.c.l.b16 %v719
        %v2848 = vunpack.c.h.b16 %v719
        %v2849 = vunpack.c.l.b16 %v720
        %v2850 = vunpack.c.h.b16 %v720
        %v2851 = vunpack.c.l.b16 %v721
        %v2852 = vunpack.c.h.b16 %v721
        %v2853 = vunpack.c.l.b16 %v722
        %v2854 = vunpack.c.h.b16 %v722
        %v2855 = vunpack.c.l.b16 %v723
        %v2856 = vunpack.c.h.b16 %v723
        %v2857 = vunpack.c.l.b16 %v724
        %v2858 = vunpack.c.h.b16 %v724
        %v2859 = vunpack.c.l.b16 %v725
        %v2860 = vunpack.c.h.b16 %v725
        %v2861 = vunpack.c.l.b16 %v726
        %v2862 = vunpack.c.h.b16 %v726
        %v2863 = vunpack.c.l.b16 %v727
        %v2864 = vunpack.c.h.b16 %v727
        %v2865 = vunpack.c.l.b16 %v728
        %v2866 = vunpack.c.h.b16 %v728
        %v2867 = vunpack.c.l.b16 %v729
        %v2868 = vunpack.c.h.b16 %v729
        %v2869 = vunpack.c.l.b16 %v730
        %v2870 = vunpack.c.h.b16 %v730
        %v2871 = vunpack.c.l.b16 %v731
        %v2872 = vunpack.c.h.b16 %v731
        %v2873 = vunpack.c.l.b16 %v732
        %v2874 = vunpack.c.h.b16 %v732
        %v2875 = vunpack.c.l.b16 %v733
        %v2876 = vunpack.c.h.b16 %v733
        %v2877 = vunpack.c.l.b16 %v734
        %v2878 = vunpack.c.h.b16 %v734
        %v2879 = vunpack.c.l.b16 %v735
        %v2880 = vunpack.c.h.b16 %v735
        %v2881 = vunpack.c.l.b16 %v736
        %v2882 = vunpack.c.h.b16 %v736
        %v2883 = vunpack.c.l.b16 %v737
        %v2884 = vunpack.c.h.b16 %v737
        %v2885 = vunpack.c.l.b16 %v738
        %v2886 = vunpack.c.h.b16 %v738
        %v2887 = vunpack.c.l.b16 %v739
        %v2888 = vunpack.c.h.b16 %v739
        %v2889 = vunpack.c.l.b16 %v740
        %v2890 = vunpack.c.h.b16 %v740
        %v2891 = vunpack.c.l.b16 %v741
        %v2892 = vunpack.c.h.b16 %v741
        %v2893 = vunpack.c.l.b16 %v742
        %v2894 = vunpack.c.h.b16 %v742
        %v2895 = vunpack.c.l.b16 %v743
        %v2896 = vunpack.c.h.b16 %v743
        %v2897 = vunpack.c.l.b16 %v744
        %v2898 = vunpack.c.h.b16 %v744
        %v2899 = vunpack.c.l.b16 %v745
        %v2900 = vunpack.c.h.b16 %v745
        %v2901 = vunpack.c.l.b16 %v746
        %v2902 = vunpack.c.h.b16 %v746
        %v2903 = vunpack.c.l.b16 %v747
        %v2904 = vunpack.c.h.b16 %v747
        %v2905 = vunpack.c.l.b16 %v748
        %v2906 = vunpack.c.h.b16 %v748
        %v2907 = vunpack.c.l.b16 %v749
        %v2908 = vunpack.c.h.b16 %v749
        %v2909 = vunpack.c.l.b16 %v750
        %v2910 = vunpack.c.h.b16 %v750
        %v2911 = vunpack.c.l.b16 %v751
        %v2912 = vunpack.c.h.b16 %v751
        %v2913 = vunpack.c.l.b16 %v752
        %v2914 = vunpack.c.h.b16 %v752
        %v2915 = vunpack.c.l.b16 %v753
        %v2916 = vunpack.c.h.b16 %v753
        %v2917 = vunpack.c.l.b16 %v754
        %v2918 = vunpack.c.h.b16 %v754
        %v2919 = vunpack.c.l.b16 %v755
        %v2920 = vunpack.c.h.b16 %v755
        %v2921 = vunpack.c.l.b16 %v756
        %v2922 = vunpack.c.h.b16 %v756
        %v2923 = vunpack.c.l.b16 %v757
        %v2924 = vunpack.c.h.b16 %v757
        %v2925 = vunpack.c.l.b16 %v758
        %v2926 = vunpack.c.h.b16 %v758
        %v2927 = vunpack.c.l.b16 %v759
        %v2928 = vunpack.c.h.b16 %v759
        %v2929 = vunpack.c.l.b16 %v760
        %v2930 = vunpack.c.h.b16 %v760
        %v2931 = vunpack.c.l.b16 %v761
        %v2932 = vunpack.c.h.b16 %v761
        %v2933 = vunpack.c.l.b16 %v762
        %v2934 = vunpack.c.h.b16 %v762
        %v2935 = vunpack.c.l.b16 %v763
        %v2936 = vunpack.c.h.b16 %v763
        %v2937 = vunpack.c.l.b16 %v764
        %v2938 = vunpack.c.h.b16 %v764
        %v2939 = vunpack.c.l.b16 %v765
        %v2940 = vunpack.c.h.b16 %v765
        %v2941 = vunpack.c.l.b16 %v766
        %v2942 = vunpack.c.h.b16 %v766
        %v2943 = vunpack.c.l.b16 %v767
        %v2944 = vunpack.c.h.b16 %v767
        %v2945 = vunpack.c.l.b16 %v768
        %v2946 = vunpack.c.h.b16 %v768
        %v2947 = vunpack.c.l.b16 %v769
        %v2948 = vunpack.c.h.b16 %v769
        %v2949 = vunpack.c.l.b16 %v770
        %v2950 = vunpack.c.h.b16 %v770
        %v2951 = vunpack.c.l.b16 %v771
        %v2952 = vunpack.c.h.b16 %v771
        %v2953 = vunpack.c.l.b16 %v772
        %v2954 = vunpack.c.h.b16 %v772
        %v2955 = vunpack.c.l.b16 %v773
        %v2956 = vunpack.c.h.b16 %v773
        %v2957 = vunpack.c.l.b16 %v774
        %v2958 = vunpack.c.h.b16 %v774
        %v2959 = vunpack.c.l.b16 %v775
        %v2960 = vunpack.c.h.b16 %v775
        %v2961 = vunpack.c.l.b16 %v776
        %v2962 = vunpack.c.h.b16 %v776
        %v2963 = vunpack.c.l.b16 %v777
        %v2964 = vunpack.c.h.b16 %v777
        %v2965 = vunpack.c.l.b16 %v778
        %v2966 = vunpack.c.h.b16 %v778
        %v2967 = vunpack.c.l.b16 %v779
        %v2968 = vunpack.c.h.b16 %v779
        %v2969 = vunpack.c.l.b16 %v780
        %v2970 = vunpack.c.h.b16 %v780
        %v2971 = vunpack.c.l.b16 %v781
        %v2972 = vunpack.c.h.b16 %v781
        %v2973 = vunpack.c.l.b16 %v782
        %v2974 = vunpack.c.h.b16 %v782
        %v2975 = vunpack.c.l.b16 %v783
        %v2976 = vunpack.c.h.b16 %v783
        %v2977 = vunpack.c.l.b16 %v784
        %v2978 = vunpack.c.h.b16 %v784
        %v2979 = vunpack.c.l.b16 %v785
        %v2980 = vunpack.c.h.b16 %v785
        %v2981 = vunpack.c.l.b16 %v786
        %v2982 = vunpack.c.h.b16 %v786
        %v2983 = vunpack.c.l.b16 %v787
        %v2984 = vunpack.c.h.b16 %v787
        %v2985 = vunpack.c.l.b16 %v788
        %v2986 = vunpack.c.h.b16 %v788
        %v2987 = vunpack.c.l.b16 %v789
        %v2988 = vunpack.c.h.b16 %v789
        %v2989 = vunpack.c.l.b16 %v790
        %v2990 = vunpack.c.h.b16 %v790
        %v2991 = vunpack.c.l.b16 %v791
        %v2992 = vunpack.c.h.b16 %v791
        %v2993 = vunpack.c.l.b16 %v792
        %v2994 = vunpack.c.h.b16 %v792
        %v2995 = vunpack.c.l.b16 %v793
        %v2996 = vunpack.c.h.b16 %v793
        %v2997 = vunpack.c.l.b16 %v794
        %v2998 = vunpack.c.h.b16 %v794
        %v2999 = vunpack.c.l.b16 %v795
        %v3000 = vunpack.c.h.b16 %v795
        %v3001 = vunpack.c.l.b16 %v796
        %v3002 = vunpack.c.h.b16 %v796
        %v3003 = vunpack.c.l.b16 %v797
        %v3004 = vunpack.c.h.b16 %v797
        %v3005 = vunpack.c.l.b16 %v798
        %v3006 = vunpack.c.h.b16 %v798
        %v3007 = vunpack.c.l.b16 %v799
        %v3008 = vunpack.c.h.b16 %v799
        %v3009 = vunpack.c.l.b16 %v800
        %v3010 = vunpack.c.h.b16 %v800
        %v3011 = vunpack.c.l.b16 %v801
        %v3012 = vunpack.c.h.b16 %v801
        %v3013 = vunpack.c.l.b16 %v802
        %v3014 = vunpack.c.h.b16 %v802
        %v3015 = vunpack.c.l.b16 %v803
        %v3016 = vunpack.c.h.b16 %v803
        %v3017 = vunpack.c.l.b16 %v804
        %v3018 = vunpack.c.h.b16 %v804
        %v3019 = vunpack.c.l.b16 %v805
        %v3020 = vunpack.c.h.b16 %v805
        %v3021 = vunpack.c.l.b16 %v806
        %v3022 = vunpack.c.h.b16 %v806
        %v3023 = vunpack.c.l.b16 %v807
        %v3024 = vunpack.c.h.b16 %v807
        %v3025 = vunpack.c.l.b16 %v808
        %v3026 = vunpack.c.h.b16 %v808
        %v3027 = vunpack.c.l.b16 %v809
        %v3028 = vunpack.c.h.b16 %v809
        %v3029 = vunpack.c.l.b16 %v810
        %v3030 = vunpack.c.h.b16 %v810
        %v3031 = vunpack.c.l.b16 %v811
        %v3032 = vunpack.c.h.b16 %v811
        %v3033 = vunpack.c.l.b16 %v812
        %v3034 = vunpack.c.h.b16 %v812
        %v3035 = vunpack.c.l.b16 %v813
        %v3036 = vunpack.c.h.b16 %v813
        %v3037 = vunpack.c.l.b16 %v814
        %v3038 = vunpack.c.h.b16 %v814
        %v3039 = vunpack.c.l.b16 %v815
        %v3040 = vunpack.c.h.b16 %v815
        %v3041 = vunpack.c.l.b16 %v816
        %v3042 = vunpack.c.h.b16 %v816
        %v3043 = vunpack.c.l.b16 %v817
        %v3044 = vunpack.c.h.b16 %v817
        %v3045 = vunpack.c.l.b16 %v818
        %v3046 = vunpack.c.h.b16 %v818
        %v3047 = vunpack.c.l.b16 %v819
        %v3048 = vunpack.c.h.b16 %v819
        %v3049 = vunpack.c.l.b16 %v820
        %v3050 = vunpack.c.h.b16 %v820
        %v3051 = vunpack.c.l.b16 %v821
        %v3052 = vunpack.c.h.b16 %v821
        %v3053 = vunpack.c.l.b16 %v822
        %v3054 = vunpack.c.h.b16 %v822
        %v3055 = vunpack.c.l.b16 %v823
        %v3056 = vunpack.c.h.b16 %v823
        %v3057 = vunpack.c.l.b16 %v824
        %v3058 = vunpack.c.h.b16 %v824
        %v3059 = vunpack.c.l.b16 %v825
        %v3060 = vunpack.c.h.b16 %v825
        %v3061 = vunpack.c.l.b16 %v826
        %v3062 = vunpack.c.h.b16 %v826
        %v3063 = vunpack.c.l.b16 %v827
        %v3064 = vunpack.c.h.b16 %v827
        %v3065 = vunpack.c.l.b16 %v828
        %v3066 = vunpack.c.h.b16 %v828
        %v3067 = vunpack.c.l.b16 %v829
        %v3068 = vunpack.c.h.b16 %v829
        %v3069 = vunpack.c.l.b16 %v830
        %v3070 = vunpack.c.h.b16 %v830
        %v3071 = vunpack.c.l.b16 %v831
        %v3072 = vunpack.c.h.b16 %v831
        %v3073 = vunpack.c.l.b16 %v832
        %v3074 = vunpack.c.h.b16 %v832
        %v3075 = vunpack.c.l.b16 %v833
        %v3076 = vunpack.c.h.b16 %v833
        %v3077 = vunpack.c.l.b16 %v834
        %v3078 = vunpack.c.h.b16 %v834
        %v3079 = vunpack.c.l.b16 %v835
        %v3080 = vunpack.c.h.b16 %v835
        %v3081 = vunpack.c.l.b16 %v836
        %v3082 = vunpack.c.h.b16 %v836
        %v3083 = vunpack.c.l.b16 %v837
        %v3084 = vunpack.c.h.b16 %v837
        %v3085 = vunpack.c.l.b16 %v838
        %v3086 = vunpack.c.h.b16 %v838
        %v3087 = vunpack.c.l.b16 %v839
        %v3088 = vunpack.c.h.b16 %v839
        %v3089 = vunpack.c.l.b16 %v840
        %v3090 = vunpack.c.h.b16 %v840
        %v3091 = vunpack.c.l.b16 %v841
        %v3092 = vunpack.c.h.b16 %v841
        %v3093 = vunpack.c.l.b16 %v842
        %v3094 = vunpack.c.h.b16 %v842
        %v3095 = vunpack.c.l.b16 %v843
        %v3096 = vunpack.c.h.b16 %v843
        %v3097 = vunpack.c.l.b16 %v844
        %v3098 = vunpack.c.h.b16 %v844
        %v3099 = vunpack.c.l.b16 %v845
        %v3100 = vunpack.c.h.b16 %v845
        %v3101 = vunpack.c.l.b16 %v846
        %v3102 = vunpack.c.h.b16 %v846
        %v3103 = vunpack.c.l.b16 %v847
        %v3104 = vunpack.c.h.b16 %v847
        %v3105 = vunpack.c.l.b16 %v848
        %v3106 = vunpack.c.h.b16 %v848
        %v3107 = vunpack.c.l.b16 %v849
        %v3108 = vunpack.c.h.b16 %v849
        %v3109 = vunpack.c.l.b16 %v850
        %v3110 = vunpack.c.h.b16 %v850
        %v3111 = vunpack.c.l.b16 %v851
        %v3112 = vunpack.c.h.b16 %v851
        %v3113 = vunpack.c.l.b16 %v852
        %v3114 = vunpack.c.h.b16 %v852
        %v3115 = vunpack.c.l.b16 %v853
        %v3116 = vunpack.c.h.b16 %v853
        %v3117 = vunpack.c.l.b16 %v854
        %v3118 = vunpack.c.h.b16 %v854
        %v3119 = vunpack.c.l.b16 %v855
        %v3120 = vunpack.c.h.b16 %v855
        %v3121 = vunpack.c.l.b16 %v856
        %v3122 = vunpack.c.h.b16 %v856
        %v3123 = vunpack.c.l.b16 %v857
        %v3124 = vunpack.c.h.b16 %v857
        %v3125 = vunpack.c.l.b16 %v858
        %v3126 = vunpack.c.h.b16 %v858
        %v3127 = vunpack.c.l.b16 %v859
        %v3128 = vunpack.c.h.b16 %v859
        %v3129 = vunpack.c.l.b16 %v860
        %v3130 = vunpack.c.h.b16 %v860
        %v3131 = vunpack.c.l.b16 %v861
        %v3132 = vunpack.c.h.b16 %v861
        %v3133 = vunpack.c.l.b16 %v862
        %v3134 = vunpack.c.h.b16 %v862
        %v3135 = vunpack.c.l.b16 %v863
        %v3136 = vunpack.c.h.b16 %v863
        %v3137 = vunpack.c.l.b16 %v864
        %v3138 = vunpack.c.h.b16 %v864
        %v3139 = vunpack.c.l.b16 %v865
        %v3140 = vunpack.c.h.b16 %v865
        %v3141 = vunpack.c.l.b16 %v866
        %v3142 = vunpack.c.h.b16 %v866
        %v3143 = vunpack.c.l.b16 %v867
        %v3144 = vunpack.c.h.b16 %v867
        %v3145 = vunpack.c.l.b16 %v868
        %v3146 = vunpack.c.h.b16 %v868
        %v3147 = vunpack.c.l.b16 %v869
        %v3148 = vunpack.c.h.b16 %v869
        %v3149 = vunpack.c.l.b16 %v870
        %v3150 = vunpack.c.h.b16 %v870
        %v3151 = vunpack.c.l.b16 %v871
        %v3152 = vunpack.c.h.b16 %v871
        %v3153 = vunpack.c.l.b16 %v872
        %v3154 = vunpack.c.h.b16 %v872
        %v3155 = vunpack.c.l.b16 %v873
        %v3156 = vunpack.c.h.b16 %v873
        %v3157 = vunpack.c.l.b16 %v874
        %v3158 = vunpack.c.h.b16 %v874
        %v3159 = vunpack.c.l.b16 %v875
        %v3160 = vunpack.c.h.b16 %v875
        %v3161 = vunpack.c.l.b16 %v876
        %v3162 = vunpack.c.h.b16 %v876
        %v3163 = vunpack.c.l.b16 %v877
        %v3164 = vunpack.c.h.b16 %v877
        %v3165 = vunpack.c.l.b16 %v878
        %v3166 = vunpack.c.h.b16 %v878
        %v3167 = vunpack.c.l.b16 %v879
        %v3168 = vunpack.c.h.b16 %v879
        %v3169 = vunpack.c.l.b16 %v880
        %v3170 = vunpack.c.h.b16 %v880
        %v3171 = vunpack.c.l.b16 %v881
        %v3172 = vunpack.c.h.b16 %v881
        %v3173 = vunpack.c.l.b16 %v882
        %v3174 = vunpack.c.h.b16 %v882
        %v3175 = vunpack.c.l.b16 %v883
        %v3176 = vunpack.c.h.b16 %v883
        %v3177 = vunpack.c.l.b16 %v884
        %v3178 = vunpack.c.h.b16 %v884
        %v3179 = vunpack.c.l.b16 %v885
        %v3180 = vunpack.c.h.b16 %v885
        %v3181 = vunpack.c.l.b16 %v886
        %v3182 = vunpack.c.h.b16 %v886
        %v3183 = vunpack.c.l.b16 %v887
        %v3184 = vunpack.c.h.b16 %v887
        %v3185 = vunpack.c.l.b16 %v888
        %v3186 = vunpack.c.h.b16 %v888
        %v3187 = vunpack.c.l.b16 %v889
        %v3188 = vunpack.c.h.b16 %v889
        %v3189 = vunpack.c.l.b16 %v890
        %v3190 = vunpack.c.h.b16 %v890
        %v3191 = vunpack.c.l.b16 %v891
        %v3192 = vunpack.c.h.b16 %v891
        %v3193 = vunpack.c.l.b16 %v892
        %v3194 = vunpack.c.h.b16 %v892
        %v3195 = vunpack.c.l.b16 %v893
        %v3196 = vunpack.c.h.b16 %v893
        %v3197 = vunpack.c.l.b16 %v894
        %v3198 = vunpack.c.h.b16 %v894
        %v3199 = vunpack.c.l.b16 %v895
        %v3200 = vunpack.c.h.b16 %v895
        %v3201 = vunpack.c.l.b16 %v896
        %v3202 = vunpack.c.h.b16 %v896
        %v3203 = vunpack.c.l.b16 %v897
        %v3204 = vunpack.c.h.b16 %v897
        %v3205 = vunpack.c.l.b16 %v898
        %v3206 = vunpack.c.h.b16 %v898
        %v3207 = vunpack.c.l.b16 %v899
        %v3208 = vunpack.c.h.b16 %v899
        %v3209 = vunpack.c.l.b16 %v900
        %v3210 = vunpack.c.h.b16 %v900
        %v3211 = vunpack.c.l.b16 %v901
        %v3212 = vunpack.c.h.b16 %v901
        %v3213 = vunpack.c.l.b16 %v902
        %v3214 = vunpack.c.h.b16 %v902
        %v3215 = vunpack.c.l.b16 %v903
        %v3216 = vunpack.c.h.b16 %v903
        %v3217 = vunpack.c.l.b16 %v904
        %v3218 = vunpack.c.h.b16 %v904
        %v3219 = vunpack.c.l.b16 %v905
        %v3220 = vunpack.c.h.b16 %v905
        %v3221 = vunpack.c.l.b16 %v906
        %v3222 = vunpack.c.h.b16 %v906
        %v3223 = vunpack.c.l.b16 %v907
        %v3224 = vunpack.c.h.b16 %v907
        %v3225 = vunpack.c.l.b16 %v908
        %v3226 = vunpack.c.h.b16 %v908
        %v3227 = vunpack.c.l.b16 %v909
        %v3228 = vunpack.c.h.b16 %v909
        %v3229 = vunpack.c.l.b16 %v910
        %v3230 = vunpack.c.h.b16 %v910
        %v3231 = vunpack.c.l.b16 %v911
        %v3232 = vunpack.c.h.b16 %v911
        %v3233 = vunpack.c.l.b16 %v912
        %v3234 = vunpack.c.h.b16 %v912
        %v3235 = vunpack.c.l.b16 %v913
        %v3236 = vunpack.c.h.b16 %v913
        %v3237 = vunpack.c.l.b16 %v914
        %v3238 = vunpack.c.h.b16 %v914
        %v3239 = vunpack.c.l.b16 %v915
        %v3240 = vunpack.c.h.b16 %v915
        %v3241 = vunpack.c.l.b16 %v916
        %v3242 = vunpack.c.h.b16 %v916
        %v3243 = vunpack.c.l.b16 %v917
        %v3244 = vunpack.c.h.b16 %v917
        %v3245 = vunpack.c.l.b16 %v918
        %v3246 = vunpack.c.h.b16 %v918
        %v3247 = vunpack.c.l.b16 %v919
        %v3248 = vunpack.c.h.b16 %v919
        %v3249 = vunpack.c.l.b16 %v920
        %v3250 = vunpack.c.h.b16 %v920
        %v3251 = vunpack.c.l.b16 %v921
        %v3252 = vunpack.c.h.b16 %v921
        %v3253 = vunpack.c.l.b16 %v922
        %v3254 = vunpack.c.h.b16 %v922
        %v3255 = vunpack.c.l.b16 %v923
        %v3256 = vunpack.c.h.b16 %v923
        %v3257 = vunpack.c.l.b16 %v924
        %v3258 = vunpack.c.h.b16 %v924
        %v3259 = vunpack.c.l.b16 %v925
        %v3260 = vunpack.c.h.b16 %v925
        %v3261 = vunpack.c.l.b16 %v926
        %v3262 = vunpack.c.h.b16 %v926
        %v3263 = vunpack.c.l.b16 %v927
        %v3264 = vunpack.c.h.b16 %v927
        %v3265 = vunpack.c.l.b16 %v928
        %v3266 = vunpack.c.h.b16 %v928
        %v3267 = vunpack.c.l.b16 %v929
        %v3268 = vunpack.c.h.b16 %v929
        %v3269 = vunpack.c.l.b16 %v930
        %v3270 = vunpack.c.h.b16 %v930
        %v3271 = vunpack.c.l.b16 %v931
        %v3272 = vunpack.c.h.b16 %v931
        %v3273 = vunpack.c.l.b16 %v932
        %v3274 = vunpack.c.h.b16 %v932
        %v3275 = vunpack.c.l.b16 %v933
        %v3276 = vunpack.c.h.b16 %v933
        %v3277 = vunpack.c.l.b16 %v934
        %v3278 = vunpack.c.h.b16 %v934
        %v3279 = vunpack.c.l.b16 %v935
        %v3280 = vunpack.c.h.b16 %v935
        %v3281 = vunpack.c.l.b16 %v936
        %v3282 = vunpack.c.h.b16 %v936
        %v3283 = vunpack.c.l.b16 %v937
        %v3284 = vunpack.c.h.b16 %v937
        %v3285 = vunpack.c.l.b16 %v938
        %v3286 = vunpack.c.h.b16 %v938
        %v3287 = vunpack.c.l.b16 %v939
        %v3288 = vunpack.c.h.b16 %v939
        %v3289 = vunpack.c.l.b16 %v940
        %v3290 = vunpack.c.h.b16 %v940
        %v3291 = vunpack.c.l.b16 %v941
        %v3292 = vunpack.c.h.b16 %v941
        %v3293 = vunpack.c.l.b16 %v942
        %v3294 = vunpack.c.h.b16 %v942
        %v3295 = vunpack.c.l.b16 %v943
        %v3296 = vunpack.c.h.b16 %v943
        %v3297 = vunpack.c.l.b16 %v944
        %v3298 = vunpack.c.h.b16 %v944
        %v3299 = vunpack.c.l.b16 %v945
        %v3300 = vunpack.c.h.b16 %v945
        %v3301 = vunpack.c.l.b16 %v946
        %v3302 = vunpack.c.h.b16 %v946
        %v3303 = vunpack.c.l.b16 %v947
        %v3304 = vunpack.c.h.b16 %v947
        %v3305 = vunpack.c.l.b16 %v948
        %v3306 = vunpack.c.h.b16 %v948
        %v3307 = vunpack.c.l.b16 %v949
        %v3308 = vunpack.c.h.b16 %v949
        %v3309 = vunpack.c.l.b16 %v950
        %v3310 = vunpack.c.h.b16 %v950
        %v3311 = vunpack.c.l.b16 %v951
        %v3312 = vunpack.c.h.b16 %v951
        %v3313 = vunpack.c.l.b16 %v952
        %v3314 = vunpack.c.h.b16 %v952
        %v3315 = vunpack.c.l.b16 %v953
        %v3316 = vunpack.c.h.b16 %v953
        %v3317 = vunpack.c.l.b16 %v954
        %v3318 = vunpack.c.h.b16 %v954
        %v3319 = vunpack.c.l.b16 %v955
        %v3320 = vunpack.c.h.b16 %v955
        %v3321 = vunpack.c.l.b16 %v956
        %v3322 = vunpack.c.h.b16 %v956
        %v3323 = vunpack.c.l.b16 %v957
        %v3324 = vunpack.c.h.b16 %v957
        %v3325 = vunpack.c.l.b16 %v958
        %v3326 = vunpack.c.h.b16 %v958
        %v3327 = vunpack.c.l.b16 %v959
        %v3328 = vunpack.c.h.b16 %v959
        %v3329 = vunpack.c.l.b16 %v960
        %v3330 = vunpack.c.h.b16 %v960
        %v3331 = vunpack.c.l.b16 %v961
        %v3332 = vunpack.c.h.b16 %v961
        %v3333 = vunpack.c.l.b16 %v962
        %v3334 = vunpack.c.h.b16 %v962
        %v3335 = vunpack.c.l.b16 %v963
        %v3336 = vunpack.c.h.b16 %v963
        %v3337 = vunpack.c.l.b16 %v964
        %v3338 = vunpack.c.h.b16 %v964
        %v3339 = vunpack.c.l.b16 %v965
        %v3340 = vunpack.c.h.b16 %v965
        %v3341 = vunpack.c.l.b16 %v966
        %v3342 = vunpack.c.h.b16 %v966
        %v3343 = vunpack.c.l.b16 %v967
        %v3344 = vunpack.c.h.b16 %v967
        %v3345 = vunpack.c.l.b16 %v968
        %v3346 = vunpack.c.h.b16 %v968
        %v3347 = vunpack.c.l.b16 %v969
        %v3348 = vunpack.c.h.b16 %v969
        %v3349 = vunpack.c.l.b16 %v970
        %v3350 = vunpack.c.h.b16 %v970
        %v3351 = vunpack.c.l.b16 %v971
        %v3352 = vunpack.c.h.b16 %v971
        %v3353 = vunpack.c.l.b16 %v972
        %v3354 = vunpack.c.h.b16 %v972
        %v3355 = vunpack.c.l.b16 %v973
        %v3356 = vunpack.c.h.b16 %v973
        %v3357 = vunpack.c.l.b16 %v974
        %v3358 = vunpack.c.h.b16 %v974
        %v3359 = vunpack.c.l.b16 %v975
        %v3360 = vunpack.c.h.b16 %v975
        %v3361 = vunpack.c.l.b16 %v976
        %v3362 = vunpack.c.h.b16 %v976
        %v3363 = vunpack.c.l.b16 %v977
        %v3364 = vunpack.c.h.b16 %v977
        %v3365 = vunpack.c.l.b16 %v978
        %v3366 = vunpack.c.h.b16 %v978
        %v3367 = vunpack.c.l.b16 %v979
        %v3368 = vunpack.c.h.b16 %v979
        %v3369 = vunpack.c.l.b16 %v980
        %v3370 = vunpack.c.h.b16 %v980
        %v3371 = vunpack.c.l.b16 %v981
        %v3372 = vunpack.c.h.b16 %v981
        %v3373 = vunpack.c.l.b16 %v982
        %v3374 = vunpack.c.h.b16 %v982
        %v3375 = vunpack.c.l.b16 %v983
        %v3376 = vunpack.c.h.b16 %v983
        %v3377 = vunpack.c.l.b16 %v984
        %v3378 = vunpack.c.h.b16 %v984
        %v3379 = vunpack.c.l.b16 %v985
        %v3380 = vunpack.c.h.b16 %v985
        %v3381 = vunpack.c.l.b16 %v986
        %v3382 = vunpack.c.h.b16 %v986
        %v3383 = vunpack.c.l.b16 %v987
        %v3384 = vunpack.c.h.b16 %v987
        %v3385 = vunpack.c.l.b16 %v988
        %v3386 = vunpack.c.h.b16 %v988
        %v3387 = vunpack.c.l.b16 %v989
        %v3388 = vunpack.c.h.b16 %v989
        %v3389 = vunpack.c.l.b16 %v990
        %v3390 = vunpack.c.h.b16 %v990
        %v3391 = vunpack.c.l.b16 %v991
        %v3392 = vunpack.c.h.b16 %v991
        %v3393 = vunpack.c.l.b16 %v992
        %v3394 = vunpack.c.h.b16 %v992
        %v3395 = vunpack.c.l.b16 %v993
        %v3396 = vunpack.c.h.b16 %v993
        %v3397 = vunpack.c.l.b16 %v994
        %v3398 = vunpack.c.h.b16 %v994
        %v3399 = vunpack.c.l.b16 %v995
        %v3400 = vunpack.c.h.b16 %v995
        %v3401 = vunpack.c.l.b16 %v996
        %v3402 = vunpack.c.h.b16 %v996
        %v3403 = vunpack.c.l.b16 %v997
        %v3404 = vunpack.c.h.b16 %v997
        %v3405 = vunpack.c.l.b16 %v998
        %v3406 = vunpack.c.h.b16 %v998
        %v3407 = vunpack.c.l.b16 %v999
        %v3408 = vunpack.c.h.b16 %v999
        %v3409 = vunpack.c.l.b16 %v1000
        %v3410 = vunpack.c.h.b16 %v1000
        %v3411 = vunpack.c.l.b16 %v1001
        %v3412 = vunpack.c.h.b16 %v1001
        %v3413 = vunpack.c.l.b16 %v1002
        %v3414 = vunpack.c.h.b16 %v1002
        %v3415 = vunpack.c.l.b16 %v1003
        %v3416 = vunpack.c.h.b16 %v1003
        %v3417 = vunpack.c.l.b16 %v1004
        %v3418 = vunpack.c.h.b16 %v1004
        %v3419 = vunpack.c.l.b16 %v1005
        %v3420 = vunpack.c.h.b16 %v1005
        %v3421 = vunpack.c.l.b16 %v1006
        %v3422 = vunpack.c.h.b16 %v1006
        %v3423 = vunpack.c.l.b16 %v1007
        %v3424 = vunpack.c.h.b16 %v1007
        %v3425 = vunpack.c.l.b16 %v1008
        %v3426 = vunpack.c.h.b16 %v1008
        %v3427 = vunpack.c.l.b16 %v1009
        %v3428 = vunpack.c.h.b16 %v1009
        %v3429 = vunpack.c.l.b16 %v1010
        %v3430 = vunpack.c.h.b16 %v1010
        %v3431 = vunpack.c.l.b16 %v1011
        %v3432 = vunpack.c.h.b16 %v1011
        %v3433 = vunpack.c.l.b16 %v1012
        %v3434 = vunpack.c.h.b16 %v1012
        %v3435 = vunpack.c.l.b16 %v1013
        %v3436 = vunpack.c.h.b16 %v1013
        %v3437 = vunpack.c.l.b16 %v1014
        %v3438 = vunpack.c.h.b16 %v1014
        %v3439 = vunpack.c.l.b16 %v1015
        %v3440 = vunpack.c.h.b16 %v1015
        %v3441 = vunpack.c.l.b16 %v1016
        %v3442 = vunpack.c.h.b16 %v1016
        %v3443 = vunpack.c.l.b16 %v1017
        %v3444 = vunpack.c.h.b16 %v1017
        %v3445 = vunpack.c.l.b16 %v1018
        %v3446 = vunpack.c.h.b16 %v1018
        %v3447 = vunpack.c.l.b16 %v1019
        %v3448 = vunpack.c.h.b16 %v1019
        %v3449 = vunpack.c.l.b16 %v1020
        %v3450 = vunpack.c.h.b16 %v1020
        %v3451 = vunpack.c.l.b16 %v1021
        %v3452 = vunpack.c.h.b16 %v1021
        %v3453 = vunpack.c.l.b16 %v1022
        %v3454 = vunpack.c.h.b16 %v1022
        %v3455 = vunpack.c.l.b16 %v1023
        %v3456 = vunpack.c.h.b16 %v1023
        %v3457 = vunpack.c.l.b16 %v1024
        %v3458 = vunpack.c.h.b16 %v1024
        %v3459 = vunpack.c.l.b16 %v1025
        %v3460 = vunpack.c.h.b16 %v1025
        %v3461 = vunpack.c.l.b16 %v1026
        %v3462 = vunpack.c.h.b16 %v1026
        %v3463 = vunpack.c.l.b16 %v1027
        %v3464 = vunpack.c.h.b16 %v1027
        %v3465 = vunpack.c.l.b16 %v1028
        %v3466 = vunpack.c.h.b16 %v1028
        %v3467 = vunpack.c.l.b16 %v1029
        %v3468 = vunpack.c.h.b16 %v1029
        %v3469 = vunpack.c.l.b16 %v1030
        %v3470 = vunpack.c.h.b16 %v1030
        %v3471 = vunpack.c.l.b16 %v1031
        %v3472 = vunpack.c.h.b16 %v1031
        %v3473 = vunpack.c.l.b16 %v1032
        %v3474 = vunpack.c.h.b16 %v1032
        %v3475 = vunpack.c.l.b16 %v1033
        %v3476 = vunpack.c.h.b16 %v1033
        %v3477 = vunpack.c.l.b16 %v1034
        %v3478 = vunpack.c.h.b16 %v1034
        %v3479 = vunpack.c.l.b16 %v1035
        %v3480 = vunpack.c.h.b16 %v1035
        %v3481 = vunpack.c.l.b16 %v1036
        %v3482 = vunpack.c.h.b16 %v1036
        %v3483 = vunpack.c.l.b16 %v1037
        %v3484 = vunpack.c.h.b16 %v1037
        %v3485 = vunpack.c.l.b16 %v1038
        %v3486 = vunpack.c.h.b16 %v1038
        %v3487 = vunpack.c.l.b16 %v1039
        %v3488 = vunpack.c.h.b16 %v1039
        %v3489 = vunpack.c.l.b16 %v1040
        %v3490 = vunpack.c.h.b16 %v1040
        %v3491 = vunpack.c.l.b16 %v1041
        %v3492 = vunpack.c.h.b16 %v1041
        %v3493 = vunpack.c.l.b16 %v1042
        %v3494 = vunpack.c.h.b16 %v1042
        %v3495 = vunpack.c.l.b16 %v1043
        %v3496 = vunpack.c.h.b16 %v1043
        %v3497 = vunpack.c.l.b16 %v1044
        %v3498 = vunpack.c.h.b16 %v1044
        %v3499 = vunpack.c.l.b16 %v1045
        %v3500 = vunpack.c.h.b16 %v1045
        %v3501 = vunpack.c.l.b16 %v1046
        %v3502 = vunpack.c.h.b16 %v1046
        %v3503 = vunpack.c.l.b16 %v1047
        %v3504 = vunpack.c.h.b16 %v1047
        %v3505 = vunpack.c.l.b16 %v1048
        %v3506 = vunpack.c.h.b16 %v1048
        %v3507 = vunpack.c.l.b16 %v1049
        %v3508 = vunpack.c.h.b16 %v1049
        %v3509 = vunpack.c.l.b16 %v1050
        %v3510 = vunpack.c.h.b16 %v1050
        %v3511 = vunpack.c.l.b16 %v1051
        %v3512 = vunpack.c.h.b16 %v1051
        %v3513 = vunpack.c.l.b16 %v1052
        %v3514 = vunpack.c.h.b16 %v1052
        %v3515 = vunpack.c.l.b16 %v1053
        %v3516 = vunpack.c.h.b16 %v1053
        %v3517 = vunpack.c.l.b16 %v1054
        %v3518 = vunpack.c.h.b16 %v1054
        %v3519 = vunpack.c.l.b16 %v1055
        %v3520 = vunpack.c.h.b16 %v1055
        %v3521 = vunpack.c.l.b16 %v1056
        %v3522 = vunpack.c.h.b16 %v1056
        %v3523 = vunpack.c.l.b16 %v1057
        %v3524 = vunpack.c.h.b16 %v1057
        %v3525 = vunpack.c.l.b16 %v1058
        %v3526 = vunpack.c.h.b16 %v1058
        %v3527 = vunpack.c.l.b16 %v1059
        %v3528 = vunpack.c.h.b16 %v1059
        %v3529 = vunpack.c.l.b16 %v1060
        %v3530 = vunpack.c.h.b16 %v1060
        %v3531 = vunpack.c.l.b16 %v1061
        %v3532 = vunpack.c.h.b16 %v1061
        %v3533 = vunpack.c.l.b16 %v1062
        %v3534 = vunpack.c.h.b16 %v1062
        %v3535 = vunpack.c.l.b16 %v1063
        %v3536 = vunpack.c.h.b16 %v1063
        %v3537 = vunpack.c.l.b16 %v1064
        %v3538 = vunpack.c.h.b16 %v1064
        %v3539 = vunpack.c.l.b16 %v1065
        %v3540 = vunpack.c.h.b16 %v1065
        %v3541 = vunpack.c.l.b16 %v1066
        %v3542 = vunpack.c.h.b16 %v1066
        %v3543 = vunpack.c.l.b16 %v1067
        %v3544 = vunpack.c.h.b16 %v1067
        %v3545 = vunpack.c.l.b16 %v1068
        %v3546 = vunpack.c.h.b16 %v1068
        %v3547 = vunpack.c.l.b16 %v1069
        %v3548 = vunpack.c.h.b16 %v1069
        %v3549 = vunpack.c.l.b16 %v1070
        %v3550 = vunpack.c.h.b16 %v1070
        %v3551 = vunpack.c.l.b16 %v1071
        %v3552 = vunpack.c.h.b16 %v1071
        %v3553 = vunpack.c.l.b16 %v1072
        %v3554 = vunpack.c.h.b16 %v1072
        %v3555 = vunpack.c.l.b16 %v1073
        %v3556 = vunpack.c.h.b16 %v1073
        %v3557 = vunpack.c.l.b16 %v1074
        %v3558 = vunpack.c.h.b16 %v1074
        %v3559 = vunpack.c.l.b16 %v1075
        %v3560 = vunpack.c.h.b16 %v1075
        %v3561 = vunpack.c.l.b16 %v1076
        %v3562 = vunpack.c.h.b16 %v1076
        %v3563 = vunpack.c.l.b16 %v1077
        %v3564 = vunpack.c.h.b16 %v1077
        %v3565 = vunpack.c.l.b16 %v1078
        %v3566 = vunpack.c.h.b16 %v1078
        %v3567 = vunpack.c.l.b16 %v1079
        %v3568 = vunpack.c.h.b16 %v1079
        %v3569 = vunpack.c.l.b16 %v1080
        %v3570 = vunpack.c.h.b16 %v1080
        %v3571 = vunpack.c.l.b16 %v1081
        %v3572 = vunpack.c.h.b16 %v1081
        %v3573 = vunpack.c.l.b16 %v1082
        %v3574 = vunpack.c.h.b16 %v1082
        %v3575 = vunpack.c.l.b16 %v1083
        %v3576 = vunpack.c.h.b16 %v1083
        %v3577 = vunpack.c.l.b16 %v1084
        %v3578 = vunpack.c.h.b16 %v1084
        %v3579 = vunpack.c.l.b16 %v1085
        %v3580 = vunpack.c.h.b16 %v1085
        %v3581 = vunpack.c.l.b16 %v1086
        %v3582 = vunpack.c.h.b16 %v1086
        %v3583 = vunpack.c.l.b16 %v1087
        %v3584 = vunpack.c.h.b16 %v1087
        %v3585 = vunpack.c.l.b16 %v1088
        %v3586 = vunpack.c.h.b16 %v1088
        %v3587 = vunpack.c.l.b16 %v1089
        %v3588 = vunpack.c.h.b16 %v1089
        %v3589 = vunpack.c.l.b16 %v1090
        %v3590 = vunpack.c.h.b16 %v1090
        %v3591 = vunpack.c.l.b16 %v1091
        %v3592 = vunpack.c.h.b16 %v1091
        %v3593 = vunpack.c.l.b16 %v1092
        %v3594 = vunpack.c.h.b16 %v1092
        %v3595 = vunpack.c.l.b16 %v1093
        %v3596 = vunpack.c.h.b16 %v1093
        %v3597 = vunpack.c.l.b16 %v1094
        %v3598 = vunpack.c.h.b16 %v1094
        %v3599 = vunpack.c.l.b16 %v1095
        %v3600 = vunpack.c.h.b16 %v1095
        %v3601 = vunpack.c.l.b16 %v1096
        %v3602 = vunpack.c.h.b16 %v1096
        %v3603 = vunpack.c.l.b16 %v1097
        %v3604 = vunpack.c.h.b16 %v1097
        %v3605 = vunpack.c.l.b16 %v1098
        %v3606 = vunpack.c.h.b16 %v1098
        %v3607 = vunpack.c.l.b16 %v1099
        %v3608 = vunpack.c.h.b16 %v1099
        %v3609 = vunpack.c.l.b16 %v1100
        %v3610 = vunpack.c.h.b16 %v1100
        %v3611 = vunpack.c.l.b16 %v1101
        %v3612 = vunpack.c.h.b16 %v1101
        %v3613 = vunpack.c.l.b16 %v1102
        %v3614 = vunpack.c.h.b16 %v1102
        %v3615 = vunpack.c.l.b16 %v1103
        %v3616 = vunpack.c.h.b16 %v1103
        %v3617 = vunpack.c.l.b16 %v1104
        %v3618 = vunpack.c.h.b16 %v1104
        %v3619 = vunpack.c.l.b16 %v1105
        %v3620 = vunpack.c.h.b16 %v1105
        %v3621 = vunpack.c.l.b16 %v1106
        %v3622 = vunpack.c.h.b16 %v1106
        %v3623 = vunpack.c.l.b16 %v1107
        %v3624 = vunpack.c.h.b16 %v1107
        %v3625 = vunpack.c.l.b16 %v1108
        %v3626 = vunpack.c.h.b16 %v1108
        %v3627 = vunpack.c.l.b16 %v1109
        %v3628 = vunpack.c.h.b16 %v1109
        %v3629 = vunpack.c.l.b16 %v1110
        %v3630 = vunpack.c.h.b16 %v1110
        %v3631 = vunpack.c.l.b16 %v1111
        %v3632 = vunpack.c.h.b16 %v1111
        %v3633 = vunpack.c.l.b16 %v1112
        %v3634 = vunpack.c.h.b16 %v1112
        %v3635 = vunpack.c.l.b16 %v1113
        %v3636 = vunpack.c.h.b16 %v1113
        %v3637 = vunpack.c.l.b16 %v1114
        %v3638 = vunpack.c.h.b16 %v1114
        %v3639 = vunpack.c.l.b16 %v1115
        %v3640 = vunpack.c.h.b16 %v1115
        %v3641 = vunpack.c.l.b16 %v1116
        %v3642 = vunpack.c.h.b16 %v1116
        %v3643 = vunpack.c.l.b16 %v1117
        %v3644 = vunpack.c.h.b16 %v1117
        %v3645 = vunpack.c.l.b16 %v1118
        %v3646 = vunpack.c.h.b16 %v1118
        %v3647 = vunpack.c.l.b16 %v1119
        %v3648 = vunpack.c.h.b16 %v1119
        %v3649 = vunpack.c.l.b16 %v1120
        %v3650 = vunpack.c.h.b16 %v1120
        %v3651 = vunpack.c.l.b16 %v1121
        %v3652 = vunpack.c.h.b16 %v1121
        %v3653 = vunpack.c.l.b16 %v1122
        %v3654 = vunpack.c.h.b16 %v1122
        %v3655 = vunpack.c.l.b16 %v1123
        %v3656 = vunpack.c.h.b16 %v1123
        %v3657 = vunpack.c.l.b16 %v1124
        %v3658 = vunpack.c.h.b16 %v1124
        %v3659 = vunpack.c.l.b16 %v1125
        %v3660 = vunpack.c.h.b16 %v1125
        %v3661 = vunpack.c.l.b16 %v1126
        %v3662 = vunpack.c.h.b16 %v1126
        %v3663 = vunpack.c.l.b16 %v1127
        %v3664 = vunpack.c.h.b16 %v1127
        %v3665 = vunpack.c.l.b16 %v1128
        %v3666 = vunpack.c.h.b16 %v1128
        %v3667 = vunpack.c.l.b16 %v1129
        %v3668 = vunpack.c.h.b16 %v1129
        %v3669 = vunpack.c.l.b16 %v1130
        %v3670 = vunpack.c.h.b16 %v1130
        %v3671 = vunpack.c.l.b16 %v1131
        %v3672 = vunpack.c.h.b16 %v1131
        %v3673 = vunpack.c.l.b16 %v1132
        %v3674 = vunpack.c.h.b16 %v1132
        %v3675 = vunpack.c.l.b16 %v1133
        %v3676 = vunpack.c.h.b16 %v1133
        %v3677 = vunpack.c.l.b16 %v1134
        %v3678 = vunpack.c.h.b16 %v1134
        %v3679 = vunpack.c.l.b16 %v1135
        %v3680 = vunpack.c.h.b16 %v1135
        %v3681 = vunpack.c.l.b16 %v1136
        %v3682 = vunpack.c.h.b16 %v1136
        %v3683 = vunpack.c.l.b16 %v1137
        %v3684 = vunpack.c.h.b16 %v1137
        %v3685 = vunpack.c.l.b16 %v1138
        %v3686 = vunpack.c.h.b16 %v1138
        %v3687 = vunpack.c.l.b16 %v1139
        %v3688 = vunpack.c.h.b16 %v1139
        %v3689 = vunpack.c.l.b16 %v1140
        %v3690 = vunpack.c.h.b16 %v1140
        %v3691 = vunpack.c.l.b16 %v1141
        %v3692 = vunpack.c.h.b16 %v1141
        %v3693 = vunpack.c.l.b16 %v1142
        %v3694 = vunpack.c.h.b16 %v1142
        %v3695 = vunpack.c.l.b16 %v1143
        %v3696 = vunpack.c.h.b16 %v1143
        %v3697 = vunpack.c.l.b16 %v1144
        %v3698 = vunpack.c.h.b16 %v1144
        %v3699 = vunpack.c.l.b16 %v1145
        %v3700 = vunpack.c.h.b16 %v1145
        %v3701 = vunpack.c.l.b16 %v1146
        %v3702 = vunpack.c.h.b16 %v1146
        %v3703 = vunpack.c.l.b16 %v1147
        %v3704 = vunpack.c.h.b16 %v1147
        %v3705 = vunpack.c.l.b16 %v1148
        %v3706 = vunpack.c.h.b16 %v1148
        %v3707 = vunpack.c.l.b16 %v1149
        %v3708 = vunpack.c.h.b16 %v1149
        %v3709 = vunpack.c.l.b16 %v1150
        %v3710 = vunpack.c.h.b16 %v1150
        %v3711 = vunpack.c.l.b16 %v1151
        %v3712 = vunpack.c.h.b16 %v1151
        %v3713 = vunpack.c.l.b16 %v1152
        %v3714 = vunpack.c.h.b16 %v1152
        %v3715 = vunpack.c.l.b16 %v1153
        %v3716 = vunpack.c.h.b16 %v1153
        %v3717 = vunpack.c.l.b16 %v1154
        %v3718 = vunpack.c.h.b16 %v1154
        %v3719 = vunpack.c.l.b16 %v1155
        %v3720 = vunpack.c.h.b16 %v1155
        %v3721 = vunpack.c.l.b16 %v1156
        %v3722 = vunpack.c.h.b16 %v1156
        %v3723 = vunpack.c.l.b16 %v1157
        %v3724 = vunpack.c.h.b16 %v1157
        %v3725 = vunpack.c.l.b16 %v1158
        %v3726 = vunpack.c.h.b16 %v1158
        %v3727 = vunpack.c.l.b16 %v1159
        %v3728 = vunpack.c.h.b16 %v1159
        %v3729 = vunpack.c.l.b16 %v1160
        %v3730 = vunpack.c.h.b16 %v1160
        %v3731 = vunpack.c.l.b16 %v1161
        %v3732 = vunpack.c.h.b16 %v1161
        %v3733 = vunpack.c.l.b16 %v1162
        %v3734 = vunpack.c.h.b16 %v1162
        %v3735 = vunpack.c.l.b16 %v1163
        %v3736 = vunpack.c.h.b16 %v1163
        %v3737 = vunpack.c.l.b16 %v1164
        %v3738 = vunpack.c.h.b16 %v1164
        %v3739 = vunpack.c.l.b16 %v1165
        %v3740 = vunpack.c.h.b16 %v1165
        %v3741 = vunpack.c.l.b16 %v1166
        %v3742 = vunpack.c.h.b16 %v1166
        %v3743 = vunpack.c.l.b16 %v1167
        %v3744 = vunpack.c.h.b16 %v1167
        %v3745 = vunpack.c.l.b16 %v1168
        %v3746 = vunpack.c.h.b16 %v1168
        %v3747 = vunpack.c.l.b16 %v1169
        %v3748 = vunpack.c.h.b16 %v1169
        %v3749 = vunpack.c.l.b16 %v1170
        %v3750 = vunpack.c.h.b16 %v1170
        %v3751 = vunpack.c.l.b16 %v1171
        %v3752 = vunpack.c.h.b16 %v1171
        %v3753 = vunpack.c.l.b16 %v1172
        %v3754 = vunpack.c.h.b16 %v1172
        %v3755 = vunpack.c.l.b16 %v1173
        %v3756 = vunpack.c.h.b16 %v1173
        %v3757 = vunpack.c.l.b16 %v1174
        %v3758 = vunpack.c.h.b16 %v1174
        %v3759 = vunpack.c.l.b16 %v1175
        %v3760 = vunpack.c.h.b16 %v1175
        %v3761 = vunpack.c.l.b16 %v1176
        %v3762 = vunpack.c.h.b16 %v1176
        %v3763 = vunpack.c.l.b16 %v1177
        %v3764 = vunpack.c.h.b16 %v1177
        %v3765 = vunpack.c.l.b16 %v1178
        %v3766 = vunpack.c.h.b16 %v1178
        %v3767 = vunpack.c.l.b16 %v1179
        %v3768 = vunpack.c.h.b16 %v1179
        %v3769 = vunpack.c.l.b16 %v1180
        %v3770 = vunpack.c.h.b16 %v1180
        %v3771 = vunpack.c.l.b16 %v1181
        %v3772 = vunpack.c.h.b16 %v1181
        %v3773 = vunpack.c.l.b16 %v1182
        %v3774 = vunpack.c.h.b16 %v1182
        %v3775 = vunpack.c.l.b16 %v1183
        %v3776 = vunpack.c.h.b16 %v1183
        %v3777 = vunpack.c.l.b16 %v1184
        %v3778 = vunpack.c.h.b16 %v1184
        %v3779 = vunpack.c.l.b16 %v1185
        %v3780 = vunpack.c.h.b16 %v1185
        %v3781 = vunpack.c.l.b16 %v1186
        %v3782 = vunpack.c.h.b16 %v1186
        %v3783 = vunpack.c.l.b16 %v1187
        %v3784 = vunpack.c.h.b16 %v1187
        %v3785 = vunpack.c.l.b16 %v1188
        %v3786 = vunpack.c.h.b16 %v1188
        %v3787 = vunpack.c.l.b16 %v1189
        %v3788 = vunpack.c.h.b16 %v1189
        %v3789 = vunpack.c.l.b16 %v1190
        %v3790 = vunpack.c.h.b16 %v1190
        %v3791 = vunpack.c.l.b16 %v1191
        %v3792 = vunpack.c.h.b16 %v1191
        %v3793 = vunpack.c.l.b16 %v1192
        %v3794 = vunpack.c.h.b16 %v1192
        %v3795 = vunpack.c.l.b16 %v1193
        %v3796 = vunpack.c.h.b16 %v1193
        %v3797 = vunpack.c.l.b16 %v1194
        %v3798 = vunpack.c.h.b16 %v1194
        %v3799 = vunpack.c.l.b16 %v1195
        %v3800 = vunpack.c.h.b16 %v1195
        %v3801 = vunpack.c.l.b16 %v1196
        %v3802 = vunpack.c.h.b16 %v1196
        %v3803 = vunpack.c.l.b16 %v1197
        %v3804 = vunpack.c.h.b16 %v1197
        %v3805 = vunpack.c.l.b16 %v1198
        %v3806 = vunpack.c.h.b16 %v1198
        %v3807 = vunpack.c.l.b16 %v1199
        %v3808 = vunpack.c.h.b16 %v1199
        %v3809 = vunpack.c.l.b16 %v1200
        %v3810 = vunpack.c.h.b16 %v1200
        %v3811 = vunpack.c.l.b16 %v1201
        %v3812 = vunpack.c.h.b16 %v1201
        %v3813 = vunpack.c.l.b16 %v1202
        %v3814 = vunpack.c.h.b16 %v1202
        %v3815 = vunpack.c.l.b16 %v1203
        %v3816 = vunpack.c.h.b16 %v1203
        %v3817 = vunpack.c.l.b16 %v1204
        %v3818 = vunpack.c.h.b16 %v1204
        %v3819 = vunpack.c.l.b16 %v1205
        %v3820 = vunpack.c.h.b16 %v1205
        %v3821 = vunpack.c.l.b16 %v1206
        %v3822 = vunpack.c.h.b16 %v1206
        %v3823 = vunpack.c.l.b16 %v1207
        %v3824 = vunpack.c.h.b16 %v1207
        %v3825 = vunpack.c.l.b16 %v1208
        %v3826 = vunpack.c.h.b16 %v1208
        %v3827 = vunpack.c.l.b16 %v1209
        %v3828 = vunpack.c.h.b16 %v1209
        %v3829 = vunpack.c.l.b16 %v1210
        %v3830 = vunpack.c.h.b16 %v1210
        %v3831 = vunpack.c.l.b16 %v1211
        %v3832 = vunpack.c.h.b16 %v1211
        %v3833 = vunpack.c.l.b16 %v1212
        %v3834 = vunpack.c.h.b16 %v1212
        %v3835 = vunpack.c.l.b16 %v1213
        %v3836 = vunpack.c.h.b16 %v1213
        %v3837 = vunpack.c.l.b16 %v1214
        %v3838 = vunpack.c.h.b16 %v1214
        %v3839 = vunpack.c.l.b16 %v1215
        %v3840 = vunpack.c.h.b16 %v1215
        %v3841 = vunpack.c.l.b16 %v1216
        %v3842 = vunpack.c.h.b16 %v1216
        %v3843 = vunpack.c.l.b16 %v1217
        %v3844 = vunpack.c.h.b16 %v1217
        %v3845 = vunpack.c.l.b16 %v1218
        %v3846 = vunpack.c.h.b16 %v1218
        %v3847 = vunpack.c.l.b16 %v1219
        %v3848 = vunpack.c.h.b16 %v1219
        %v3849 = vunpack.c.l.b16 %v1220
        %v3850 = vunpack.c.h.b16 %v1220
        %v3851 = vunpack.c.l.b16 %v1221
        %v3852 = vunpack.c.h.b16 %v1221
        %v3853 = vunpack.c.l.b16 %v1222
        %v3854 = vunpack.c.h.b16 %v1222
        %v3855 = vunpack.c.l.b16 %v1223
        %v3856 = vunpack.c.h.b16 %v1223
        %v3857 = vunpack.c.l.b16 %v1224
        %v3858 = vunpack.c.h.b16 %v1224
        %v3859 = vunpack.c.l.b16 %v1225
        %v3860 = vunpack.c.h.b16 %v1225
        %v3861 = vunpack.c.l.b16 %v1226
        %v3862 = vunpack.c.h.b16 %v1226
        %v3863 = vunpack.c.l.b16 %v1227
        %v3864 = vunpack.c.h.b16 %v1227
        %v3865 = vunpack.c.l.b16 %v1228
        %v3866 = vunpack.c.h.b16 %v1228
        %v3867 = vunpack.c.l.b16 %v1229
        %v3868 = vunpack.c.h.b16 %v1229
        %v3869 = vunpack.c.l.b16 %v1230
        %v3870 = vunpack.c.h.b16 %v1230
        %v3871 = vunpack.c.l.b16 %v1231
        %v3872 = vunpack.c.h.b16 %v1231
        %v3873 = vunpack.c.l.b16 %v1232
        %v3874 = vunpack.c.h.b16 %v1232
        %v3875 = vunpack.c.l.b16 %v1233
        %v3876 = vunpack.c.h.b16 %v1233
        %v3877 = vunpack.c.l.b16 %v1234
        %v3878 = vunpack.c.h.b16 %v1234
        %v3879 = vunpack.c.l.b16 %v1235
        %v3880 = vunpack.c.h.b16 %v1235
        %v3881 = vunpack.c.l.b16 %v1236
        %v3882 = vunpack.c.h.b16 %v1236
        %v3883 = vunpack.c.l.b16 %v1237
        %v3884 = vunpack.c.h.b16 %v1237
        %v3885 = vunpack.c.l.b16 %v1238
        %v3886 = vunpack.c.h.b16 %v1238
        %v3887 = vunpack.c.l.b16 %v1239
        %v3888 = vunpack.c.h.b16 %v1239
        %v3889 = vunpack.c.l.b16 %v1240
        %v3890 = vunpack.c.h.b16 %v1240
        %v3891 = vunpack.c.l.b16 %v1241
        %v3892 = vunpack.c.h.b16 %v1241
        %v3893 = vunpack.c.l.b16 %v1242
        %v3894 = vunpack.c.h.b16 %v1242
        %v3895 = vunpack.c.l.b16 %v1243
        %v3896 = vunpack.c.h.b16 %v1243
        %v3897 = vunpack.c.l.b16 %v1244
        %v3898 = vunpack.c.h.b16 %v1244
        %v3899 = vunpack.c.l.b16 %v1245
        %v3900 = vunpack.c.h.b16 %v1245
        %v3901 = vunpack.c.l.b16 %v1246
        %v3902 = vunpack.c.h.b16 %v1246
        %v3903 = vunpack.c.l.b16 %v1247
        %v3904 = vunpack.c.h.b16 %v1247
        %v3905 = vunpack.c.l.b16 %v1248
        %v3906 = vunpack.c.h.b16 %v1248
        %v3907 = vunpack.c.l.b16 %v1249
        %v3908 = vunpack.c.h.b16 %v1249
        %v3909 = vunpack.c.l.b16 %v1250
        %v3910 = vunpack.c.h.b16 %v1250
        %v3911 = vunpack.c.l.b16 %v1251
        %v3912 = vunpack.c.h.b16 %v1251
        %v3913 = vunpack.c.l.b16 %v1252
        %v3914 = vunpack.c.h.b16 %v1252
        %v3915 = vunpack.c.l.b16 %v1253
        %v3916 = vunpack.c.h.b16 %v1253
        %v3917 = vunpack.c.l.b16 %v1254
        %v3918 = vunpack.c.h.b16 %v1254
        %v3919 = vunpack.c.l.b16 %v1255
        %v3920 = vunpack.c.h.b16 %v1255
        %v3921 = vunpack.c.l.b16 %v1256
        %v3922 = vunpack.c.h.b16 %v1256
        %v3923 = vunpack.c.l.b16 %v1257
        %v3924 = vunpack.c.h.b16 %v1257
        %v3925 = vunpack.c.l.b16 %v1258
        %v3926 = vunpack.c.h.b16 %v1258
        %v3927 = vunpack.c.l.b16 %v1259
        %v3928 = vunpack.c.h.b16 %v1259
        %v3929 = vunpack.c.l.b16 %v1260
        %v3930 = vunpack.c.h.b16 %v1260
        %v3931 = vunpack.c.l.b16 %v1261
        %v3932 = vunpack.c.h.b16 %v1261
        %v3933 = vunpack.c.l.b16 %v1262
        %v3934 = vunpack.c.h.b16 %v1262
        %v3935 = vunpack.c.l.b16 %v1263
        %v3936 = vunpack.c.h.b16 %v1263
        %v3937 = vunpack.c.l.b16 %v1264
        %v3938 = vunpack.c.h.b16 %v1264
        %v3939 = vunpack.c.l.b16 %v1265
        %v3940 = vunpack.c.h.b16 %v1265
        %v3941 = vunpack.c.l.b16 %v1266
        %v3942 = vunpack.c.h.b16 %v1266
        %v3943 = vunpack.c.l.b16 %v1267
        %v3944 = vunpack.c.h.b16 %v1267
        %v3945 = vunpack.c.l.b16 %v1268
        %v3946 = vunpack.c.h.b16 %v1268
        %v3947 = vunpack.c.l.b16 %v1269
        %v3948 = vunpack.c.h.b16 %v1269
        %v3949 = vunpack.c.l.b16 %v1270
        %v3950 = vunpack.c.h.b16 %v1270
        %v3951 = vunpack.c.l.b16 %v1271
        %v3952 = vunpack.c.h.b16 %v1271
        %v3953 = vunpack.c.l.b16 %v1272
        %v3954 = vunpack.c.h.b16 %v1272
        %v3955 = vunpack.c.l.b16 %v1273
        %v3956 = vunpack.c.h.b16 %v1273
        %v3957 = vunpack.c.l.b16 %v1274
        %v3958 = vunpack.c.h.b16 %v1274
        %v3959 = vunpack.c.l.b16 %v1275
        %v3960 = vunpack.c.h.b16 %v1275
        %v3961 = vunpack.c.l.b16 %v1276
        %v3962 = vunpack.c.h.b16 %v1276
        %v3963 = vunpack.c.l.b16 %v1277
        %v3964 = vunpack.c.h.b16 %v1277
        %v3965 = vunpack.c.l.b16 %v1278
        %v3966 = vunpack.c.h.b16 %v1278
        %v3967 = vpack.c.b16 %v2183, %v2175
        %v3968 = vpack.c.b16 %v2184, %v2176
        %v3969 = vpack.c.b16 %v2185, %v2177
        %v3970 = vpack.c.b16 %v2186, %v2178
        %v3971 = vpack.c.b16 %v2187, %v2179
        %v3972 = vpack.c.b16 %v2188, %v2180
        %v3973 = vpack.c.b16 %v2189, %v2181
        %v3974 = vpack.c.b16 %v2190, %v2182
        %v3975 = vpack.c.b16 %v2199, %v2191
        %v3976 = vpack.c.b16 %v2200, %v2192
        %v3977 = vpack.c.b16 %v2201, %v2193
        %v3978 = vpack.c.b16 %v2202, %v2194
        %v3979 = vpack.c.b16 %v2203, %v2195
        %v3980 = vpack.c.b16 %v2204, %v2196
        %v3981 = vpack.c.b16 %v2205, %v2197
        %v3982 = vpack.c.b16 %v2206, %v2198
        %v3983 = vpack.c.b16 %v2215, %v2207
        %v3984 = vpack.c.b16 %v2216, %v2208
        %v3985 = vpack.c.b16 %v2217, %v2209
        %v3986 = vpack.c.b16 %v2218, %v2210
        %v3987 = vpack.c.b16 %v2219, %v2211
        %v3988 = vpack.c.b16 %v2220, %v2212
        %v3989 = vpack.c.b16 %v2221, %v2213
        %v3990 = vpack.c.b16 %v2222, %v2214
        %v3991 = vpack.c.b16 %v2231, %v2223
        %v3992 = vpack.c.b16 %v2232, %v2224
        %v3993 = vpack.c.b16 %v2233, %v2225
        %v3994 = vpack.c.b16 %v2234, %v2226
        %v3995 = vpack.c.b16 %v2235, %v2227
        %v3996 = vpack.c.b16 %v2236, %v2228
        %v3997 = vpack.c.b16 %v2237, %v2229
        %v3998 = vpack.c.b16 %v2238, %v2230
        %v3999 = vpack.c.b16 %v2247, %v2239
        %v4000 = vpack.c.b16 %v2248, %v2240
        %v4001 = vpack.c.b16 %v2249, %v2241
        %v4002 = vpack.c.b16 %v2250, %v2242
        %v4003 = vpack.c.b16 %v2251, %v2243
        %v4004 = vpack.c.b16 %v2252, %v2244
        %v4005 = vpack.c.b16 %v2253, %v2245
        %v4006 = vpack.c.b16 %v2254, %v2246
        %v4007 = vpack.c.b16 %v2263, %v2255
        %v4008 = vpack.c.b16 %v2264, %v2256
        %v4009 = vpack.c.b16 %v2265, %v2257
        %v4010 = vpack.c.b16 %v2266, %v2258
        %v4011 = vpack.c.b16 %v2267, %v2259
        %v4012 = vpack.c.b16 %v2268, %v2260
        %v4013 = vpack.c.b16 %v2269, %v2261
        %v4014 = vpack.c.b16 %v2270, %v2262
        %v4015 = vpack.c.b16 %v2279, %v2271
        %v4016 = vpack.c.b16 %v2280, %v2272
        %v4017 = vpack.c.b16 %v2281, %v2273
        %v4018 = vpack.c.b16 %v2282, %v2274
        %v4019 = vpack.c.b16 %v2283, %v2275
        %v4020 = vpack.c.b16 %v2284, %v2276
        %v4021 = vpack.c.b16 %v2285, %v2277
        %v4022 = vpack.c.b16 %v2286, %v2278
        %v4023 = vpack.c.b16 %v2295, %v2287
        %v4024 = vpack.c.b16 %v2296, %v2288
        %v4025 = vpack.c.b16 %v2297, %v2289
        %v4026 = vpack.c.b16 %v2298, %v2290
        %v4027 = vpack.c.b16 %v2299, %v2291
        %v4028 = vpack.c.b16 %v2300, %v2292
        %v4029 = vpack.c.b16 %v2301, %v2293
        %v4030 = vpack.c.b16 %v2302, %v2294
        %v4031 = vpack.c.b16 %v2311, %v2303
        %v4032 = vpack.c.b16 %v2312, %v2304
        %v4033 = vpack.c.b16 %v2313, %v2305
        %v4034 = vpack.c.b16 %v2314, %v2306
        %v4035 = vpack.c.b16 %v2315, %v2307
        %v4036 = vpack.c.b16 %v2316, %v2308
        %v4037 = vpack.c.b16 %v2317, %v2309
        %v4038 = vpack.c.b16 %v2318, %v2310
        %v4039 = vpack.c.b16 %v2327, %v2319
        %v4040 = vpack.c.b16 %v2328, %v2320
        %v4041 = vpack.c.b16 %v2329, %v2321
        %v4042 = vpack.c.b16 %v2330, %v2322
        %v4043 = vpack.c.b16 %v2331, %v2323
        %v4044 = vpack.c.b16 %v2332, %v2324
        %v4045 = vpack.c.b16 %v2333, %v2325
        %v4046 = vpack.c.b16 %v2334, %v2326
        %v4047 = vpack.c.b16 %v2343, %v2335
        %v4048 = vpack.c.b16 %v2344, %v2336
        %v4049 = vpack.c.b16 %v2345, %v2337
        %v4050 = vpack.c.b16 %v2346, %v2338
        %v4051 = vpack.c.b16 %v2347, %v2339
        %v4052 = vpack.c.b16 %v2348, %v2340
        %v4053 = vpack.c.b16 %v2349, %v2341
        %v4054 = vpack.c.b16 %v2350, %v2342
        %v4055 = vpack.c.b16 %v2359, %v2351
        %v4056 = vpack.c.b16 %v2360, %v2352
        %v4057 = vpack.c.b16 %v2361, %v2353
        %v4058 = vpack.c.b16 %v2362, %v2354
        %v4059 = vpack.c.b16 %v2363, %v2355
        %v4060 = vpack.c.b16 %v2364, %v2356
        %v4061 = vpack.c.b16 %v2365, %v2357
        %v4062 = vpack.c.b16 %v2366, %v2358
        %v4063 = vpack.c.b16 %v2375, %v2367
        %v4064 = vpack.c.b16 %v2376, %v2368
        %v4065 = vpack.c.b16 %v2377, %v2369
        %v4066 = vpack.c.b16 %v2378, %v2370
        %v4067 = vpack.c.b16 %v2379, %v2371
        %v4068 = vpack.c.b16 %v2380, %v2372
        %v4069 = vpack.c.b16 %v2381, %v2373
        %v4070 = vpack.c.b16 %v2382, %v2374
        %v4071 = vpack.c.b16 %v2391, %v2383
        %v4072 = vpack.c.b16 %v2392, %v2384
        %v4073 = vpack.c.b16 %v2393, %v2385
        %v4074 = vpack.c.b16 %v2394, %v2386
        %v4075 = vpack.c.b16 %v2395, %v2387
        %v4076 = vpack.c.b16 %v2396, %v2388
        %v4077 = vpack.c.b16 %v2397, %v2389
        %v4078 = vpack.c.b16 %v2398, %v2390
        %v4079 = vpack.c.b16 %v2407, %v2399
        %v4080 = vpack.c.b16 %v2408, %v2400
        %v4081 = vpack.c.b16 %v2409, %v2401
        %v4082 = vpack.c.b16 %v2410, %v2402
        %v4083 = vpack.c.b16 %v2411, %v2403
        %v4084 = vpack.c.b16 %v2412, %v2404
        %v4085 = vpack.c.b16 %v2413, %v2405
        %v4086 = vpack.c.b16 %v2414, %v2406
        %v4087 = vpack.c.b16 %v2423, %v2415
        %v4088 = vpack.c.b16 %v2424, %v2416
        %v4089 = vpack.c.b16 %v2425, %v2417
        %v4090 = vpack.c.b16 %v2426, %v2418
        %v4091 = vpack.c.b16 %v2427, %v2419
        %v4092 = vpack.c.b16 %v2428, %v2420
        %v4093 = vpack.c.b16 %v2429, %v2421
        %v4094 = vpack.c.b16 %v2430, %v2422
        %v4095 = vpack.c.b16 %v2439, %v2431
        %v4096 = vpack.c.b16 %v2440, %v2432
        %v4097 = vpack.c.b16 %v2441, %v2433
        %v4098 = vpack.c.b16 %v2442, %v2434
        %v4099 = vpack.c.b16 %v2443, %v2435
        %v4100 = vpack.c.b16 %v2444, %v2436
        %v4101 = vpack.c.b16 %v2445, %v2437
        %v4102 = vpack.c.b16 %v2446, %v2438
        %v4103 = vpack.c.b16 %v2455, %v2447
        %v4104 = vpack.c.b16 %v2456, %v2448
        %v4105 = vpack.c.b16 %v2457, %v2449
        %v4106 = vpack.c.b16 %v2458, %v2450
        %v4107 = vpack.c.b16 %v2459, %v2451
        %v4108 = vpack.c.b16 %v2460, %v2452
        %v4109 = vpack.c.b16 %v2461, %v2453
        %v4110 = vpack.c.b16 %v2462, %v2454
        %v4111 = vpack.c.b16 %v2471, %v2463
        %v4112 = vpack.c.b16 %v2472, %v2464
        %v4113 = vpack.c.b16 %v2473, %v2465
        %v4114 = vpack.c.b16 %v2474, %v2466
        %v4115 = vpack.c.b16 %v2475, %v2467
        %v4116 = vpack.c.b16 %v2476, %v2468
        %v4117 = vpack.c.b16 %v2477, %v2469
        %v4118 = vpack.c.b16 %v2478, %v2470
        %v4119 = vpack.c.b16 %v2487, %v2479
        %v4120 = vpack.c.b16 %v2488, %v2480
        %v4121 = vpack.c.b16 %v2489, %v2481
        %v4122 = vpack.c.b16 %v2490, %v2482
        %v4123 = vpack.c.b16 %v2491, %v2483
        %v4124 = vpack.c.b16 %v2492, %v2484
        %v4125 = vpack.c.b16 %v2493, %v2485
        %v4126 = vpack.c.b16 %v2494, %v2486
        %v4127 = vpack.c.b16 %v2503, %v2495
        %v4128 = vpack.c.b16 %v2504, %v2496
        %v4129 = vpack.c.b16 %v2505, %v2497
        %v4130 = vpack.c.b16 %v2506, %v2498
        %v4131 = vpack.c.b16 %v2507, %v2499
        %v4132 = vpack.c.b16 %v2508, %v2500
        %v4133 = vpack.c.b16 %v2509, %v2501
        %v4134 = vpack.c.b16 %v2510, %v2502
        %v4135 = vpack.c.b16 %v2519, %v2511
        %v4136 = vpack.c.b16 %v2520, %v2512
        %v4137 = vpack.c.b16 %v2521, %v2513
        %v4138 = vpack.c.b16 %v2522, %v2514
        %v4139 = vpack.c.b16 %v2523, %v2515
        %v4140 = vpack.c.b16 %v2524, %v2516
        %v4141 = vpack.c.b16 %v2525, %v2517
        %v4142 = vpack.c.b16 %v2526, %v2518
        %v4143 = vpack.c.b16 %v2535, %v2527
        %v4144 = vpack.c.b16 %v2536, %v2528
        %v4145 = vpack.c.b16 %v2537, %v2529
        %v4146 = vpack.c.b16 %v2538, %v2530
        %v4147 = vpack.c.b16 %v2539, %v2531
        %v4148 = vpack.c.b16 %v2540, %v2532
        %v4149 = vpack.c.b16 %v2541, %v2533
        %v4150 = vpack.c.b16 %v2542, %v2534
        %v4151 = vpack.c.b16 %v2551, %v2543
        %v4152 = vpack.c.b16 %v2552, %v2544
        %v4153 = vpack.c.b16 %v2553, %v2545
        %v4154 = vpack.c.b16 %v2554, %v2546
        %v4155 = vpack.c.b16 %v2555, %v2547
        %v4156 = vpack.c.b16 %v2556, %v2548
        %v4157 = vpack.c.b16 %v2557, %v2549
        %v4158 = vpack.c.b16 %v2558, %v2550
        %v4159 = vpack.c.b16 %v2567, %v2559
        %v4160 = vpack.c.b16 %v2568, %v2560
        %v4161 = vpack.c.b16 %v2569, %v2561
        %v4162 = vpack.c.b16 %v2570, %v2562
        %v4163 = vpack.c.b16 %v2571, %v2563
        %v4164 = vpack.c.b16 %v2572, %v2564
        %v4165 = vpack.c.b16 %v2573, %v2565
        %v4166 = vpack.c.b16 %v2574, %v2566
        %v4167 = vpack.c.b16 %v2583, %v2575
        %v4168 = vpack.c.b16 %v2584, %v2576
        %v4169 = vpack.c.b16 %v2585, %v2577
        %v4170 = vpack.c.b16 %v2586, %v2578
        %v4171 = vpack.c.b16 %v2587, %v2579
        %v4172 = vpack.c.b16 %v2588, %v2580
        %v4173 = vpack.c.b16 %v2589, %v2581
        %v4174 = vpack.c.b16 %v2590, %v2582
        %v4175 = vpack.c.b16 %v2599, %v2591
        %v4176 = vpack.c.b16 %v2600, %v2592
        %v4177 = vpack.c.b16 %v2601, %v2593
        %v4178 = vpack.c.b16 %v2602, %v2594
        %v4179 = vpack.c.b16 %v2603, %v2595
        %v4180 = vpack.c.b16 %v2604, %v2596
        %v4181 = vpack.c.b16 %v2605, %v2597
        %v4182 = vpack.c.b16 %v2606, %v2598
        %v4183 = vpack.c.b16 %v2615, %v2607
        %v4184 = vpack.c.b16 %v2616, %v2608
        %v4185 = vpack.c.b16 %v2617, %v2609
        %v4186 = vpack.c.b16 %v2618, %v2610
        %v4187 = vpack.c.b16 %v2619, %v2611
        %v4188 = vpack.c.b16 %v2620, %v2612
        %v4189 = vpack.c.b16 %v2621, %v2613
        %v4190 = vpack.c.b16 %v2622, %v2614
        %v4191 = vpack.c.b16 %v2631, %v2623
        %v4192 = vpack.c.b16 %v2632, %v2624
        %v4193 = vpack.c.b16 %v2633, %v2625
        %v4194 = vpack.c.b16 %v2634, %v2626
        %v4195 = vpack.c.b16 %v2635, %v2627
        %v4196 = vpack.c.b16 %v2636, %v2628
        %v4197 = vpack.c.b16 %v2637, %v2629
        %v4198 = vpack.c.b16 %v2638, %v2630
        %v4199 = vpack.c.b16 %v2647, %v2639
        %v4200 = vpack.c.b16 %v2648, %v2640
        %v4201 = vpack.c.b16 %v2649, %v2641
        %v4202 = vpack.c.b16 %v2650, %v2642
        %v4203 = vpack.c.b16 %v2651, %v2643
        %v4204 = vpack.c.b16 %v2652, %v2644
        %v4205 = vpack.c.b16 %v2653, %v2645
        %v4206 = vpack.c.b16 %v2654, %v2646
        %v4207 = vpack.c.b16 %v2663, %v2655
        %v4208 = vpack.c.b16 %v2664, %v2656
        %v4209 = vpack.c.b16 %v2665, %v2657
        %v4210 = vpack.c.b16 %v2666, %v2658
        %v4211 = vpack.c.b16 %v2667, %v2659
        %v4212 = vpack.c.b16 %v2668, %v2660
        %v4213 = vpack.c.b16 %v2669, %v2661
        %v4214 = vpack.c.b16 %v2670, %v2662
        %v4215 = vpack.c.b16 %v2679, %v2671
        %v4216 = vpack.c.b16 %v2680, %v2672
        %v4217 = vpack.c.b16 %v2681, %v2673
        %v4218 = vpack.c.b16 %v2682, %v2674
        %v4219 = vpack.c.b16 %v2683, %v2675
        %v4220 = vpack.c.b16 %v2684, %v2676
        %v4221 = vpack.c.b16 %v2685, %v2677
        %v4222 = vpack.c.b16 %v2686, %v2678
        %v4223 = vpack.c.b16 %v2695, %v2687
        %v4224 = vpack.c.b16 %v2696, %v2688
        %v4225 = vpack.c.b16 %v2697, %v2689
        %v4226 = vpack.c.b16 %v2698, %v2690
        %v4227 = vpack.c.b16 %v2699, %v2691
        %v4228 = vpack.c.b16 %v2700, %v2692
        %v4229 = vpack.c.b16 %v2701, %v2693
        %v4230 = vpack.c.b16 %v2702, %v2694
        %v4231 = vpack.c.b16 %v2711, %v2703
        %v4232 = vpack.c.b16 %v2712, %v2704
        %v4233 = vpack.c.b16 %v2713, %v2705
        %v4234 = vpack.c.b16 %v2714, %v2706
        %v4235 = vpack.c.b16 %v2715, %v2707
        %v4236 = vpack.c.b16 %v2716, %v2708
        %v4237 = vpack.c.b16 %v2717, %v2709
        %v4238 = vpack.c.b16 %v2718, %v2710
        %v4239 = vpack.c.b16 %v2727, %v2719
        %v4240 = vpack.c.b16 %v2728, %v2720
        %v4241 = vpack.c.b16 %v2729, %v2721
        %v4242 = vpack.c.b16 %v2730, %v2722
        %v4243 = vpack.c.b16 %v2731, %v2723
        %v4244 = vpack.c.b16 %v2732, %v2724
        %v4245 = vpack.c.b16 %v2733, %v2725
        %v4246 = vpack.c.b16 %v2734, %v2726
        %v4247 = vpack.c.b16 %v2743, %v2735
        %v4248 = vpack.c.b16 %v2744, %v2736
        %v4249 = vpack.c.b16 %v2745, %v2737
        %v4250 = vpack.c.b16 %v2746, %v2738
        %v4251 = vpack.c.b16 %v2747, %v2739
        %v4252 = vpack.c.b16 %v2748, %v2740
        %v4253 = vpack.c.b16 %v2749, %v2741
        %v4254 = vpack.c.b16 %v2750, %v2742
        %v4255 = vpack.c.b16 %v2759, %v2751
        %v4256 = vpack.c.b16 %v2760, %v2752
        %v4257 = vpack.c.b16 %v2761, %v2753
        %v4258 = vpack.c.b16 %v2762, %v2754
        %v4259 = vpack.c.b16 %v2763, %v2755
        %v4260 = vpack.c.b16 %v2764, %v2756
        %v4261 = vpack.c.b16 %v2765, %v2757
        %v4262 = vpack.c.b16 %v2766, %v2758
        %v4263 = vpack.c.b16 %v2775, %v2767
        %v4264 = vpack.c.b16 %v2776, %v2768
        %v4265 = vpack.c.b16 %v2777, %v2769
        %v4266 = vpack.c.b16 %v2778, %v2770
        %v4267 = vpack.c.b16 %v2779, %v2771
        %v4268 = vpack.c.b16 %v2780, %v2772
        %v4269 = vpack.c.b16 %v2781, %v2773
        %v4270 = vpack.c.b16 %v2782, %v2774
        %v4271 = vpack.c.b16 %v2791, %v2783
        %v4272 = vpack.c.b16 %v2792, %v2784
        %v4273 = vpack.c.b16 %v2793, %v2785
        %v4274 = vpack.c.b16 %v2794, %v2786
        %v4275 = vpack.c.b16 %v2795, %v2787
        %v4276 = vpack.c.b16 %v2796, %v2788
        %v4277 = vpack.c.b16 %v2797, %v2789
        %v4278 = vpack.c.b16 %v2798, %v2790
        %v4279 = vpack.c.b16 %v2807, %v2799
        %v4280 = vpack.c.b16 %v2808, %v2800
        %v4281 = vpack.c.b16 %v2809, %v2801
        %v4282 = vpack.c.b16 %v2810, %v2802
        %v4283 = vpack.c.b16 %v2811, %v2803
        %v4284 = vpack.c.b16 %v2812, %v2804
        %v4285 = vpack.c.b16 %v2813, %v2805
        %v4286 = vpack.c.b16 %v2814, %v2806
        %v4287 = vpack.c.b16 %v2823, %v2815
        %v4288 = vpack.c.b16 %v2824, %v2816
        %v4289 = vpack.c.b16 %v2825, %v2817
        %v4290 = vpack.c.b16 %v2826, %v2818
        %v4291 = vpack.c.b16 %v2827, %v2819
        %v4292 = vpack.c.b16 %v2828, %v2820
        %v4293 = vpack.c.b16 %v2829, %v2821
        %v4294 = vpack.c.b16 %v2830, %v2822
        %v4295 = vpack.c.b16 %v2839, %v2831
        %v4296 = vpack.c.b16 %v2840, %v2832
        %v4297 = vpack.c.b16 %v2841, %v2833
        %v4298 = vpack.c.b16 %v2842, %v2834
        %v4299 = vpack.c.b16 %v2843, %v2835
        %v4300 = vpack.c.b16 %v2844, %v2836
        %v4301 = vpack.c.b16 %v2845, %v2837
        %v4302 = vpack.c.b16 %v2846, %v2838
        %v4303 = vpack.c.b16 %v2855, %v2847
        %v4304 = vpack.c.b16 %v2856, %v2848
        %v4305 = vpack.c.b16 %v2857, %v2849
        %v4306 = vpack.c.b16 %v2858, %v2850
        %v4307 = vpack.c.b16 %v2859, %v2851
        %v4308 = vpack.c.b16 %v2860, %v2852
        %v4309 = vpack.c.b16 %v2861, %v2853
        %v4310 = vpack.c.b16 %v2862, %v2854
        %v4311 = vpack.c.b16 %v2871, %v2863
        %v4312 = vpack.c.b16 %v2872, %v2864
        %v4313 = vpack.c.b16 %v2873, %v2865
        %v4314 = vpack.c.b16 %v2874, %v2866
        %v4315 = vpack.c.b16 %v2875, %v2867
        %v4316 = vpack.c.b16 %v2876, %v2868
        %v4317 = vpack.c.b16 %v2877, %v2869
        %v4318 = vpack.c.b16 %v2878, %v2870
        %v4319 = vpack.c.b16 %v2887, %v2879
        %v4320 = vpack.c.b16 %v2888, %v2880
        %v4321 = vpack.c.b16 %v2889, %v2881
        %v4322 = vpack.c.b16 %v2890, %v2882
        %v4323 = vpack.c.b16 %v2891, %v2883
        %v4324 = vpack.c.b16 %v2892, %v2884
        %v4325 = vpack.c.b16 %v2893, %v2885
        %v4326 = vpack.c.b16 %v2894, %v2886
        %v4327 = vpack.c.b16 %v2903, %v2895
        %v4328 = vpack.c.b16 %v2904, %v2896
        %v4329 = vpack.c.b16 %v2905, %v2897
        %v4330 = vpack.c.b16 %v2906, %v2898
        %v4331 = vpack.c.b16 %v2907, %v2899
        %v4332 = vpack.c.b16 %v2908, %v2900
        %v4333 = vpack.c.b16 %v2909, %v2901
        %v4334 = vpack.c.b16 %v2910, %v2902
        %v4335 = vpack.c.b16 %v2919, %v2911
        %v4336 = vpack.c.b16 %v2920, %v2912
        %v4337 = vpack.c.b16 %v2921, %v2913
        %v4338 = vpack.c.b16 %v2922, %v2914
        %v4339 = vpack.c.b16 %v2923, %v2915
        %v4340 = vpack.c.b16 %v2924, %v2916
        %v4341 = vpack.c.b16 %v2925, %v2917
        %v4342 = vpack.c.b16 %v2926, %v2918
        %v4343 = vpack.c.b16 %v2935, %v2927
        %v4344 = vpack.c.b16 %v2936, %v2928
        %v4345 = vpack.c.b16 %v2937, %v2929
        %v4346 = vpack.c.b16 %v2938, %v2930
        %v4347 = vpack.c.b16 %v2939, %v2931
        %v4348 = vpack.c.b16 %v2940, %v2932
        %v4349 = vpack.c.b16 %v2941, %v2933
        %v4350 = vpack.c.b16 %v2942, %v2934
        %v4351 = vpack.c.b16 %v2951, %v2943
        %v4352 = vpack.c.b16 %v2952, %v2944
        %v4353 = vpack.c.b16 %v2953, %v2945
        %v4354 = vpack.c.b16 %v2954, %v2946
        %v4355 = vpack.c.b16 %v2955, %v2947
        %v4356 = vpack.c.b16 %v2956, %v2948
        %v4357 = vpack.c.b16 %v2957, %v2949
        %v4358 = vpack.c.b16 %v2958, %v2950
        %v4359 = vpack.c.b16 %v2967, %v2959
        %v4360 = vpack.c.b16 %v2968, %v2960
        %v4361 = vpack.c.b16 %v2969, %v2961
        %v4362 = vpack.c.b16 %v2970, %v2962
        %v4363 = vpack.c.b16 %v2971, %v2963
        %v4364 = vpack.c.b16 %v2972, %v2964
        %v4365 = vpack.c.b16 %v2973, %v2965
        %v4366 = vpack.c.b16 %v2974, %v2966
        %v4367 = vpack.c.b16 %v2983, %v2975
        %v4368 = vpack.c.b16 %v2984, %v2976
        %v4369 = vpack.c.b16 %v2985, %v2977
        %v4370 = vpack.c.b16 %v2986, %v2978
        %v4371 = vpack.c.b16 %v2987, %v2979
        %v4372 = vpack.c.b16 %v2988, %v2980
        %v4373 = vpack.c.b16 %v2989, %v2981
        %v4374 = vpack.c.b16 %v2990, %v2982
        %v4375 = vpack.c.b16 %v2999, %v2991
        %v4376 = vpack.c.b16 %v3000, %v2992
        %v4377 = vpack.c.b16 %v3001, %v2993
        %v4378 = vpack.c.b16 %v3002, %v2994
        %v4379 = vpack.c.b16 %v3003, %v2995
        %v4380 = vpack.c.b16 %v3004, %v2996
        %v4381 = vpack.c.b16 %v3005, %v2997
        %v4382 = vpack.c.b16 %v3006, %v2998
        %v4383 = vpack.c.b16 %v3015, %v3007
        %v4384 = vpack.c.b16 %v3016, %v3008
        %v4385 = vpack.c.b16 %v3017, %v3009
        %v4386 = vpack.c.b16 %v3018, %v3010
        %v4387 = vpack.c.b16 %v3019, %v3011
        %v4388 = vpack.c.b16 %v3020, %v3012
        %v4389 = vpack.c.b16 %v3021, %v3013
        %v4390 = vpack.c.b16 %v3022, %v3014
        %v4391 = vpack.c.b16 %v3031, %v3023
        %v4392 = vpack.c.b16 %v3032, %v3024
        %v4393 = vpack.c.b16 %v3033, %v3025
        %v4394 = vpack.c.b16 %v3034, %v3026
        %v4395 = vpack.c.b16 %v3035, %v3027
        %v4396 = vpack.c.b16 %v3036, %v3028
        %v4397 = vpack.c.b16 %v3037, %v3029
        %v4398 = vpack.c.b16 %v3038, %v3030
        %v4399 = vpack.c.b16 %v3047, %v3039
        %v4400 = vpack.c.b16 %v3048, %v3040
        %v4401 = vpack.c.b16 %v3049, %v3041
        %v4402 = vpack.c.b16 %v3050, %v3042
        %v4403 = vpack.c.b16 %v3051, %v3043
        %v4404 = vpack.c.b16 %v3052, %v3044
        %v4405 = vpack.c.b16 %v3053, %v3045
        %v4406 = vpack.c.b16 %v3054, %v3046
        %v4407 = vpack.c.b16 %v3063, %v3055
        %v4408 = vpack.c.b16 %v3064, %v3056
        %v4409 = vpack.c.b16 %v3065, %v3057
        %v4410 = vpack.c.b16 %v3066, %v3058
        %v4411 = vpack.c.b16 %v3067, %v3059
        %v4412 = vpack.c.b16 %v3068, %v3060
        %v4413 = vpack.c.b16 %v3069, %v3061
        %v4414 = vpack.c.b16 %v3070, %v3062
        %v4415 = vpack.c.b16 %v3079, %v3071
        %v4416 = vpack.c.b16 %v3080, %v3072
        %v4417 = vpack.c.b16 %v3081, %v3073
        %v4418 = vpack.c.b16 %v3082, %v3074
        %v4419 = vpack.c.b16 %v3083, %v3075
        %v4420 = vpack.c.b16 %v3084, %v3076
        %v4421 = vpack.c.b16 %v3085, %v3077
        %v4422 = vpack.c.b16 %v3086, %v3078
        %v4423 = vpack.c.b16 %v3095, %v3087
        %v4424 = vpack.c.b16 %v3096, %v3088
        %v4425 = vpack.c.b16 %v3097, %v3089
        %v4426 = vpack.c.b16 %v3098, %v3090
        %v4427 = vpack.c.b16 %v3099, %v3091
        %v4428 = vpack.c.b16 %v3100, %v3092
        %v4429 = vpack.c.b16 %v3101, %v3093
        %v4430 = vpack.c.b16 %v3102, %v3094
        %v4431 = vpack.c.b16 %v3111, %v3103
        %v4432 = vpack.c.b16 %v3112, %v3104
        %v4433 = vpack.c.b16 %v3113, %v3105
        %v4434 = vpack.c.b16 %v3114, %v3106
        %v4435 = vpack.c.b16 %v3115, %v3107
        %v4436 = vpack.c.b16 %v3116, %v3108
        %v4437 = vpack.c.b16 %v3117, %v3109
        %v4438 = vpack.c.b16 %v3118, %v3110
        %v4439 = vpack.c.b16 %v3127, %v3119
        %v4440 = vpack.c.b16 %v3128, %v3120
        %v4441 = vpack.c.b16 %v3129, %v3121
        %v4442 = vpack.c.b16 %v3130, %v3122
        %v4443 = vpack.c.b16 %v3131, %v3123
        %v4444 = vpack.c.b16 %v3132, %v3124
        %v4445 = vpack.c.b16 %v3133, %v3125
        %v4446 = vpack.c.b16 %v3134, %v3126
        %v4447 = vpack.c.b16 %v3143, %v3135
        %v4448 = vpack.c.b16 %v3144, %v3136
        %v4449 = vpack.c.b16 %v3145, %v3137
        %v4450 = vpack.c.b16 %v3146, %v3138
        %v4451 = vpack.c.b16 %v3147, %v3139
        %v4452 = vpack.c.b16 %v3148, %v3140
        %v4453 = vpack.c.b16 %v3149, %v3141
        %v4454 = vpack.c.b16 %v3150, %v3142
        %v4455 = vpack.c.b16 %v3159, %v3151
        %v4456 = vpack.c.b16 %v3160, %v3152
        %v4457 = vpack.c.b16 %v3161, %v3153
        %v4458 = vpack.c.b16 %v3162, %v3154
        %v4459 = vpack.c.b16 %v3163, %v3155
        %v4460 = vpack.c.b16 %v3164, %v3156
        %v4461 = vpack.c.b16 %v3165, %v3157
        %v4462 = vpack.c.b16 %v3166, %v3158
        %v4463 = vpack.c.b16 %v3175, %v3167
        %v4464 = vpack.c.b16 %v3176, %v3168
        %v4465 = vpack.c.b16 %v3177, %v3169
        %v4466 = vpack.c.b16 %v3178, %v3170
        %v4467 = vpack.c.b16 %v3179, %v3171
        %v4468 = vpack.c.b16 %v3180, %v3172
        %v4469 = vpack.c.b16 %v3181, %v3173
        %v4470 = vpack.c.b16 %v3182, %v3174
        %v4471 = vpack.c.b16 %v3191, %v3183
        %v4472 = vpack.c.b16 %v3192, %v3184
        %v4473 = vpack.c.b16 %v3193, %v3185
        %v4474 = vpack.c.b16 %v3194, %v3186
        %v4475 = vpack.c.b16 %v3195, %v3187
        %v4476 = vpack.c.b16 %v3196, %v3188
        %v4477 = vpack.c.b16 %v3197, %v3189
        %v4478 = vpack.c.b16 %v3198, %v3190
        %v4479 = vpack.c.b16 %v3207, %v3199
        %v4480 = vpack.c.b16 %v3208, %v3200
        %v4481 = vpack.c.b16 %v3209, %v3201
        %v4482 = vpack.c.b16 %v3210, %v3202
        %v4483 = vpack.c.b16 %v3211, %v3203
        %v4484 = vpack.c.b16 %v3212, %v3204
        %v4485 = vpack.c.b16 %v3213, %v3205
        %v4486 = vpack.c.b16 %v3214, %v3206
        %v4487 = vpack.c.b16 %v3223, %v3215
        %v4488 = vpack.c.b16 %v3224, %v3216
        %v4489 = vpack.c.b16 %v3225, %v3217
        %v4490 = vpack.c.b16 %v3226, %v3218
        %v4491 = vpack.c.b16 %v3227, %v3219
        %v4492 = vpack.c.b16 %v3228, %v3220
        %v4493 = vpack.c.b16 %v3229, %v3221
        %v4494 = vpack.c.b16 %v3230, %v3222
        %v4495 = vpack.c.b16 %v3239, %v3231
        %v4496 = vpack.c.b16 %v3240, %v3232
        %v4497 = vpack.c.b16 %v3241, %v3233
        %v4498 = vpack.c.b16 %v3242, %v3234
        %v4499 = vpack.c.b16 %v3243, %v3235
        %v4500 = vpack.c.b16 %v3244, %v3236
        %v4501 = vpack.c.b16 %v3245, %v3237
        %v4502 = vpack.c.b16 %v3246, %v3238
        %v4503 = vpack.c.b16 %v3255, %v3247
        %v4504 = vpack.c.b16 %v3256, %v3248
        %v4505 = vpack.c.b16 %v3257, %v3249
        %v4506 = vpack.c.b16 %v3258, %v3250
        %v4507 = vpack.c.b16 %v3259, %v3251
        %v4508 = vpack.c.b16 %v3260, %v3252
        %v4509 = vpack.c.b16 %v3261, %v3253
        %v4510 = vpack.c.b16 %v3262, %v3254
        %v4511 = vpack.c.b16 %v3271, %v3263
        %v4512 = vpack.c.b16 %v3272, %v3264
        %v4513 = vpack.c.b16 %v3273, %v3265
        %v4514 = vpack.c.b16 %v3274, %v3266
        %v4515 = vpack.c.b16 %v3275, %v3267
        %v4516 = vpack.c.b16 %v3276, %v3268
        %v4517 = vpack.c.b16 %v3277, %v3269
        %v4518 = vpack.c.b16 %v3278, %v3270
        %v4519 = vpack.c.b16 %v3287, %v3279
        %v4520 = vpack.c.b16 %v3288, %v3280
        %v4521 = vpack.c.b16 %v3289, %v3281
        %v4522 = vpack.c.b16 %v3290, %v3282
        %v4523 = vpack.c.b16 %v3291, %v3283
        %v4524 = vpack.c.b16 %v3292, %v3284
        %v4525 = vpack.c.b16 %v3293, %v3285
        %v4526 = vpack.c.b16 %v3294, %v3286
        %v4527 = vpack.c.b16 %v3303, %v3295
        %v4528 = vpack.c.b16 %v3304, %v3296
        %v4529 = vpack.c.b16 %v3305, %v3297
        %v4530 = vpack.c.b16 %v3306, %v3298
        %v4531 = vpack.c.b16 %v3307, %v3299
        %v4532 = vpack.c.b16 %v3308, %v3300
        %v4533 = vpack.c.b16 %v3309, %v3301
        %v4534 = vpack.c.b16 %v3310, %v3302
        %v4535 = vpack.c.b16 %v3319, %v3311
        %v4536 = vpack.c.b16 %v3320, %v3312
        %v4537 = vpack.c.b16 %v3321, %v3313
        %v4538 = vpack.c.b16 %v3322, %v3314
        %v4539 = vpack.c.b16 %v3323, %v3315
        %v4540 = vpack.c.b16 %v3324, %v3316
        %v4541 = vpack.c.b16 %v3325, %v3317
        %v4542 = vpack.c.b16 %v3326, %v3318
        %v4543 = vpack.c.b16 %v3335, %v3327
        %v4544 = vpack.c.b16 %v3336, %v3328
        %v4545 = vpack.c.b16 %v3337, %v3329
        %v4546 = vpack.c.b16 %v3338, %v3330
        %v4547 = vpack.c.b16 %v3339, %v3331
        %v4548 = vpack.c.b16 %v3340, %v3332
        %v4549 = vpack.c.b16 %v3341, %v3333
        %v4550 = vpack.c.b16 %v3342, %v3334
        %v4551 = vpack.c.b16 %v3351, %v3343
        %v4552 = vpack.c.b16 %v3352, %v3344
        %v4553 = vpack.c.b16 %v3353, %v3345
        %v4554 = vpack.c.b16 %v3354, %v3346
        %v4555 = vpack.c.b16 %v3355, %v3347
        %v4556 = vpack.c.b16 %v3356, %v3348
        %v4557 = vpack.c.b16 %v3357, %v3349
        %v4558 = vpack.c.b16 %v3358, %v3350
        %v4559 = vpack.c.b16 %v3367, %v3359
        %v4560 = vpack.c.b16 %v3368, %v3360
        %v4561 = vpack.c.b16 %v3369, %v3361
        %v4562 = vpack.c.b16 %v3370, %v3362
        %v4563 = vpack.c.b16 %v3371, %v3363
        %v4564 = vpack.c.b16 %v3372, %v3364
        %v4565 = vpack.c.b16 %v3373, %v3365
        %v4566 = vpack.c.b16 %v3374, %v3366
        %v4567 = vpack.c.b16 %v3383, %v3375
        %v4568 = vpack.c.b16 %v3384, %v3376
        %v4569 = vpack.c.b16 %v3385, %v3377
        %v4570 = vpack.c.b16 %v3386, %v3378
        %v4571 = vpack.c.b16 %v3387, %v3379
        %v4572 = vpack.c.b16 %v3388, %v3380
        %v4573 = vpack.c.b16 %v3389, %v3381
        %v4574 = vpack.c.b16 %v3390, %v3382
        %v4575 = vpack.c.b16 %v3399, %v3391
        %v4576 = vpack.c.b16 %v3400, %v3392
        %v4577 = vpack.c.b16 %v3401, %v3393
        %v4578 = vpack.c.b16 %v3402, %v3394
        %v4579 = vpack.c.b16 %v3403, %v3395
        %v4580 = vpack.c.b16 %v3404, %v3396
        %v4581 = vpack.c.b16 %v3405, %v3397
        %v4582 = vpack.c.b16 %v3406, %v3398
        %v4583 = vpack.c.b16 %v3415, %v3407
        %v4584 = vpack.c.b16 %v3416, %v3408
        %v4585 = vpack.c.b16 %v3417, %v3409
        %v4586 = vpack.c.b16 %v3418, %v3410
        %v4587 = vpack.c.b16 %v3419, %v3411
        %v4588 = vpack.c.b16 %v3420, %v3412
        %v4589 = vpack.c.b16 %v3421, %v3413
        %v4590 = vpack.c.b16 %v3422, %v3414
        %v4591 = vpack.c.b16 %v3431, %v3423
        %v4592 = vpack.c.b16 %v3432, %v3424
        %v4593 = vpack.c.b16 %v3433, %v3425
        %v4594 = vpack.c.b16 %v3434, %v3426
        %v4595 = vpack.c.b16 %v3435, %v3427
        %v4596 = vpack.c.b16 %v3436, %v3428
        %v4597 = vpack.c.b16 %v3437, %v3429
        %v4598 = vpack.c.b16 %v3438, %v3430
        %v4599 = vpack.c.b16 %v3447, %v3439
        %v4600 = vpack.c.b16 %v3448, %v3440
        %v4601 = vpack.c.b16 %v3449, %v3441
        %v4602 = vpack.c.b16 %v3450, %v3442
        %v4603 = vpack.c.b16 %v3451, %v3443
        %v4604 = vpack.c.b16 %v3452, %v3444
        %v4605 = vpack.c.b16 %v3453, %v3445
        %v4606 = vpack.c.b16 %v3454, %v3446
        %v4607 = vpack.c.b16 %v3463, %v3455
        %v4608 = vpack.c.b16 %v3464, %v3456
        %v4609 = vpack.c.b16 %v3465, %v3457
        %v4610 = vpack.c.b16 %v3466, %v3458
        %v4611 = vpack.c.b16 %v3467, %v3459
        %v4612 = vpack.c.b16 %v3468, %v3460
        %v4613 = vpack.c.b16 %v3469, %v3461
        %v4614 = vpack.c.b16 %v3470, %v3462
        %v4615 = vpack.c.b16 %v3479, %v3471
        %v4616 = vpack.c.b16 %v3480, %v3472
        %v4617 = vpack.c.b16 %v3481, %v3473
        %v4618 = vpack.c.b16 %v3482, %v3474
        %v4619 = vpack.c.b16 %v3483, %v3475
        %v4620 = vpack.c.b16 %v3484, %v3476
        %v4621 = vpack.c.b16 %v3485, %v3477
        %v4622 = vpack.c.b16 %v3486, %v3478
        %v4623 = vpack.c.b16 %v3495, %v3487
        %v4624 = vpack.c.b16 %v3496, %v3488
        %v4625 = vpack.c.b16 %v3497, %v3489
        %v4626 = vpack.c.b16 %v3498, %v3490
        %v4627 = vpack.c.b16 %v3499, %v3491
        %v4628 = vpack.c.b16 %v3500, %v3492
        %v4629 = vpack.c.b16 %v3501, %v3493
        %v4630 = vpack.c.b16 %v3502, %v3494
        %v4631 = vpack.c.b16 %v3511, %v3503
        %v4632 = vpack.c.b16 %v3512, %v3504
        %v4633 = vpack.c.b16 %v3513, %v3505
        %v4634 = vpack.c.b16 %v3514, %v3506
        %v4635 = vpack.c.b16 %v3515, %v3507
        %v4636 = vpack.c.b16 %v3516, %v3508
        %v4637 = vpack.c.b16 %v3517, %v3509
        %v4638 = vpack.c.b16 %v3518, %v3510
        %v4639 = vpack.c.b16 %v3527, %v3519
        %v4640 = vpack.c.b16 %v3528, %v3520
        %v4641 = vpack.c.b16 %v3529, %v3521
        %v4642 = vpack.c.b16 %v3530, %v3522
        %v4643 = vpack.c.b16 %v3531, %v3523
        %v4644 = vpack.c.b16 %v3532, %v3524
        %v4645 = vpack.c.b16 %v3533, %v3525
        %v4646 = vpack.c.b16 %v3534, %v3526
        %v4647 = vpack.c.b16 %v3543, %v3535
        %v4648 = vpack.c.b16 %v3544, %v3536
        %v4649 = vpack.c.b16 %v3545, %v3537
        %v4650 = vpack.c.b16 %v3546, %v3538
        %v4651 = vpack.c.b16 %v3547, %v3539
        %v4652 = vpack.c.b16 %v3548, %v3540
        %v4653 = vpack.c.b16 %v3549, %v3541
        %v4654 = vpack.c.b16 %v3550, %v3542
        %v4655 = vpack.c.b16 %v3559, %v3551
        %v4656 = vpack.c.b16 %v3560, %v3552
        %v4657 = vpack.c.b16 %v3561, %v3553
        %v4658 = vpack.c.b16 %v3562, %v3554
        %v4659 = vpack.c.b16 %v3563, %v3555
        %v4660 = vpack.c.b16 %v3564, %v3556
        %v4661 = vpack.c.b16 %v3565, %v3557
        %v4662 = vpack.c.b16 %v3566, %v3558
        %v4663 = vpack.c.b16 %v3575, %v3567
        %v4664 = vpack.c.b16 %v3576, %v3568
        %v4665 = vpack.c.b16 %v3577, %v3569
        %v4666 = vpack.c.b16 %v3578, %v3570
        %v4667 = vpack.c.b16 %v3579, %v3571
        %v4668 = vpack.c.b16 %v3580, %v3572
        %v4669 = vpack.c.b16 %v3581, %v3573
        %v4670 = vpack.c.b16 %v3582, %v3574
        %v4671 = vpack.c.b16 %v3591, %v3583
        %v4672 = vpack.c.b16 %v3592, %v3584
        %v4673 = vpack.c.b16 %v3593, %v3585
        %v4674 = vpack.c.b16 %v3594, %v3586
        %v4675 = vpack.c.b16 %v3595, %v3587
        %v4676 = vpack.c.b16 %v3596, %v3588
        %v4677 = vpack.c.b16 %v3597, %v3589
        %v4678 = vpack.c.b16 %v3598, %v3590
        %v4679 = vpack.c.b16 %v3607, %v3599
        %v4680 = vpack.c.b16 %v3608, %v3600
        %v4681 = vpack.c.b16 %v3609, %v3601
        %v4682 = vpack.c.b16 %v3610, %v3602
        %v4683 = vpack.c.b16 %v3611, %v3603
        %v4684 = vpack.c.b16 %v3612, %v3604
        %v4685 = vpack.c.b16 %v3613, %v3605
        %v4686 = vpack.c.b16 %v3614, %v3606
        %v4687 = vpack.c.b16 %v3623, %v3615
        %v4688 = vpack.c.b16 %v3624, %v3616
        %v4689 = vpack.c.b16 %v3625, %v3617
        %v4690 = vpack.c.b16 %v3626, %v3618
        %v4691 = vpack.c.b16 %v3627, %v3619
        %v4692 = vpack.c.b16 %v3628, %v3620
        %v4693 = vpack.c.b16 %v3629, %v3621
        %v4694 = vpack.c.b16 %v3630, %v3622
        %v4695 = vpack.c.b16 %v3639, %v3631
        %v4696 = vpack.c.b16 %v3640, %v3632
        %v4697 = vpack.c.b16 %v3641, %v3633
        %v4698 = vpack.c.b16 %v3642, %v3634
        %v4699 = vpack.c.b16 %v3643, %v3635
        %v4700 = vpack.c.b16 %v3644, %v3636
        %v4701 = vpack.c.b16 %v3645, %v3637
        %v4702 = vpack.c.b16 %v3646, %v3638
        %v4703 = vpack.c.b16 %v3655, %v3647
        %v4704 = vpack.c.b16 %v3656, %v3648
        %v4705 = vpack.c.b16 %v3657, %v3649
        %v4706 = vpack.c.b16 %v3658, %v3650
        %v4707 = vpack.c.b16 %v3659, %v3651
        %v4708 = vpack.c.b16 %v3660, %v3652
        %v4709 = vpack.c.b16 %v3661, %v3653
        %v4710 = vpack.c.b16 %v3662, %v3654
        %v4711 = vpack.c.b16 %v3671, %v3663
        %v4712 = vpack.c.b16 %v3672, %v3664
        %v4713 = vpack.c.b16 %v3673, %v3665
        %v4714 = vpack.c.b16 %v3674, %v3666
        %v4715 = vpack.c.b16 %v3675, %v3667
        %v4716 = vpack.c.b16 %v3676, %v3668
        %v4717 = vpack.c.b16 %v3677, %v3669
        %v4718 = vpack.c.b16 %v3678, %v3670
        %v4719 = vpack.c.b16 %v3687, %v3679
        %v4720 = vpack.c.b16 %v3688, %v3680
        %v4721 = vpack.c.b16 %v3689, %v3681
        %v4722 = vpack.c.b16 %v3690, %v3682
        %v4723 = vpack.c.b16 %v3691, %v3683
        %v4724 = vpack.c.b16 %v3692, %v3684
        %v4725 = vpack.c.b16 %v3693, %v3685
        %v4726 = vpack.c.b16 %v3694, %v3686
        %v4727 = vpack.c.b16 %v3703, %v3695
        %v4728 = vpack.c.b16 %v3704, %v3696
        %v4729 = vpack.c.b16 %v3705, %v3697
        %v4730 = vpack.c.b16 %v3706, %v3698
        %v4731 = vpack.c.b16 %v3707, %v3699
        %v4732 = vpack.c.b16 %v3708, %v3700
        %v4733 = vpack.c.b16 %v3709, %v3701
        %v4734 = vpack.c.b16 %v3710, %v3702
        %v4735 = vpack.c.b16 %v3719, %v3711
        %v4736 = vpack.c.b16 %v3720, %v3712
        %v4737 = vpack.c.b16 %v3721, %v3713
        %v4738 = vpack.c.b16 %v3722, %v3714
        %v4739 = vpack.c.b16 %v3723, %v3715
        %v4740 = vpack.c.b16 %v3724, %v3716
        %v4741 = vpack.c.b16 %v3725, %v3717
        %v4742 = vpack.c.b16 %v3726, %v3718
        %v4743 = vpack.c.b16 %v3735, %v3727
        %v4744 = vpack.c.b16 %v3736, %v3728
        %v4745 = vpack.c.b16 %v3737, %v3729
        %v4746 = vpack.c.b16 %v3738, %v3730
        %v4747 = vpack.c.b16 %v3739, %v3731
        %v4748 = vpack.c.b16 %v3740, %v3732
        %v4749 = vpack.c.b16 %v3741, %v3733
        %v4750 = vpack.c.b16 %v3742, %v3734
        %v4751 = vpack.c.b16 %v3751, %v3743
        %v4752 = vpack.c.b16 %v3752, %v3744
        %v4753 = vpack.c.b16 %v3753, %v3745
        %v4754 = vpack.c.b16 %v3754, %v3746
        %v4755 = vpack.c.b16 %v3755, %v3747
        %v4756 = vpack.c.b16 %v3756, %v3748
        %v4757 = vpack.c.b16 %v3757, %v3749
        %v4758 = vpack.c.b16 %v3758, %v3750
        %v4759 = vpack.c.b16 %v3767, %v3759
        %v4760 = vpack.c.b16 %v3768, %v3760
        %v4761 = vpack.c.b16 %v3769, %v3761
        %v4762 = vpack.c.b16 %v3770, %v3762
        %v4763 = vpack.c.b16 %v3771, %v3763
        %v4764 = vpack.c.b16 %v3772, %v3764
        %v4765 = vpack.c.b16 %v3773, %v3765
        %v4766 = vpack.c.b16 %v3774, %v3766
        %v4767 = vpack.c.b16 %v3783, %v3775
        %v4768 = vpack.c.b16 %v3784, %v3776
        %v4769 = vpack.c.b16 %v3785, %v3777
        %v4770 = vpack.c.b16 %v3786, %v3778
        %v4771 = vpack.c.b16 %v3787, %v3779
        %v4772 = vpack.c.b16 %v3788, %v3780
        %v4773 = vpack.c.b16 %v3789, %v3781
        %v4774 = vpack.c.b16 %v3790, %v3782
        %v4775 = vpack.c.b16 %v3799, %v3791
        %v4776 = vpack.c.b16 %v3800, %v3792
        %v4777 = vpack.c.b16 %v3801, %v3793
        %v4778 = vpack.c.b16 %v3802, %v3794
        %v4779 = vpack.c.b16 %v3803, %v3795
        %v4780 = vpack.c.b16 %v3804, %v3796
        %v4781 = vpack.c.b16 %v3805, %v3797
        %v4782 = vpack.c.b16 %v3806, %v3798
        %v4783 = vpack.c.b16 %v3815, %v3807
        %v4784 = vpack.c.b16 %v3816, %v3808
        %v4785 = vpack.c.b16 %v3817, %v3809
        %v4786 = vpack.c.b16 %v3818, %v3810
        %v4787 = vpack.c.b16 %v3819, %v3811
        %v4788 = vpack.c.b16 %v3820, %v3812
        %v4789 = vpack.c.b16 %v3821, %v3813
        %v4790 = vpack.c.b16 %v3822, %v3814
        %v4791 = vpack.c.b16 %v3831, %v3823
        %v4792 = vpack.c.b16 %v3832, %v3824
        %v4793 = vpack.c.b16 %v3833, %v3825
        %v4794 = vpack.c.b16 %v3834, %v3826
        %v4795 = vpack.c.b16 %v3835, %v3827
        %v4796 = vpack.c.b16 %v3836, %v3828
        %v4797 = vpack.c.b16 %v3837, %v3829
        %v4798 = vpack.c.b16 %v3838, %v3830
        %v4799 = vpack.c.b16 %v3847, %v3839
        %v4800 = vpack.c.b16 %v3848, %v3840
        %v4801 = vpack.c.b16 %v3849, %v3841
        %v4802 = vpack.c.b16 %v3850, %v3842
        %v4803 = vpack.c.b16 %v3851, %v3843
        %v4804 = vpack.c.b16 %v3852, %v3844
        %v4805 = vpack.c.b16 %v3853, %v3845
        %v4806 = vpack.c.b16 %v3854, %v3846
        %v4807 = vpack.c.b16 %v3863, %v3855
        %v4808 = vpack.c.b16 %v3864, %v3856
        %v4809 = vpack.c.b16 %v3865, %v3857
        %v4810 = vpack.c.b16 %v3866, %v3858
        %v4811 = vpack.c.b16 %v3867, %v3859
        %v4812 = vpack.c.b16 %v3868, %v3860
        %v4813 = vpack.c.b16 %v3869, %v3861
        %v4814 = vpack.c.b16 %v3870, %v3862
        %v4815 = vpack.c.b16 %v3879, %v3871
        %v4816 = vpack.c.b16 %v3880, %v3872
        %v4817 = vpack.c.b16 %v3881, %v3873
        %v4818 = vpack.c.b16 %v3882, %v3874
        %v4819 = vpack.c.b16 %v3883, %v3875
        %v4820 = vpack.c.b16 %v3884, %v3876
        %v4821 = vpack.c.b16 %v3885, %v3877
        %v4822 = vpack.c.b16 %v3886, %v3878
        %v4823 = vpack.c.b16 %v3895, %v3887
        %v4824 = vpack.c.b16 %v3896, %v3888
        %v4825 = vpack.c.b16 %v3897, %v3889
        %v4826 = vpack.c.b16 %v3898, %v3890
        %v4827 = vpack.c.b16 %v3899, %v3891
        %v4828 = vpack.c.b16 %v3900, %v3892
        %v4829 = vpack.c.b16 %v3901, %v3893
        %v4830 = vpack.c.b16 %v3902, %v3894
        %v4831 = vpack.c.b16 %v3911, %v3903
        %v4832 = vpack.c.b16 %v3912, %v3904
        %v4833 = vpack.c.b16 %v3913, %v3905
        %v4834 = vpack.c.b16 %v3914, %v3906
        %v4835 = vpack.c.b16 %v3915, %v3907
        %v4836 = vpack.c.b16 %v3916, %v3908
        %v4837 = vpack.c.b16 %v3917, %v3909
        %v4838 = vpack.c.b16 %v3918, %v3910
        %v4839 = vpack.c.b16 %v3927, %v3919
        %v4840 = vpack.c.b16 %v3928, %v3920
        %v4841 = vpack.c.b16 %v3929, %v3921
        %v4842 = vpack.c.b16 %v3930, %v3922
        %v4843 = vpack.c.b16 %v3931, %v3923
        %v4844 = vpack.c.b16 %v3932, %v3924
        %v4845 = vpack.c.b16 %v3933, %v3925
        %v4846 = vpack.c.b16 %v3934, %v3926
        %v4847 = vpack.c.b16 %v3943, %v3935
        %v4848 = vpack.c.b16 %v3944, %v3936
        %v4849 = vpack.c.b16 %v3945, %v3937
        %v4850 = vpack.c.b16 %v3946, %v3938
        %v4851 = vpack.c.b16 %v3947, %v3939
        %v4852 = vpack.c.b16 %v3948, %v3940
        %v4853 = vpack.c.b16 %v3949, %v3941
        %v4854 = vpack.c.b16 %v3950, %v3942
        %v4855 = vpack.c.b16 %v3959, %v3951
        %v4856 = vpack.c.b16 %v3960, %v3952
        %v4857 = vpack.c.b16 %v3961, %v3953
        %v4858 = vpack.c.b16 %v3962, %v3954
        %v4859 = vpack.c.b16 %v3963, %v3955
        %v4860 = vpack.c.b16 %v3964, %v3956
        %v4861 = vpack.c.b16 %v3965, %v3957
        %v4862 = vpack.c.b16 %v3966, %v3958
        %5759 = vmatprep.subr.bf16.mxu0 %v3968
        %5760 = vmatpush1.bf16.msra.mxu0 %v3967
        %5761 = vmatprep.subr.bf16.mxu0 %v3976
        %5762 = vmatpush1.bf16.msra.mxu0 %v3975
        %5763 = vmatprep.subr.bf16.mxu0 %v3984
        %5764 = vmatpush1.bf16.msra.mxu0 %v3983
        %5765 = vmatprep.subr.bf16.mxu0 %v3992
        %5766 = vmatpush1.bf16.msra.mxu0 %v3991
        %5767 = vmatprep.subr.bf16.mxu0 %v4000
        %5768 = vmatpush1.bf16.msra.mxu0 %v3999
        %5769 = vmatprep.subr.bf16.mxu0 %v4008
        %5770 = vmatpush1.bf16.msra.mxu0 %v4007
        %5771 = vmatprep.subr.bf16.mxu0 %v4016
        %5772 = vmatpush1.bf16.msra.mxu0 %v4015
        %5773 = vmatprep.subr.bf16.mxu0 %v4024
        %5774 = vmatpush1.bf16.msra.mxu0 %v4023
        %5775 = vmatprep.subr.bf16.mxu0 %v4032
        %5776 = vmatpush1.bf16.msra.mxu0 %v4031
        %5777 = vmatprep.subr.bf16.mxu0 %v4040
        %5778 = vmatpush1.bf16.msra.mxu0 %v4039
        %5779 = vmatprep.subr.bf16.mxu0 %v4048
        %5780 = vmatpush1.bf16.msra.mxu0 %v4047
        %5781 = vmatprep.subr.bf16.mxu0 %v4056
        %5782 = vmatpush1.bf16.msra.mxu0 %v4055
        %5783 = vmatprep.subr.bf16.mxu0 %v4064
        %5784 = vmatpush1.bf16.msra.mxu0 %v4063
        %5785 = vmatprep.subr.bf16.mxu0 %v4072
        %5786 = vmatpush1.bf16.msra.mxu0 %v4071
        %5787 = vmatprep.subr.bf16.mxu0 %v4080
        %5788 = vmatpush1.bf16.msra.mxu0 %v4079
        %5789 = vmatprep.subr.bf16.mxu0 %v4088
        %5790 = vmatpush1.bf16.msra.mxu0 %v4087
        %5791 = vmatprep.mubr.bf16.mxu0 %v370
        %5792 = vmatmul.mubr.bf16.gmra.mrb[0].mxu0 %v369
        %v5793 = vpop.f32.mrb[0].mxu0
        %v5794 = vadd.f32 0.0, %v5793
        %v5795 = vpop.f32.mrb[0].mxu0
        %v5796 = vadd.f32 0.0, %v5795
        %v5797 = vpop.f32.mrb[0].mxu0
        %v5798 = vpop.f32.mrb[0].mxu0
        %5799 = vdwg.mxu0
        %5800 = vmatprep.subr.bf16.mxu0 %v4096
        %5801 = vmatpush1.bf16.msra.mxu0 %v4095
        %5802 = vmatprep.subr.bf16.mxu0 %v4104
        %5803 = vmatpush1.bf16.msra.mxu0 %v4103
        %5804 = vmatprep.subr.bf16.mxu0 %v4112
        %5805 = vmatpush1.bf16.msra.mxu0 %v4111
        %5806 = vmatprep.subr.bf16.mxu0 %v4120
        %5807 = vmatpush1.bf16.msra.mxu0 %v4119
        %5808 = vmatprep.subr.bf16.mxu0 %v4128
        %5809 = vmatpush1.bf16.msra.mxu0 %v4127
        %5810 = vmatprep.subr.bf16.mxu0 %v4136
        %5811 = vmatpush1.bf16.msra.mxu0 %v4135
        %5812 = vmatprep.subr.bf16.mxu0 %v4144
        %5813 = vmatpush1.bf16.msra.mxu0 %v4143
        %5814 = vmatprep.subr.bf16.mxu0 %v4152
        %5815 = vmatpush1.bf16.msra.mxu0 %v4151
        %5816 = vmatprep.subr.bf16.mxu0 %v4160
        %5817 = vmatpush1.bf16.msra.mxu0 %v4159
        %5818 = vmatprep.subr.bf16.mxu0 %v4168
        %5819 = vmatpush1.bf16.msra.mxu0 %v4167
        %5820 = vmatprep.subr.bf16.mxu0 %v4176
        %5821 = vmatpush1.bf16.msra.mxu0 %v4175
        %5822 = vmatprep.subr.bf16.mxu0 %v4184
        %5823 = vmatpush1.bf16.msra.mxu0 %v4183
        %5824 = vmatprep.subr.bf16.mxu0 %v4192
        %5825 = vmatpush1.bf16.msra.mxu0 %v4191
        %5826 = vmatprep.subr.bf16.mxu0 %v4200
        %5827 = vmatpush1.bf16.msra.mxu0 %v4199
        %5828 = vmatprep.subr.bf16.mxu0 %v4208
        %5829 = vmatpush1.bf16.msra.mxu0 %v4207
        %5830 = vmatprep.subr.bf16.mxu0 %v4216
        %5831 = vmatpush1.bf16.msra.mxu0 %v4215
        %5832 = vmatprep.mubr.bf16.mxu0 %v372
        %5833 = vmatmul.mubr.bf16.gmra.mrb[0].mxu0 %v371
        %v5834 = vpop.f32.mrb[0].mxu0
        %v5835 = vadd.f32 %v5794, %v5834
        %v5836 = vpop.f32.mrb[0].mxu0
        %v5837 = vadd.f32 %v5796, %v5836
        %v5838 = vpop.f32.mrb[0].mxu0
        %v5839 = vpop.f32.mrb[0].mxu0
        %5840 = vdwg.mxu0
        %5841 = vmatprep.subr.bf16.mxu0 %v4224
        %5842 = vmatpush1.bf16.msra.mxu0 %v4223
        %5843 = vmatprep.subr.bf16.mxu0 %v4232
        %5844 = vmatpush1.bf16.msra.mxu0 %v4231
        %5845 = vmatprep.subr.bf16.mxu0 %v4240
        %5846 = vmatpush1.bf16.msra.mxu0 %v4239
        %5847 = vmatprep.subr.bf16.mxu0 %v4248
        %5848 = vmatpush1.bf16.msra.mxu0 %v4247
        %5849 = vmatprep.subr.bf16.mxu0 %v4256
        %5850 = vmatpush1.bf16.msra.mxu0 %v4255
        %5851 = vmatprep.subr.bf16.mxu0 %v4264
        %5852 = vmatpush1.bf16.msra.mxu0 %v4263
        %5853 = vmatprep.subr.bf16.mxu0 %v4272
        %5854 = vmatpush1.bf16.msra.mxu0 %v4271
        %5855 = vmatprep.subr.bf16.mxu0 %v4280
        %5856 = vmatpush1.bf16.msra.mxu0 %v4279
        %5857 = vmatprep.subr.bf16.mxu0 %v4288
        %5858 = vmatpush1.bf16.msra.mxu0 %v4287
        %5859 = vmatprep.subr.bf16.mxu0 %v4296
        %5860 = vmatpush1.bf16.msra.mxu0 %v4295
        %5861 = vmatprep.subr.bf16.mxu0 %v4304
        %5862 = vmatpush1.bf16.msra.mxu0 %v4303
        %5863 = vmatprep.subr.bf16.mxu0 %v4312
        %5864 = vmatpush1.bf16.msra.mxu0 %v4311
        %5865 = vmatprep.subr.bf16.mxu0 %v4320
        %5866 = vmatpush1.bf16.msra.mxu0 %v4319
        %5867 = vmatprep.subr.bf16.mxu0 %v4328
        %5868 = vmatpush1.bf16.msra.mxu0 %v4327
        %5869 = vmatprep.subr.bf16.mxu0 %v4336
        %5870 = vmatpush1.bf16.msra.mxu0 %v4335
        %5871 = vmatprep.subr.bf16.mxu0 %v4344
        %5872 = vmatpush1.bf16.msra.mxu0 %v4343
        %5873 = vmatprep.mubr.bf16.mxu0 %v374
        %5874 = vmatmul.mubr.bf16.gmra.mrb[0].mxu0 %v373
        %v5875 = vpop.f32.mrb[0].mxu0
        %v5876 = vadd.f32 %v5835, %v5875
        %v5877 = vpop.f32.mrb[0].mxu0
        %v5878 = vadd.f32 %v5837, %v5877
        %v5879 = vpop.f32.mrb[0].mxu0
        %v5880 = vpop.f32.mrb[0].mxu0
        %5881 = vdwg.mxu0
        %5882 = vmatprep.subr.bf16.mxu0 %v4352
        %5883 = vmatpush1.bf16.msra.mxu0 %v4351
        %5884 = vmatprep.subr.bf16.mxu0 %v4360
        %5885 = vmatpush1.bf16.msra.mxu0 %v4359
        %5886 = vmatprep.subr.bf16.mxu0 %v4368
        %5887 = vmatpush1.bf16.msra.mxu0 %v4367
        %5888 = vmatprep.subr.bf16.mxu0 %v4376
        %5889 = vmatpush1.bf16.msra.mxu0 %v4375
        %5890 = vmatprep.subr.bf16.mxu0 %v4384
        %5891 = vmatpush1.bf16.msra.mxu0 %v4383
        %5892 = vmatprep.subr.bf16.mxu0 %v4392
        %5893 = vmatpush1.bf16.msra.mxu0 %v4391
        %5894 = vmatprep.subr.bf16.mxu0 %v4400
        %5895 = vmatpush1.bf16.msra.mxu0 %v4399
        %5896 = vmatprep.subr.bf16.mxu0 %v4408
        %5897 = vmatpush1.bf16.msra.mxu0 %v4407
        %5898 = vmatprep.subr.bf16.mxu0 %v4416
        %5899 = vmatpush1.bf16.msra.mxu0 %v4415
        %5900 = vmatprep.subr.bf16.mxu0 %v4424
        %5901 = vmatpush1.bf16.msra.mxu0 %v4423
        %5902 = vmatprep.subr.bf16.mxu0 %v4432
        %5903 = vmatpush1.bf16.msra.mxu0 %v4431
        %5904 = vmatprep.subr.bf16.mxu0 %v4440
        %5905 = vmatpush1.bf16.msra.mxu0 %v4439
        %5906 = vmatprep.subr.bf16.mxu0 %v4448
        %5907 = vmatpush1.bf16.msra.mxu0 %v4447
        %5908 = vmatprep.subr.bf16.mxu0 %v4456
        %5909 = vmatpush1.bf16.msra.mxu0 %v4455
        %5910 = vmatprep.subr.bf16.mxu0 %v4464
        %5911 = vmatpush1.bf16.msra.mxu0 %v4463
        %5912 = vmatprep.subr.bf16.mxu0 %v4472
        %5913 = vmatpush1.bf16.msra.mxu0 %v4471
        %5914 = vmatprep.mubr.bf16.mxu0 %v376
        %5915 = vmatmul.mubr.bf16.gmra.mrb[0].mxu0 %v375
        %v5916 = vpop.f32.mrb[0].mxu0
        %v5917 = vadd.f32 %v5876, %v5916
        %v5918 = vpop.f32.mrb[0].mxu0
        %v5919 = vadd.f32 %v5878, %v5918
        %v5920 = vpop.f32.mrb[0].mxu0
        %v5921 = vpop.f32.mrb[0].mxu0
        %5922 = vdwg.mxu0
        %5923 = vmatprep.subr.bf16.mxu0 %v4480
        %5924 = vmatpush1.bf16.msra.mxu0 %v4479
        %5925 = vmatprep.subr.bf16.mxu0 %v4488
        %5926 = vmatpush1.bf16.msra.mxu0 %v4487
        %5927 = vmatprep.subr.bf16.mxu0 %v4496
        %5928 = vmatpush1.bf16.msra.mxu0 %v4495
        %5929 = vmatprep.subr.bf16.mxu0 %v4504
        %5930 = vmatpush1.bf16.msra.mxu0 %v4503
        %5931 = vmatprep.subr.bf16.mxu0 %v4512
        %5932 = vmatpush1.bf16.msra.mxu0 %v4511
        %5933 = vmatprep.subr.bf16.mxu0 %v4520
        %5934 = vmatpush1.bf16.msra.mxu0 %v4519
        %5935 = vmatprep.subr.bf16.mxu0 %v4528
        %5936 = vmatpush1.bf16.msra.mxu0 %v4527
        %5937 = vmatprep.subr.bf16.mxu0 %v4536
        %5938 = vmatpush1.bf16.msra.mxu0 %v4535
        %5939 = vmatprep.subr.bf16.mxu0 %v4544
        %5940 = vmatpush1.bf16.msra.mxu0 %v4543
        %5941 = vmatprep.subr.bf16.mxu0 %v4552
        %5942 = vmatpush1.bf16.msra.mxu0 %v4551
        %5943 = vmatprep.subr.bf16.mxu0 %v4560
        %5944 = vmatpush1.bf16.msra.mxu0 %v4559
        %5945 = vmatprep.subr.bf16.mxu0 %v4568
        %5946 = vmatpush1.bf16.msra.mxu0 %v4567
        %5947 = vmatprep.subr.bf16.mxu0 %v4576
        %5948 = vmatpush1.bf16.msra.mxu0 %v4575
        %5949 = vmatprep.subr.bf16.mxu0 %v4584
        %5950 = vmatpush1.bf16.msra.mxu0 %v4583
        %5951 = vmatprep.subr.bf16.mxu0 %v4592
        %5952 = vmatpush1.bf16.msra.mxu0 %v4591
        %5953 = vmatprep.subr.bf16.mxu0 %v4600
        %5954 = vmatpush1.bf16.msra.mxu0 %v4599
        %5955 = vmatprep.mubr.bf16.mxu0 %v378
        %5956 = vmatmul.mubr.bf16.gmra.mrb[0].mxu0 %v377
        %v5957 = vpop.f32.mrb[0].mxu0
        %v5958 = vadd.f32 %v5917, %v5957
        %v5959 = vpop.f32.mrb[0].mxu0
        %v5960 = vadd.f32 %v5919, %v5959
        %v5961 = vpop.f32.mrb[0].mxu0
        %v5962 = vpop.f32.mrb[0].mxu0
        %5963 = vdwg.mxu0
        %5964 = vmatprep.subr.bf16.mxu0 %v4608
        %5965 = vmatpush1.bf16.msra.mxu0 %v4607
        %5966 = vmatprep.subr.bf16.mxu0 %v4616
        %5967 = vmatpush1.bf16.msra.mxu0 %v4615
        %5968 = vmatprep.subr.bf16.mxu0 %v4624
        %5969 = vmatpush1.bf16.msra.mxu0 %v4623
        %5970 = vmatprep.subr.bf16.mxu0 %v4632
        %5971 = vmatpush1.bf16.msra.mxu0 %v4631
        %5972 = vmatprep.subr.bf16.mxu0 %v4640
        %5973 = vmatpush1.bf16.msra.mxu0 %v4639
        %5974 = vmatprep.subr.bf16.mxu0 %v4648
        %5975 = vmatpush1.bf16.msra.mxu0 %v4647
        %5976 = vmatprep.subr.bf16.mxu0 %v4656
        %5977 = vmatpush1.bf16.msra.mxu0 %v4655
        %5978 = vmatprep.subr.bf16.mxu0 %v4664
        %5979 = vmatpush1.bf16.msra.mxu0 %v4663
        %5980 = vmatprep.subr.bf16.mxu0 %v4672
        %5981 = vmatpush1.bf16.msra.mxu0 %v4671
        %5982 = vmatprep.subr.bf16.mxu0 %v4680
        %5983 = vmatpush1.bf16.msra.mxu0 %v4679
        %5984 = vmatprep.subr.bf16.mxu0 %v4688
        %5985 = vmatpush1.bf16.msra.mxu0 %v4687
        %5986 = vmatprep.subr.bf16.mxu0 %v4696
        %5987 = vmatpush1.bf16.msra.mxu0 %v4695
        %5988 = vmatprep.subr.bf16.mxu0 %v4704
        %5989 = vmatpush1.bf16.msra.mxu0 %v4703
        %5990 = vmatprep.subr.bf16.mxu0 %v4712
        %5991 = vmatpush1.bf16.msra.mxu0 %v4711
        %5992 = vmatprep.subr.bf16.mxu0 %v4720
        %5993 = vmatpush1.bf16.msra.mxu0 %v4719
        %5994 = vmatprep.subr.bf16.mxu0 %v4728
        %5995 = vmatpush1.bf16.msra.mxu0 %v4727
        %5996 = vmatprep.mubr.bf16.mxu0 %v380
        %5997 = vmatmul.mubr.bf16.gmra.mrb[0].mxu0 %v379
        %v5998 = vpop.f32.mrb[0].mxu0
        %v5999 = vadd.f32 %v5958, %v5998
        %v6000 = vpop.f32.mrb[0].mxu0
        %v6001 = vadd.f32 %v5960, %v6000
        %v6002 = vpop.f32.mrb[0].mxu0
        %v6003 = vpop.f32.mrb[0].mxu0
        %6004 = vdwg.mxu0
        %6005 = vmatprep.subr.bf16.mxu0 %v4736
        %6006 = vmatpush1.bf16.msra.mxu0 %v4735
        %6007 = vmatprep.subr.bf16.mxu0 %v4744
        %6008 = vmatpush1.bf16.msra.mxu0 %v4743
        %6009 = vmatprep.subr.bf16.mxu0 %v4752
        %6010 = vmatpush1.bf16.msra.mxu0 %v4751
        %6011 = vmatprep.subr.bf16.mxu0 %v4760
        %6012 = vmatpush1.bf16.msra.mxu0 %v4759
        %6013 = vmatprep.subr.bf16.mxu0 %v4768
        %6014 = vmatpush1.bf16.msra.mxu0 %v4767
        %6015 = vmatprep.subr.bf16.mxu0 %v4776
        %6016 = vmatpush1.bf16.msra.mxu0 %v4775
        %6017 = vmatprep.subr.bf16.mxu0 %v4784
        %6018 = vmatpush1.bf16.msra.mxu0 %v4783
        %6019 = vmatprep.subr.bf16.mxu0 %v4792
        %6020 = vmatpush1.bf16.msra.mxu0 %v4791
        %6021 = vmatprep.subr.bf16.mxu0 %v4800
        %6022 = vmatpush1.bf16.msra.mxu0 %v4799
        %6023 = vmatprep.subr.bf16.mxu0 %v4808
        %6024 = vmatpush1.bf16.msra.mxu0 %v4807
        %6025 = vmatprep.subr.bf16.mxu0 %v4816
        %6026 = vmatpush1.bf16.msra.mxu0 %v4815
        %6027 = vmatprep.subr.bf16.mxu0 %v4824
        %6028 = vmatpush1.bf16.msra.mxu0 %v4823
        %6029 = vmatprep.subr.bf16.mxu0 %v4832
        %6030 = vmatpush1.bf16.msra.mxu0 %v4831
        %6031 = vmatprep.subr.bf16.mxu0 %v4840
        %6032 = vmatpush1.bf16.msra.mxu0 %v4839
        %6033 = vmatprep.subr.bf16.mxu0 %v4848
        %6034 = vmatpush1.bf16.msra.mxu0 %v4847
        %6035 = vmatprep.subr.bf16.mxu0 %v4856
        %6036 = vmatpush1.bf16.msra.mxu0 %v4855
        %6037 = vmatprep.mubr.bf16.mxu0 %v382
        %6038 = vmatmul.mubr.bf16.gmra.mrb[0].mxu0 %v381
        %v6039 = vpop.f32.mrb[0].mxu0
        %v6040 = vadd.f32 %v5999, %v6039
        %v6041 = vpop.f32.mrb[0].mxu0
        %v6042 = vadd.f32 %v6001, %v6041
        %v6043 = vpop.f32.mrb[0].mxu0
        %v6044 = vpop.f32.mrb[0].mxu0
        %6045 = vdwg.mxu0
        %6046 = vmatprep.subr.bf16.mxu0 %v3970
        %6047 = vmatpush1.bf16.msra.mxu0 %v3969
        %6048 = vmatprep.subr.bf16.mxu0 %v3978
        %6049 = vmatpush1.bf16.msra.mxu0 %v3977
        %6050 = vmatprep.subr.bf16.mxu0 %v3986
        %6051 = vmatpush1.bf16.msra.mxu0 %v3985
        %6052 = vmatprep.subr.bf16.mxu0 %v3994
        %6053 = vmatpush1.bf16.msra.mxu0 %v3993
        %6054 = vmatprep.subr.bf16.mxu0 %v4002
        %6055 = vmatpush1.bf16.msra.mxu0 %v4001
        %6056 = vmatprep.subr.bf16.mxu0 %v4010
        %6057 = vmatpush1.bf16.msra.mxu0 %v4009
        %6058 = vmatprep.subr.bf16.mxu0 %v4018
        %6059 = vmatpush1.bf16.msra.mxu0 %v4017
        %6060 = vmatprep.subr.bf16.mxu0 %v4026
        %6061 = vmatpush1.bf16.msra.mxu0 %v4025
        %6062 = vmatprep.subr.bf16.mxu0 %v4034
        %6063 = vmatpush1.bf16.msra.mxu0 %v4033
        %6064 = vmatprep.subr.bf16.mxu0 %v4042
        %6065 = vmatpush1.bf16.msra.mxu0 %v4041
        %6066 = vmatprep.subr.bf16.mxu0 %v4050
        %6067 = vmatpush1.bf16.msra.mxu0 %v4049
        %6068 = vmatprep.subr.bf16.mxu0 %v4058
        %6069 = vmatpush1.bf16.msra.mxu0 %v4057
        %6070 = vmatprep.subr.bf16.mxu0 %v4066
        %6071 = vmatpush1.bf16.msra.mxu0 %v4065
        %6072 = vmatprep.subr.bf16.mxu0 %v4074
        %6073 = vmatpush1.bf16.msra.mxu0 %v4073
        %6074 = vmatprep.subr.bf16.mxu0 %v4082
        %6075 = vmatpush1.bf16.msra.mxu0 %v4081
        %6076 = vmatprep.subr.bf16.mxu0 %v4090
        %6077 = vmatpush1.bf16.msra.mxu0 %v4089
        %6078 = vmatprep.mubr.bf16.mxu0 %v370
        %6079 = vmatmul.mubr.bf16.gmra.mrb[0].mxu0 %v369
        %v6080 = vpop.f32.mrb[0].mxu0
        %v6081 = vadd.f32 0.0, %v6080
        %v6082 = vpop.f32.mrb[0].mxu0
        %v6083 = vadd.f32 0.0, %v6082
        %v6084 = vpop.f32.mrb[0].mxu0
        %v6085 = vpop.f32.mrb[0].mxu0
        %6086 = vdwg.mxu0
        %6087 = vmatprep.subr.bf16.mxu0 %v4098
        %6088 = vmatpush1.bf16.msra.mxu0 %v4097
        %6089 = vmatprep.subr.bf16.mxu0 %v4106
        %6090 = vmatpush1.bf16.msra.mxu0 %v4105
        %6091 = vmatprep.subr.bf16.mxu0 %v4114
        %6092 = vmatpush1.bf16.msra.mxu0 %v4113
        %6093 = vmatprep.subr.bf16.mxu0 %v4122
        %6094 = vmatpush1.bf16.msra.mxu0 %v4121
        %6095 = vmatprep.subr.bf16.mxu0 %v4130
        %6096 = vmatpush1.bf16.msra.mxu0 %v4129
        %6097 = vmatprep.subr.bf16.mxu0 %v4138
        %6098 = vmatpush1.bf16.msra.mxu0 %v4137
        %6099 = vmatprep.subr.bf16.mxu0 %v4146
        %6100 = vmatpush1.bf16.msra.mxu0 %v4145
        %6101 = vmatprep.subr.bf16.mxu0 %v4154
        %6102 = vmatpush1.bf16.msra.mxu0 %v4153
        %6103 = vmatprep.subr.bf16.mxu0 %v4162
        %6104 = vmatpush1.bf16.msra.mxu0 %v4161
        %6105 = vmatprep.subr.bf16.mxu0 %v4170
        %6106 = vmatpush1.bf16.msra.mxu0 %v4169
        %6107 = vmatprep.subr.bf16.mxu0 %v4178
        %6108 = vmatpush1.bf16.msra.mxu0 %v4177
        %6109 = vmatprep.subr.bf16.mxu0 %v4186
        %6110 = vmatpush1.bf16.msra.mxu0 %v4185
        %6111 = vmatprep.subr.bf16.mxu0 %v4194
        %6112 = vmatpush1.bf16.msra.mxu0 %v4193
        %6113 = vmatprep.subr.bf16.mxu0 %v4202
        %6114 = vmatpush1.bf16.msra.mxu0 %v4201
        %6115 = vmatprep.subr.bf16.mxu0 %v4210
        %6116 = vmatpush1.bf16.msra.mxu0 %v4209
        %6117 = vmatprep.subr.bf16.mxu0 %v4218
        %6118 = vmatpush1.bf16.msra.mxu0 %v4217
        %6119 = vmatprep.mubr.bf16.mxu0 %v372
        %6120 = vmatmul.mubr.bf16.gmra.mrb[0].mxu0 %v371
        %v6121 = vpop.f32.mrb[0].mxu0
        %v6122 = vadd.f32 %v6081, %v6121
        %v6123 = vpop.f32.mrb[0].mxu0
        %v6124 = vadd.f32 %v6083, %v6123
        %v6125 = vpop.f32.mrb[0].mxu0
        %v6126 = vpop.f32.mrb[0].mxu0
        %6127 = vdwg.mxu0
        %6128 = vmatprep.subr.bf16.mxu0 %v4226
        %6129 = vmatpush1.bf16.msra.mxu0 %v4225
        %6130 = vmatprep.subr.bf16.mxu0 %v4234
        %6131 = vmatpush1.bf16.msra.mxu0 %v4233
        %6132 = vmatprep.subr.bf16.mxu0 %v4242
        %6133 = vmatpush1.bf16.msra.mxu0 %v4241
        %6134 = vmatprep.subr.bf16.mxu0 %v4250
        %6135 = vmatpush1.bf16.msra.mxu0 %v4249
        %6136 = vmatprep.subr.bf16.mxu0 %v4258
        %6137 = vmatpush1.bf16.msra.mxu0 %v4257
        %6138 = vmatprep.subr.bf16.mxu0 %v4266
        %6139 = vmatpush1.bf16.msra.mxu0 %v4265
        %6140 = vmatprep.subr.bf16.mxu0 %v4274
        %6141 = vmatpush1.bf16.msra.mxu0 %v4273
        %6142 = vmatprep.subr.bf16.mxu0 %v4282
        %6143 = vmatpush1.bf16.msra.mxu0 %v4281
        %6144 = vmatprep.subr.bf16.mxu0 %v4290
        %6145 = vmatpush1.bf16.msra.mxu0 %v4289
        %6146 = vmatprep.subr.bf16.mxu0 %v4298
        %6147 = vmatpush1.bf16.msra.mxu0 %v4297
        %6148 = vmatprep.subr.bf16.mxu0 %v4306
        %6149 = vmatpush1.bf16.msra.mxu0 %v4305
        %6150 = vmatprep.subr.bf16.mxu0 %v4314
        %6151 = vmatpush1.bf16.msra.mxu0 %v4313
        %6152 = vmatprep.subr.bf16.mxu0 %v4322
        %6153 = vmatpush1.bf16.msra.mxu0 %v4321
        %6154 = vmatprep.subr.bf16.mxu0 %v4330
        %6155 = vmatpush1.bf16.msra.mxu0 %v4329
        %6156 = vmatprep.subr.bf16.mxu0 %v4338
        %6157 = vmatpush1.bf16.msra.mxu0 %v4337
        %6158 = vmatprep.subr.bf16.mxu0 %v4346
        %6159 = vmatpush1.bf16.msra.mxu0 %v4345
        %6160 = vmatprep.mubr.bf16.mxu0 %v374
        %6161 = vmatmul.mubr.bf16.gmra.mrb[0].mxu0 %v373
        %v6162 = vpop.f32.mrb[0].mxu0
        %v6163 = vadd.f32 %v6122, %v6162
        %v6164 = vpop.f32.mrb[0].mxu0
        %v6165 = vadd.f32 %v6124, %v6164
        %v6166 = vpop.f32.mrb[0].mxu0
        %v6167 = vpop.f32.mrb[0].mxu0
        %6168 = vdwg.mxu0
        %6169 = vmatprep.subr.bf16.mxu0 %v4354
        %6170 = vmatpush1.bf16.msra.mxu0 %v4353
        %6171 = vmatprep.subr.bf16.mxu0 %v4362
        %6172 = vmatpush1.bf16.msra.mxu0 %v4361
        %6173 = vmatprep.subr.bf16.mxu0 %v4370
        %6174 = vmatpush1.bf16.msra.mxu0 %v4369
        %6175 = vmatprep.subr.bf16.mxu0 %v4378
        %6176 = vmatpush1.bf16.msra.mxu0 %v4377
        %6177 = vmatprep.subr.bf16.mxu0 %v4386
        %6178 = vmatpush1.bf16.msra.mxu0 %v4385
        %6179 = vmatprep.subr.bf16.mxu0 %v4394
        %6180 = vmatpush1.bf16.msra.mxu0 %v4393
        %6181 = vmatprep.subr.bf16.mxu0 %v4402
        %6182 = vmatpush1.bf16.msra.mxu0 %v4401
        %6183 = vmatprep.subr.bf16.mxu0 %v4410
        %6184 = vmatpush1.bf16.msra.mxu0 %v4409
        %6185 = vmatprep.subr.bf16.mxu0 %v4418
        %6186 = vmatpush1.bf16.msra.mxu0 %v4417
        %6187 = vmatprep.subr.bf16.mxu0 %v4426
        %6188 = vmatpush1.bf16.msra.mxu0 %v4425
        %6189 = vmatprep.subr.bf16.mxu0 %v4434
        %6190 = vmatpush1.bf16.msra.mxu0 %v4433
        %6191 = vmatprep.subr.bf16.mxu0 %v4442
        %6192 = vmatpush1.bf16.msra.mxu0 %v4441
        %6193 = vmatprep.subr.bf16.mxu0 %v4450
        %6194 = vmatpush1.bf16.msra.mxu0 %v4449
        %6195 = vmatprep.subr.bf16.mxu0 %v4458
        %6196 = vmatpush1.bf16.msra.mxu0 %v4457
        %6197 = vmatprep.subr.bf16.mxu0 %v4466
        %6198 = vmatpush1.bf16.msra.mxu0 %v4465
        %6199 = vmatprep.subr.bf16.mxu0 %v4474
        %6200 = vmatpush1.bf16.msra.mxu0 %v4473
        %6201 = vmatprep.mubr.bf16.mxu0 %v376
        %6202 = vmatmul.mubr.bf16.gmra.mrb[0].mxu0 %v375
        %v6203 = vpop.f32.mrb[0].mxu0
        %v6204 = vadd.f32 %v6163, %v6203
        %v6205 = vpop.f32.mrb[0].mxu0
        %v6206 = vadd.f32 %v6165, %v6205
        %v6207 = vpop.f32.mrb[0].mxu0
        %v6208 = vpop.f32.mrb[0].mxu0
        %6209 = vdwg.mxu0
        %6210 = vmatprep.subr.bf16.mxu0 %v4482
        %6211 = vmatpush1.bf16.msra.mxu0 %v4481
        %6212 = vmatprep.subr.bf16.mxu0 %v4490
        %6213 = vmatpush1.bf16.msra.mxu0 %v4489
        %6214 = vmatprep.subr.bf16.mxu0 %v4498
        %6215 = vmatpush1.bf16.msra.mxu0 %v4497
        %6216 = vmatprep.subr.bf16.mxu0 %v4506
        %6217 = vmatpush1.bf16.msra.mxu0 %v4505
        %6218 = vmatprep.subr.bf16.mxu0 %v4514
        %6219 = vmatpush1.bf16.msra.mxu0 %v4513
        %6220 = vmatprep.subr.bf16.mxu0 %v4522
        %6221 = vmatpush1.bf16.msra.mxu0 %v4521
        %6222 = vmatprep.subr.bf16.mxu0 %v4530
        %6223 = vmatpush1.bf16.msra.mxu0 %v4529
        %6224 = vmatprep.subr.bf16.mxu0 %v4538
        %6225 = vmatpush1.bf16.msra.mxu0 %v4537
        %6226 = vmatprep.subr.bf16.mxu0 %v4546
        %6227 = vmatpush1.bf16.msra.mxu0 %v4545
        %6228 = vmatprep.subr.bf16.mxu0 %v4554
        %6229 = vmatpush1.bf16.msra.mxu0 %v4553
        %6230 = vmatprep.subr.bf16.mxu0 %v4562
        %6231 = vmatpush1.bf16.msra.mxu0 %v4561
        %6232 = vmatprep.subr.bf16.mxu0 %v4570
        %6233 = vmatpush1.bf16.msra.mxu0 %v4569
        %6234 = vmatprep.subr.bf16.mxu0 %v4578
        %6235 = vmatpush1.bf16.msra.mxu0 %v4577
        %6236 = vmatprep.subr.bf16.mxu0 %v4586
        %6237 = vmatpush1.bf16.msra.mxu0 %v4585
        %6238 = vmatprep.subr.bf16.mxu0 %v4594
        %6239 = vmatpush1.bf16.msra.mxu0 %v4593
        %6240 = vmatprep.subr.bf16.mxu0 %v4602
        %6241 = vmatpush1.bf16.msra.mxu0 %v4601
        %6242 = vmatprep.mubr.bf16.mxu0 %v378
        %6243 = vmatmul.mubr.bf16.gmra.mrb[0].mxu0 %v377
        %v6244 = vpop.f32.mrb[0].mxu0
        %v6245 = vadd.f32 %v6204, %v6244
        %v6246 = vpop.f32.mrb[0].mxu0
        %v6247 = vadd.f32 %v6206, %v6246
        %v6248 = vpop.f32.mrb[0].mxu0
        %v6249 = vpop.f32.mrb[0].mxu0
        %6250 = vdwg.mxu0
        %6251 = vmatprep.subr.bf16.mxu0 %v4610
        %6252 = vmatpush1.bf16.msra.mxu0 %v4609
        %6253 = vmatprep.subr.bf16.mxu0 %v4618
        %6254 = vmatpush1.bf16.msra.mxu0 %v4617
        %6255 = vmatprep.subr.bf16.mxu0 %v4626
        %6256 = vmatpush1.bf16.msra.mxu0 %v4625
        %6257 = vmatprep.subr.bf16.mxu0 %v4634
        %6258 = vmatpush1.bf16.msra.mxu0 %v4633
        %6259 = vmatprep.subr.bf16.mxu0 %v4642
        %6260 = vmatpush1.bf16.msra.mxu0 %v4641
        %6261 = vmatprep.subr.bf16.mxu0 %v4650
        %6262 = vmatpush1.bf16.msra.mxu0 %v4649
        %6263 = vmatprep.subr.bf16.mxu0 %v4658
        %6264 = vmatpush1.bf16.msra.mxu0 %v4657
        %6265 = vmatprep.subr.bf16.mxu0 %v4666
        %6266 = vmatpush1.bf16.msra.mxu0 %v4665
        %6267 = vmatprep.subr.bf16.mxu0 %v4674
        %6268 = vmatpush1.bf16.msra.mxu0 %v4673
        %6269 = vmatprep.subr.bf16.mxu0 %v4682
        %6270 = vmatpush1.bf16.msra.mxu0 %v4681
        %6271 = vmatprep.subr.bf16.mxu0 %v4690
        %6272 = vmatpush1.bf16.msra.mxu0 %v4689
        %6273 = vmatprep.subr.bf16.mxu0 %v4698
        %6274 = vmatpush1.bf16.msra.mxu0 %v4697
        %6275 = vmatprep.subr.bf16.mxu0 %v4706
        %6276 = vmatpush1.bf16.msra.mxu0 %v4705
        %6277 = vmatprep.subr.bf16.mxu0 %v4714
        %6278 = vmatpush1.bf16.msra.mxu0 %v4713
        %6279 = vmatprep.subr.bf16.mxu0 %v4722
        %6280 = vmatpush1.bf16.msra.mxu0 %v4721
        %6281 = vmatprep.subr.bf16.mxu0 %v4730
        %6282 = vmatpush1.bf16.msra.mxu0 %v4729
        %6283 = vmatprep.mubr.bf16.mxu0 %v380
        %6284 = vmatmul.mubr.bf16.gmra.mrb[0].mxu0 %v379
        %v6285 = vpop.f32.mrb[0].mxu0
        %v6286 = vadd.f32 %v6245, %v6285
        %v6287 = vpop.f32.mrb[0].mxu0
        %v6288 = vadd.f32 %v6247, %v6287
        %v6289 = vpop.f32.mrb[0].mxu0
        %v6290 = vpop.f32.mrb[0].mxu0
        %6291 = vdwg.mxu0
        %6292 = vmatprep.subr.bf16.mxu0 %v4738
        %6293 = vmatpush1.bf16.msra.mxu0 %v4737
        %6294 = vmatprep.subr.bf16.mxu0 %v4746
        %6295 = vmatpush1.bf16.msra.mxu0 %v4745
        %6296 = vmatprep.subr.bf16.mxu0 %v4754
        %6297 = vmatpush1.bf16.msra.mxu0 %v4753
        %6298 = vmatprep.subr.bf16.mxu0 %v4762
        %6299 = vmatpush1.bf16.msra.mxu0 %v4761
        %6300 = vmatprep.subr.bf16.mxu0 %v4770
        %6301 = vmatpush1.bf16.msra.mxu0 %v4769
        %6302 = vmatprep.subr.bf16.mxu0 %v4778
        %6303 = vmatpush1.bf16.msra.mxu0 %v4777
        %6304 = vmatprep.subr.bf16.mxu0 %v4786
        %6305 = vmatpush1.bf16.msra.mxu0 %v4785
        %6306 = vmatprep.subr.bf16.mxu0 %v4794
        %6307 = vmatpush1.bf16.msra.mxu0 %v4793
        %6308 = vmatprep.subr.bf16.mxu0 %v4802
        %6309 = vmatpush1.bf16.msra.mxu0 %v4801
        %6310 = vmatprep.subr.bf16.mxu0 %v4810
        %6311 = vmatpush1.bf16.msra.mxu0 %v4809
        %6312 = vmatprep.subr.bf16.mxu0 %v4818
        %6313 = vmatpush1.bf16.msra.mxu0 %v4817
        %6314 = vmatprep.subr.bf16.mxu0 %v4826
        %6315 = vmatpush1.bf16.msra.mxu0 %v4825
        %6316 = vmatprep.subr.bf16.mxu0 %v4834
        %6317 = vmatpush1.bf16.msra.mxu0 %v4833
        %6318 = vmatprep.subr.bf16.mxu0 %v4842
        %6319 = vmatpush1.bf16.msra.mxu0 %v4841
        %6320 = vmatprep.subr.bf16.mxu0 %v4850
        %6321 = vmatpush1.bf16.msra.mxu0 %v4849
        %6322 = vmatprep.subr.bf16.mxu0 %v4858
        %6323 = vmatpush1.bf16.msra.mxu0 %v4857
        %6324 = vmatprep.mubr.bf16.mxu0 %v382
        %6325 = vmatmul.mubr.bf16.gmra.mrb[0].mxu0 %v381
        %v6326 = vpop.f32.mrb[0].mxu0
        %v6327 = vadd.f32 %v6286, %v6326
        %v6328 = vpop.f32.mrb[0].mxu0
        %v6329 = vadd.f32 %v6288, %v6328
        %v6330 = vpop.f32.mrb[0].mxu0
        %v6331 = vpop.f32.mrb[0].mxu0
        %6332 = vdwg.mxu0
        %6333 = vmatprep.subr.bf16.mxu0 %v3972
        %6334 = vmatpush1.bf16.msra.mxu0 %v3971
        %6335 = vmatprep.subr.bf16.mxu0 %v3980
        %6336 = vmatpush1.bf16.msra.mxu0 %v3979
        %6337 = vmatprep.subr.bf16.mxu0 %v3988
        %6338 = vmatpush1.bf16.msra.mxu0 %v3987
        %6339 = vmatprep.subr.bf16.mxu0 %v3996
        %6340 = vmatpush1.bf16.msra.mxu0 %v3995
        %6341 = vmatprep.subr.bf16.mxu0 %v4004
        %6342 = vmatpush1.bf16.msra.mxu0 %v4003
        %6343 = vmatprep.subr.bf16.mxu0 %v4012
        %6344 = vmatpush1.bf16.msra.mxu0 %v4011
        %6345 = vmatprep.subr.bf16.mxu0 %v4020
        %6346 = vmatpush1.bf16.msra.mxu0 %v4019
        %6347 = vmatprep.subr.bf16.mxu0 %v4028
        %6348 = vmatpush1.bf16.msra.mxu0 %v4027
        %6349 = vmatprep.subr.bf16.mxu0 %v4036
        %6350 = vmatpush1.bf16.msra.mxu0 %v4035
        %6351 = vmatprep.subr.bf16.mxu0 %v4044
        %6352 = vmatpush1.bf16.msra.mxu0 %v4043
        %6353 = vmatprep.subr.bf16.mxu0 %v4052
        %6354 = vmatpush1.bf16.msra.mxu0 %v4051
        %6355 = vmatprep.subr.bf16.mxu0 %v4060
        %6356 = vmatpush1.bf16.msra.mxu0 %v4059
        %6357 = vmatprep.subr.bf16.mxu0 %v4068
        %6358 = vmatpush1.bf16.msra.mxu0 %v4067
        %6359 = vmatprep.subr.bf16.mxu0 %v4076
        %6360 = vmatpush1.bf16.msra.mxu0 %v4075
        %6361 = vmatprep.subr.bf16.mxu0 %v4084
        %6362 = vmatpush1.bf16.msra.mxu0 %v4083
        %6363 = vmatprep.subr.bf16.mxu0 %v4092
        %6364 = vmatpush1.bf16.msra.mxu0 %v4091
        %6365 = vmatprep.mubr.bf16.mxu0 %v370
        %6366 = vmatmul.mubr.bf16.gmra.mrb[0].mxu0 %v369
        %v6367 = vpop.f32.mrb[0].mxu0
        %v6368 = vadd.f32 0.0, %v6367
        %v6369 = vpop.f32.mrb[0].mxu0
        %v6370 = vadd.f32 0.0, %v6369
        %v6371 = vpop.f32.mrb[0].mxu0
        %v6372 = vpop.f32.mrb[0].mxu0
        %6373 = vdwg.mxu0
        %6374 = vmatprep.subr.bf16.mxu0 %v4100
        %6375 = vmatpush1.bf16.msra.mxu0 %v4099
        %6376 = vmatprep.subr.bf16.mxu0 %v4108
        %6377 = vmatpush1.bf16.msra.mxu0 %v4107
        %6378 = vmatprep.subr.bf16.mxu0 %v4116
        %6379 = vmatpush1.bf16.msra.mxu0 %v4115
        %6380 = vmatprep.subr.bf16.mxu0 %v4124
        %6381 = vmatpush1.bf16.msra.mxu0 %v4123
        %6382 = vmatprep.subr.bf16.mxu0 %v4132
        %6383 = vmatpush1.bf16.msra.mxu0 %v4131
        %6384 = vmatprep.subr.bf16.mxu0 %v4140
        %6385 = vmatpush1.bf16.msra.mxu0 %v4139
        %6386 = vmatprep.subr.bf16.mxu0 %v4148
        %6387 = vmatpush1.bf16.msra.mxu0 %v4147
        %6388 = vmatprep.subr.bf16.mxu0 %v4156
        %6389 = vmatpush1.bf16.msra.mxu0 %v4155
        %6390 = vmatprep.subr.bf16.mxu0 %v4164
        %6391 = vmatpush1.bf16.msra.mxu0 %v4163
        %6392 = vmatprep.subr.bf16.mxu0 %v4172
        %6393 = vmatpush1.bf16.msra.mxu0 %v4171
        %6394 = vmatprep.subr.bf16.mxu0 %v4180
        %6395 = vmatpush1.bf16.msra.mxu0 %v4179
        %6396 = vmatprep.subr.bf16.mxu0 %v4188
        %6397 = vmatpush1.bf16.msra.mxu0 %v4187
        %6398 = vmatprep.subr.bf16.mxu0 %v4196
        %6399 = vmatpush1.bf16.msra.mxu0 %v4195
        %6400 = vmatprep.subr.bf16.mxu0 %v4204
        %6401 = vmatpush1.bf16.msra.mxu0 %v4203
        %6402 = vmatprep.subr.bf16.mxu0 %v4212
        %6403 = vmatpush1.bf16.msra.mxu0 %v4211
        %6404 = vmatprep.subr.bf16.mxu0 %v4220
        %6405 = vmatpush1.bf16.msra.mxu0 %v4219
        %6406 = vmatprep.mubr.bf16.mxu0 %v372
        %6407 = vmatmul.mubr.bf16.gmra.mrb[0].mxu0 %v371
        %v6408 = vpop.f32.mrb[0].mxu0
        %v6409 = vadd.f32 %v6368, %v6408
        %v6410 = vpop.f32.mrb[0].mxu0
        %v6411 = vadd.f32 %v6370, %v6410
        %v6412 = vpop.f32.mrb[0].mxu0
        %v6413 = vpop.f32.mrb[0].mxu0
        %6414 = vdwg.mxu0
        %6415 = vmatprep.subr.bf16.mxu0 %v4228
        %6416 = vmatpush1.bf16.msra.mxu0 %v4227
        %6417 = vmatprep.subr.bf16.mxu0 %v4236
        %6418 = vmatpush1.bf16.msra.mxu0 %v4235
        %6419 = vmatprep.subr.bf16.mxu0 %v4244
        %6420 = vmatpush1.bf16.msra.mxu0 %v4243
        %6421 = vmatprep.subr.bf16.mxu0 %v4252
        %6422 = vmatpush1.bf16.msra.mxu0 %v4251
        %6423 = vmatprep.subr.bf16.mxu0 %v4260
        %6424 = vmatpush1.bf16.msra.mxu0 %v4259
        %6425 = vmatprep.subr.bf16.mxu0 %v4268
        %6426 = vmatpush1.bf16.msra.mxu0 %v4267
        %6427 = vmatprep.subr.bf16.mxu0 %v4276
        %6428 = vmatpush1.bf16.msra.mxu0 %v4275
        %6429 = vmatprep.subr.bf16.mxu0 %v4284
        %6430 = vmatpush1.bf16.msra.mxu0 %v4283
        %6431 = vmatprep.subr.bf16.mxu0 %v4292
        %6432 = vmatpush1.bf16.msra.mxu0 %v4291
        %6433 = vmatprep.subr.bf16.mxu0 %v4300
        %6434 = vmatpush1.bf16.msra.mxu0 %v4299
        %6435 = vmatprep.subr.bf16.mxu0 %v4308
        %6436 = vmatpush1.bf16.msra.mxu0 %v4307
        %6437 = vmatprep.subr.bf16.mxu0 %v4316
        %6438 = vmatpush1.bf16.msra.mxu0 %v4315
        %6439 = vmatprep.subr.bf16.mxu0 %v4324
        %6440 = vmatpush1.bf16.msra.mxu0 %v4323
        %6441 = vmatprep.subr.bf16.mxu0 %v4332
        %6442 = vmatpush1.bf16.msra.mxu0 %v4331
        %6443 = vmatprep.subr.bf16.mxu0 %v4340
        %6444 = vmatpush1.bf16.msra.mxu0 %v4339
        %6445 = vmatprep.subr.bf16.mxu0 %v4348
        %6446 = vmatpush1.bf16.msra.mxu0 %v4347
        %6447 = vmatprep.mubr.bf16.mxu0 %v374
        %6448 = vmatmul.mubr.bf16.gmra.mrb[0].mxu0 %v373
        %v6449 = vpop.f32.mrb[0].mxu0
        %v6450 = vadd.f32 %v6409, %v6449
        %v6451 = vpop.f32.mrb[0].mxu0
        %v6452 = vadd.f32 %v6411, %v6451
        %v6453 = vpop.f32.mrb[0].mxu0
        %v6454 = vpop.f32.mrb[0].mxu0
        %6455 = vdwg.mxu0
        %6456 = vmatprep.subr.bf16.mxu0 %v4356
        %6457 = vmatpush1.bf16.msra.mxu0 %v4355
        %6458 = vmatprep.subr.bf16.mxu0 %v4364
        %6459 = vmatpush1.bf16.msra.mxu0 %v4363
        %6460 = vmatprep.subr.bf16.mxu0 %v4372
        %6461 = vmatpush1.bf16.msra.mxu0 %v4371
        %6462 = vmatprep.subr.bf16.mxu0 %v4380
        %6463 = vmatpush1.bf16.msra.mxu0 %v4379
        %6464 = vmatprep.subr.bf16.mxu0 %v4388
        %6465 = vmatpush1.bf16.msra.mxu0 %v4387
        %6466 = vmatprep.subr.bf16.mxu0 %v4396
        %6467 = vmatpush1.bf16.msra.mxu0 %v4395
        %6468 = vmatprep.subr.bf16.mxu0 %v4404
        %6469 = vmatpush1.bf16.msra.mxu0 %v4403
        %6470 = vmatprep.subr.bf16.mxu0 %v4412
        %6471 = vmatpush1.bf16.msra.mxu0 %v4411
        %6472 = vmatprep.subr.bf16.mxu0 %v4420
        %6473 = vmatpush1.bf16.msra.mxu0 %v4419
        %6474 = vmatprep.subr.bf16.mxu0 %v4428
        %6475 = vmatpush1.bf16.msra.mxu0 %v4427
        %6476 = vmatprep.subr.bf16.mxu0 %v4436
        %6477 = vmatpush1.bf16.msra.mxu0 %v4435
        %6478 = vmatprep.subr.bf16.mxu0 %v4444
        %6479 = vmatpush1.bf16.msra.mxu0 %v4443
        %6480 = vmatprep.subr.bf16.mxu0 %v4452
        %6481 = vmatpush1.bf16.msra.mxu0 %v4451
        %6482 = vmatprep.subr.bf16.mxu0 %v4460
        %6483 = vmatpush1.bf16.msra.mxu0 %v4459
        %6484 = vmatprep.subr.bf16.mxu0 %v4468
        %6485 = vmatpush1.bf16.msra.mxu0 %v4467
        %6486 = vmatprep.subr.bf16.mxu0 %v4476
        %6487 = vmatpush1.bf16.msra.mxu0 %v4475
        %6488 = vmatprep.mubr.bf16.mxu0 %v376
        %6489 = vmatmul.mubr.bf16.gmra.mrb[0].mxu0 %v375
        %v6490 = vpop.f32.mrb[0].mxu0
        %v6491 = vadd.f32 %v6450, %v6490
        %v6492 = vpop.f32.mrb[0].mxu0
        %v6493 = vadd.f32 %v6452, %v6492
        %v6494 = vpop.f32.mrb[0].mxu0
        %v6495 = vpop.f32.mrb[0].mxu0
        %6496 = vdwg.mxu0
        %6497 = vmatprep.subr.bf16.mxu0 %v4484
        %6498 = vmatpush1.bf16.msra.mxu0 %v4483
        %6499 = vmatprep.subr.bf16.mxu0 %v4492
        %6500 = vmatpush1.bf16.msra.mxu0 %v4491
        %6501 = vmatprep.subr.bf16.mxu0 %v4500
        %6502 = vmatpush1.bf16.msra.mxu0 %v4499
        %6503 = vmatprep.subr.bf16.mxu0 %v4508
        %6504 = vmatpush1.bf16.msra.mxu0 %v4507
        %6505 = vmatprep.subr.bf16.mxu0 %v4516
        %6506 = vmatpush1.bf16.msra.mxu0 %v4515
        %6507 = vmatprep.subr.bf16.mxu0 %v4524
        %6508 = vmatpush1.bf16.msra.mxu0 %v4523
        %6509 = vmatprep.subr.bf16.mxu0 %v4532
        %6510 = vmatpush1.bf16.msra.mxu0 %v4531
        %6511 = vmatprep.subr.bf16.mxu0 %v4540
        %6512 = vmatpush1.bf16.msra.mxu0 %v4539
        %6513 = vmatprep.subr.bf16.mxu0 %v4548
        %6514 = vmatpush1.bf16.msra.mxu0 %v4547
        %6515 = vmatprep.subr.bf16.mxu0 %v4556
        %6516 = vmatpush1.bf16.msra.mxu0 %v4555
        %6517 = vmatprep.subr.bf16.mxu0 %v4564
        %6518 = vmatpush1.bf16.msra.mxu0 %v4563
        %6519 = vmatprep.subr.bf16.mxu0 %v4572
        %6520 = vmatpush1.bf16.msra.mxu0 %v4571
        %6521 = vmatprep.subr.bf16.mxu0 %v4580
        %6522 = vmatpush1.bf16.msra.mxu0 %v4579
        %6523 = vmatprep.subr.bf16.mxu0 %v4588
        %6524 = vmatpush1.bf16.msra.mxu0 %v4587
        %6525 = vmatprep.subr.bf16.mxu0 %v4596
        %6526 = vmatpush1.bf16.msra.mxu0 %v4595
        %6527 = vmatprep.subr.bf16.mxu0 %v4604
        %6528 = vmatpush1.bf16.msra.mxu0 %v4603
        %6529 = vmatprep.mubr.bf16.mxu0 %v378
        %6530 = vmatmul.mubr.bf16.gmra.mrb[0].mxu0 %v377
        %v6531 = vpop.f32.mrb[0].mxu0
        %v6532 = vadd.f32 %v6491, %v6531
        %v6533 = vpop.f32.mrb[0].mxu0
        %v6534 = vadd.f32 %v6493, %v6533
        %v6535 = vpop.f32.mrb[0].mxu0
        %v6536 = vpop.f32.mrb[0].mxu0
        %6537 = vdwg.mxu0
        %6538 = vmatprep.subr.bf16.mxu0 %v4612
        %6539 = vmatpush1.bf16.msra.mxu0 %v4611
        %6540 = vmatprep.subr.bf16.mxu0 %v4620
        %6541 = vmatpush1.bf16.msra.mxu0 %v4619
        %6542 = vmatprep.subr.bf16.mxu0 %v4628
        %6543 = vmatpush1.bf16.msra.mxu0 %v4627
        %6544 = vmatprep.subr.bf16.mxu0 %v4636
        %6545 = vmatpush1.bf16.msra.mxu0 %v4635
        %6546 = vmatprep.subr.bf16.mxu0 %v4644
        %6547 = vmatpush1.bf16.msra.mxu0 %v4643
        %6548 = vmatprep.subr.bf16.mxu0 %v4652
        %6549 = vmatpush1.bf16.msra.mxu0 %v4651
        %6550 = vmatprep.subr.bf16.mxu0 %v4660
        %6551 = vmatpush1.bf16.msra.mxu0 %v4659
        %6552 = vmatprep.subr.bf16.mxu0 %v4668
        %6553 = vmatpush1.bf16.msra.mxu0 %v4667
        %6554 = vmatprep.subr.bf16.mxu0 %v4676
        %6555 = vmatpush1.bf16.msra.mxu0 %v4675
        %6556 = vmatprep.subr.bf16.mxu0 %v4684
        %6557 = vmatpush1.bf16.msra.mxu0 %v4683
        %6558 = vmatprep.subr.bf16.mxu0 %v4692
        %6559 = vmatpush1.bf16.msra.mxu0 %v4691
        %6560 = vmatprep.subr.bf16.mxu0 %v4700
        %6561 = vmatpush1.bf16.msra.mxu0 %v4699
        %6562 = vmatprep.subr.bf16.mxu0 %v4708
        %6563 = vmatpush1.bf16.msra.mxu0 %v4707
        %6564 = vmatprep.subr.bf16.mxu0 %v4716
        %6565 = vmatpush1.bf16.msra.mxu0 %v4715
        %6566 = vmatprep.subr.bf16.mxu0 %v4724
        %6567 = vmatpush1.bf16.msra.mxu0 %v4723
        %6568 = vmatprep.subr.bf16.mxu0 %v4732
        %6569 = vmatpush1.bf16.msra.mxu0 %v4731
        %6570 = vmatprep.mubr.bf16.mxu0 %v380
        %6571 = vmatmul.mubr.bf16.gmra.mrb[0].mxu0 %v379
        %v6572 = vpop.f32.mrb[0].mxu0
        %v6573 = vadd.f32 %v6532, %v6572
        %v6574 = vpop.f32.mrb[0].mxu0
        %v6575 = vadd.f32 %v6534, %v6574
        %v6576 = vpop.f32.mrb[0].mxu0
        %v6577 = vpop.f32.mrb[0].mxu0
        %6578 = vdwg.mxu0
        %6579 = vmatprep.subr.bf16.mxu0 %v4740
        %6580 = vmatpush1.bf16.msra.mxu0 %v4739
        %6581 = vmatprep.subr.bf16.mxu0 %v4748
        %6582 = vmatpush1.bf16.msra.mxu0 %v4747
        %6583 = vmatprep.subr.bf16.mxu0 %v4756
        %6584 = vmatpush1.bf16.msra.mxu0 %v4755
        %6585 = vmatprep.subr.bf16.mxu0 %v4764
        %6586 = vmatpush1.bf16.msra.mxu0 %v4763
        %6587 = vmatprep.subr.bf16.mxu0 %v4772
        %6588 = vmatpush1.bf16.msra.mxu0 %v4771
        %6589 = vmatprep.subr.bf16.mxu0 %v4780
        %6590 = vmatpush1.bf16.msra.mxu0 %v4779
        %6591 = vmatprep.subr.bf16.mxu0 %v4788
        %6592 = vmatpush1.bf16.msra.mxu0 %v4787
        %6593 = vmatprep.subr.bf16.mxu0 %v4796
        %6594 = vmatpush1.bf16.msra.mxu0 %v4795
        %6595 = vmatprep.subr.bf16.mxu0 %v4804
        %6596 = vmatpush1.bf16.msra.mxu0 %v4803
        %6597 = vmatprep.subr.bf16.mxu0 %v4812
        %6598 = vmatpush1.bf16.msra.mxu0 %v4811
        %6599 = vmatprep.subr.bf16.mxu0 %v4820
        %6600 = vmatpush1.bf16.msra.mxu0 %v4819
        %6601 = vmatprep.subr.bf16.mxu0 %v4828
        %6602 = vmatpush1.bf16.msra.mxu0 %v4827
        %6603 = vmatprep.subr.bf16.mxu0 %v4836
        %6604 = vmatpush1.bf16.msra.mxu0 %v4835
        %6605 = vmatprep.subr.bf16.mxu0 %v4844
        %6606 = vmatpush1.bf16.msra.mxu0 %v4843
        %6607 = vmatprep.subr.bf16.mxu0 %v4852
        %6608 = vmatpush1.bf16.msra.mxu0 %v4851
        %6609 = vmatprep.subr.bf16.mxu0 %v4860
        %6610 = vmatpush1.bf16.msra.mxu0 %v4859
        %6611 = vmatprep.mubr.bf16.mxu0 %v382
        %6612 = vmatmul.mubr.bf16.gmra.mrb[0].mxu0 %v381
        %v6613 = vpop.f32.mrb[0].mxu0
        %v6614 = vadd.f32 %v6573, %v6613
        %v6615 = vpop.f32.mrb[0].mxu0
        %v6616 = vadd.f32 %v6575, %v6615
        %v6617 = vpop.f32.mrb[0].mxu0
        %v6618 = vpop.f32.mrb[0].mxu0
        %6619 = vdwg.mxu0
        %6620 = vmatprep.subr.bf16.mxu0 %v3974
        %6621 = vmatpush1.bf16.msra.mxu0 %v3973
        %6622 = vmatprep.subr.bf16.mxu0 %v3982
        %6623 = vmatpush1.bf16.msra.mxu0 %v3981
        %6624 = vmatprep.subr.bf16.mxu0 %v3990
        %6625 = vmatpush1.bf16.msra.mxu0 %v3989
        %6626 = vmatprep.subr.bf16.mxu0 %v3998
        %6627 = vmatpush1.bf16.msra.mxu0 %v3997
        %6628 = vmatprep.subr.bf16.mxu0 %v4006
        %6629 = vmatpush1.bf16.msra.mxu0 %v4005
        %6630 = vmatprep.subr.bf16.mxu0 %v4014
        %6631 = vmatpush1.bf16.msra.mxu0 %v4013
        %6632 = vmatprep.subr.bf16.mxu0 %v4022
        %6633 = vmatpush1.bf16.msra.mxu0 %v4021
        %6634 = vmatprep.subr.bf16.mxu0 %v4030
        %6635 = vmatpush1.bf16.msra.mxu0 %v4029
        %6636 = vmatprep.subr.bf16.mxu0 %v4038
        %6637 = vmatpush1.bf16.msra.mxu0 %v4037
        %6638 = vmatprep.subr.bf16.mxu0 %v4046
        %6639 = vmatpush1.bf16.msra.mxu0 %v4045
        %6640 = vmatprep.subr.bf16.mxu0 %v4054
        %6641 = vmatpush1.bf16.msra.mxu0 %v4053
        %6642 = vmatprep.subr.bf16.mxu0 %v4062
        %6643 = vmatpush1.bf16.msra.mxu0 %v4061
        %6644 = vmatprep.subr.bf16.mxu0 %v4070
        %6645 = vmatpush1.bf16.msra.mxu0 %v4069
        %6646 = vmatprep.subr.bf16.mxu0 %v4078
        %6647 = vmatpush1.bf16.msra.mxu0 %v4077
        %6648 = vmatprep.subr.bf16.mxu0 %v4086
        %6649 = vmatpush1.bf16.msra.mxu0 %v4085
        %6650 = vmatprep.subr.bf16.mxu0 %v4094
        %6651 = vmatpush1.bf16.msra.mxu0 %v4093
        %6652 = vmatprep.mubr.bf16.mxu0 %v370
        %6653 = vmatmul.mubr.bf16.gmra.mrb[0].mxu0 %v369
        %v6654 = vpop.f32.mrb[0].mxu0
        %v6655 = vadd.f32 0.0, %v6654
        %v6656 = vpop.f32.mrb[0].mxu0
        %v6657 = vadd.f32 0.0, %v6656
        %v6658 = vpop.f32.mrb[0].mxu0
        %v6659 = vpop.f32.mrb[0].mxu0
        %6660 = vdwg.mxu0
        %6661 = vmatprep.subr.bf16.mxu0 %v4102
        %6662 = vmatpush1.bf16.msra.mxu0 %v4101
        %6663 = vmatprep.subr.bf16.mxu0 %v4110
        %6664 = vmatpush1.bf16.msra.mxu0 %v4109
        %6665 = vmatprep.subr.bf16.mxu0 %v4118
        %6666 = vmatpush1.bf16.msra.mxu0 %v4117
        %6667 = vmatprep.subr.bf16.mxu0 %v4126
        %6668 = vmatpush1.bf16.msra.mxu0 %v4125
        %6669 = vmatprep.subr.bf16.mxu0 %v4134
        %6670 = vmatpush1.bf16.msra.mxu0 %v4133
        %6671 = vmatprep.subr.bf16.mxu0 %v4142
        %6672 = vmatpush1.bf16.msra.mxu0 %v4141
        %6673 = vmatprep.subr.bf16.mxu0 %v4150
        %6674 = vmatpush1.bf16.msra.mxu0 %v4149
        %6675 = vmatprep.subr.bf16.mxu0 %v4158
        %6676 = vmatpush1.bf16.msra.mxu0 %v4157
        %6677 = vmatprep.subr.bf16.mxu0 %v4166
        %6678 = vmatpush1.bf16.msra.mxu0 %v4165
        %6679 = vmatprep.subr.bf16.mxu0 %v4174
        %6680 = vmatpush1.bf16.msra.mxu0 %v4173
        %6681 = vmatprep.subr.bf16.mxu0 %v4182
        %6682 = vmatpush1.bf16.msra.mxu0 %v4181
        %6683 = vmatprep.subr.bf16.mxu0 %v4190
        %6684 = vmatpush1.bf16.msra.mxu0 %v4189
        %6685 = vmatprep.subr.bf16.mxu0 %v4198
        %6686 = vmatpush1.bf16.msra.mxu0 %v4197
        %6687 = vmatprep.subr.bf16.mxu0 %v4206
        %6688 = vmatpush1.bf16.msra.mxu0 %v4205
        %6689 = vmatprep.subr.bf16.mxu0 %v4214
        %6690 = vmatpush1.bf16.msra.mxu0 %v4213
        %6691 = vmatprep.subr.bf16.mxu0 %v4222
        %6692 = vmatpush1.bf16.msra.mxu0 %v4221
        %6693 = vmatprep.mubr.bf16.mxu0 %v372
        %6694 = vmatmul.mubr.bf16.gmra.mrb[0].mxu0 %v371
        %v6695 = vpop.f32.mrb[0].mxu0
        %v6696 = vadd.f32 %v6655, %v6695
        %v6697 = vpop.f32.mrb[0].mxu0
        %v6698 = vadd.f32 %v6657, %v6697
        %v6699 = vpop.f32.mrb[0].mxu0
        %v6700 = vpop.f32.mrb[0].mxu0
        %6701 = vdwg.mxu0
        %6702 = vmatprep.subr.bf16.mxu0 %v4230
        %6703 = vmatpush1.bf16.msra.mxu0 %v4229
        %6704 = vmatprep.subr.bf16.mxu0 %v4238
        %6705 = vmatpush1.bf16.msra.mxu0 %v4237
        %6706 = vmatprep.subr.bf16.mxu0 %v4246
        %6707 = vmatpush1.bf16.msra.mxu0 %v4245
        %6708 = vmatprep.subr.bf16.mxu0 %v4254
        %6709 = vmatpush1.bf16.msra.mxu0 %v4253
        %6710 = vmatprep.subr.bf16.mxu0 %v4262
        %6711 = vmatpush1.bf16.msra.mxu0 %v4261
        %6712 = vmatprep.subr.bf16.mxu0 %v4270
        %6713 = vmatpush1.bf16.msra.mxu0 %v4269
        %6714 = vmatprep.subr.bf16.mxu0 %v4278
        %6715 = vmatpush1.bf16.msra.mxu0 %v4277
        %6716 = vmatprep.subr.bf16.mxu0 %v4286
        %6717 = vmatpush1.bf16.msra.mxu0 %v4285
        %6718 = vmatprep.subr.bf16.mxu0 %v4294
        %6719 = vmatpush1.bf16.msra.mxu0 %v4293
        %6720 = vmatprep.subr.bf16.mxu0 %v4302
        %6721 = vmatpush1.bf16.msra.mxu0 %v4301
        %6722 = vmatprep.subr.bf16.mxu0 %v4310
        %6723 = vmatpush1.bf16.msra.mxu0 %v4309
        %6724 = vmatprep.subr.bf16.mxu0 %v4318
        %6725 = vmatpush1.bf16.msra.mxu0 %v4317
        %6726 = vmatprep.subr.bf16.mxu0 %v4326
        %6727 = vmatpush1.bf16.msra.mxu0 %v4325
        %6728 = vmatprep.subr.bf16.mxu0 %v4334
        %6729 = vmatpush1.bf16.msra.mxu0 %v4333
        %6730 = vmatprep.subr.bf16.mxu0 %v4342
        %6731 = vmatpush1.bf16.msra.mxu0 %v4341
        %6732 = vmatprep.subr.bf16.mxu0 %v4350
        %6733 = vmatpush1.bf16.msra.mxu0 %v4349
        %6734 = vmatprep.mubr.bf16.mxu0 %v374
        %6735 = vmatmul.mubr.bf16.gmra.mrb[0].mxu0 %v373
        %v6736 = vpop.f32.mrb[0].mxu0
        %v6737 = vadd.f32 %v6696, %v6736
        %v6738 = vpop.f32.mrb[0].mxu0
        %v6739 = vadd.f32 %v6698, %v6738
        %v6740 = vpop.f32.mrb[0].mxu0
        %v6741 = vpop.f32.mrb[0].mxu0
        %6742 = vdwg.mxu0
        %6743 = vmatprep.subr.bf16.mxu0 %v4358
        %6744 = vmatpush1.bf16.msra.mxu0 %v4357
        %6745 = vmatprep.subr.bf16.mxu0 %v4366
        %6746 = vmatpush1.bf16.msra.mxu0 %v4365
        %6747 = vmatprep.subr.bf16.mxu0 %v4374
        %6748 = vmatpush1.bf16.msra.mxu0 %v4373
        %6749 = vmatprep.subr.bf16.mxu0 %v4382
        %6750 = vmatpush1.bf16.msra.mxu0 %v4381
        %6751 = vmatprep.subr.bf16.mxu0 %v4390
        %6752 = vmatpush1.bf16.msra.mxu0 %v4389
        %6753 = vmatprep.subr.bf16.mxu0 %v4398
        %6754 = vmatpush1.bf16.msra.mxu0 %v4397
        %6755 = vmatprep.subr.bf16.mxu0 %v4406
        %6756 = vmatpush1.bf16.msra.mxu0 %v4405
        %6757 = vmatprep.subr.bf16.mxu0 %v4414
        %6758 = vmatpush1.bf16.msra.mxu0 %v4413
        %6759 = vmatprep.subr.bf16.mxu0 %v4422
        %6760 = vmatpush1.bf16.msra.mxu0 %v4421
        %6761 = vmatprep.subr.bf16.mxu0 %v4430
        %6762 = vmatpush1.bf16.msra.mxu0 %v4429
        %6763 = vmatprep.subr.bf16.mxu0 %v4438
        %6764 = vmatpush1.bf16.msra.mxu0 %v4437
        %6765 = vmatprep.subr.bf16.mxu0 %v4446
        %6766 = vmatpush1.bf16.msra.mxu0 %v4445
        %6767 = vmatprep.subr.bf16.mxu0 %v4454
        %6768 = vmatpush1.bf16.msra.mxu0 %v4453
        %6769 = vmatprep.subr.bf16.mxu0 %v4462
        %6770 = vmatpush1.bf16.msra.mxu0 %v4461
        %6771 = vmatprep.subr.bf16.mxu0 %v4470
        %6772 = vmatpush1.bf16.msra.mxu0 %v4469
        %6773 = vmatprep.subr.bf16.mxu0 %v4478
        %6774 = vmatpush1.bf16.msra.mxu0 %v4477
        %6775 = vmatprep.mubr.bf16.mxu0 %v376
        %6776 = vmatmul.mubr.bf16.gmra.mrb[0].mxu0 %v375
        %v6777 = vpop.f32.mrb[0].mxu0
        %v6778 = vadd.f32 %v6737, %v6777
        %v6779 = vpop.f32.mrb[0].mxu0
        %v6780 = vadd.f32 %v6739, %v6779
        %v6781 = vpop.f32.mrb[0].mxu0
        %v6782 = vpop.f32.mrb[0].mxu0
        %6783 = vdwg.mxu0
        %6784 = vmatprep.subr.bf16.mxu0 %v4486
        %6785 = vmatpush1.bf16.msra.mxu0 %v4485
        %6786 = vmatprep.subr.bf16.mxu0 %v4494
        %6787 = vmatpush1.bf16.msra.mxu0 %v4493
        %6788 = vmatprep.subr.bf16.mxu0 %v4502
        %6789 = vmatpush1.bf16.msra.mxu0 %v4501
        %6790 = vmatprep.subr.bf16.mxu0 %v4510
        %6791 = vmatpush1.bf16.msra.mxu0 %v4509
        %6792 = vmatprep.subr.bf16.mxu0 %v4518
        %6793 = vmatpush1.bf16.msra.mxu0 %v4517
        %6794 = vmatprep.subr.bf16.mxu0 %v4526
        %6795 = vmatpush1.bf16.msra.mxu0 %v4525
        %6796 = vmatprep.subr.bf16.mxu0 %v4534
        %6797 = vmatpush1.bf16.msra.mxu0 %v4533
        %6798 = vmatprep.subr.bf16.mxu0 %v4542
        %6799 = vmatpush1.bf16.msra.mxu0 %v4541
        %6800 = vmatprep.subr.bf16.mxu0 %v4550
        %6801 = vmatpush1.bf16.msra.mxu0 %v4549
        %6802 = vmatprep.subr.bf16.mxu0 %v4558
        %6803 = vmatpush1.bf16.msra.mxu0 %v4557
        %6804 = vmatprep.subr.bf16.mxu0 %v4566
        %6805 = vmatpush1.bf16.msra.mxu0 %v4565
        %6806 = vmatprep.subr.bf16.mxu0 %v4574
        %6807 = vmatpush1.bf16.msra.mxu0 %v4573
        %6808 = vmatprep.subr.bf16.mxu0 %v4582
        %6809 = vmatpush1.bf16.msra.mxu0 %v4581
        %6810 = vmatprep.subr.bf16.mxu0 %v4590
        %6811 = vmatpush1.bf16.msra.mxu0 %v4589
        %6812 = vmatprep.subr.bf16.mxu0 %v4598
        %6813 = vmatpush1.bf16.msra.mxu0 %v4597
        %6814 = vmatprep.subr.bf16.mxu0 %v4606
        %6815 = vmatpush1.bf16.msra.mxu0 %v4605
        %6816 = vmatprep.mubr.bf16.mxu0 %v378
        %6817 = vmatmul.mubr.bf16.gmra.mrb[0].mxu0 %v377
        %v6818 = vpop.f32.mrb[0].mxu0
        %v6819 = vadd.f32 %v6778, %v6818
        %v6820 = vpop.f32.mrb[0].mxu0
        %v6821 = vadd.f32 %v6780, %v6820
        %v6822 = vpop.f32.mrb[0].mxu0
        %v6823 = vpop.f32.mrb[0].mxu0
        %6824 = vdwg.mxu0
        %6825 = vmatprep.subr.bf16.mxu0 %v4614
        %6826 = vmatpush1.bf16.msra.mxu0 %v4613
        %6827 = vmatprep.subr.bf16.mxu0 %v4622
        %6828 = vmatpush1.bf16.msra.mxu0 %v4621
        %6829 = vmatprep.subr.bf16.mxu0 %v4630
        %6830 = vmatpush1.bf16.msra.mxu0 %v4629
        %6831 = vmatprep.subr.bf16.mxu0 %v4638
        %6832 = vmatpush1.bf16.msra.mxu0 %v4637
        %6833 = vmatprep.subr.bf16.mxu0 %v4646
        %6834 = vmatpush1.bf16.msra.mxu0 %v4645
        %6835 = vmatprep.subr.bf16.mxu0 %v4654
        %6836 = vmatpush1.bf16.msra.mxu0 %v4653
        %6837 = vmatprep.subr.bf16.mxu0 %v4662
        %6838 = vmatpush1.bf16.msra.mxu0 %v4661
        %6839 = vmatprep.subr.bf16.mxu0 %v4670
        %6840 = vmatpush1.bf16.msra.mxu0 %v4669
        %6841 = vmatprep.subr.bf16.mxu0 %v4678
        %6842 = vmatpush1.bf16.msra.mxu0 %v4677
        %6843 = vmatprep.subr.bf16.mxu0 %v4686
        %6844 = vmatpush1.bf16.msra.mxu0 %v4685
        %6845 = vmatprep.subr.bf16.mxu0 %v4694
        %6846 = vmatpush1.bf16.msra.mxu0 %v4693
        %6847 = vmatprep.subr.bf16.mxu0 %v4702
        %6848 = vmatpush1.bf16.msra.mxu0 %v4701
        %6849 = vmatprep.subr.bf16.mxu0 %v4710
        %6850 = vmatpush1.bf16.msra.mxu0 %v4709
        %6851 = vmatprep.subr.bf16.mxu0 %v4718
        %6852 = vmatpush1.bf16.msra.mxu0 %v4717
        %6853 = vmatprep.subr.bf16.mxu0 %v4726
        %6854 = vmatpush1.bf16.msra.mxu0 %v4725
        %6855 = vmatprep.subr.bf16.mxu0 %v4734
        %6856 = vmatpush1.bf16.msra.mxu0 %v4733
        %6857 = vmatprep.mubr.bf16.mxu0 %v380
        %6858 = vmatmul.mubr.bf16.gmra.mrb[0].mxu0 %v379
        %v6859 = vpop.f32.mrb[0].mxu0
        %v6860 = vadd.f32 %v6819, %v6859
        %v6861 = vpop.f32.mrb[0].mxu0
        %v6862 = vadd.f32 %v6821, %v6861
        %v6863 = vpop.f32.mrb[0].mxu0
        %v6864 = vpop.f32.mrb[0].mxu0
        %6865 = vdwg.mxu0
        %6866 = vmatprep.subr.bf16.mxu0 %v4742
        %6867 = vmatpush1.bf16.msra.mxu0 %v4741
        %6868 = vmatprep.subr.bf16.mxu0 %v4750
        %6869 = vmatpush1.bf16.msra.mxu0 %v4749
        %6870 = vmatprep.subr.bf16.mxu0 %v4758
        %6871 = vmatpush1.bf16.msra.mxu0 %v4757
        %6872 = vmatprep.subr.bf16.mxu0 %v4766
        %6873 = vmatpush1.bf16.msra.mxu0 %v4765
        %6874 = vmatprep.subr.bf16.mxu0 %v4774
        %6875 = vmatpush1.bf16.msra.mxu0 %v4773
        %6876 = vmatprep.subr.bf16.mxu0 %v4782
        %6877 = vmatpush1.bf16.msra.mxu0 %v4781
        %6878 = vmatprep.subr.bf16.mxu0 %v4790
        %6879 = vmatpush1.bf16.msra.mxu0 %v4789
        %6880 = vmatprep.subr.bf16.mxu0 %v4798
        %6881 = vmatpush1.bf16.msra.mxu0 %v4797
        %6882 = vmatprep.subr.bf16.mxu0 %v4806
        %6883 = vmatpush1.bf16.msra.mxu0 %v4805
        %6884 = vmatprep.subr.bf16.mxu0 %v4814
        %6885 = vmatpush1.bf16.msra.mxu0 %v4813
        %6886 = vmatprep.subr.bf16.mxu0 %v4822
        %6887 = vmatpush1.bf16.msra.mxu0 %v4821
        %6888 = vmatprep.subr.bf16.mxu0 %v4830
        %6889 = vmatpush1.bf16.msra.mxu0 %v4829
        %6890 = vmatprep.subr.bf16.mxu0 %v4838
        %6891 = vmatpush1.bf16.msra.mxu0 %v4837
        %6892 = vmatprep.subr.bf16.mxu0 %v4846
        %6893 = vmatpush1.bf16.msra.mxu0 %v4845
        %6894 = vmatprep.subr.bf16.mxu0 %v4854
        %6895 = vmatpush1.bf16.msra.mxu0 %v4853
        %6896 = vmatprep.subr.bf16.mxu0 %v4862
        %6897 = vmatpush1.bf16.msra.mxu0 %v4861
        %6898 = vmatprep.mubr.bf16.mxu0 %v382
        %6899 = vmatmul.mubr.bf16.gmra.mrb[0].mxu0 %v381
        %v6900 = vpop.f32.mrb[0].mxu0
        %v6901 = vadd.f32 %v6860, %v6900
        %v6902 = vpop.f32.mrb[0].mxu0
        %v6903 = vadd.f32 %v6862, %v6902
        %v6904 = vpop.f32.mrb[0].mxu0
        %v6905 = vpop.f32.mrb[0].mxu0
        %6906 = vdwg.mxu0
        %v6915 = vcombine.low %v6040, %v6042
        %v6916 = vcombine.low %v6327, %v6329
        %v6918 = vunpack.c.l.s4 1983009808
        %v6919 = vunpack.c.0.s8 %v6918
        %v6920 = vlaneseq
        %v6921 = vshrl.u32 %v6920, 7
        %v6922 = vsub.s32 %v6919, %v6921
        %v6923 = vrot.slane %v6915, %v6922
        %v6925 = vunpack.c.l.s4 1983009808
        %v6926 = vunpack.c.0.s8 %v6925
        %v6927 = vlaneseq
        %v6928 = vshrl.u32 %v6927, 7
        %v6929 = vsub.s32 %v6926, %v6928
        %v6930 = vrot.slane %v6916, %v6929
        %v6931 = vcombine.low %v6923, %v6930
        %v6932 = vcombine.low %v6614, %v6616
        %v6933 = vcombine.low %v6901, %v6903
        %v6935 = vunpack.c.l.s4 1983009808
        %v6936 = vunpack.c.0.s8 %v6935
        %v6937 = vlaneseq
        %v6938 = vshrl.u32 %v6937, 7
        %v6939 = vsub.s32 %v6936, %v6938
        %v6940 = vrot.slane %v6932, %v6939
        %v6942 = vunpack.c.l.s4 1983009808
        %v6943 = vunpack.c.0.s8 %v6942
        %v6944 = vlaneseq
        %v6945 = vshrl.u32 %v6944, 7
        %v6946 = vsub.s32 %v6943, %v6945
        %v6947 = vrot.slane %v6933, %v6946
        %v6948 = vcombine.low %v6940, %v6947
        %v6951 = vadd.f32 %v286, %v6931
        %v6952 = vadd.f32 %v287, %v6948
        %6953 = vst [vmem:[#allocation2] sm:$0xff] %v6951
        %6954 = vst [vmem:[#allocation2 + $0x8] sm:$0xff] %v6952
        %p6955 = scmp.eq.s32.totalorder %s21, 2
        // Predicated region
        $region57: #{cnn2d_forward.3} parent=39 // pred_check
          %p6956 = pneg %p6955
        $region58: #{cnn2d_forward.3} parent=39 // pred_check_branch
          %6958 = sbr.rel (%p6956) target = $region60
        $region59: #{cnn2d_forward.3} parent=39 // pred_region
          %v6959 = vld [vmem:[#allocation2] sm:$0xff]
          %v6960 = vld [vmem:[#allocation2 + $0x8] sm:$0xff]
          %v6961 = vld [vmem:[#allocation6] sm:$0xff]
          %v6963 = vlaneseq
          %v6964 = vshrl.u32 %v6963, 7
          %v6965 = vsub.s32 0, %v6964
          %v6966 = vrot.slane %v6961, %v6965
          %v6967 = vlaneseq
          %v6968 = vshrl.u32 %v6967, 7
          %v6969 = vsub.s32 1, %v6968
          %v6970 = vrot.slane %v6961, %v6969
          %v6971 = vlaneseq
          %v6972 = vshrl.u32 %v6971, 7
          %v6973 = vsub.s32 2, %v6972
          %v6974 = vrot.slane %v6961, %v6973
          %v6975 = vlaneseq
          %v6976 = vshrl.u32 %v6975, 7
          %v6977 = vsub.s32 3, %v6976
          %v6978 = vrot.slane %v6961, %v6977
          %v6979 = vlaneseq
          %v6980 = vshrl.u32 %v6979, 7
          %v6981 = vsub.s32 4, %v6980
          %v6982 = vrot.slane %v6961, %v6981
          %v6983 = vlaneseq
          %v6984 = vshrl.u32 %v6983, 7
          %v6985 = vsub.s32 5, %v6984
          %v6986 = vrot.slane %v6961, %v6985
          %v6987 = vlaneseq
          %v6988 = vshrl.u32 %v6987, 7
          %v6989 = vsub.s32 6, %v6988
          %v6990 = vrot.slane %v6961, %v6989
          %v6991 = vlaneseq
          %v6992 = vshrl.u32 %v6991, 7
          %v6993 = vsub.s32 7, %v6992
          %v6994 = vrot.slane %v6961, %v6993
          %v6995 = vcombine.low %v6966, %v6970
          %v6996 = vcombine.low %v6974, %v6978
          %v6998 = vunpack.c.l.s4 1983009808
          %v6999 = vunpack.c.0.s8 %v6998
          %v7000 = vlaneseq
          %v7001 = vshrl.u32 %v7000, 7
          %v7002 = vsub.s32 %v6999, %v7001
          %v7003 = vrot.slane %v6995, %v7002
          %v7005 = vunpack.c.l.s4 1983009808
          %v7006 = vunpack.c.0.s8 %v7005
          %v7007 = vlaneseq
          %v7008 = vshrl.u32 %v7007, 7
          %v7009 = vsub.s32 %v7006, %v7008
          %v7010 = vrot.slane %v6996, %v7009
          %v7011 = vcombine.low %v7003, %v7010
          %v7012 = vcombine.low %v6982, %v6986
          %v7013 = vcombine.low %v6990, %v6994
          %v7015 = vunpack.c.l.s4 1983009808
          %v7016 = vunpack.c.0.s8 %v7015
          %v7017 = vlaneseq
          %v7018 = vshrl.u32 %v7017, 7
          %v7019 = vsub.s32 %v7016, %v7018
          %v7020 = vrot.slane %v7012, %v7019
          %v7022 = vunpack.c.l.s4 1983009808
          %v7023 = vunpack.c.0.s8 %v7022
          %v7024 = vlaneseq
          %v7025 = vshrl.u32 %v7024, 7
          %v7026 = vsub.s32 %v7023, %v7025
          %v7027 = vrot.slane %v7013, %v7026
          %v7028 = vcombine.low %v7020, %v7027
          %v7031 = vadd.f32 %v6959, %v7011
          %v7032 = vadd.f32 %v6960, %v7028
          %v7033 = vmax.f32 %v7031, 0.0
          %v7034 = vmax.f32 %v7032, 0.0
          %v7035 = vld [vmem:[%s3] sm:$0xff]
          %v7036 = vld [vmem:[%s3 + $0x8] sm:$0xff]
          %v7037 = vld [vmem:[%s3 + $0x10] sm:$0xff]
          %v7038 = vld [vmem:[%s3 + $0x18] sm:$0xff]
          %v7039 = vld [vmem:[%s3 + $0x20] sm:$0xff]
          %v7040 = vld [vmem:[%s3 + $0x28] sm:$0xff]
          %v7041 = vld [vmem:[%s3 + $0x30] sm:$0xff]
          %v7042 = vld [vmem:[%s3 + $0x38] sm:$0xff]
          %v7043 = vld [vmem:[%s3 + $0x40] sm:$0xff]
          %v7044 = vld [vmem:[%s3 + $0x48] sm:$0xff]
          %v7045 = vld [vmem:[%s3 + $0x50] sm:$0xff]
          %v7046 = vld [vmem:[%s3 + $0x58] sm:$0xff]
          %v7047 = vld [vmem:[%s3 + $0x60] sm:$0xff]
          %v7048 = vld [vmem:[%s3 + $0x68] sm:$0xff]
          %v7049 = vld [vmem:[%s3 + $0x70] sm:$0xff]
          %v7050 = vld [vmem:[%s3 + $0x78] sm:$0xff]
          %v7051 = vld [vmem:[%s3 + $0x80] sm:$0xff]
          %v7052 = vld [vmem:[%s3 + $0x88] sm:$0xff]
          %v7053 = vld [vmem:[%s3 + $0x90] sm:$0xff]
          %v7054 = vld [vmem:[%s3 + $0x98] sm:$0xff]
          %v7055 = vld [vmem:[%s3 + $0xa0] sm:$0xff]
          %v7056 = vld [vmem:[%s3 + $0xa8] sm:$0xff]
          %v7057 = vld [vmem:[%s3 + $0xb0] sm:$0xff]
          %v7058 = vld [vmem:[%s3 + $0xb8] sm:$0xff]
          %v7059 = vld [vmem:[%s3 + $0xc0] sm:$0xff]
          %v7060 = vld [vmem:[%s3 + $0xc8] sm:$0xff]
          %v7061 = vld [vmem:[%s3 + $0xd0] sm:$0xff]
          %v7062 = vld [vmem:[%s3 + $0xd8] sm:$0xff]
          %v7063 = vld [vmem:[%s3 + $0xe0] sm:$0xff]
          %v7064 = vld [vmem:[%s3 + $0xe8] sm:$0xff]
          %v7065 = vld [vmem:[%s3 + $0xf0] sm:$0xff]
          %v7066 = vld [vmem:[%s3 + $0xf8] sm:$0xff]
          %v7067 = vld [vmem:[%s3 + $0x100] sm:$0xff]
          %v7068 = vld [vmem:[%s3 + $0x108] sm:$0xff]
          %v7069 = vld [vmem:[%s3 + $0x110] sm:$0xff]
          %v7070 = vld [vmem:[%s3 + $0x118] sm:$0xff]
          %v7071 = vld [vmem:[%s3 + $0x120] sm:$0xff]
          %v7072 = vld [vmem:[%s3 + $0x128] sm:$0xff]
          %v7073 = vld [vmem:[%s3 + $0x130] sm:$0xff]
          %v7074 = vld [vmem:[%s3 + $0x138] sm:$0xff]
          %v7075 = vld [vmem:[%s3 + $0x140] sm:$0xff]
          %v7076 = vld [vmem:[%s3 + $0x148] sm:$0xff]
          %v7077 = vld [vmem:[%s3 + $0x150] sm:$0xff]
          %v7078 = vld [vmem:[%s3 + $0x158] sm:$0xff]
          %v7079 = vld [vmem:[%s3 + $0x160] sm:$0xff]
          %v7080 = vld [vmem:[%s3 + $0x168] sm:$0xff]
          %v7081 = vld [vmem:[%s3 + $0x170] sm:$0xff]
          %v7082 = vld [vmem:[%s3 + $0x178] sm:$0xff]
          %v7083 = vld [vmem:[%s3 + $0x180] sm:$0xff]
          %v7084 = vld [vmem:[%s3 + $0x188] sm:$0xff]
          %v7085 = vld [vmem:[%s3 + $0x190] sm:$0xff]
          %v7086 = vld [vmem:[%s3 + $0x198] sm:$0xff]
          %v7087 = vld [vmem:[%s3 + $0x1a0] sm:$0xff]
          %v7088 = vld [vmem:[%s3 + $0x1a8] sm:$0xff]
          %v7089 = vld [vmem:[%s3 + $0x1b0] sm:$0xff]
          %v7090 = vld [vmem:[%s3 + $0x1b8] sm:$0xff]
          %v7091 = vld [vmem:[%s3 + $0x1c0] sm:$0xff]
          %v7092 = vld [vmem:[%s3 + $0x1c8] sm:$0xff]
          %v7093 = vld [vmem:[%s3 + $0x1d0] sm:$0xff]
          %v7094 = vld [vmem:[%s3 + $0x1d8] sm:$0xff]
          %v7095 = vld [vmem:[%s3 + $0x1e0] sm:$0xff]
          %v7096 = vld [vmem:[%s3 + $0x1e8] sm:$0xff]
          %v7097 = vld [vmem:[%s3 + $0x1f0] sm:$0xff]
          %v7098 = vld [vmem:[%s3 + $0x1f8] sm:$0xff]
          %v7099 = vld [vmem:[%s3 + $0x200] sm:$0xff]
          %v7100 = vld [vmem:[%s3 + $0x208] sm:$0xff]
          %v7101 = vld [vmem:[%s3 + $0x210] sm:$0xff]
          %v7102 = vld [vmem:[%s3 + $0x218] sm:$0xff]
          %v7103 = vld [vmem:[%s3 + $0x220] sm:$0xff]
          %v7104 = vld [vmem:[%s3 + $0x228] sm:$0xff]
          %v7105 = vld [vmem:[%s3 + $0x230] sm:$0xff]
          %v7106 = vld [vmem:[%s3 + $0x238] sm:$0xff]
          %v7107 = vld [vmem:[%s3 + $0x240] sm:$0xff]
          %v7108 = vld [vmem:[%s3 + $0x248] sm:$0xff]
          %v7109 = vld [vmem:[%s3 + $0x250] sm:$0xff]
          %v7110 = vld [vmem:[%s3 + $0x258] sm:$0xff]
          %v7111 = vld [vmem:[%s3 + $0x260] sm:$0xff]
          %v7112 = vld [vmem:[%s3 + $0x268] sm:$0xff]
          %v7113 = vld [vmem:[%s3 + $0x270] sm:$0xff]
          %v7114 = vld [vmem:[%s3 + $0x278] sm:$0xff]
          %v7115 = vld [vmem:[%s3 + $0x280] sm:$0xff]
          %v7116 = vld [vmem:[%s3 + $0x288] sm:$0xff]
          %v7117 = vld [vmem:[%s3 + $0x290] sm:$0xff]
          %v7118 = vld [vmem:[%s3 + $0x298] sm:$0xff]
          %v7119 = vld [vmem:[%s3 + $0x2a0] sm:$0xff]
          %v7120 = vld [vmem:[%s3 + $0x2a8] sm:$0xff]
          %v7121 = vld [vmem:[%s3 + $0x2b0] sm:$0xff]
          %v7122 = vld [vmem:[%s3 + $0x2b8] sm:$0xff]
          %v7123 = vld [vmem:[%s3 + $0x2c0] sm:$0xff]
          %v7124 = vld [vmem:[%s3 + $0x2c8] sm:$0xff]
          %v7125 = vld [vmem:[%s3 + $0x2d0] sm:$0xff]
          %v7126 = vld [vmem:[%s3 + $0x2d8] sm:$0xff]
          %v7127 = vld [vmem:[%s3 + $0x2e0] sm:$0xff]
          %v7128 = vld [vmem:[%s3 + $0x2e8] sm:$0xff]
          %v7129 = vld [vmem:[%s3 + $0x2f0] sm:$0xff]
          %v7130 = vld [vmem:[%s3 + $0x2f8] sm:$0xff]
          %v7131 = vld [vmem:[%s3 + $0x300] sm:$0xff]
          %v7132 = vld [vmem:[%s3 + $0x308] sm:$0xff]
          %v7133 = vld [vmem:[%s3 + $0x310] sm:$0xff]
          %v7134 = vld [vmem:[%s3 + $0x318] sm:$0xff]
          %v7135 = vld [vmem:[%s3 + $0x320] sm:$0xff]
          %v7136 = vld [vmem:[%s3 + $0x328] sm:$0xff]
          %v7137 = vld [vmem:[%s3 + $0x330] sm:$0xff]
          %v7138 = vld [vmem:[%s3 + $0x338] sm:$0xff]
          %v7139 = vld [vmem:[%s3 + $0x340] sm:$0xff]
          %v7140 = vld [vmem:[%s3 + $0x348] sm:$0xff]
          %v7141 = vld [vmem:[%s3 + $0x350] sm:$0xff]
          %v7142 = vld [vmem:[%s3 + $0x358] sm:$0xff]
          %v7143 = vld [vmem:[%s3 + $0x360] sm:$0xff]
          %v7144 = vld [vmem:[%s3 + $0x368] sm:$0xff]
          %v7145 = vld [vmem:[%s3 + $0x370] sm:$0xff]
          %v7146 = vld [vmem:[%s3 + $0x378] sm:$0xff]
          %v7147 = vld [vmem:[%s3 + $0x380] sm:$0xff]
          %v7148 = vld [vmem:[%s3 + $0x388] sm:$0xff]
          %v7149 = vld [vmem:[%s3 + $0x390] sm:$0xff]
          %v7150 = vld [vmem:[%s3 + $0x398] sm:$0xff]
          %v7151 = vld [vmem:[%s3 + $0x3a0] sm:$0xff]
          %v7152 = vld [vmem:[%s3 + $0x3a8] sm:$0xff]
          %v7153 = vld [vmem:[%s3 + $0x3b0] sm:$0xff]
          %v7154 = vld [vmem:[%s3 + $0x3b8] sm:$0xff]
          %v7155 = vld [vmem:[%s3 + $0x3c0] sm:$0xff]
          %v7156 = vld [vmem:[%s3 + $0x3c8] sm:$0xff]
          %v7157 = vld [vmem:[%s3 + $0x3d0] sm:$0xff]
          %v7158 = vld [vmem:[%s3 + $0x3d8] sm:$0xff]
          %v7159 = vld [vmem:[%s3 + $0x3e0] sm:$0xff]
          %v7160 = vld [vmem:[%s3 + $0x3e8] sm:$0xff]
          %v7161 = vld [vmem:[%s3 + $0x3f0] sm:$0xff]
          %v7162 = vld [vmem:[%s3 + $0x3f8] sm:$0xff]
          %v7163 = vld [vmem:[#allocation8] sm:$0x1]
          %v7165 = vlaneseq
          %v7166 = vshrl.u32 %v7165, 7
          %v7167 = vsub.s32 0, %v7166
          %v7168 = vrot.slane %v7163, %v7167
          %v7172 = vcombine.high %v7033, %v7033
          %v7174 = vunpack.c.l.s4 1983009808
          %v7175 = vunpack.c.0.s8 %v7174
          %v7176 = vlaneseq
          %v7177 = vshrl.u32 %v7176, 7
          %v7178 = vsub.s32 %v7175, %v7177
          %v7179 = vrot.slane %v7033, %v7178
          %v7181 = vunpack.c.l.s4 1983009808
          %v7182 = vunpack.c.0.s8 %v7181
          %v7183 = vlaneseq
          %v7184 = vshrl.u32 %v7183, 7
          %v7185 = vsub.s32 %v7182, %v7184
          %v7186 = vrot.slane %v7172, %v7185
          %v7187 = vcombine.high %v7179, %v7179
          %v7188 = vcombine.high %v7186, %v7186
          %v7189 = vcombine.high %v7034, %v7034
          %v7191 = vunpack.c.l.s4 1983009808
          %v7192 = vunpack.c.0.s8 %v7191
          %v7193 = vlaneseq
          %v7194 = vshrl.u32 %v7193, 7
          %v7195 = vsub.s32 %v7192, %v7194
          %v7196 = vrot.slane %v7034, %v7195
          %v7198 = vunpack.c.l.s4 1983009808
          %v7199 = vunpack.c.0.s8 %v7198
          %v7200 = vlaneseq
          %v7201 = vshrl.u32 %v7200, 7
          %v7202 = vsub.s32 %v7199, %v7201
          %v7203 = vrot.slane %v7189, %v7202
          %v7204 = vcombine.high %v7196, %v7196
          %v7205 = vcombine.high %v7203, %v7203
          %7214 = vmatprep.subr.mxu0 0.0
          %7215 = vmatpush1.msra.mxu0 %v7035
          %7216 = vmatprep.subr.mxu0 0.0
          %7217 = vmatpush1.msra.mxu0 %v7036
          %7218 = vmatprep.subr.mxu0 0.0
          %7219 = vmatpush1.msra.mxu0 %v7037
          %7220 = vmatprep.subr.mxu0 0.0
          %7221 = vmatpush1.msra.mxu0 %v7038
          %7222 = vmatprep.subr.mxu0 0.0
          %7223 = vmatpush1.msra.mxu0 %v7039
          %7224 = vmatprep.subr.mxu0 0.0
          %7225 = vmatpush1.msra.mxu0 %v7040
          %7226 = vmatprep.subr.mxu0 0.0
          %7227 = vmatpush1.msra.mxu0 %v7041
          %7228 = vmatprep.subr.mxu0 0.0
          %7229 = vmatpush1.msra.mxu0 %v7042
          %7230 = vmatprep.subr.mxu0 0.0
          %7231 = vmatpush1.msra.mxu0 %v7043
          %7232 = vmatprep.subr.mxu0 0.0
          %7233 = vmatpush1.msra.mxu0 %v7044
          %7234 = vmatprep.subr.mxu0 0.0
          %7235 = vmatpush1.msra.mxu0 %v7045
          %7236 = vmatprep.subr.mxu0 0.0
          %7237 = vmatpush1.msra.mxu0 %v7046
          %7238 = vmatprep.subr.mxu0 0.0
          %7239 = vmatpush1.msra.mxu0 %v7047
          %7240 = vmatprep.subr.mxu0 0.0
          %7241 = vmatpush1.msra.mxu0 %v7048
          %7242 = vmatprep.subr.mxu0 0.0
          %7243 = vmatpush1.msra.mxu0 %v7049
          %7244 = vmatprep.subr.mxu0 0.0
          %7245 = vmatpush1.msra.mxu0 %v7050
          %7246 = vmatprep.subr.mxu0 0.0
          %7247 = vmatpush1.msra.mxu0 %v7051
          %7248 = vmatprep.subr.mxu0 0.0
          %7249 = vmatpush1.msra.mxu0 %v7052
          %7250 = vmatprep.subr.mxu0 0.0
          %7251 = vmatpush1.msra.mxu0 %v7053
          %7252 = vmatprep.subr.mxu0 0.0
          %7253 = vmatpush1.msra.mxu0 %v7054
          %7254 = vmatprep.subr.mxu0 0.0
          %7255 = vmatpush1.msra.mxu0 %v7055
          %7256 = vmatprep.subr.mxu0 0.0
          %7257 = vmatpush1.msra.mxu0 %v7056
          %7258 = vmatprep.subr.mxu0 0.0
          %7259 = vmatpush1.msra.mxu0 %v7057
          %7260 = vmatprep.subr.mxu0 0.0
          %7261 = vmatpush1.msra.mxu0 %v7058
          %7262 = vmatprep.subr.mxu0 0.0
          %7263 = vmatpush1.msra.mxu0 %v7059
          %7264 = vmatprep.subr.mxu0 0.0
          %7265 = vmatpush1.msra.mxu0 %v7060
          %7266 = vmatprep.subr.mxu0 0.0
          %7267 = vmatpush1.msra.mxu0 %v7061
          %7268 = vmatprep.subr.mxu0 0.0
          %7269 = vmatpush1.msra.mxu0 %v7062
          %7270 = vmatprep.subr.mxu0 0.0
          %7271 = vmatpush1.msra.mxu0 %v7063
          %7272 = vmatprep.subr.mxu0 0.0
          %7273 = vmatpush1.msra.mxu0 %v7064
          %7274 = vmatprep.subr.mxu0 0.0
          %7275 = vmatpush1.msra.mxu0 %v7065
          %7276 = vmatprep.subr.mxu0 0.0
          %7277 = vmatpush1.msra.mxu0 %v7066
          %7278 = vmatprep.mubr.f32.mxu0 %v7187
          %7279 = vmatmul.mubr.f32.gmra.mrb[0].mxu0 %v7179
          %v7280 = vpop.f32.mrb[0].mxu0
          %v7281 = vadd.f32 %v7168, %v7280
          %v7282 = vpop.f32.mrb[0].mxu0
          %7283 = vdwg.mxu0
          %7284 = vmatprep.subr.mxu0 0.0
          %7285 = vmatpush1.msra.mxu0 %v7067
          %7286 = vmatprep.subr.mxu0 0.0
          %7287 = vmatpush1.msra.mxu0 %v7068
          %7288 = vmatprep.subr.mxu0 0.0
          %7289 = vmatpush1.msra.mxu0 %v7069
          %7290 = vmatprep.subr.mxu0 0.0
          %7291 = vmatpush1.msra.mxu0 %v7070
          %7292 = vmatprep.subr.mxu0 0.0
          %7293 = vmatpush1.msra.mxu0 %v7071
          %7294 = vmatprep.subr.mxu0 0.0
          %7295 = vmatpush1.msra.mxu0 %v7072
          %7296 = vmatprep.subr.mxu0 0.0
          %7297 = vmatpush1.msra.mxu0 %v7073
          %7298 = vmatprep.subr.mxu0 0.0
          %7299 = vmatpush1.msra.mxu0 %v7074
          %7300 = vmatprep.subr.mxu0 0.0
          %7301 = vmatpush1.msra.mxu0 %v7075
          %7302 = vmatprep.subr.mxu0 0.0
          %7303 = vmatpush1.msra.mxu0 %v7076
          %7304 = vmatprep.subr.mxu0 0.0
          %7305 = vmatpush1.msra.mxu0 %v7077
          %7306 = vmatprep.subr.mxu0 0.0
          %7307 = vmatpush1.msra.mxu0 %v7078
          %7308 = vmatprep.subr.mxu0 0.0
          %7309 = vmatpush1.msra.mxu0 %v7079
          %7310 = vmatprep.subr.mxu0 0.0
          %7311 = vmatpush1.msra.mxu0 %v7080
          %7312 = vmatprep.subr.mxu0 0.0
          %7313 = vmatpush1.msra.mxu0 %v7081
          %7314 = vmatprep.subr.mxu0 0.0
          %7315 = vmatpush1.msra.mxu0 %v7082
          %7316 = vmatprep.subr.mxu0 0.0
          %7317 = vmatpush1.msra.mxu0 %v7083
          %7318 = vmatprep.subr.mxu0 0.0
          %7319 = vmatpush1.msra.mxu0 %v7084
          %7320 = vmatprep.subr.mxu0 0.0
          %7321 = vmatpush1.msra.mxu0 %v7085
          %7322 = vmatprep.subr.mxu0 0.0
          %7323 = vmatpush1.msra.mxu0 %v7086
          %7324 = vmatprep.subr.mxu0 0.0
          %7325 = vmatpush1.msra.mxu0 %v7087
          %7326 = vmatprep.subr.mxu0 0.0
          %7327 = vmatpush1.msra.mxu0 %v7088
          %7328 = vmatprep.subr.mxu0 0.0
          %7329 = vmatpush1.msra.mxu0 %v7089
          %7330 = vmatprep.subr.mxu0 0.0
          %7331 = vmatpush1.msra.mxu0 %v7090
          %7332 = vmatprep.subr.mxu0 0.0
          %7333 = vmatpush1.msra.mxu0 %v7091
          %7334 = vmatprep.subr.mxu0 0.0
          %7335 = vmatpush1.msra.mxu0 %v7092
          %7336 = vmatprep.subr.mxu0 0.0
          %7337 = vmatpush1.msra.mxu0 %v7093
          %7338 = vmatprep.subr.mxu0 0.0
          %7339 = vmatpush1.msra.mxu0 %v7094
          %7340 = vmatprep.subr.mxu0 0.0
          %7341 = vmatpush1.msra.mxu0 %v7095
          %7342 = vmatprep.subr.mxu0 0.0
          %7343 = vmatpush1.msra.mxu0 %v7096
          %7344 = vmatprep.subr.mxu0 0.0
          %7345 = vmatpush1.msra.mxu0 %v7097
          %7346 = vmatprep.subr.mxu0 0.0
          %7347 = vmatpush1.msra.mxu0 %v7098
          %7348 = vmatprep.mubr.f32.mxu0 %v7188
          %7349 = vmatmul.mubr.f32.gmra.mrb[0].mxu0 %v7186
          %v7350 = vpop.f32.mrb[0].mxu0
          %v7351 = vadd.f32 %v7281, %v7350
          %v7352 = vpop.f32.mrb[0].mxu0
          %7353 = vdwg.mxu0
          %7354 = vmatprep.subr.mxu0 0.0
          %7355 = vmatpush1.msra.mxu0 %v7099
          %7356 = vmatprep.subr.mxu0 0.0
          %7357 = vmatpush1.msra.mxu0 %v7100
          %7358 = vmatprep.subr.mxu0 0.0
          %7359 = vmatpush1.msra.mxu0 %v7101
          %7360 = vmatprep.subr.mxu0 0.0
          %7361 = vmatpush1.msra.mxu0 %v7102
          %7362 = vmatprep.subr.mxu0 0.0
          %7363 = vmatpush1.msra.mxu0 %v7103
          %7364 = vmatprep.subr.mxu0 0.0
          %7365 = vmatpush1.msra.mxu0 %v7104
          %7366 = vmatprep.subr.mxu0 0.0
          %7367 = vmatpush1.msra.mxu0 %v7105
          %7368 = vmatprep.subr.mxu0 0.0
          %7369 = vmatpush1.msra.mxu0 %v7106
          %7370 = vmatprep.subr.mxu0 0.0
          %7371 = vmatpush1.msra.mxu0 %v7107
          %7372 = vmatprep.subr.mxu0 0.0
          %7373 = vmatpush1.msra.mxu0 %v7108
          %7374 = vmatprep.subr.mxu0 0.0
          %7375 = vmatpush1.msra.mxu0 %v7109
          %7376 = vmatprep.subr.mxu0 0.0
          %7377 = vmatpush1.msra.mxu0 %v7110
          %7378 = vmatprep.subr.mxu0 0.0
          %7379 = vmatpush1.msra.mxu0 %v7111
          %7380 = vmatprep.subr.mxu0 0.0
          %7381 = vmatpush1.msra.mxu0 %v7112
          %7382 = vmatprep.subr.mxu0 0.0
          %7383 = vmatpush1.msra.mxu0 %v7113
          %7384 = vmatprep.subr.mxu0 0.0
          %7385 = vmatpush1.msra.mxu0 %v7114
          %7386 = vmatprep.subr.mxu0 0.0
          %7387 = vmatpush1.msra.mxu0 %v7115
          %7388 = vmatprep.subr.mxu0 0.0
          %7389 = vmatpush1.msra.mxu0 %v7116
          %7390 = vmatprep.subr.mxu0 0.0
          %7391 = vmatpush1.msra.mxu0 %v7117
          %7392 = vmatprep.subr.mxu0 0.0
          %7393 = vmatpush1.msra.mxu0 %v7118
          %7394 = vmatprep.subr.mxu0 0.0
          %7395 = vmatpush1.msra.mxu0 %v7119
          %7396 = vmatprep.subr.mxu0 0.0
          %7397 = vmatpush1.msra.mxu0 %v7120
          %7398 = vmatprep.subr.mxu0 0.0
          %7399 = vmatpush1.msra.mxu0 %v7121
          %7400 = vmatprep.subr.mxu0 0.0
          %7401 = vmatpush1.msra.mxu0 %v7122
          %7402 = vmatprep.subr.mxu0 0.0
          %7403 = vmatpush1.msra.mxu0 %v7123
          %7404 = vmatprep.subr.mxu0 0.0
          %7405 = vmatpush1.msra.mxu0 %v7124
          %7406 = vmatprep.subr.mxu0 0.0
          %7407 = vmatpush1.msra.mxu0 %v7125
          %7408 = vmatprep.subr.mxu0 0.0
          %7409 = vmatpush1.msra.mxu0 %v7126
          %7410 = vmatprep.subr.mxu0 0.0
          %7411 = vmatpush1.msra.mxu0 %v7127
          %7412 = vmatprep.subr.mxu0 0.0
          %7413 = vmatpush1.msra.mxu0 %v7128
          %7414 = vmatprep.subr.mxu0 0.0
          %7415 = vmatpush1.msra.mxu0 %v7129
          %7416 = vmatprep.subr.mxu0 0.0
          %7417 = vmatpush1.msra.mxu0 %v7130
          %7418 = vmatprep.mubr.f32.mxu0 %v7204
          %7419 = vmatmul.mubr.f32.gmra.mrb[0].mxu0 %v7196
          %v7420 = vpop.f32.mrb[0].mxu0
          %v7421 = vadd.f32 %v7351, %v7420
          %v7422 = vpop.f32.mrb[0].mxu0
          %7423 = vdwg.mxu0
          %7424 = vmatprep.subr.mxu0 0.0
          %7425 = vmatpush1.msra.mxu0 %v7131
          %7426 = vmatprep.subr.mxu0 0.0
          %7427 = vmatpush1.msra.mxu0 %v7132
          %7428 = vmatprep.subr.mxu0 0.0
          %7429 = vmatpush1.msra.mxu0 %v7133
          %7430 = vmatprep.subr.mxu0 0.0
          %7431 = vmatpush1.msra.mxu0 %v7134
          %7432 = vmatprep.subr.mxu0 0.0
          %7433 = vmatpush1.msra.mxu0 %v7135
          %7434 = vmatprep.subr.mxu0 0.0
          %7435 = vmatpush1.msra.mxu0 %v7136
          %7436 = vmatprep.subr.mxu0 0.0
          %7437 = vmatpush1.msra.mxu0 %v7137
          %7438 = vmatprep.subr.mxu0 0.0
          %7439 = vmatpush1.msra.mxu0 %v7138
          %7440 = vmatprep.subr.mxu0 0.0
          %7441 = vmatpush1.msra.mxu0 %v7139
          %7442 = vmatprep.subr.mxu0 0.0
          %7443 = vmatpush1.msra.mxu0 %v7140
          %7444 = vmatprep.subr.mxu0 0.0
          %7445 = vmatpush1.msra.mxu0 %v7141
          %7446 = vmatprep.subr.mxu0 0.0
          %7447 = vmatpush1.msra.mxu0 %v7142
          %7448 = vmatprep.subr.mxu0 0.0
          %7449 = vmatpush1.msra.mxu0 %v7143
          %7450 = vmatprep.subr.mxu0 0.0
          %7451 = vmatpush1.msra.mxu0 %v7144
          %7452 = vmatprep.subr.mxu0 0.0
          %7453 = vmatpush1.msra.mxu0 %v7145
          %7454 = vmatprep.subr.mxu0 0.0
          %7455 = vmatpush1.msra.mxu0 %v7146
          %7456 = vmatprep.subr.mxu0 0.0
          %7457 = vmatpush1.msra.mxu0 %v7147
          %7458 = vmatprep.subr.mxu0 0.0
          %7459 = vmatpush1.msra.mxu0 %v7148
          %7460 = vmatprep.subr.mxu0 0.0
          %7461 = vmatpush1.msra.mxu0 %v7149
          %7462 = vmatprep.subr.mxu0 0.0
          %7463 = vmatpush1.msra.mxu0 %v7150
          %7464 = vmatprep.subr.mxu0 0.0
          %7465 = vmatpush1.msra.mxu0 %v7151
          %7466 = vmatprep.subr.mxu0 0.0
          %7467 = vmatpush1.msra.mxu0 %v7152
          %7468 = vmatprep.subr.mxu0 0.0
          %7469 = vmatpush1.msra.mxu0 %v7153
          %7470 = vmatprep.subr.mxu0 0.0
          %7471 = vmatpush1.msra.mxu0 %v7154
          %7472 = vmatprep.subr.mxu0 0.0
          %7473 = vmatpush1.msra.mxu0 %v7155
          %7474 = vmatprep.subr.mxu0 0.0
          %7475 = vmatpush1.msra.mxu0 %v7156
          %7476 = vmatprep.subr.mxu0 0.0
          %7477 = vmatpush1.msra.mxu0 %v7157
          %7478 = vmatprep.subr.mxu0 0.0
          %7479 = vmatpush1.msra.mxu0 %v7158
          %7480 = vmatprep.subr.mxu0 0.0
          %7481 = vmatpush1.msra.mxu0 %v7159
          %7482 = vmatprep.subr.mxu0 0.0
          %7483 = vmatpush1.msra.mxu0 %v7160
          %7484 = vmatprep.subr.mxu0 0.0
          %7485 = vmatpush1.msra.mxu0 %v7161
          %7486 = vmatprep.subr.mxu0 0.0
          %7487 = vmatpush1.msra.mxu0 %v7162
          %7488 = vmatprep.mubr.f32.mxu0 %v7205
          %7489 = vmatmul.mubr.f32.gmra.mrb[0].mxu0 %v7203
          %v7490 = vpop.f32.mrb[0].mxu0
          %v7491 = vadd.f32 %v7421, %v7490
          %v7492 = vpop.f32.mrb[0].mxu0
          %7493 = vdwg.mxu0
          %vm7494 = vcmask 25600
          %v7495 = vsel %vm7494, %v7491, -inf
          %7496 = vmax.xlane.f32.xlu0 %v7495
          %v7497 = vpop.xlane.xlu0 %7496
          %v7498 = vsub.f32 %v7491, %v7497
          %v7499 = vmul.f32 %v7498, 1.442695
          %v7500 = vpow.pop %v7499
          %v7501 = vsel %vm7494, %v7500, 0.0
          %7502 = vadd.xlane.f32.xlu0 %v7501
          %v7503 = vpop.xlane.xlu0 %7502
          %v7504 = vlog2.pop %v7503
          %v7505 = vmul.f32 %v7504, 0.6931472
          %v7506 = vsub.f32 %v7498, %v7505
          %7507 = vst.msk [vmem:[#allocation9] sm:$0x3] %vm7494, %v7506
        $region60: #{cnn2d_forward.3} parent=39 // pred_fallthru
          _
        // Predicated region
        $region61: #{cnn2d_forward.3} parent=39 // pred_check
          %p7508 = pneg %p149
        $region62: #{cnn2d_forward.3} parent=39 // pred_check_branch
          %7510 = sbr.rel (%p7508) target = $region64
        $region63: #{cnn2d_forward.3} parent=39 // pred_region
          %s7512 = ssub.s32 32, 32
          %7513 = vsyncadd [#allocation5], %s7512
          %s7515 = sshll.u32 [#allocation9], 4
          %s7516 = int_to_ptr.vmem [resolvable:$true] %s7515
          %7518 = dma.vmem_to_hbm [thread:$0]  %s7516, 32, %s5, [#allocation5]
        $region64: #{cnn2d_forward.3} parent=39 // pred_fallthru
          _
        // Predicated region
        $region65: #{cnn2d_forward.3} parent=39 // pred_check
          %p7519 = pneg %p149
        $region66: #{cnn2d_forward.3} parent=39 // pred_check_branch
          %7521 = sbr.rel (%p7519) target = $region68
        $region67: #{cnn2d_forward.3} parent=39 // pred_region
          %7522 = dma.done [#allocation5], 32
        $region68: #{cnn2d_forward.3} parent=39 // pred_fallthru
          _
      $region40: #{cnn2d_forward.3} parent=5 // pred_fallthru
        _
      %p7523 = scmp.le.s32.totalorder 2, %s16
      // Predicated region
      $region69: #{cnn2d_forward.3} parent=5 // pred_check
        %p7524 = pneg %p7523
      $region70: #{cnn2d_forward.3} parent=5 // pred_check_branch
        %7526 = sbr.rel (%p7524) target = $region72
      $region71: #{cnn2d_forward.3} parent=5 // pred_region
        %s7527 = ssub.s32 %s16, 2
      $region72: #{cnn2d_forward.3} parent=5 // pred_fallthru
        _
    $region6: #{cnn2d_forward.3} parent=1 // loop_footer
      %s20 = sadd.s32 1, %s16
    $region7: #{cnn2d_forward.3} parent=1 // loop_footer_branch
      %15 = sbr.rel target = $region3
    $region8: #{cnn2d_forward.3} parent=1 // loop_exit
      _
    %7528 = vsyncpa [#allocation4], 1
    %s7529 = scalar_lea.sflag [#allocation4], 1
    %7530 = vsyncpa %s7529, 1
    %7531 = vsyncpa [#allocation7], 1
    %7532 = vsyncpa [#allocation5], 1
    %s7533 = scalar_lea.sflag [#allocation5], 1
    %7534 = vsyncpa %s7533, 1

</llo_original>
